<compile_context>
chip_gen: v6e
topology: v6e:2x2x1
jax: 0.10.0
libtpu: 0.0.40
codegen_flags: <defaults>
</compile_context>

<pallas_src>
import functools
import math

import jax
import jax.numpy as jnp
from jax.experimental import pallas as pl
from jax.experimental.pallas import tpu as pltpu


_MM_DTYPE = jnp.bfloat16     # matmul-operand dtype (f32 accumulation everywhere)
_ACT_DTYPE = jnp.bfloat16    # residual-stream dtype in HBM between kernels
_LN_EPS = 1e-5


def _default_vmem_limit():
    # 3/4 of physical VMEM per core, capped at 96 MiB:
    #   v5e/v6e (128 MiB) -> 96 MiB, v7x (64 MiB) -> 48 MiB, fallback -> 48 MiB.
    try:
        cap = pltpu.get_tpu_info().vmem_capacity_bytes
    except Exception:
        cap = 64 * 1024 * 1024
    return int(min(cap * 3 // 4, 96 * 1024 * 1024))


_VMEM_LIMIT = _default_vmem_limit()


def _cparams(n_axes=1):
    return pltpu.CompilerParams(
        dimension_semantics=("parallel",) * n_axes,
        vmem_limit_bytes=_VMEM_LIMIT)


def _row_tile(m, cap=512):
    """Row tile: multiple of 8, <= cap, and chosen so the row grid has >= 2 steps
    whenever possible (keeps both v7x TensorCores busy)."""
    if m <= 8:
        return m
    half = -(-m // 2)            # cdiv(m, 2)
    half = -(-half // 8) * 8     # round up to a multiple of 8
    return min(cap, half)


def _ff_tile(ff, cap=2048):
    """Tile of the FFN hidden dim that divides ff exactly (no padded-block garbage in
    the accumulation) and keeps the (D, tf)/(tf, D) weight blocks VMEM-friendly."""
    if ff <= cap:
        return ff
    for t in (2048, 1024, 512, 256, 128):
        if ff % t == 0:
            return t
    return ff   # TODO(synk): pad ff to a multiple of 128 for exotic sizes


def _col_tile(n, cap=2048):
    return n if n <= cap else cap


# ----------------------------- in-kernel helpers ----------------------------

def _erf(x):
    # Abramowitz & Stegun 7.1.26 polynomial, |err| <= 1.5e-7 — exact-GELU fidelity well
    # below bf16 matmul noise; uses only exp/div/mul/where (all Mosaic-supported).
    p = 0.3275911
    a1, a2, a3, a4, a5 = (0.254829592, -0.284496736, 1.421413741,
                          -1.453152027, 1.061405429)
    ax = jnp.where(x >= 0.0, x, -x)
    t = 1.0 / (1.0 + p * ax)
    poly = ((((a5 * t + a4) * t + a3) * t + a2) * t + a1) * t
    y = 1.0 - poly * jnp.exp(-ax * ax)
    return jnp.where(x >= 0.0, y, -y)


def _gelu_exact(x):
    return 0.5 * x * (1.0 + _erf(x * 0.7071067811865476))


def _ln(x, g, b, eps=_LN_EPS):
    mean = jnp.mean(x, axis=-1, keepdims=True)
    xc = x - mean
    var = jnp.mean(xc * xc, axis=-1, keepdims=True)
    inv = jax.lax.rsqrt(var + eps)
    return xc * inv * g + b


def _attention_core(xq, xkv, wq_ref, bq_ref, wkv_ref, bkv_ref, wo_ref, bo_ref,
                    *, nhead, causal):
    """xq: (Tq, D) f32, xkv: (Tk, D) f32  ->  attention output (Tq, D) f32."""
    tq, d = xq.shape
    tk = xkv.shape[0]
    hd = d // nhead
    scale = 1.0 / math.sqrt(hd)
    mm = wq_ref.dtype

    # fused projections: Q from x_q, packed K|V from x_kv — no HBM round trips
    q = jnp.dot(xq.astype(mm), wq_ref[...],
                preferred_element_type=jnp.float32) + bq_ref[...]
    kv = jnp.dot(xkv.astype(mm), wkv_ref[...],
                 preferred_element_type=jnp.float32) + bkv_ref[...]
    k = kv[:, :d]
    v = kv[:, d:]

    if causal:
        row = jax.lax.broadcasted_iota(jnp.int32, (tq, tk), 0)
        col = jax.lax.broadcasted_iota(jnp.int32, (tq, tk), 1)
        keep = col <= row     # same as additive -inf tgt_mask (diagonal always kept)

    # TODO(synk): head slices are head_dim wide (not 128-lane aligned) and QK^T / P@V
    # contract over K=head_dim; packing heads onto the sublane axis (or 2 heads per MXU
    # pass) would raise MXU depth utilization on v6e/v7x.
    ctx = []
    for h in range(nhead):                              # static unroll over heads
        sl = slice(h * hd, (h + 1) * hd)
        qh = (q[:, sl] * scale).astype(mm)              # fold 1/sqrt(hd) into q
        kh = k[:, sl].astype(mm)
        vh = v[:, sl].astype(mm)
        s = jax.lax.dot_general(qh, kh, (((1,), (1,)), ((), ())),
                                preferred_element_type=jnp.float32)
        if causal:
            s = jnp.where(keep, s, -jnp.inf)
        m = jnp.max(s, axis=-1, keepdims=True)
        p = jnp.exp(s - m)
        p = p * pl.reciprocal(jnp.sum(p, axis=-1, keepdims=True), approx=True)
        ctx.append(jnp.dot(p.astype(mm), vh, preferred_element_type=jnp.float32))

    # single full-K=D output projection (concat layout) instead of per-head folds
    ctx = jnp.concatenate(ctx, axis=-1)                 # (Tq, D)
    attn = jnp.dot(ctx.astype(mm), wo_ref[...],
                   preferred_element_type=jnp.float32) + bo_ref[...]
    return attn


# ----------------------------- Pallas kernels ------------------------------

def _ln_linear_kernel(x_ref, g_ref, b_ref, w_ref, wb_ref, o_ref):
    x = x_ref[...].astype(jnp.float32)
    xn = _ln(x, g_ref[...], b_ref[...])
    acc = jnp.dot(xn.astype(w_ref.dtype), w_ref[...],
                  preferred_element_type=jnp.float32)
    o_ref[...] = (acc + wb_ref[...]).astype(o_ref.dtype)


def _ffn_block_kernel(x_ref, w1_ref, b1_ref, w2_ref, bl2_ref, g_ref, be_ref,
                      *rest, apply_final_ln):
    if apply_final_ln:
        gf_ref, bf_ref, o_ref, acc_ref = rest
    else:
        o_ref, acc_ref = rest
        gf_ref = bf_ref = None

    fi = pl.program_id(1)

    @pl.when(fi == 0)
    def _():
        acc_ref[...] = jnp.zeros_like(acc_ref)

    x = x_ref[...].astype(jnp.float32)                           # (tm, D)
    mm = w1_ref.dtype
    h = jnp.dot(x.astype(mm), w1_ref[...],
                preferred_element_type=jnp.float32) + b1_ref[...]
    h = _gelu_exact(h)                                           # f32 elementwise
    acc_ref[...] += jnp.dot(h.astype(mm), w2_ref[...],
                            preferred_element_type=jnp.float32)

    @pl.when(fi == pl.num_programs(1) - 1)
    def _():
        y = acc_ref[...] + bl2_ref[...]
        out = _ln(x + y, g_ref[...], be_ref[...])                # post-LN of the block
        if apply_final_ln:                                       # fused encoder-final LN
            out = _ln(out, gf_ref[...], bf_ref[...])
        o_ref[...] = out.astype(o_ref.dtype)


def _mha_self_kernel(x_ref, wq_ref, bq_ref, wkv_ref, bkv_ref, wo_ref, bo_ref,
                     g_ref, be_ref, o_ref, *, nhead, causal):
    # single x ref is used for Q and K/V (no duplicate activation DMA)
    x = x_ref[...].astype(jnp.float32)
    attn = _attention_core(x, x, wq_ref, bq_ref, wkv_ref, bkv_ref, wo_ref, bo_ref,
                           nhead=nhead, causal=causal)
    o_ref[...] = _ln(x + attn, g_ref[...], be_ref[...]).astype(o_ref.dtype)


def _mha_cross_kernel(xq_ref, xkv_ref, wq_ref, bq_ref, wkv_ref, bkv_ref, wo_ref,
                      bo_ref, g_ref, be_ref, o_ref, *, nhead):
    xq = xq_ref[...].astype(jnp.float32)      # (tq, D) query tile
    xkv = xkv_ref[...].astype(jnp.float32)    # (Tk, D) full memory (resident across tq)
    attn = _attention_core(xq, xkv, wq_ref, bq_ref, wkv_ref, bkv_ref, wo_ref, bo_ref,
                           nhead=nhead, causal=False)
    o_ref[...] = _ln(xq + attn, g_ref[...], be_ref[...]).astype(o_ref.dtype)


# ----------------------------- kernel wrappers ------------------------------

def ln_linear(x, g, b, w, wb, out_dtype=None):
    """Fused: LayerNorm over last dim, then @ w + wb; tiled over rows and columns."""
    K, N = w.shape
    lead = x.shape[:-1]
    x2 = x.reshape(-1, K)
    M = x2.shape[0]
    tm = _row_tile(M)
    tn = _col_tile(N)
    out_dtype = out_dtype if out_dtype is not None else x.dtype
    vec_k = lambda i, j: (0, 0)
    out = pl.pallas_call(
        _ln_linear_kernel,
        out_shape=jax.ShapeDtypeStruct((M, N), out_dtype),
        grid=(pl.cdiv(M, tm), pl.cdiv(N, tn)),
        in_specs=[pl.BlockSpec((tm, K), lambda i, j: (i, 0)),
                  pl.BlockSpec((1, K), vec_k),
                  pl.BlockSpec((1, K), vec_k),
                  pl.BlockSpec((K, tn), lambda i, j: (0, j)),
                  pl.BlockSpec((1, tn), lambda i, j: (0, j))],
        out_specs=pl.BlockSpec((tm, tn), lambda i, j: (i, j)),
        compiler_params=_cparams(2),
    )(x2, g.reshape(1, K), b.reshape(1, K), w, wb.reshape(1, N))
    return out.reshape(lead + (N,))


def ffn_block(x, lin1, lin2, ln, final_ln=None):
    """Fused: LayerNorm(x + Lin2(GELU(Lin1(x)))) [optionally + a second LayerNorm];
    rows tiled on a parallel axis, the 4*D hidden tiled on a reduction axis."""
    D = x.shape[-1]
    ff = lin1['w'].shape[1]
    lead = x.shape[:-1]
    x2 = x.reshape(-1, D)
    M = x2.shape[0]
    tm = _row_tile(M)
    tf = _ff_tile(ff)
    apply_final = final_ln is not None

    vec = lambda i, f: (0, 0)
    in_specs = [pl.BlockSpec((tm, D), lambda i, f: (i, 0)),
                pl.BlockSpec((D, tf), lambda i, f: (0, f)),
                pl.BlockSpec((1, tf), lambda i, f: (0, f)),
                pl.BlockSpec((tf, D), lambda i, f: (f, 0)),
                pl.BlockSpec((1, D), vec),
                pl.BlockSpec((1, D), vec),
                pl.BlockSpec((1, D), vec)]
    args = [x2, lin1['w'], lin1['b'].reshape(1, ff), lin2['w'],
            lin2['b'].reshape(1, D), ln['g'].reshape(1, D), ln['b'].reshape(1, D)]
    if apply_final:
        in_specs += [pl.BlockSpec((1, D), vec), pl.BlockSpec((1, D), vec)]
        args += [final_ln['g'].reshape(1, D), final_ln['b'].reshape(1, D)]

    out = pl.pallas_call(
        functools.partial(_ffn_block_kernel, apply_final_ln=apply_final),
        out_shape=jax.ShapeDtypeStruct((M, D), _ACT_DTYPE),
        grid=(pl.cdiv(M, tm), pl.cdiv(ff, tf)),
        in_specs=in_specs,
        out_specs=pl.BlockSpec((tm, D), lambda i, f: (i, 0)),
        scratch_shapes=[pltpu.VMEM((tm, D), jnp.float32)],
        compiler_params=pltpu.CompilerParams(
            dimension_semantics=("parallel", "arbitrary"),
            vmem_limit_bytes=_VMEM_LIMIT),
    )(*args)
    return out.reshape(lead + (D,))


def mha_self_block(x, p, ln, nhead, causal):
    """Fused self-attention block: LayerNorm(x + MHA(x, x, x)); grid over batch,
    x passed once (shared Q / K/V ref)."""
    # TODO(synk): for long sequences tile Tq (with a query-row offset in the causal
    # mask) or switch to a blocked online-softmax form.
    B, T, D = x.shape
    kernel = functools.partial(_mha_self_kernel, nhead=nhead, causal=causal)
    vec = lambda i: (0, 0)
    return pl.pallas_call(
        kernel,
        out_shape=jax.ShapeDtypeStruct((B, T, D), _ACT_DTYPE),
        grid=(B,),
        in_specs=[pl.BlockSpec((None, T, D), lambda i: (i, 0, 0)),
                  pl.BlockSpec((D, D), vec),
                  pl.BlockSpec((1, D), vec),
                  pl.BlockSpec((D, 2 * D), vec),
                  pl.BlockSpec((1, 2 * D), vec),
                  pl.BlockSpec((D, D), vec),
                  pl.BlockSpec((1, D), vec),
                  pl.BlockSpec((1, D), vec),
                  pl.BlockSpec((1, D), vec)],
        out_specs=pl.BlockSpec((None, T, D), lambda i: (i, 0, 0)),
        compiler_params=_cparams(1),
    )(x, p['wq'], p['bq'].reshape(1, D), p['wkv'], p['bkv'].reshape(1, 2 * D),
      p['wo'], p['bo'].reshape(1, D), ln['g'].reshape(1, D), ln['b'].reshape(1, D))


def mha_cross_block(x_q, x_kv, p, ln, nhead, tq_cap=256):
    """Fused cross-attention block: LayerNorm(x_q + MHA(x_q, x_kv, x_kv));
    grid over (batch, query tiles), memory kept resident across query tiles."""
    B, Tq, D = x_q.shape
    Tk = x_kv.shape[1]
    tq = Tq if Tq <= tq_cap else tq_cap
    kernel = functools.partial(_mha_cross_kernel, nhead=nhead)
    vec = lambda i, j: (0, 0)
    return pl.pallas_call(
        kernel,
        out_shape=jax.ShapeDtypeStruct((B, Tq, D), _ACT_DTYPE),
        grid=(B, pl.cdiv(Tq, tq)),
        in_specs=[pl.BlockSpec((None, tq, D), lambda i, j: (i, j, 0)),
                  pl.BlockSpec((None, Tk, D), lambda i, j: (i, 0, 0)),
                  pl.BlockSpec((D, D), vec),
                  pl.BlockSpec((1, D), vec),
                  pl.BlockSpec((D, 2 * D), vec),
                  pl.BlockSpec((1, 2 * D), vec),
                  pl.BlockSpec((D, D), vec),
                  pl.BlockSpec((1, D), vec),
                  pl.BlockSpec((1, D), vec),
                  pl.BlockSpec((1, D), vec)],
        out_specs=pl.BlockSpec((None, tq, D), lambda i, j: (i, j, 0)),
        compiler_params=_cparams(2),
    )(x_q, x_kv, p['wq'], p['bq'].reshape(1, D), p['wkv'], p['bkv'].reshape(1, 2 * D),
      p['wo'], p['bo'].reshape(1, D), ln['g'].reshape(1, D), ln['b'].reshape(1, D))


# ----------------------------- model glue ----------------------------------

def cross_entropy(logits, targets, pad_idx):
    V = logits.shape[-1]
    lg = logits.reshape(-1, V)
    t = targets.reshape(-1)
    logz = jax.nn.logsumexp(lg, axis=-1)
    ll = jnp.take_along_axis(lg, t[:, None], axis=-1)[:, 0]
    nll = logz - ll
    mask = (t != pad_idx).astype(lg.dtype)
    return jnp.sum(nll * mask) / jnp.maximum(jnp.sum(mask), 1.0)


def forward(params, cfg, mfcc, src, tgt=None):
    nhead = cfg['nhead']
    n_layer = len(params['enc_layers'])

    # ---- encoder input: LN(mfcc + pos) @ W_dense + b  (fused LN+Linear kernel)
    b, et, em = mfcc.shape
    x = (mfcc + params['e_pos_emb'][:, :et, :]).astype(_ACT_DTYPE)
    x = ln_linear(x, params['ln']['g'], params['ln']['b'],
                  params['dense']['w'], params['dense']['b'], out_dtype=_ACT_DTYPE)

    # ---- decoder input: token embedding gather + positional embedding (XLA gather)
    b, dt = src.shape
    y = (jnp.take(params['tok_emb'], src, axis=0)
         + params['d_pos_emb'][:, :dt, :]).astype(_ACT_DTYPE)

    # ---- encoder stack (post-LN layers); final encoder LN fused into the last FFN
    for li, lp in enumerate(params['enc_layers']):
        x = mha_self_block(x, lp['sa'], lp['ln1'], nhead, causal=False)
        fin = params['enc_norm'] if li == n_layer - 1 else None
        x = ffn_block(x, lp['lin1'], lp['lin2'], lp['ln2'], final_ln=fin)
    memory = x

    # ---- decoder stack (causal self-attn, cross-attn to memory, FFN)
    for lp in params['dec_layers']:
        y = mha_self_block(y, lp['sa'], lp['ln1'], nhead, causal=True)
        y = mha_cross_block(y, memory, lp['ca'], lp['ln2'], nhead)
        y = ffn_block(y, lp['lin1'], lp['lin2'], lp['ln3'])

    # ---- final decoder LayerNorm fused with the (column-tiled) vocab projection
    logits = ln_linear(y, params['dec_norm']['g'], params['dec_norm']['b'],
                       params['out']['w'], params['out']['b'], out_dtype=jnp.float32)

    loss = None
    if tgt is not None:
        # TODO(synk): CE could be fused into the last ln_linear kernel, but the logits
        # must be materialized (returned) anyway, so the reduction stays in XLA here.
        loss = cross_entropy(logits, tgt, cfg['pad_idx'])
    return logits, loss


# ----------------------------- parameter init ------------------------------

def init_params(cfg, key):
    d, nm, v, bs = cfg['d_model'], cfg['n_mel'], cfg['vocab_size'], cfg['block_size']
    ff = 4 * d
    keys = iter(jax.random.split(key, 256))

    def nrm(shape, std=0.02):
        return (std * jax.random.normal(next(keys), shape)).astype(jnp.float32)

    def lin(kin, kout):
        return {'w': nrm((kin, kout)).astype(_MM_DTYPE),
                'b': jnp.zeros((kout,), jnp.float32)}

    def ln(dim):
        return {'g': jnp.ones((dim,), jnp.float32), 'b': jnp.zeros((dim,), jnp.float32)}

    def mha_p():
        return {'wq': nrm((d, d)).astype(_MM_DTYPE),
                'bq': jnp.zeros((d,), jnp.float32),
                'wkv': nrm((d, 2 * d)).astype(_MM_DTYPE),   # packed K|V projection
                'bkv': jnp.zeros((2 * d,), jnp.float32),
                'wo': nrm((d, d)).astype(_MM_DTYPE),
                'bo': jnp.zeros((d,), jnp.float32)}

    def enc_layer():
        return {'sa': mha_p(), 'lin1': lin(d, ff), 'lin2': lin(ff, d),
                'ln1': ln(d), 'ln2': ln(d)}

    def dec_layer():
        return {'sa': mha_p(), 'ca': mha_p(), 'lin1': lin(d, ff), 'lin2': lin(ff, d),
                'ln1': ln(d), 'ln2': ln(d), 'ln3': ln(d)}

    return {
        'e_pos_emb': nrm((1, bs, nm)),
        'd_pos_emb': nrm((1, bs, d)),
        'ln': ln(nm),
        'dense': lin(nm, d),
        'tok_emb': nrm((v, d)),
        'enc_layers': [enc_layer() for _ in range(cfg['n_layer'])],
        'dec_layers': [dec_layer() for _ in range(cfg['n_layer'])],
        'enc_norm': ln(d),
        'dec_norm': ln(d),
        'out': lin(d, v),
    }


# ----------------------------- main -----------------------------------------

if __name__ == "__main__":
    cfg = dict(n_mel=16, d_model=32, n_layer=2, nhead=8,
               vocab_size=40, block_size=32, pad_idx=0)

    key = jax.random.PRNGKey(0)
    pkey, mkey, skey, tkey = jax.random.split(key, 4)
    params = init_params(cfg, pkey)

    B, ET, DT = 2, 16, 8
    mfcc = jax.random.normal(mkey, (B, ET, cfg['n_mel']), dtype=jnp.float32)
    src = jax.random.randint(skey, (B, DT), 1, cfg['vocab_size'])
    tgt = jax.random.randint(tkey, (B, DT), 0, cfg['vocab_size'])

    fwd = jax.jit(lambda p, m, s, t: forward(p, cfg, m, s, t))
    logits, loss = fwd(params, mfcc, src, tgt)
    jax.block_until_ready((logits, loss))

    assert logits.shape == (B, DT, cfg['vocab_size'])
    assert logits.dtype == jnp.float32
    assert jnp.isfinite(loss)
    print("KERNEL_OK")
</pallas_src>

<mosaic_0001>
module attributes {stable_mosaic.version = 11 : i64} {
  func.func @_ln_linear_kernel(%arg0: i32, %arg1: i32, %arg2: memref<16x16xbf16, #tpu.memory_space<vmem>>, %arg3: memref<1x16xf32, #tpu.memory_space<vmem>>, %arg4: memref<1x16xf32, #tpu.memory_space<vmem>>, %arg5: memref<16x32xbf16, #tpu.memory_space<vmem>>, %arg6: memref<1x32xf32, #tpu.memory_space<vmem>>, %arg7: memref<16x32xbf16, #tpu.memory_space<vmem>>) attributes {dimension_semantics = [#tpu.dimension_semantics<parallel>, #tpu.dimension_semantics<parallel>], iteration_bounds = array<i64: 2, 1>, scalar_prefetch = 0 : i64, scratch_operands = 0 : i64, tpu.core_type = #tpu.core_type<tc>, window_params = [{transform_indices = @transform_0, window_bounds = array<i64: 16, 16>}, {pipeline_mode = #tpu.pipeline_mode<synchronous>, transform_indices = @transform_1, window_bounds = array<i64: 1, 16>}, {pipeline_mode = #tpu.pipeline_mode<synchronous>, transform_indices = @transform_2, window_bounds = array<i64: 1, 16>}, {transform_indices = @transform_3, window_bounds = array<i64: 16, 32>}, {transform_indices = @transform_4, window_bounds = array<i64: 1, 32>}, {transform_indices = @transform_5, window_bounds = array<i64: 16, 32>}]} {
    %c0 = arith.constant 0 : index
    %c0_0 = arith.constant 0 : index
    %0 = vector.load %arg2[%c0, %c0_0] : memref<16x16xbf16, #tpu.memory_space<vmem>>, vector<16x16xbf16>
    %1 = arith.extf %0 : vector<16x16xbf16> to vector<16x16xf32>
    %c0_1 = arith.constant 0 : index
    %c0_2 = arith.constant 0 : index
    %2 = vector.load %arg3[%c0_1, %c0_2] : memref<1x16xf32, #tpu.memory_space<vmem>>, vector<1x16xf32>
    %c0_3 = arith.constant 0 : index
    %c0_4 = arith.constant 0 : index
    %3 = vector.load %arg4[%c0_3, %c0_4] : memref<1x16xf32, #tpu.memory_space<vmem>>, vector<1x16xf32>
    %cst = arith.constant dense<0.000000e+00> : vector<16xf32>
    %4 = vector.multi_reduction <add>, %1, %cst [1] : vector<16x16xf32> to vector<16xf32>
    %5 = vector.shape_cast %4 : vector<16xf32> to vector<16x1xf32>
    %cst_5 = arith.constant 1.600000e+01 : f32
    %6 = vector.broadcast %cst_5 : f32 to vector<16x1xf32>
    %7 = arith.divf %5, %6 : vector<16x1xf32>
    %8 = vector.broadcast %7 : vector<16x1xf32> to vector<16x16xf32>
    %9 = arith.subf %1, %8 : vector<16x16xf32>
    %10 = arith.mulf %9, %9 : vector<16x16xf32>
    %cst_6 = arith.constant dense<0.000000e+00> : vector<16xf32>
    %11 = vector.multi_reduction <add>, %10, %cst_6 [1] : vector<16x16xf32> to vector<16xf32>
    %12 = vector.shape_cast %11 : vector<16xf32> to vector<16x1xf32>
    %cst_7 = arith.constant 1.600000e+01 : f32
    %13 = vector.broadcast %cst_7 : f32 to vector<16x1xf32>
    %14 = arith.divf %12, %13 : vector<16x1xf32>
    %cst_8 = arith.constant 9.99999974E-6 : f32
    %15 = vector.broadcast %cst_8 : f32 to vector<16x1xf32>
    %16 = arith.addf %14, %15 : vector<16x1xf32>
    %17 = math.rsqrt %16 : vector<16x1xf32>
    %18 = vector.broadcast %17 : vector<16x1xf32> to vector<16x16xf32>
    %19 = arith.mulf %9, %18 : vector<16x16xf32>
    %20 = vector.broadcast %2 : vector<1x16xf32> to vector<16x16xf32>
    %21 = arith.mulf %19, %20 : vector<16x16xf32>
    %22 = vector.broadcast %3 : vector<1x16xf32> to vector<16x16xf32>
    %23 = arith.addf %21, %22 : vector<16x16xf32>
    %24 = arith.truncf %23 : vector<16x16xf32> to vector<16x16xbf16>
    %c0_9 = arith.constant 0 : index
    %c0_10 = arith.constant 0 : index
    %25 = vector.load %arg5[%c0_9, %c0_10] : memref<16x32xbf16, #tpu.memory_space<vmem>>, vector<16x32xbf16>
    %cst_11 = arith.constant dense<0.000000e+00> : vector<16x32xf32>
    %26 = tpu.matmul %24, %25, %cst_11 {dimension_numbers = #tpu.dot_dimension_numbers<[1], [0], [0], [1], [0, 0, 1, 1], [], []>} : vector<16x16xbf16>, vector<16x32xbf16>, vector<16x32xf32> -> vector<16x32xf32>
    %c0_12 = arith.constant 0 : index
    %c0_13 = arith.constant 0 : index
    %27 = vector.load %arg6[%c0_12, %c0_13] : memref<1x32xf32, #tpu.memory_space<vmem>>, vector<1x32xf32>
    %28 = vector.broadcast %27 : vector<1x32xf32> to vector<16x32xf32>
    %29 = arith.addf %26, %28 : vector<16x32xf32>
    %30 = arith.truncf %29 : vector<16x32xf32> to vector<16x32xbf16>
    %c0_14 = arith.constant 0 : index
    %c0_15 = arith.constant 0 : index
    %31 = vector.load %arg7[%c0_14, %c0_15] : memref<16x32xbf16, #tpu.memory_space<vmem>>, vector<16x32xbf16>
    tpu.vector_store %arg7[%c0_14, %c0_15], %30 {strides = array<i32>} : memref<16x32xbf16, #tpu.memory_space<vmem>>, vector<16x32xbf16>,
    return
  }
  func.func @transform_0(%arg0: i32, %arg1: i32) -> (i32, i32) {
    %c0_i32 = arith.constant 0 : i32
    %c0_i32_0 = arith.constant 0 : i32
    return %arg0, %c0_i32 : i32, i32
  }
  func.func @transform_1(%arg0: i32, %arg1: i32) -> (i32, i32) {
    %c0_i32 = arith.constant 0 : i32
    %c0_i32_0 = arith.constant 0 : i32
    %c0_i32_1 = arith.constant 0 : i32
    return %c0_i32, %c0_i32_0 : i32, i32
  }
  func.func @transform_2(%arg0: i32, %arg1: i32) -> (i32, i32) {
    %c0_i32 = arith.constant 0 : i32
    %c0_i32_0 = arith.constant 0 : i32
    %c0_i32_1 = arith.constant 0 : i32
    return %c0_i32, %c0_i32_0 : i32, i32
  }
  func.func @transform_3(%arg0: i32, %arg1: i32) -> (i32, i32) {
    %c0_i32 = arith.constant 0 : i32
    %c0_i32_0 = arith.constant 0 : i32
    return %c0_i32, %arg1 : i32, i32
  }
  func.func @transform_4(%arg0: i32, %arg1: i32) -> (i32, i32) {
    %c0_i32 = arith.constant 0 : i32
    %c0_i32_0 = arith.constant 0 : i32
    return %c0_i32, %arg1 : i32, i32
  }
  func.func @transform_5(%arg0: i32, %arg1: i32) -> (i32, i32) {
    %c0_i32 = arith.constant 0 : i32
    return %arg0, %arg1 : i32, i32
  }
}

module attributes {stable_mosaic.version = 11 : i64} {
  func.func @_mha_self_kernel(%arg0: i32, %arg1: memref<1x16x32xbf16, #tpu.memory_space<vmem>>, %arg2: memref<32x32xbf16, #tpu.memory_space<vmem>>, %arg3: memref<1x32xf32, #tpu.memory_space<vmem>>, %arg4: memref<32x64xbf16, #tpu.memory_space<vmem>>, %arg5: memref<1x64xf32, #tpu.memory_space<vmem>>, %arg6: memref<32x32xbf16, #tpu.memory_space<vmem>>, %arg7: memref<1x32xf32, #tpu.memory_space<vmem>>, %arg8: memref<1x32xf32, #tpu.memory_space<vmem>>, %arg9: memref<1x32xf32, #tpu.memory_space<vmem>>, %arg10: memref<1x16x32xbf16, #tpu.memory_space<vmem>>) attributes {dimension_semantics = [#tpu.dimension_semantics<parallel>], iteration_bounds = array<i64: 2>, scalar_prefetch = 0 : i64, scratch_operands = 0 : i64, tpu.core_type = #tpu.core_type<tc>, window_params = [{transform_indices = @transform_0, window_bounds = array<i64: 1, 16, 32>}, {pipeline_mode = #tpu.pipeline_mode<synchronous>, transform_indices = @transform_1, window_bounds = array<i64: 32, 32>}, {pipeline_mode = #tpu.pipeline_mode<synchronous>, transform_indices = @transform_2, window_bounds = array<i64: 1, 32>}, {pipeline_mode = #tpu.pipeline_mode<synchronous>, transform_indices = @transform_3, window_bounds = array<i64: 32, 64>}, {pipeline_mode = #tpu.pipeline_mode<synchronous>, transform_indices = @transform_4, window_bounds = array<i64: 1, 64>}, {pipeline_mode = #tpu.pipeline_mode<synchronous>, transform_indices = @transform_5, window_bounds = array<i64: 32, 32>}, {pipeline_mode = #tpu.pipeline_mode<synchronous>, transform_indices = @transform_6, window_bounds = array<i64: 1, 32>}, {pipeline_mode = #tpu.pipeline_mode<synchronous>, transform_indices = @transform_7, window_bounds = array<i64: 1, 32>}, {pipeline_mode = #tpu.pipeline_mode<synchronous>, transform_indices = @transform_8, window_bounds = array<i64: 1, 32>}, {transform_indices = @transform_9, window_bounds = array<i64: 1, 16, 32>}]} {
    %c0 = arith.constant 0 : index
    %c0_0 = arith.constant 0 : index
    %c0_1 = arith.constant 0 : index
    %0 = vector.load %arg1[%c0, %c0_0, %c0_1] : memref<1x16x32xbf16, #tpu.memory_space<vmem>>, vector<1x16x32xbf16>
    %1 = vector.shape_cast %0 : vector<1x16x32xbf16> to vector<16x32xbf16>
    %2 = arith.extf %1 : vector<16x32xbf16> to vector<16x32xf32>
    %3 = arith.truncf %2 : vector<16x32xf32> to vector<16x32xbf16>
    %c0_2 = arith.constant 0 : index
    %c0_3 = arith.constant 0 : index
    %4 = vector.load %arg2[%c0_2, %c0_3] : memref<32x32xbf16, #tpu.memory_space<vmem>>, vector<32x32xbf16>
    %cst = arith.constant dense<0.000000e+00> : vector<16x32xf32>
    %5 = tpu.matmul %3, %4, %cst {dimension_numbers = #tpu.dot_dimension_numbers<[1], [0], [0], [1], [0, 0, 1, 1], [], []>} : vector<16x32xbf16>, vector<32x32xbf16>, vector<16x32xf32> -> vector<16x32xf32>
    %c0_4 = arith.constant 0 : index
    %c0_5 = arith.constant 0 : index
    %6 = vector.load %arg3[%c0_4, %c0_5] : memref<1x32xf32, #tpu.memory_space<vmem>>, vector<1x32xf32>
    %7 = vector.broadcast %6 : vector<1x32xf32> to vector<16x32xf32>
    %8 = arith.addf %5, %7 : vector<16x32xf32>
    %9 = arith.truncf %2 : vector<16x32xf32> to vector<16x32xbf16>
    %c0_6 = arith.constant 0 : index
    %c0_7 = arith.constant 0 : index
    %10 = vector.load %arg4[%c0_6, %c0_7] : memref<32x64xbf16, #tpu.memory_space<vmem>>, vector<32x64xbf16>
    %cst_8 = arith.constant dense<0.000000e+00> : vector<16x64xf32>
    %11 = tpu.matmul %9, %10, %cst_8 {dimension_numbers = #tpu.dot_dimension_numbers<[1], [0], [0], [1], [0, 0, 1, 1], [], []>} : vector<16x32xbf16>, vector<32x64xbf16>, vector<16x64xf32> -> vector<16x64xf32>
    %c0_9 = arith.constant 0 : index
    %c0_10 = arith.constant 0 : index
    %12 = vector.load %arg5[%c0_9, %c0_10] : memref<1x64xf32, #tpu.memory_space<vmem>>, vector<1x64xf32>
    %13 = vector.broadcast %12 : vector<1x64xf32> to vector<16x64xf32>
    %14 = arith.addf %11, %13 : vector<16x64xf32>
    %15 = vector.extract_strided_slice %14 {offsets = [0, 0], sizes = [16, 32], strides = [1, 1]} : vector<16x64xf32> to vector<16x32xf32>
    %16 = vector.extract_strided_slice %14 {offsets = [0, 32], sizes = [16, 32], strides = [1, 1]} : vector<16x64xf32> to vector<16x32xf32>
    %17 = vector.extract_strided_slice %8 {offsets = [0, 0], sizes = [16, 4], strides = [1, 1]} : vector<16x32xf32> to vector<16x4xf32>
    %cst_11 = arith.constant 5.000000e-01 : f32
    %18 = vector.broadcast %cst_11 : f32 to vector<16x4xf32>
    %19 = arith.mulf %17, %18 : vector<16x4xf32>
    %20 = arith.truncf %19 : vector<16x4xf32> to vector<16x4xbf16>
    %21 = vector.extract_strided_slice %15 {offsets = [0, 0], sizes = [16, 4], strides = [1, 1]} : vector<16x32xf32> to vector<16x4xf32>
    %22 = arith.truncf %21 : vector<16x4xf32> to vector<16x4xbf16>
    %23 = vector.extract_strided_slice %16 {offsets = [0, 0], sizes = [16, 4], strides = [1, 1]} : vector<16x32xf32> to vector<16x4xf32>
    %24 = arith.truncf %23 : vector<16x4xf32> to vector<16x4xbf16>
    %cst_12 = arith.constant dense<0.000000e+00> : vector<16x16xf32>
    %25 = tpu.matmul %20, %22, %cst_12 {dimension_numbers = #tpu.dot_dimension_numbers<[1], [1], [0], [0], [0, 0, 1, 0], [], []>} : vector<16x4xbf16>, vector<16x4xbf16>, vector<16x16xf32> -> vector<16x16xf32>
    %cst_13 = arith.constant dense<0xFF800000> : vector<16xf32>
    %26 = vector.multi_reduction <maximumf>, %25, %cst_13 [1] : vector<16x16xf32> to vector<16xf32>
    %27 = vector.shape_cast %26 : vector<16xf32> to vector<16x1xf32>
    %28 = vector.broadcast %27 : vector<16x1xf32> to vector<16x16xf32>
    %29 = arith.subf %25, %28 : vector<16x16xf32>
    %30 = math.exp %29 : vector<16x16xf32>
    %cst_14 = arith.constant dense<0.000000e+00> : vector<16xf32>
    %31 = vector.multi_reduction <add>, %30, %cst_14 [1] : vector<16x16xf32> to vector<16xf32>
    %32 = vector.shape_cast %31 : vector<16xf32> to vector<16x1xf32>
    %33 = tpu.reciprocal %32 {approx = true} : vector<16x1xf32> -> vector<16x1xf32>
    %34 = vector.broadcast %33 : vector<16x1xf32> to vector<16x16xf32>
    %35 = arith.mulf %30, %34 : vector<16x16xf32>
    %36 = arith.truncf %35 : vector<16x16xf32> to vector<16x16xbf16>
    %cst_15 = arith.constant dense<0.000000e+00> : vector<16x4xf32>
    %37 = tpu.matmul %36, %24, %cst_15 {dimension_numbers = #tpu.dot_dimension_numbers<[1], [0], [0], [1], [0, 0, 1, 1], [], []>} : vector<16x16xbf16>, vector<16x4xbf16>, vector<16x4xf32> -> vector<16x4xf32>
    %38 = vector.extract_strided_slice %8 {offsets = [0, 4], sizes = [16, 4], strides = [1, 1]} : vector<16x32xf32> to vector<16x4xf32>
    %cst_16 = arith.constant 5.000000e-01 : f32
    %39 = vector.broadcast %cst_16 : f32 to vector<16x4xf32>
    %40 = arith.mulf %38, %39 : vector<16x4xf32>
    %41 = arith.truncf %40 : vector<16x4xf32> to vector<16x4xbf16>
    %42 = vector.extract_strided_slice %15 {offsets = [0, 4], sizes = [16, 4], strides = [1, 1]} : vector<16x32xf32> to vector<16x4xf32>
    %43 = arith.truncf %42 : vector<16x4xf32> to vector<16x4xbf16>
    %44 = vector.extract_strided_slice %16 {offsets = [0, 4], sizes = [16, 4], strides = [1, 1]} : vector<16x32xf32> to vector<16x4xf32>
    %45 = arith.truncf %44 : vector<16x4xf32> to vector<16x4xbf16>
    %cst_17 = arith.constant dense<0.000000e+00> : vector<16x16xf32>
    %46 = tpu.matmul %41, %43, %cst_17 {dimension_numbers = #tpu.dot_dimension_numbers<[1], [1], [0], [0], [0, 0, 1, 0], [], []>} : vector<16x4xbf16>, vector<16x4xbf16>, vector<16x16xf32> -> vector<16x16xf32>
    %cst_18 = arith.constant dense<0xFF800000> : vector<16xf32>
    %47 = vector.multi_reduction <maximumf>, %46, %cst_18 [1] : vector<16x16xf32> to vector<16xf32>
    %48 = vector.shape_cast %47 : vector<16xf32> to vector<16x1xf32>
    %49 = vector.broadcast %48 : vector<16x1xf32> to vector<16x16xf32>
    %50 = arith.subf %46, %49 : vector<16x16xf32>
    %51 = math.exp %50 : vector<16x16xf32>
    %cst_19 = arith.constant dense<0.000000e+00> : vector<16xf32>
    %52 = vector.multi_reduction <add>, %51, %cst_19 [1] : vector<16x16xf32> to vector<16xf32>
    %53 = vector.shape_cast %52 : vector<16xf32> to vector<16x1xf32>
    %54 = tpu.reciprocal %53 {approx = true} : vector<16x1xf32> -> vector<16x1xf32>
    %55 = vector.broadcast %54 : vector<16x1xf32> to vector<16x16xf32>
    %56 = arith.mulf %51, %55 : vector<16x16xf32>
    %57 = arith.truncf %56 : vector<16x16xf32> to vector<16x16xbf16>
    %cst_20 = arith.constant dense<0.000000e+00> : vector<16x4xf32>
    %58 = tpu.matmul %57, %45, %cst_20 {dimension_numbers = #tpu.dot_dimension_numbers<[1], [0], [0], [1], [0, 0, 1, 1], [], []>} : vector<16x16xbf16>, vector<16x4xbf16>, vector<16x4xf32> -> vector<16x4xf32>
    %59 = vector.extract_strided_slice %8 {offsets = [0, 8], sizes = [16, 4], strides = [1, 1]} : vector<16x32xf32> to vector<16x4xf32>
    %cst_21 = arith.constant 5.000000e-01 : f32
    %60 = vector.broadcast %cst_21 : f32 to vector<16x4xf32>
    %61 = arith.mulf %59, %60 : vector<16x4xf32>
    %62 = arith.truncf %61 : vector<16x4xf32> to vector<16x4xbf16>
    %63 = vector.extract_strided_slice %15 {offsets = [0, 8], sizes = [16, 4], strides = [1, 1]} : vector<16x32xf32> to vector<16x4xf32>
    %64 = arith.truncf %63 : vector<16x4xf32> to vector<16x4xbf16>
    %65 = vector.extract_strided_slice %16 {offsets = [0, 8], sizes = [16, 4], strides = [1, 1]} : vector<16x32xf32> to vector<16x4xf32>
    %66 = arith.truncf %65 : vector<16x4xf32> to vector<16x4xbf16>
    %cst_22 = arith.constant dense<0.000000e+00> : vector<16x16xf32>
    %67 = tpu.matmul %62, %64, %cst_22 {dimension_numbers = #tpu.dot_dimension_numbers<[1], [1], [0], [0], [0, 0, 1, 0], [], []>} : vector<16x4xbf16>, vector<16x4xbf16>, vector<16x16xf32> -> vector<16x16xf32>
    %cst_23 = arith.constant dense<0xFF800000> : vector<16xf32>
    %68 = vector.multi_reduction <maximumf>, %67, %cst_23 [1] : vector<16x16xf32> to vector<16xf32>
    %69 = vector.shape_cast %68 : vector<16xf32> to vector<16x1xf32>
    %70 = vector.broadcast %69 : vector<16x1xf32> to vector<16x16xf32>
    %71 = arith.subf %67, %70 : vector<16x16xf32>
    %72 = math.exp %71 : vector<16x16xf32>
    %cst_24 = arith.constant dense<0.000000e+00> : vector<16xf32>
    %73 = vector.multi_reduction <add>, %72, %cst_24 [1] : vector<16x16xf32> to vector<16xf32>
    %74 = vector.shape_cast %73 : vector<16xf32> to vector<16x1xf32>
    %75 = tpu.reciprocal %74 {approx = true} : vector<16x1xf32> -> vector<16x1xf32>
    %76 = vector.broadcast %75 : vector<16x1xf32> to vector<16x16xf32>
    %77 = arith.mulf %72, %76 : vector<16x16xf32>
    %78 = arith.truncf %77 : vector<16x16xf32> to vector<16x16xbf16>
    %cst_25 = arith.constant dense<0.000000e+00> : vector<16x4xf32>
    %79 = tpu.matmul %78, %66, %cst_25 {dimension_numbers = #tpu.dot_dimension_numbers<[1], [0], [0], [1], [0, 0, 1, 1], [], []>} : vector<16x16xbf16>, vector<16x4xbf16>, vector<16x4xf32> -> vector<16x4xf32>
    %80 = vector.extract_strided_slice %8 {offsets = [0, 12], sizes = [16, 4], strides = [1, 1]} : vector<16x32xf32> to vector<16x4xf32>
    %cst_26 = arith.constant 5.000000e-01 : f32
    %81 = vector.broadcast %cst_26 : f32 to vector<16x4xf32>
    %82 = arith.mulf %80, %81 : vector<16x4xf32>
    %83 = arith.truncf %82 : vector<16x4xf32> to vector<16x4xbf16>
    %84 = vector.extract_strided_slice %15 {offsets = [0, 12], sizes = [16, 4], strides = [1, 1]} : vector<16x32xf32> to vector<16x4xf32>
    %85 = arith.truncf %84 : vector<16x4xf32> to vector<16x4xbf16>
    %86 = vector.extract_strided_slice %16 {offsets = [0, 12], sizes = [16, 4], strides = [1, 1]} : vector<16x32xf32> to vector<16x4xf32>
    %87 = arith.truncf %86 : vector<16x4xf32> to vector<16x4xbf16>
    %cst_27 = arith.constant dense<0.000000e+00> : vector<16x16xf32>
    %88 = tpu.matmul %83, %85, %cst_27 {dimension_numbers = #tpu.dot_dimension_numbers<[1], [1], [0], [0], [0, 0, 1, 0], [], []>} : vector<16x4xbf16>, vector<16x4xbf16>, vector<16x16xf32> -> vector<16x16xf32>
    %cst_28 = arith.constant dense<0xFF800000> : vector<16xf32>
    %89 = vector.multi_reduction <maximumf>, %88, %cst_28 [1] : vector<16x16xf32> to vector<16xf32>
    %90 = vector.shape_cast %89 : vector<16xf32> to vector<16x1xf32>
    %91 = vector.broadcast %90 : vector<16x1xf32> to vector<16x16xf32>
    %92 = arith.subf %88, %91 : vector<16x16xf32>
    %93 = math.exp %92 : vector<16x16xf32>
    %cst_29 = arith.constant dense<0.000000e+00> : vector<16xf32>
    %94 = vector.multi_reduction <add>, %93, %cst_29 [1] : vector<16x16xf32> to vector<16xf32>
    %95 = vector.shape_cast %94 : vector<16xf32> to vector<16x1xf32>
    %96 = tpu.reciprocal %95 {approx = true} : vector<16x1xf32> -> vector<16x1xf32>
    %97 = vector.broadcast %96 : vector<16x1xf32> to vector<16x16xf32>
    %98 = arith.mulf %93, %97 : vector<16x16xf32>
    %99 = arith.truncf %98 : vector<16x16xf32> to vector<16x16xbf16>
    %cst_30 = arith.constant dense<0.000000e+00> : vector<16x4xf32>
    %100 = tpu.matmul %99, %87, %cst_30 {dimension_numbers = #tpu.dot_dimension_numbers<[1], [0], [0], [1], [0, 0, 1, 1], [], []>} : vector<16x16xbf16>, vector<16x4xbf16>, vector<16x4xf32> -> vector<16x4xf32>
    %101 = vector.extract_strided_slice %8 {offsets = [0, 16], sizes = [16, 4], strides = [1, 1]} : vector<16x32xf32> to vector<16x4xf32>
    %cst_31 = arith.constant 5.000000e-01 : f32
    %102 = vector.broadcast %cst_31 : f32 to vector<16x4xf32>
    %103 = arith.mulf %101, %102 : vector<16x4xf32>
    %104 = arith.truncf %103 : vector<16x4xf32> to vector<16x4xbf16>
    %105 = vector.extract_strided_slice %15 {offsets = [0, 16], sizes = [16, 4], strides = [1, 1]} : vector<16x32xf32> to vector<16x4xf32>
    %106 = arith.truncf %105 : vector<16x4xf32> to vector<16x4xbf16>
    %107 = vector.extract_strided_slice %16 {offsets = [0, 16], sizes = [16, 4], strides = [1, 1]} : vector<16x32xf32> to vector<16x4xf32>
    %108 = arith.truncf %107 : vector<16x4xf32> to vector<16x4xbf16>
    %cst_32 = arith.constant dense<0.000000e+00> : vector<16x16xf32>
    %109 = tpu.matmul %104, %106, %cst_32 {dimension_numbers = #tpu.dot_dimension_numbers<[1], [1], [0], [0], [0, 0, 1, 0], [], []>} : vector<16x4xbf16>, vector<16x4xbf16>, vector<16x16xf32> -> vector<16x16xf32>
    %cst_33 = arith.constant dense<0xFF800000> : vector<16xf32>
    %110 = vector.multi_reduction <maximumf>, %109, %cst_33 [1] : vector<16x16xf32> to vector<16xf32>
    %111 = vector.shape_cast %110 : vector<16xf32> to vector<16x1xf32>
    %112 = vector.broadcast %111 : vector<16x1xf32> to vector<16x16xf32>
    %113 = arith.subf %109, %112 : vector<16x16xf32>
    %114 = math.exp %113 : vector<16x16xf32>
    %cst_34 = arith.constant dense<0.000000e+00> : vector<16xf32>
    %115 = vector.multi_reduction <add>, %114, %cst_34 [1] : vector<16x16xf32> to vector<16xf32>
    %116 = vector.shape_cast %115 : vector<16xf32> to vector<16x1xf32>
    %117 = tpu.reciprocal %116 {approx = true} : vector<16x1xf32> -> vector<16x1xf32>
    %118 = vector.broadcast %117 : vector<16x1xf32> to vector<16x16xf32>
    %119 = arith.mulf %114, %118 : vector<16x16xf32>
    %120 = arith.truncf %119 : vector<16x16xf32> to vector<16x16xbf16>
    %cst_35 = arith.constant dense<0.000000e+00> : vector<16x4xf32>
    %121 = tpu.matmul %120, %108, %cst_35 {dimension_numbers = #tpu.dot_dimension_numbers<[1], [0], [0], [1], [0, 0, 1, 1], [], []>} : vector<16x16xbf16>, vector<16x4xbf16>, vector<16x4xf32> -> vector<16x4xf32>
    %122 = vector.extract_strided_slice %8 {offsets = [0, 20], sizes = [16, 4], strides = [1, 1]} : vector<16x32xf32> to vector<16x4xf32>
    %cst_36 = arith.constant 5.000000e-01 : f32
    %123 = vector.broadcast %cst_36 : f32 to vector<16x4xf32>
    %124 = arith.mulf %122, %123 : vector<16x4xf32>
    %125 = arith.truncf %124 : vector<16x4xf32> to vector<16x4xbf16>
    %126 = vector.extract_strided_slice %15 {offsets = [0, 20], sizes = [16, 4], strides = [1, 1]} : vector<16x32xf32> to vector<16x4xf32>
    %127 = arith.truncf %126 : vector<16x4xf32> to vector<16x4xbf16>
    %128 = vector.extract_strided_slice %16 {offsets = [0, 20], sizes = [16, 4], strides = [1, 1]} : vector<16x32xf32> to vector<16x4xf32>
    %129 = arith.truncf %128 : vector<16x4xf32> to vector<16x4xbf16>
    %cst_37 = arith.constant dense<0.000000e+00> : vector<16x16xf32>
    %130 = tpu.matmul %125, %127, %cst_37 {dimension_numbers = #tpu.dot_dimension_numbers<[1], [1], [0], [0], [0, 0, 1, 0], [], []>} : vector<16x4xbf16>, vector<16x4xbf16>, vector<16x16xf32> -> vector<16x16xf32>
    %cst_38 = arith.constant dense<0xFF800000> : vector<16xf32>
    %131 = vector.multi_reduction <maximumf>, %130, %cst_38 [1] : vector<16x16xf32> to vector<16xf32>
    %132 = vector.shape_cast %131 : vector<16xf32> to vector<16x1xf32>
    %133 = vector.broadcast %132 : vector<16x1xf32> to vector<16x16xf32>
    %134 = arith.subf %130, %133 : vector<16x16xf32>
    %135 = math.exp %134 : vector<16x16xf32>
    %cst_39 = arith.constant dense<0.000000e+00> : vector<16xf32>
    %136 = vector.multi_reduction <add>, %135, %cst_39 [1] : vector<16x16xf32> to vector<16xf32>
    %137 = vector.shape_cast %136 : vector<16xf32> to vector<16x1xf32>
    %138 = tpu.reciprocal %137 {approx = true} : vector<16x1xf32> -> vector<16x1xf32>
    %139 = vector.broadcast %138 : vector<16x1xf32> to vector<16x16xf32>
    %140 = arith.mulf %135, %139 : vector<16x16xf32>
    %141 = arith.truncf %140 : vector<16x16xf32> to vector<16x16xbf16>
    %cst_40 = arith.constant dense<0.000000e+00> : vector<16x4xf32>
    %142 = tpu.matmul %141, %129, %cst_40 {dimension_numbers = #tpu.dot_dimension_numbers<[1], [0], [0], [1], [0, 0, 1, 1], [], []>} : vector<16x16xbf16>, vector<16x4xbf16>, vector<16x4xf32> -> vector<16x4xf32>
    %143 = vector.extract_strided_slice %8 {offsets = [0, 24], sizes = [16, 4], strides = [1, 1]} : vector<16x32xf32> to vector<16x4xf32>
    %cst_41 = arith.constant 5.000000e-01 : f32
    %144 = vector.broadcast %cst_41 : f32 to vector<16x4xf32>
    %145 = arith.mulf %143, %144 : vector<16x4xf32>
    %146 = arith.truncf %145 : vector<16x4xf32> to vector<16x4xbf16>
    %147 = vector.extract_strided_slice %15 {offsets = [0, 24], sizes = [16, 4], strides = [1, 1]} : vector<16x32xf32> to vector<16x4xf32>
    %148 = arith.truncf %147 : vector<16x4xf32> to vector<16x4xbf16>
    %149 = vector.extract_strided_slice %16 {offsets = [0, 24], sizes = [16, 4], strides = [1, 1]} : vector<16x32xf32> to vector<16x4xf32>
    %150 = arith.truncf %149 : vector<16x4xf32> to vector<16x4xbf16>
    %cst_42 = arith.constant dense<0.000000e+00> : vector<16x16xf32>
    %151 = tpu.matmul %146, %148, %cst_42 {dimension_numbers = #tpu.dot_dimension_numbers<[1], [1], [0], [0], [0, 0, 1, 0], [], []>} : vector<16x4xbf16>, vector<16x4xbf16>, vector<16x16xf32> -> vector<16x16xf32>
    %cst_43 = arith.constant dense<0xFF800000> : vector<16xf32>
    %152 = vector.multi_reduction <maximumf>, %151, %cst_43 [1] : vector<16x16xf32> to vector<16xf32>
    %153 = vector.shape_cast %152 : vector<16xf32> to vector<16x1xf32>
    %154 = vector.broadcast %153 : vector<16x1xf32> to vector<16x16xf32>
    %155 = arith.subf %151, %154 : vector<16x16xf32>
    %156 = math.exp %155 : vector<16x16xf32>
    %cst_44 = arith.constant dense<0.000000e+00> : vector<16xf32>
    %157 = vector.multi_reduction <add>, %156, %cst_44 [1] : vector<16x16xf32> to vector<16xf32>
    %158 = vector.shape_cast %157 : vector<16xf32> to vector<16x1xf32>
    %159 = tpu.reciprocal %158 {approx = true} : vector<16x1xf32> -> vector<16x1xf32>
    %160 = vector.broadcast %159 : vector<16x1xf32> to vector<16x16xf32>
    %161 = arith.mulf %156, %160 : vector<16x16xf32>
    %162 = arith.truncf %161 : vector<16x16xf32> to vector<16x16xbf16>
    %cst_45 = arith.constant dense<0.000000e+00> : vector<16x4xf32>
    %163 = tpu.matmul %162, %150, %cst_45 {dimension_numbers = #tpu.dot_dimension_numbers<[1], [0], [0], [1], [0, 0, 1, 1], [], []>} : vector<16x16xbf16>, vector<16x4xbf16>, vector<16x4xf32> -> vector<16x4xf32>
    %164 = vector.extract_strided_slice %8 {offsets = [0, 28], sizes = [16, 4], strides = [1, 1]} : vector<16x32xf32> to vector<16x4xf32>
    %cst_46 = arith.constant 5.000000e-01 : f32
    %165 = vector.broadcast %cst_46 : f32 to vector<16x4xf32>
    %166 = arith.mulf %164, %165 : vector<16x4xf32>
    %167 = arith.truncf %166 : vector<16x4xf32> to vector<16x4xbf16>
    %168 = vector.extract_strided_slice %15 {offsets = [0, 28], sizes = [16, 4], strides = [1, 1]} : vector<16x32xf32> to vector<16x4xf32>
    %169 = arith.truncf %168 : vector<16x4xf32> to vector<16x4xbf16>
    %170 = vector.extract_strided_slice %16 {offsets = [0, 28], sizes = [16, 4], strides = [1, 1]} : vector<16x32xf32> to vector<16x4xf32>
    %171 = arith.truncf %170 : vector<16x4xf32> to vector<16x4xbf16>
    %cst_47 = arith.constant dense<0.000000e+00> : vector<16x16xf32>
    %172 = tpu.matmul %167, %169, %cst_47 {dimension_numbers = #tpu.dot_dimension_numbers<[1], [1], [0], [0], [0, 0, 1, 0], [], []>} : vector<16x4xbf16>, vector<16x4xbf16>, vector<16x16xf32> -> vector<16x16xf32>
    %cst_48 = arith.constant dense<0xFF800000> : vector<16xf32>
    %173 = vector.multi_reduction <maximumf>, %172, %cst_48 [1] : vector<16x16xf32> to vector<16xf32>
    %174 = vector.shape_cast %173 : vector<16xf32> to vector<16x1xf32>
    %175 = vector.broadcast %174 : vector<16x1xf32> to vector<16x16xf32>
    %176 = arith.subf %172, %175 : vector<16x16xf32>
    %177 = math.exp %176 : vector<16x16xf32>
    %cst_49 = arith.constant dense<0.000000e+00> : vector<16xf32>
    %178 = vector.multi_reduction <add>, %177, %cst_49 [1] : vector<16x16xf32> to vector<16xf32>
    %179 = vector.shape_cast %178 : vector<16xf32> to vector<16x1xf32>
    %180 = tpu.reciprocal %179 {approx = true} : vector<16x1xf32> -> vector<16x1xf32>
    %181 = vector.broadcast %180 : vector<16x1xf32> to vector<16x16xf32>
    %182 = arith.mulf %177, %181 : vector<16x16xf32>
    %183 = arith.truncf %182 : vector<16x16xf32> to vector<16x16xbf16>
    %cst_50 = arith.constant dense<0.000000e+00> : vector<16x4xf32>
    %184 = tpu.matmul %183, %171, %cst_50 {dimension_numbers = #tpu.dot_dimension_numbers<[1], [0], [0], [1], [0, 0, 1, 1], [], []>} : vector<16x16xbf16>, vector<16x4xbf16>, vector<16x4xf32> -> vector<16x4xf32>
    %185 = tpu.concatenate %37, %58, %79, %100, %121, %142, %163, %184 in 1 : vector<16x4xf32>, vector<16x4xf32>, vector<16x4xf32>, vector<16x4xf32>, vector<16x4xf32>, vector<16x4xf32>, vector<16x4xf32>, vector<16x4xf32> -> vector<16x32xf32>
    %186 = arith.truncf %185 : vector<16x32xf32> to vector<16x32xbf16>
    %c0_51 = arith.constant 0 : index
    %c0_52 = arith.constant 0 : index
    %187 = vector.load %arg6[%c0_51, %c0_52] : memref<32x32xbf16, #tpu.memory_space<vmem>>, vector<32x32xbf16>
    %cst_53 = arith.constant dense<0.000000e+00> : vector<16x32xf32>
    %188 = tpu.matmul %186, %187, %cst_53 {dimension_numbers = #tpu.dot_dimension_numbers<[1], [0], [0], [1], [0, 0, 1, 1], [], []>} : vector<16x32xbf16>, vector<32x32xbf16>, vector<16x32xf32> -> vector<16x32xf32>
    %c0_54 = arith.constant 0 : index
    %c0_55 = arith.constant 0 : index
    %189 = vector.load %arg7[%c0_54, %c0_55] : memref<1x32xf32, #tpu.memory_space<vmem>>, vector<1x32xf32>
    %190 = vector.broadcast %189 : vector<1x32xf32> to vector<16x32xf32>
    %191 = arith.addf %188, %190 : vector<16x32xf32>
    %192 = arith.addf %2, %191 : vector<16x32xf32>
    %c0_56 = arith.constant 0 : index
    %c0_57 = arith.constant 0 : index
    %193 = vector.load %arg8[%c0_56, %c0_57] : memref<1x32xf32, #tpu.memory_space<vmem>>, vector<1x32xf32>
    %c0_58 = arith.constant 0 : index
    %c0_59 = arith.constant 0 : index
    %194 = vector.load %arg9[%c0_58, %c0_59] : memref<1x32xf32, #tpu.memory_space<vmem>>, vector<1x32xf32>
    %cst_60 = arith.constant dense<0.000000e+00> : vector<16xf32>
    %195 = vector.multi_reduction <add>, %192, %cst_60 [1] : vector<16x32xf32> to vector<16xf32>
    %196 = vector.shape_cast %195 : vector<16xf32> to vector<16x1xf32>
    %cst_61 = arith.constant 3.200000e+01 : f32
    %197 = vector.broadcast %cst_61 : f32 to vector<16x1xf32>
    %198 = arith.divf %196, %197 : vector<16x1xf32>
    %199 = vector.broadcast %198 : vector<16x1xf32> to vector<16x32xf32>
    %200 = arith.subf %192, %199 : vector<16x32xf32>
    %201 = arith.mulf %200, %200 : vector<16x32xf32>
    %cst_62 = arith.constant dense<0.000000e+00> : vector<16xf32>
    %202 = vector.multi_reduction <add>, %201, %cst_62 [1] : vector<16x32xf32> to vector<16xf32>
    %203 = vector.shape_cast %202 : vector<16xf32> to vector<16x1xf32>
    %cst_63 = arith.constant 3.200000e+01 : f32
    %204 = vector.broadcast %cst_63 : f32 to vector<16x1xf32>
    %205 = arith.divf %203, %204 : vector<16x1xf32>
    %cst_64 = arith.constant 9.99999974E-6 : f32
    %206 = vector.broadcast %cst_64 : f32 to vector<16x1xf32>
    %207 = arith.addf %205, %206 : vector<16x1xf32>
    %208 = math.rsqrt %207 : vector<16x1xf32>
    %209 = vector.broadcast %208 : vector<16x1xf32> to vector<16x32xf32>
    %210 = arith.mulf %200, %209 : vector<16x32xf32>
    %211 = vector.broadcast %193 : vector<1x32xf32> to vector<16x32xf32>
    %212 = arith.mulf %210, %211 : vector<16x32xf32>
    %213 = vector.broadcast %194 : vector<1x32xf32> to vector<16x32xf32>
    %214 = arith.addf %212, %213 : vector<16x32xf32>
    %215 = arith.truncf %214 : vector<16x32xf32> to vector<16x32xbf16>
    %c0_65 = arith.constant 0 : index
    %c0_66 = arith.constant 0 : index
    %c0_67 = arith.constant 0 : index
    %216 = vector.load %arg10[%c0_65, %c0_66, %c0_67] : memref<1x16x32xbf16, #tpu.memory_space<vmem>>, vector<1x16x32xbf16>
    %217 = vector.shape_cast %216 : vector<1x16x32xbf16> to vector<16x32xbf16>
    %218 = vector.shape_cast %215 : vector<16x32xbf16> to vector<1x16x32xbf16>
    tpu.vector_store %arg10[%c0_65, %c0_66, %c0_67], %218 {strides = array<i32>} : memref<1x16x32xbf16, #tpu.memory_space<vmem>>, vector<1x16x32xbf16>,
    return
  }
  func.func @transform_0(%arg0: i32) -> (i32, i32, i32) {
    %c0_i32 = arith.constant 0 : i32
    %c0_i32_0 = arith.constant 0 : i32
    %c0_i32_1 = arith.constant 0 : i32
    return %arg0, %c0_i32, %c0_i32_0 : i32, i32, i32
  }
  func.func @transform_1(%arg0: i32) -> (i32, i32) {
    %c0_i32 = arith.constant 0 : i32
    %c0_i32_0 = arith.constant 0 : i32
    %c0_i32_1 = arith.constant 0 : i32
    return %c0_i32, %c0_i32_0 : i32, i32
  }
  func.func @transform_2(%arg0: i32) -> (i32, i32) {
    %c0_i32 = arith.constant 0 : i32
    %c0_i32_0 = arith.constant 0 : i32
    %c0_i32_1 = arith.constant 0 : i32
    return %c0_i32, %c0_i32_0 : i32, i32
  }
  func.func @transform_3(%arg0: i32) -> (i32, i32) {
    %c0_i32 = arith.constant 0 : i32
    %c0_i32_0 = arith.constant 0 : i32
    %c0_i32_1 = arith.constant 0 : i32
    return %c0_i32, %c0_i32_0 : i32, i32
  }
  func.func @transform_4(%arg0: i32) -> (i32, i32) {
    %c0_i32 = arith.constant 0 : i32
    %c0_i32_0 = arith.constant 0 : i32
    %c0_i32_1 = arith.constant 0 : i32
    return %c0_i32, %c0_i32_0 : i32, i32
  }
  func.func @transform_5(%arg0: i32) -> (i32, i32) {
    %c0_i32 = arith.constant 0 : i32
    %c0_i32_0 = arith.constant 0 : i32
    %c0_i32_1 = arith.constant 0 : i32
    return %c0_i32, %c0_i32_0 : i32, i32
  }
  func.func @transform_6(%arg0: i32) -> (i32, i32) {
    %c0_i32 = arith.constant 0 : i32
    %c0_i32_0 = arith.constant 0 : i32
    %c0_i32_1 = arith.constant 0 : i32
    return %c0_i32, %c0_i32_0 : i32, i32
  }
  func.func @transform_7(%arg0: i32) -> (i32, i32) {
    %c0_i32 = arith.constant 0 : i32
    %c0_i32_0 = arith.constant 0 : i32
    %c0_i32_1 = arith.constant 0 : i32
    return %c0_i32, %c0_i32_0 : i32, i32
  }
  func.func @transform_8(%arg0: i32) -> (i32, i32) {
    %c0_i32 = arith.constant 0 : i32
    %c0_i32_0 = arith.constant 0 : i32
    %c0_i32_1 = arith.constant 0 : i32
    return %c0_i32, %c0_i32_0 : i32, i32
  }
  func.func @transform_9(%arg0: i32) -> (i32, i32, i32) {
    %c0_i32 = arith.constant 0 : i32
    %c0_i32_0 = arith.constant 0 : i32
    %c0_i32_1 = arith.constant 0 : i32
    return %arg0, %c0_i32, %c0_i32_0 : i32, i32, i32
  }
}

module attributes {stable_mosaic.version = 11 : i64} {
  func.func @_ffn_block_kernel(%arg0: i32, %arg1: i32, %arg2: memref<16x32xbf16, #tpu.memory_space<vmem>>, %arg3: memref<32x128xbf16, #tpu.memory_space<vmem>>, %arg4: memref<1x128xf32, #tpu.memory_space<vmem>>, %arg5: memref<128x32xbf16, #tpu.memory_space<vmem>>, %arg6: memref<1x32xf32, #tpu.memory_space<vmem>>, %arg7: memref<1x32xf32, #tpu.memory_space<vmem>>, %arg8: memref<1x32xf32, #tpu.memory_space<vmem>>, %arg9: memref<16x32xbf16, #tpu.memory_space<vmem>>, %arg10: memref<16x32xf32, #tpu.memory_space<vmem>>) attributes {dimension_semantics = [#tpu.dimension_semantics<parallel>, #tpu.dimension_semantics<arbitrary>], iteration_bounds = array<i64: 2, 1>, scalar_prefetch = 0 : i64, scratch_operands = 1 : i64, tpu.core_type = #tpu.core_type<tc>, window_params = [{transform_indices = @transform_0, window_bounds = array<i64: 16, 32>}, {transform_indices = @transform_1, window_bounds = array<i64: 32, 128>}, {transform_indices = @transform_2, window_bounds = array<i64: 1, 128>}, {transform_indices = @transform_3, window_bounds = array<i64: 128, 32>}, {pipeline_mode = #tpu.pipeline_mode<synchronous>, transform_indices = @transform_4, window_bounds = array<i64: 1, 32>}, {pipeline_mode = #tpu.pipeline_mode<synchronous>, transform_indices = @transform_5, window_bounds = array<i64: 1, 32>}, {pipeline_mode = #tpu.pipeline_mode<synchronous>, transform_indices = @transform_6, window_bounds = array<i64: 1, 32>}, {transform_indices = @transform_7, window_bounds = array<i64: 16, 32>}]} {
    %c0_i32 = arith.constant 0 : i32
    %0 = arith.cmpi eq, %arg1, %c0_i32 : i32
    %1 = arith.extui %0 : i1 to i32
    %c0_i32_0 = arith.constant 0 : i32
    %2 = arith.cmpi ne, %1, %c0_i32_0 : i32
    scf.if %2 {
      %cst_32 = arith.constant 0.000000e+00 : f32
      %64 = vector.broadcast %cst_32 : f32 to vector<16x32xf32>
      %c0_33 = arith.constant 0 : index
      %c0_34 = arith.constant 0 : index
      %65 = vector.load %arg10[%c0_33, %c0_34] : memref<16x32xf32, #tpu.memory_space<vmem>>, vector<16x32xf32>
      tpu.vector_store %arg10[%c0_33, %c0_34], %64 {strides = array<i32>} : memref<16x32xf32, #tpu.memory_space<vmem>>, vector<16x32xf32>,
    } else {
    }
    %c0 = arith.constant 0 : index
    %c0_1 = arith.constant 0 : index
    %3 = vector.load %arg2[%c0, %c0_1] : memref<16x32xbf16, #tpu.memory_space<vmem>>, vector<16x32xbf16>
    %4 = arith.extf %3 : vector<16x32xbf16> to vector<16x32xf32>
    %5 = arith.truncf %4 : vector<16x32xf32> to vector<16x32xbf16>
    %c0_2 = arith.constant 0 : index
    %c0_3 = arith.constant 0 : index
    %6 = vector.load %arg3[%c0_2, %c0_3] : memref<32x128xbf16, #tpu.memory_space<vmem>>, vector<32x128xbf16>
    %cst = arith.constant dense<0.000000e+00> : vector<16x128xf32>
    %7 = tpu.matmul %5, %6, %cst {dimension_numbers = #tpu.dot_dimension_numbers<[1], [0], [0], [1], [0, 0, 1, 1], [], []>} : vector<16x32xbf16>, vector<32x128xbf16>, vector<16x128xf32> -> vector<16x128xf32>
    %c0_4 = arith.constant 0 : index
    %c0_5 = arith.constant 0 : index
    %8 = vector.load %arg4[%c0_4, %c0_5] : memref<1x128xf32, #tpu.memory_space<vmem>>, vector<1x128xf32>
    %9 = vector.broadcast %8 : vector<1x128xf32> to vector<16x128xf32>
    %10 = arith.addf %7, %9 : vector<16x128xf32>
    %cst_6 = arith.constant 5.000000e-01 : f32
    %11 = vector.broadcast %cst_6 : f32 to vector<16x128xf32>
    %12 = arith.mulf %11, %10 : vector<16x128xf32>
    %cst_7 = arith.constant 0.707106769 : f32
    %13 = vector.broadcast %cst_7 : f32 to vector<16x128xf32>
    %14 = arith.mulf %10, %13 : vector<16x128xf32>
    %cst_8 = arith.constant 0.000000e+00 : f32
    %15 = vector.broadcast %cst_8 : f32 to vector<16x128xf32>
    %16 = arith.cmpf oge, %14, %15 : vector<16x128xf32>
    %cst_9 = arith.constant 0.000000e+00 : f32
    %17 = vector.broadcast %cst_9 : f32 to vector<16x128xf32>
    %18 = arith.subf %17, %14 : vector<16x128xf32>
    %19 = arith.select %16, %14, %18 : vector<16x128xi1>, vector<16x128xf32>
    %cst_10 = arith.constant 0.327591091 : f32
    %20 = vector.broadcast %cst_10 : f32 to vector<16x128xf32>
    %21 = arith.mulf %20, %19 : vector<16x128xf32>
    %cst_11 = arith.constant 1.000000e+00 : f32
    %22 = vector.broadcast %cst_11 : f32 to vector<16x128xf32>
    %23 = arith.addf %22, %21 : vector<16x128xf32>
    %cst_12 = arith.constant 1.000000e+00 : f32
    %24 = vector.broadcast %cst_12 : f32 to vector<16x128xf32>
    %25 = arith.divf %24, %23 : vector<16x128xf32>
    %cst_13 = arith.constant 1.06140542 : f32
    %26 = vector.broadcast %cst_13 : f32 to vector<16x128xf32>
    %27 = arith.mulf %26, %25 : vector<16x128xf32>
    %cst_14 = arith.constant -1.45315206 : f32
    %28 = vector.broadcast %cst_14 : f32 to vector<16x128xf32>
    %29 = arith.addf %27, %28 : vector<16x128xf32>
    %30 = arith.mulf %29, %25 : vector<16x128xf32>
    %cst_15 = arith.constant 1.42141378 : f32
    %31 = vector.broadcast %cst_15 : f32 to vector<16x128xf32>
    %32 = arith.addf %30, %31 : vector<16x128xf32>
    %33 = arith.mulf %32, %25 : vector<16x128xf32>
    %cst_16 = arith.constant -0.284496725 : f32
    %34 = vector.broadcast %cst_16 : f32 to vector<16x128xf32>
    %35 = arith.addf %33, %34 : vector<16x128xf32>
    %36 = arith.mulf %35, %25 : vector<16x128xf32>
    %cst_17 = arith.constant 0.254829586 : f32
    %37 = vector.broadcast %cst_17 : f32 to vector<16x128xf32>
    %38 = arith.addf %36, %37 : vector<16x128xf32>
    %39 = arith.mulf %38, %25 : vector<16x128xf32>
    %cst_18 = arith.constant 0.000000e+00 : f32
    %40 = vector.broadcast %cst_18 : f32 to vector<16x128xf32>
    %41 = arith.subf %40, %19 : vector<16x128xf32>
    %42 = arith.mulf %41, %19 : vector<16x128xf32>
    %43 = math.exp %42 : vector<16x128xf32>
    %44 = arith.mulf %39, %43 : vector<16x128xf32>
    %cst_19 = arith.constant 1.000000e+00 : f32
    %45 = vector.broadcast %cst_19 : f32 to vector<16x128xf32>
    %46 = arith.subf %45, %44 : vector<16x128xf32>
    %cst_20 = arith.constant 0.000000e+00 : f32
    %47 = vector.broadcast %cst_20 : f32 to vector<16x128xf32>
    %48 = arith.cmpf oge, %14, %47 : vector<16x128xf32>
    %cst_21 = arith.constant 0.000000e+00 : f32
    %49 = vector.broadcast %cst_21 : f32 to vector<16x128xf32>
    %50 = arith.subf %49, %46 : vector<16x128xf32>
    %51 = arith.select %48, %46, %50 : vector<16x128xi1>, vector<16x128xf32>
    %cst_22 = arith.constant 1.000000e+00 : f32
    %52 = vector.broadcast %cst_22 : f32 to vector<16x128xf32>
    %53 = arith.addf %52, %51 : vector<16x128xf32>
    %54 = arith.mulf %12, %53 : vector<16x128xf32>
    %c0_23 = arith.constant 0 : index
    %c0_24 = arith.constant 0 : index
    %55 = vector.load %arg10[%c0_23, %c0_24] : memref<16x32xf32, #tpu.memory_space<vmem>>, vector<16x32xf32>
    %56 = arith.truncf %54 : vector<16x128xf32> to vector<16x128xbf16>
    %c0_25 = arith.constant 0 : index
    %c0_26 = arith.constant 0 : index
    %57 = vector.load %arg5[%c0_25, %c0_26] : memref<128x32xbf16, #tpu.memory_space<vmem>>, vector<128x32xbf16>
    %cst_27 = arith.constant dense<0.000000e+00> : vector<16x32xf32>
    %58 = tpu.matmul %56, %57, %cst_27 {dimension_numbers = #tpu.dot_dimension_numbers<[1], [0], [0], [1], [0, 0, 1, 1], [], []>} : vector<16x128xbf16>, vector<128x32xbf16>, vector<16x32xf32> -> vector<16x32xf32>
    %59 = arith.addf %55, %58 : vector<16x32xf32>
    %c0_28 = arith.constant 0 : index
    %c0_29 = arith.constant 0 : index
    %60 = vector.load %arg10[%c0_28, %c0_29] : memref<16x32xf32, #tpu.memory_space<vmem>>, vector<16x32xf32>
    tpu.vector_store %arg10[%c0_28, %c0_29], %59 {strides = array<i32>} : memref<16x32xf32, #tpu.memory_space<vmem>>, vector<16x32xf32>,
    %c0_i32_30 = arith.constant 0 : i32
    %61 = arith.cmpi eq, %arg1, %c0_i32_30 : i32
    %62 = arith.extui %61 : i1 to i32
    %c0_i32_31 = arith.constant 0 : i32
    %63 = arith.cmpi ne, %62, %c0_i32_31 : i32
    scf.if %63 {
      %c0_32 = arith.constant 0 : index
      %c0_33 = arith.constant 0 : index
      %64 = vector.load %arg10[%c0_32, %c0_33] : memref<16x32xf32, #tpu.memory_space<vmem>>, vector<16x32xf32>
      %c0_34 = arith.constant 0 : index
      %c0_35 = arith.constant 0 : index
      %65 = vector.load %arg6[%c0_34, %c0_35] : memref<1x32xf32, #tpu.memory_space<vmem>>, vector<1x32xf32>
      %66 = vector.broadcast %65 : vector<1x32xf32> to vector<16x32xf32>
      %67 = arith.addf %64, %66 : vector<16x32xf32>
      %68 = arith.addf %4, %67 : vector<16x32xf32>
      %c0_36 = arith.constant 0 : index
      %c0_37 = arith.constant 0 : index
      %69 = vector.load %arg7[%c0_36, %c0_37] : memref<1x32xf32, #tpu.memory_space<vmem>>, vector<1x32xf32>
      %c0_38 = arith.constant 0 : index
      %c0_39 = arith.constant 0 : index
      %70 = vector.load %arg8[%c0_38, %c0_39] : memref<1x32xf32, #tpu.memory_space<vmem>>, vector<1x32xf32>
      %cst_40 = arith.constant dense<0.000000e+00> : vector<16xf32>
      %71 = vector.multi_reduction <add>, %68, %cst_40 [1] : vector<16x32xf32> to vector<16xf32>
      %72 = vector.shape_cast %71 : vector<16xf32> to vector<16x1xf32>
      %cst_41 = arith.constant 3.200000e+01 : f32
      %73 = vector.broadcast %cst_41 : f32 to vector<16x1xf32>
      %74 = arith.divf %72, %73 : vector<16x1xf32>
      %75 = vector.broadcast %74 : vector<16x1xf32> to vector<16x32xf32>
      %76 = arith.subf %68, %75 : vector<16x32xf32>
      %77 = arith.mulf %76, %76 : vector<16x32xf32>
      %cst_42 = arith.constant dense<0.000000e+00> : vector<16xf32>
      %78 = vector.multi_reduction <add>, %77, %cst_42 [1] : vector<16x32xf32> to vector<16xf32>
      %79 = vector.shape_cast %78 : vector<16xf32> to vector<16x1xf32>
      %cst_43 = arith.constant 3.200000e+01 : f32
      %80 = vector.broadcast %cst_43 : f32 to vector<16x1xf32>
      %81 = arith.divf %79, %80 : vector<16x1xf32>
      %cst_44 = arith.constant 9.99999974E-6 : f32
      %82 = vector.broadcast %cst_44 : f32 to vector<16x1xf32>
      %83 = arith.addf %81, %82 : vector<16x1xf32>
      %84 = math.rsqrt %83 : vector<16x1xf32>
      %85 = vector.broadcast %84 : vector<16x1xf32> to vector<16x32xf32>
      %86 = arith.mulf %76, %85 : vector<16x32xf32>
      %87 = vector.broadcast %69 : vector<1x32xf32> to vector<16x32xf32>
      %88 = arith.mulf %86, %87 : vector<16x32xf32>
      %89 = vector.broadcast %70 : vector<1x32xf32> to vector<16x32xf32>
      %90 = arith.addf %88, %89 : vector<16x32xf32>
      %91 = arith.truncf %90 : vector<16x32xf32> to vector<16x32xbf16>
      %c0_45 = arith.constant 0 : index
      %c0_46 = arith.constant 0 : index
      %92 = vector.load %arg9[%c0_45, %c0_46] : memref<16x32xbf16, #tpu.memory_space<vmem>>, vector<16x32xbf16>
      tpu.vector_store %arg9[%c0_45, %c0_46], %91 {strides = array<i32>} : memref<16x32xbf16, #tpu.memory_space<vmem>>, vector<16x32xbf16>,
    } else {
    }
    return
  }
  func.func @transform_0(%arg0: i32, %arg1: i32) -> (i32, i32) {
    %c0_i32 = arith.constant 0 : i32
    %c0_i32_0 = arith.constant 0 : i32
    return %arg0, %c0_i32 : i32, i32
  }
  func.func @transform_1(%arg0: i32, %arg1: i32) -> (i32, i32) {
    %c0_i32 = arith.constant 0 : i32
    %c0_i32_0 = arith.constant 0 : i32
    return %c0_i32, %arg1 : i32, i32
  }
  func.func @transform_2(%arg0: i32, %arg1: i32) -> (i32, i32) {
    %c0_i32 = arith.constant 0 : i32
    %c0_i32_0 = arith.constant 0 : i32
    return %c0_i32, %arg1 : i32, i32
  }
  func.func @transform_3(%arg0: i32, %arg1: i32) -> (i32, i32) {
    %c0_i32 = arith.constant 0 : i32
    %c0_i32_0 = arith.constant 0 : i32
    return %arg1, %c0_i32 : i32, i32
  }
  func.func @transform_4(%arg0: i32, %arg1: i32) -> (i32, i32) {
    %c0_i32 = arith.constant 0 : i32
    %c0_i32_0 = arith.constant 0 : i32
    %c0_i32_1 = arith.constant 0 : i32
    return %c0_i32, %c0_i32_0 : i32, i32
  }
  func.func @transform_5(%arg0: i32, %arg1: i32) -> (i32, i32) {
    %c0_i32 = arith.constant 0 : i32
    %c0_i32_0 = arith.constant 0 : i32
    %c0_i32_1 = arith.constant 0 : i32
    return %c0_i32, %c0_i32_0 : i32, i32
  }
  func.func @transform_6(%arg0: i32, %arg1: i32) -> (i32, i32) {
    %c0_i32 = arith.constant 0 : i32
    %c0_i32_0 = arith.constant 0 : i32
    %c0_i32_1 = arith.constant 0 : i32
    return %c0_i32, %c0_i32_0 : i32, i32
  }
  func.func @transform_7(%arg0: i32, %arg1: i32) -> (i32, i32) {
    %c0_i32 = arith.constant 0 : i32
    %c0_i32_0 = arith.constant 0 : i32
    return %arg0, %c0_i32 : i32, i32
  }
}

module attributes {stable_mosaic.version = 11 : i64} {
  func.func @_ffn_block_kernel(%arg0: i32, %arg1: i32, %arg2: memref<16x32xbf16, #tpu.memory_space<vmem>>, %arg3: memref<32x128xbf16, #tpu.memory_space<vmem>>, %arg4: memref<1x128xf32, #tpu.memory_space<vmem>>, %arg5: memref<128x32xbf16, #tpu.memory_space<vmem>>, %arg6: memref<1x32xf32, #tpu.memory_space<vmem>>, %arg7: memref<1x32xf32, #tpu.memory_space<vmem>>, %arg8: memref<1x32xf32, #tpu.memory_space<vmem>>, %arg9: memref<1x32xf32, #tpu.memory_space<vmem>>, %arg10: memref<1x32xf32, #tpu.memory_space<vmem>>, %arg11: memref<16x32xbf16, #tpu.memory_space<vmem>>, %arg12: memref<16x32xf32, #tpu.memory_space<vmem>>) attributes {dimension_semantics = [#tpu.dimension_semantics<parallel>, #tpu.dimension_semantics<arbitrary>], iteration_bounds = array<i64: 2, 1>, scalar_prefetch = 0 : i64, scratch_operands = 1 : i64, tpu.core_type = #tpu.core_type<tc>, window_params = [{transform_indices = @transform_0, window_bounds = array<i64: 16, 32>}, {transform_indices = @transform_1, window_bounds = array<i64: 32, 128>}, {transform_indices = @transform_2, window_bounds = array<i64: 1, 128>}, {transform_indices = @transform_3, window_bounds = array<i64: 128, 32>}, {pipeline_mode = #tpu.pipeline_mode<synchronous>, transform_indices = @transform_4, window_bounds = array<i64: 1, 32>}, {pipeline_mode = #tpu.pipeline_mode<synchronous>, transform_indices = @transform_5, window_bounds = array<i64: 1, 32>}, {pipeline_mode = #tpu.pipeline_mode<synchronous>, transform_indices = @transform_6, window_bounds = array<i64: 1, 32>}, {pipeline_mode = #tpu.pipeline_mode<synchronous>, transform_indices = @transform_7, window_bounds = array<i64: 1, 32>}, {pipeline_mode = #tpu.pipeline_mode<synchronous>, transform_indices = @transform_8, window_bounds = array<i64: 1, 32>}, {transform_indices = @transform_9, window_bounds = array<i64: 16, 32>}]} {
    %c0_i32 = arith.constant 0 : i32
    %0 = arith.cmpi eq, %arg1, %c0_i32 : i32
    %1 = arith.extui %0 : i1 to i32
    %c0_i32_0 = arith.constant 0 : i32
    %2 = arith.cmpi ne, %1, %c0_i32_0 : i32
    scf.if %2 {
      %cst_32 = arith.constant 0.000000e+00 : f32
      %64 = vector.broadcast %cst_32 : f32 to vector<16x32xf32>
      %c0_33 = arith.constant 0 : index
      %c0_34 = arith.constant 0 : index
      %65 = vector.load %arg12[%c0_33, %c0_34] : memref<16x32xf32, #tpu.memory_space<vmem>>, vector<16x32xf32>
      tpu.vector_store %arg12[%c0_33, %c0_34], %64 {strides = array<i32>} : memref<16x32xf32, #tpu.memory_space<vmem>>, vector<16x32xf32>,
    } else {
    }
    %c0 = arith.constant 0 : index
    %c0_1 = arith.constant 0 : index
    %3 = vector.load %arg2[%c0, %c0_1] : memref<16x32xbf16, #tpu.memory_space<vmem>>, vector<16x32xbf16>
    %4 = arith.extf %3 : vector<16x32xbf16> to vector<16x32xf32>
    %5 = arith.truncf %4 : vector<16x32xf32> to vector<16x32xbf16>
    %c0_2 = arith.constant 0 : index
    %c0_3 = arith.constant 0 : index
    %6 = vector.load %arg3[%c0_2, %c0_3] : memref<32x128xbf16, #tpu.memory_space<vmem>>, vector<32x128xbf16>
    %cst = arith.constant dense<0.000000e+00> : vector<16x128xf32>
    %7 = tpu.matmul %5, %6, %cst {dimension_numbers = #tpu.dot_dimension_numbers<[1], [0], [0], [1], [0, 0, 1, 1], [], []>} : vector<16x32xbf16>, vector<32x128xbf16>, vector<16x128xf32> -> vector<16x128xf32>
    %c0_4 = arith.constant 0 : index
    %c0_5 = arith.constant 0 : index
    %8 = vector.load %arg4[%c0_4, %c0_5] : memref<1x128xf32, #tpu.memory_space<vmem>>, vector<1x128xf32>
    %9 = vector.broadcast %8 : vector<1x128xf32> to vector<16x128xf32>
    %10 = arith.addf %7, %9 : vector<16x128xf32>
    %cst_6 = arith.constant 5.000000e-01 : f32
    %11 = vector.broadcast %cst_6 : f32 to vector<16x128xf32>
    %12 = arith.mulf %11, %10 : vector<16x128xf32>
    %cst_7 = arith.constant 0.707106769 : f32
    %13 = vector.broadcast %cst_7 : f32 to vector<16x128xf32>
    %14 = arith.mulf %10, %13 : vector<16x128xf32>
    %cst_8 = arith.constant 0.000000e+00 : f32
    %15 = vector.broadcast %cst_8 : f32 to vector<16x128xf32>
    %16 = arith.cmpf oge, %14, %15 : vector<16x128xf32>
    %cst_9 = arith.constant 0.000000e+00 : f32
    %17 = vector.broadcast %cst_9 : f32 to vector<16x128xf32>
    %18 = arith.subf %17, %14 : vector<16x128xf32>
    %19 = arith.select %16, %14, %18 : vector<16x128xi1>, vector<16x128xf32>
    %cst_10 = arith.constant 0.327591091 : f32
    %20 = vector.broadcast %cst_10 : f32 to vector<16x128xf32>
    %21 = arith.mulf %20, %19 : vector<16x128xf32>
    %cst_11 = arith.constant 1.000000e+00 : f32
    %22 = vector.broadcast %cst_11 : f32 to vector<16x128xf32>
    %23 = arith.addf %22, %21 : vector<16x128xf32>
    %cst_12 = arith.constant 1.000000e+00 : f32
    %24 = vector.broadcast %cst_12 : f32 to vector<16x128xf32>
    %25 = arith.divf %24, %23 : vector<16x128xf32>
    %cst_13 = arith.constant 1.06140542 : f32
    %26 = vector.broadcast %cst_13 : f32 to vector<16x128xf32>
    %27 = arith.mulf %26, %25 : vector<16x128xf32>
    %cst_14 = arith.constant -1.45315206 : f32
    %28 = vector.broadcast %cst_14 : f32 to vector<16x128xf32>
    %29 = arith.addf %27, %28 : vector<16x128xf32>
    %30 = arith.mulf %29, %25 : vector<16x128xf32>
    %cst_15 = arith.constant 1.42141378 : f32
    %31 = vector.broadcast %cst_15 : f32 to vector<16x128xf32>
    %32 = arith.addf %30, %31 : vector<16x128xf32>
    %33 = arith.mulf %32, %25 : vector<16x128xf32>
    %cst_16 = arith.constant -0.284496725 : f32
    %34 = vector.broadcast %cst_16 : f32 to vector<16x128xf32>
    %35 = arith.addf %33, %34 : vector<16x128xf32>
    %36 = arith.mulf %35, %25 : vector<16x128xf32>
    %cst_17 = arith.constant 0.254829586 : f32
    %37 = vector.broadcast %cst_17 : f32 to vector<16x128xf32>
    %38 = arith.addf %36, %37 : vector<16x128xf32>
    %39 = arith.mulf %38, %25 : vector<16x128xf32>
    %cst_18 = arith.constant 0.000000e+00 : f32
    %40 = vector.broadcast %cst_18 : f32 to vector<16x128xf32>
    %41 = arith.subf %40, %19 : vector<16x128xf32>
    %42 = arith.mulf %41, %19 : vector<16x128xf32>
    %43 = math.exp %42 : vector<16x128xf32>
    %44 = arith.mulf %39, %43 : vector<16x128xf32>
    %cst_19 = arith.constant 1.000000e+00 : f32
    %45 = vector.broadcast %cst_19 : f32 to vector<16x128xf32>
    %46 = arith.subf %45, %44 : vector<16x128xf32>
    %cst_20 = arith.constant 0.000000e+00 : f32
    %47 = vector.broadcast %cst_20 : f32 to vector<16x128xf32>
    %48 = arith.cmpf oge, %14, %47 : vector<16x128xf32>
    %cst_21 = arith.constant 0.000000e+00 : f32
    %49 = vector.broadcast %cst_21 : f32 to vector<16x128xf32>
    %50 = arith.subf %49, %46 : vector<16x128xf32>
    %51 = arith.select %48, %46, %50 : vector<16x128xi1>, vector<16x128xf32>
    %cst_22 = arith.constant 1.000000e+00 : f32
    %52 = vector.broadcast %cst_22 : f32 to vector<16x128xf32>
    %53 = arith.addf %52, %51 : vector<16x128xf32>
    %54 = arith.mulf %12, %53 : vector<16x128xf32>
    %c0_23 = arith.constant 0 : index
    %c0_24 = arith.constant 0 : index
    %55 = vector.load %arg12[%c0_23, %c0_24] : memref<16x32xf32, #tpu.memory_space<vmem>>, vector<16x32xf32>
    %56 = arith.truncf %54 : vector<16x128xf32> to vector<16x128xbf16>
    %c0_25 = arith.constant 0 : index
    %c0_26 = arith.constant 0 : index
    %57 = vector.load %arg5[%c0_25, %c0_26] : memref<128x32xbf16, #tpu.memory_space<vmem>>, vector<128x32xbf16>
    %cst_27 = arith.constant dense<0.000000e+00> : vector<16x32xf32>
    %58 = tpu.matmul %56, %57, %cst_27 {dimension_numbers = #tpu.dot_dimension_numbers<[1], [0], [0], [1], [0, 0, 1, 1], [], []>} : vector<16x128xbf16>, vector<128x32xbf16>, vector<16x32xf32> -> vector<16x32xf32>
    %59 = arith.addf %55, %58 : vector<16x32xf32>
    %c0_28 = arith.constant 0 : index
    %c0_29 = arith.constant 0 : index
    %60 = vector.load %arg12[%c0_28, %c0_29] : memref<16x32xf32, #tpu.memory_space<vmem>>, vector<16x32xf32>
    tpu.vector_store %arg12[%c0_28, %c0_29], %59 {strides = array<i32>} : memref<16x32xf32, #tpu.memory_space<vmem>>, vector<16x32xf32>,
    %c0_i32_30 = arith.constant 0 : i32
    %61 = arith.cmpi eq, %arg1, %c0_i32_30 : i32
    %62 = arith.extui %61 : i1 to i32
    %c0_i32_31 = arith.constant 0 : i32
    %63 = arith.cmpi ne, %62, %c0_i32_31 : i32
    scf.if %63 {
      %c0_32 = arith.constant 0 : index
      %c0_33 = arith.constant 0 : index
      %64 = vector.load %arg12[%c0_32, %c0_33] : memref<16x32xf32, #tpu.memory_space<vmem>>, vector<16x32xf32>
      %c0_34 = arith.constant 0 : index
      %c0_35 = arith.constant 0 : index
      %65 = vector.load %arg6[%c0_34, %c0_35] : memref<1x32xf32, #tpu.memory_space<vmem>>, vector<1x32xf32>
      %66 = vector.broadcast %65 : vector<1x32xf32> to vector<16x32xf32>
      %67 = arith.addf %64, %66 : vector<16x32xf32>
      %68 = arith.addf %4, %67 : vector<16x32xf32>
      %c0_36 = arith.constant 0 : index
      %c0_37 = arith.constant 0 : index
      %69 = vector.load %arg7[%c0_36, %c0_37] : memref<1x32xf32, #tpu.memory_space<vmem>>, vector<1x32xf32>
      %c0_38 = arith.constant 0 : index
      %c0_39 = arith.constant 0 : index
      %70 = vector.load %arg8[%c0_38, %c0_39] : memref<1x32xf32, #tpu.memory_space<vmem>>, vector<1x32xf32>
      %cst_40 = arith.constant dense<0.000000e+00> : vector<16xf32>
      %71 = vector.multi_reduction <add>, %68, %cst_40 [1] : vector<16x32xf32> to vector<16xf32>
      %72 = vector.shape_cast %71 : vector<16xf32> to vector<16x1xf32>
      %cst_41 = arith.constant 3.200000e+01 : f32
      %73 = vector.broadcast %cst_41 : f32 to vector<16x1xf32>
      %74 = arith.divf %72, %73 : vector<16x1xf32>
      %75 = vector.broadcast %74 : vector<16x1xf32> to vector<16x32xf32>
      %76 = arith.subf %68, %75 : vector<16x32xf32>
      %77 = arith.mulf %76, %76 : vector<16x32xf32>
      %cst_42 = arith.constant dense<0.000000e+00> : vector<16xf32>
      %78 = vector.multi_reduction <add>, %77, %cst_42 [1] : vector<16x32xf32> to vector<16xf32>
      %79 = vector.shape_cast %78 : vector<16xf32> to vector<16x1xf32>
      %cst_43 = arith.constant 3.200000e+01 : f32
      %80 = vector.broadcast %cst_43 : f32 to vector<16x1xf32>
      %81 = arith.divf %79, %80 : vector<16x1xf32>
      %cst_44 = arith.constant 9.99999974E-6 : f32
      %82 = vector.broadcast %cst_44 : f32 to vector<16x1xf32>
      %83 = arith.addf %81, %82 : vector<16x1xf32>
      %84 = math.rsqrt %83 : vector<16x1xf32>
      %85 = vector.broadcast %84 : vector<16x1xf32> to vector<16x32xf32>
      %86 = arith.mulf %76, %85 : vector<16x32xf32>
      %87 = vector.broadcast %69 : vector<1x32xf32> to vector<16x32xf32>
      %88 = arith.mulf %86, %87 : vector<16x32xf32>
      %89 = vector.broadcast %70 : vector<1x32xf32> to vector<16x32xf32>
      %90 = arith.addf %88, %89 : vector<16x32xf32>
      %c0_45 = arith.constant 0 : index
      %c0_46 = arith.constant 0 : index
      %91 = vector.load %arg9[%c0_45, %c0_46] : memref<1x32xf32, #tpu.memory_space<vmem>>, vector<1x32xf32>
      %c0_47 = arith.constant 0 : index
      %c0_48 = arith.constant 0 : index
      %92 = vector.load %arg10[%c0_47, %c0_48] : memref<1x32xf32, #tpu.memory_space<vmem>>, vector<1x32xf32>
      %cst_49 = arith.constant dense<0.000000e+00> : vector<16xf32>
      %93 = vector.multi_reduction <add>, %90, %cst_49 [1] : vector<16x32xf32> to vector<16xf32>
      %94 = vector.shape_cast %93 : vector<16xf32> to vector<16x1xf32>
      %cst_50 = arith.constant 3.200000e+01 : f32
      %95 = vector.broadcast %cst_50 : f32 to vector<16x1xf32>
      %96 = arith.divf %94, %95 : vector<16x1xf32>
      %97 = vector.broadcast %96 : vector<16x1xf32> to vector<16x32xf32>
      %98 = arith.subf %90, %97 : vector<16x32xf32>
      %99 = arith.mulf %98, %98 : vector<16x32xf32>
      %cst_51 = arith.constant dense<0.000000e+00> : vector<16xf32>
      %100 = vector.multi_reduction <add>, %99, %cst_51 [1] : vector<16x32xf32> to vector<16xf32>
      %101 = vector.shape_cast %100 : vector<16xf32> to vector<16x1xf32>
      %cst_52 = arith.constant 3.200000e+01 : f32
      %102 = vector.broadcast %cst_52 : f32 to vector<16x1xf32>
      %103 = arith.divf %101, %102 : vector<16x1xf32>
      %cst_53 = arith.constant 9.99999974E-6 : f32
      %104 = vector.broadcast %cst_53 : f32 to vector<16x1xf32>
      %105 = arith.addf %103, %104 : vector<16x1xf32>
      %106 = math.rsqrt %105 : vector<16x1xf32>
      %107 = vector.broadcast %106 : vector<16x1xf32> to vector<16x32xf32>
      %108 = arith.mulf %98, %107 : vector<16x32xf32>
      %109 = vector.broadcast %91 : vector<1x32xf32> to vector<16x32xf32>
      %110 = arith.mulf %108, %109 : vector<16x32xf32>
      %111 = vector.broadcast %92 : vector<1x32xf32> to vector<16x32xf32>
      %112 = arith.addf %110, %111 : vector<16x32xf32>
      %113 = arith.truncf %112 : vector<16x32xf32> to vector<16x32xbf16>
      %c0_54 = arith.constant 0 : index
      %c0_55 = arith.constant 0 : index
      %114 = vector.load %arg11[%c0_54, %c0_55] : memref<16x32xbf16, #tpu.memory_space<vmem>>, vector<16x32xbf16>
      tpu.vector_store %arg11[%c0_54, %c0_55], %113 {strides = array<i32>} : memref<16x32xbf16, #tpu.memory_space<vmem>>, vector<16x32xbf16>,
    } else {
    }
    return
  }
  func.func @transform_0(%arg0: i32, %arg1: i32) -> (i32, i32) {
    %c0_i32 = arith.constant 0 : i32
    %c0_i32_0 = arith.constant 0 : i32
    return %arg0, %c0_i32 : i32, i32
  }
  func.func @transform_1(%arg0: i32, %arg1: i32) -> (i32, i32) {
    %c0_i32 = arith.constant 0 : i32
    %c0_i32_0 = arith.constant 0 : i32
    return %c0_i32, %arg1 : i32, i32
  }
  func.func @transform_2(%arg0: i32, %arg1: i32) -> (i32, i32) {
    %c0_i32 = arith.constant 0 : i32
    %c0_i32_0 = arith.constant 0 : i32
    return %c0_i32, %arg1 : i32, i32
  }
  func.func @transform_3(%arg0: i32, %arg1: i32) -> (i32, i32) {
    %c0_i32 = arith.constant 0 : i32
    %c0_i32_0 = arith.constant 0 : i32
    return %arg1, %c0_i32 : i32, i32
  }
  func.func @transform_4(%arg0: i32, %arg1: i32) -> (i32, i32) {
    %c0_i32 = arith.constant 0 : i32
    %c0_i32_0 = arith.constant 0 : i32
    %c0_i32_1 = arith.constant 0 : i32
    return %c0_i32, %c0_i32_0 : i32, i32
  }
  func.func @transform_5(%arg0: i32, %arg1: i32) -> (i32, i32) {
    %c0_i32 = arith.constant 0 : i32
    %c0_i32_0 = arith.constant 0 : i32
    %c0_i32_1 = arith.constant 0 : i32
    return %c0_i32, %c0_i32_0 : i32, i32
  }
  func.func @transform_6(%arg0: i32, %arg1: i32) -> (i32, i32) {
    %c0_i32 = arith.constant 0 : i32
    %c0_i32_0 = arith.constant 0 : i32
    %c0_i32_1 = arith.constant 0 : i32
    return %c0_i32, %c0_i32_0 : i32, i32
  }
  func.func @transform_7(%arg0: i32, %arg1: i32) -> (i32, i32) {
    %c0_i32 = arith.constant 0 : i32
    %c0_i32_0 = arith.constant 0 : i32
    %c0_i32_1 = arith.constant 0 : i32
    return %c0_i32, %c0_i32_0 : i32, i32
  }
  func.func @transform_8(%arg0: i32, %arg1: i32) -> (i32, i32) {
    %c0_i32 = arith.constant 0 : i32
    %c0_i32_0 = arith.constant 0 : i32
    %c0_i32_1 = arith.constant 0 : i32
    return %c0_i32, %c0_i32_0 : i32, i32
  }
  func.func @transform_9(%arg0: i32, %arg1: i32) -> (i32, i32) {
    %c0_i32 = arith.constant 0 : i32
    %c0_i32_0 = arith.constant 0 : i32
    return %arg0, %c0_i32 : i32, i32
  }
}

module attributes {stable_mosaic.version = 11 : i64} {
  func.func @_mha_self_kernel(%arg0: i32, %arg1: memref<1x8x32xbf16, #tpu.memory_space<vmem>>, %arg2: memref<32x32xbf16, #tpu.memory_space<vmem>>, %arg3: memref<1x32xf32, #tpu.memory_space<vmem>>, %arg4: memref<32x64xbf16, #tpu.memory_space<vmem>>, %arg5: memref<1x64xf32, #tpu.memory_space<vmem>>, %arg6: memref<32x32xbf16, #tpu.memory_space<vmem>>, %arg7: memref<1x32xf32, #tpu.memory_space<vmem>>, %arg8: memref<1x32xf32, #tpu.memory_space<vmem>>, %arg9: memref<1x32xf32, #tpu.memory_space<vmem>>, %arg10: memref<1x8x32xbf16, #tpu.memory_space<vmem>>) attributes {dimension_semantics = [#tpu.dimension_semantics<parallel>], iteration_bounds = array<i64: 2>, scalar_prefetch = 0 : i64, scratch_operands = 0 : i64, tpu.core_type = #tpu.core_type<tc>, window_params = [{transform_indices = @transform_0, window_bounds = array<i64: 1, 8, 32>}, {pipeline_mode = #tpu.pipeline_mode<synchronous>, transform_indices = @transform_1, window_bounds = array<i64: 32, 32>}, {pipeline_mode = #tpu.pipeline_mode<synchronous>, transform_indices = @transform_2, window_bounds = array<i64: 1, 32>}, {pipeline_mode = #tpu.pipeline_mode<synchronous>, transform_indices = @transform_3, window_bounds = array<i64: 32, 64>}, {pipeline_mode = #tpu.pipeline_mode<synchronous>, transform_indices = @transform_4, window_bounds = array<i64: 1, 64>}, {pipeline_mode = #tpu.pipeline_mode<synchronous>, transform_indices = @transform_5, window_bounds = array<i64: 32, 32>}, {pipeline_mode = #tpu.pipeline_mode<synchronous>, transform_indices = @transform_6, window_bounds = array<i64: 1, 32>}, {pipeline_mode = #tpu.pipeline_mode<synchronous>, transform_indices = @transform_7, window_bounds = array<i64: 1, 32>}, {pipeline_mode = #tpu.pipeline_mode<synchronous>, transform_indices = @transform_8, window_bounds = array<i64: 1, 32>}, {transform_indices = @transform_9, window_bounds = array<i64: 1, 8, 32>}]} {
    %c0 = arith.constant 0 : index
    %c0_0 = arith.constant 0 : index
    %c0_1 = arith.constant 0 : index
    %0 = vector.load %arg1[%c0, %c0_0, %c0_1] : memref<1x8x32xbf16, #tpu.memory_space<vmem>>, vector<1x8x32xbf16>
    %1 = vector.shape_cast %0 : vector<1x8x32xbf16> to vector<8x32xbf16>
    %2 = arith.extf %1 : vector<8x32xbf16> to vector<8x32xf32>
    %3 = arith.truncf %2 : vector<8x32xf32> to vector<8x32xbf16>
    %c0_2 = arith.constant 0 : index
    %c0_3 = arith.constant 0 : index
    %4 = vector.load %arg2[%c0_2, %c0_3] : memref<32x32xbf16, #tpu.memory_space<vmem>>, vector<32x32xbf16>
    %cst = arith.constant dense<0.000000e+00> : vector<8x32xf32>
    %5 = tpu.matmul %3, %4, %cst {dimension_numbers = #tpu.dot_dimension_numbers<[1], [0], [0], [1], [0, 0, 1, 1], [], []>} : vector<8x32xbf16>, vector<32x32xbf16>, vector<8x32xf32> -> vector<8x32xf32>
    %c0_4 = arith.constant 0 : index
    %c0_5 = arith.constant 0 : index
    %6 = vector.load %arg3[%c0_4, %c0_5] : memref<1x32xf32, #tpu.memory_space<vmem>>, vector<1x32xf32>
    %7 = vector.broadcast %6 : vector<1x32xf32> to vector<8x32xf32>
    %8 = arith.addf %5, %7 : vector<8x32xf32>
    %9 = arith.truncf %2 : vector<8x32xf32> to vector<8x32xbf16>
    %c0_6 = arith.constant 0 : index
    %c0_7 = arith.constant 0 : index
    %10 = vector.load %arg4[%c0_6, %c0_7] : memref<32x64xbf16, #tpu.memory_space<vmem>>, vector<32x64xbf16>
    %cst_8 = arith.constant dense<0.000000e+00> : vector<8x64xf32>
    %11 = tpu.matmul %9, %10, %cst_8 {dimension_numbers = #tpu.dot_dimension_numbers<[1], [0], [0], [1], [0, 0, 1, 1], [], []>} : vector<8x32xbf16>, vector<32x64xbf16>, vector<8x64xf32> -> vector<8x64xf32>
    %c0_9 = arith.constant 0 : index
    %c0_10 = arith.constant 0 : index
    %12 = vector.load %arg5[%c0_9, %c0_10] : memref<1x64xf32, #tpu.memory_space<vmem>>, vector<1x64xf32>
    %13 = vector.broadcast %12 : vector<1x64xf32> to vector<8x64xf32>
    %14 = arith.addf %11, %13 : vector<8x64xf32>
    %15 = vector.extract_strided_slice %14 {offsets = [0, 0], sizes = [8, 32], strides = [1, 1]} : vector<8x64xf32> to vector<8x32xf32>
    %16 = vector.extract_strided_slice %14 {offsets = [0, 32], sizes = [8, 32], strides = [1, 1]} : vector<8x64xf32> to vector<8x32xf32>
    %17 = tpu.iota {dimensions = array<i32: 0>} : vector<8x8xi32>
    %18 = tpu.iota {dimensions = array<i32: 1>} : vector<8x8xi32>
    %19 = arith.cmpi sle, %18, %17 : vector<8x8xi32>
    %20 = vector.extract_strided_slice %8 {offsets = [0, 0], sizes = [8, 4], strides = [1, 1]} : vector<8x32xf32> to vector<8x4xf32>
    %cst_11 = arith.constant 5.000000e-01 : f32
    %21 = vector.broadcast %cst_11 : f32 to vector<8x4xf32>
    %22 = arith.mulf %20, %21 : vector<8x4xf32>
    %23 = arith.truncf %22 : vector<8x4xf32> to vector<8x4xbf16>
    %24 = vector.extract_strided_slice %15 {offsets = [0, 0], sizes = [8, 4], strides = [1, 1]} : vector<8x32xf32> to vector<8x4xf32>
    %25 = arith.truncf %24 : vector<8x4xf32> to vector<8x4xbf16>
    %26 = vector.extract_strided_slice %16 {offsets = [0, 0], sizes = [8, 4], strides = [1, 1]} : vector<8x32xf32> to vector<8x4xf32>
    %27 = arith.truncf %26 : vector<8x4xf32> to vector<8x4xbf16>
    %cst_12 = arith.constant dense<0.000000e+00> : vector<8x8xf32>
    %28 = tpu.matmul %23, %25, %cst_12 {dimension_numbers = #tpu.dot_dimension_numbers<[1], [1], [0], [0], [0, 0, 1, 0], [], []>} : vector<8x4xbf16>, vector<8x4xbf16>, vector<8x8xf32> -> vector<8x8xf32>
    %cst_13 = arith.constant 0xFF800000 : f32
    %29 = vector.broadcast %cst_13 : f32 to vector<8x8xf32>
    %30 = arith.select %19, %28, %29 : vector<8x8xi1>, vector<8x8xf32>
    %cst_14 = arith.constant dense<0xFF800000> : vector<8xf32>
    %31 = vector.multi_reduction <maximumf>, %30, %cst_14 [1] : vector<8x8xf32> to vector<8xf32>
    %32 = vector.shape_cast %31 : vector<8xf32> to vector<8x1xf32>
    %33 = vector.broadcast %32 : vector<8x1xf32> to vector<8x8xf32>
    %34 = arith.subf %30, %33 : vector<8x8xf32>
    %35 = math.exp %34 : vector<8x8xf32>
    %cst_15 = arith.constant dense<0.000000e+00> : vector<8xf32>
    %36 = vector.multi_reduction <add>, %35, %cst_15 [1] : vector<8x8xf32> to vector<8xf32>
    %37 = vector.shape_cast %36 : vector<8xf32> to vector<8x1xf32>
    %38 = tpu.reciprocal %37 {approx = true} : vector<8x1xf32> -> vector<8x1xf32>
    %39 = vector.broadcast %38 : vector<8x1xf32> to vector<8x8xf32>
    %40 = arith.mulf %35, %39 : vector<8x8xf32>
    %41 = arith.truncf %40 : vector<8x8xf32> to vector<8x8xbf16>
    %cst_16 = arith.constant dense<0.000000e+00> : vector<8x4xf32>
    %42 = tpu.matmul %41, %27, %cst_16 {dimension_numbers = #tpu.dot_dimension_numbers<[1], [0], [0], [1], [0, 0, 1, 1], [], []>} : vector<8x8xbf16>, vector<8x4xbf16>, vector<8x4xf32> -> vector<8x4xf32>
    %43 = vector.extract_strided_slice %8 {offsets = [0, 4], sizes = [8, 4], strides = [1, 1]} : vector<8x32xf32> to vector<8x4xf32>
    %cst_17 = arith.constant 5.000000e-01 : f32
    %44 = vector.broadcast %cst_17 : f32 to vector<8x4xf32>
    %45 = arith.mulf %43, %44 : vector<8x4xf32>
    %46 = arith.truncf %45 : vector<8x4xf32> to vector<8x4xbf16>
    %47 = vector.extract_strided_slice %15 {offsets = [0, 4], sizes = [8, 4], strides = [1, 1]} : vector<8x32xf32> to vector<8x4xf32>
    %48 = arith.truncf %47 : vector<8x4xf32> to vector<8x4xbf16>
    %49 = vector.extract_strided_slice %16 {offsets = [0, 4], sizes = [8, 4], strides = [1, 1]} : vector<8x32xf32> to vector<8x4xf32>
    %50 = arith.truncf %49 : vector<8x4xf32> to vector<8x4xbf16>
    %cst_18 = arith.constant dense<0.000000e+00> : vector<8x8xf32>
    %51 = tpu.matmul %46, %48, %cst_18 {dimension_numbers = #tpu.dot_dimension_numbers<[1], [1], [0], [0], [0, 0, 1, 0], [], []>} : vector<8x4xbf16>, vector<8x4xbf16>, vector<8x8xf32> -> vector<8x8xf32>
    %cst_19 = arith.constant 0xFF800000 : f32
    %52 = vector.broadcast %cst_19 : f32 to vector<8x8xf32>
    %53 = arith.select %19, %51, %52 : vector<8x8xi1>, vector<8x8xf32>
    %cst_20 = arith.constant dense<0xFF800000> : vector<8xf32>
    %54 = vector.multi_reduction <maximumf>, %53, %cst_20 [1] : vector<8x8xf32> to vector<8xf32>
    %55 = vector.shape_cast %54 : vector<8xf32> to vector<8x1xf32>
    %56 = vector.broadcast %55 : vector<8x1xf32> to vector<8x8xf32>
    %57 = arith.subf %53, %56 : vector<8x8xf32>
    %58 = math.exp %57 : vector<8x8xf32>
    %cst_21 = arith.constant dense<0.000000e+00> : vector<8xf32>
    %59 = vector.multi_reduction <add>, %58, %cst_21 [1] : vector<8x8xf32> to vector<8xf32>
    %60 = vector.shape_cast %59 : vector<8xf32> to vector<8x1xf32>
    %61 = tpu.reciprocal %60 {approx = true} : vector<8x1xf32> -> vector<8x1xf32>
    %62 = vector.broadcast %61 : vector<8x1xf32> to vector<8x8xf32>
    %63 = arith.mulf %58, %62 : vector<8x8xf32>
    %64 = arith.truncf %63 : vector<8x8xf32> to vector<8x8xbf16>
    %cst_22 = arith.constant dense<0.000000e+00> : vector<8x4xf32>
    %65 = tpu.matmul %64, %50, %cst_22 {dimension_numbers = #tpu.dot_dimension_numbers<[1], [0], [0], [1], [0, 0, 1, 1], [], []>} : vector<8x8xbf16>, vector<8x4xbf16>, vector<8x4xf32> -> vector<8x4xf32>
    %66 = vector.extract_strided_slice %8 {offsets = [0, 8], sizes = [8, 4], strides = [1, 1]} : vector<8x32xf32> to vector<8x4xf32>
    %cst_23 = arith.constant 5.000000e-01 : f32
    %67 = vector.broadcast %cst_23 : f32 to vector<8x4xf32>
    %68 = arith.mulf %66, %67 : vector<8x4xf32>
    %69 = arith.truncf %68 : vector<8x4xf32> to vector<8x4xbf16>
    %70 = vector.extract_strided_slice %15 {offsets = [0, 8], sizes = [8, 4], strides = [1, 1]} : vector<8x32xf32> to vector<8x4xf32>
    %71 = arith.truncf %70 : vector<8x4xf32> to vector<8x4xbf16>
    %72 = vector.extract_strided_slice %16 {offsets = [0, 8], sizes = [8, 4], strides = [1, 1]} : vector<8x32xf32> to vector<8x4xf32>
    %73 = arith.truncf %72 : vector<8x4xf32> to vector<8x4xbf16>
    %cst_24 = arith.constant dense<0.000000e+00> : vector<8x8xf32>
    %74 = tpu.matmul %69, %71, %cst_24 {dimension_numbers = #tpu.dot_dimension_numbers<[1], [1], [0], [0], [0, 0, 1, 0], [], []>} : vector<8x4xbf16>, vector<8x4xbf16>, vector<8x8xf32> -> vector<8x8xf32>
    %cst_25 = arith.constant 0xFF800000 : f32
    %75 = vector.broadcast %cst_25 : f32 to vector<8x8xf32>
    %76 = arith.select %19, %74, %75 : vector<8x8xi1>, vector<8x8xf32>
    %cst_26 = arith.constant dense<0xFF800000> : vector<8xf32>
    %77 = vector.multi_reduction <maximumf>, %76, %cst_26 [1] : vector<8x8xf32> to vector<8xf32>
    %78 = vector.shape_cast %77 : vector<8xf32> to vector<8x1xf32>
    %79 = vector.broadcast %78 : vector<8x1xf32> to vector<8x8xf32>
    %80 = arith.subf %76, %79 : vector<8x8xf32>
    %81 = math.exp %80 : vector<8x8xf32>
    %cst_27 = arith.constant dense<0.000000e+00> : vector<8xf32>
    %82 = vector.multi_reduction <add>, %81, %cst_27 [1] : vector<8x8xf32> to vector<8xf32>
    %83 = vector.shape_cast %82 : vector<8xf32> to vector<8x1xf32>
    %84 = tpu.reciprocal %83 {approx = true} : vector<8x1xf32> -> vector<8x1xf32>
    %85 = vector.broadcast %84 : vector<8x1xf32> to vector<8x8xf32>
    %86 = arith.mulf %81, %85 : vector<8x8xf32>
    %87 = arith.truncf %86 : vector<8x8xf32> to vector<8x8xbf16>
    %cst_28 = arith.constant dense<0.000000e+00> : vector<8x4xf32>
    %88 = tpu.matmul %87, %73, %cst_28 {dimension_numbers = #tpu.dot_dimension_numbers<[1], [0], [0], [1], [0, 0, 1, 1], [], []>} : vector<8x8xbf16>, vector<8x4xbf16>, vector<8x4xf32> -> vector<8x4xf32>
    %89 = vector.extract_strided_slice %8 {offsets = [0, 12], sizes = [8, 4], strides = [1, 1]} : vector<8x32xf32> to vector<8x4xf32>
    %cst_29 = arith.constant 5.000000e-01 : f32
    %90 = vector.broadcast %cst_29 : f32 to vector<8x4xf32>
    %91 = arith.mulf %89, %90 : vector<8x4xf32>
    %92 = arith.truncf %91 : vector<8x4xf32> to vector<8x4xbf16>
    %93 = vector.extract_strided_slice %15 {offsets = [0, 12], sizes = [8, 4], strides = [1, 1]} : vector<8x32xf32> to vector<8x4xf32>
    %94 = arith.truncf %93 : vector<8x4xf32> to vector<8x4xbf16>
    %95 = vector.extract_strided_slice %16 {offsets = [0, 12], sizes = [8, 4], strides = [1, 1]} : vector<8x32xf32> to vector<8x4xf32>
    %96 = arith.truncf %95 : vector<8x4xf32> to vector<8x4xbf16>
    %cst_30 = arith.constant dense<0.000000e+00> : vector<8x8xf32>
    %97 = tpu.matmul %92, %94, %cst_30 {dimension_numbers = #tpu.dot_dimension_numbers<[1], [1], [0], [0], [0, 0, 1, 0], [], []>} : vector<8x4xbf16>, vector<8x4xbf16>, vector<8x8xf32> -> vector<8x8xf32>
    %cst_31 = arith.constant 0xFF800000 : f32
    %98 = vector.broadcast %cst_31 : f32 to vector<8x8xf32>
    %99 = arith.select %19, %97, %98 : vector<8x8xi1>, vector<8x8xf32>
    %cst_32 = arith.constant dense<0xFF800000> : vector<8xf32>
    %100 = vector.multi_reduction <maximumf>, %99, %cst_32 [1] : vector<8x8xf32> to vector<8xf32>
    %101 = vector.shape_cast %100 : vector<8xf32> to vector<8x1xf32>
    %102 = vector.broadcast %101 : vector<8x1xf32> to vector<8x8xf32>
    %103 = arith.subf %99, %102 : vector<8x8xf32>
    %104 = math.exp %103 : vector<8x8xf32>
    %cst_33 = arith.constant dense<0.000000e+00> : vector<8xf32>
    %105 = vector.multi_reduction <add>, %104, %cst_33 [1] : vector<8x8xf32> to vector<8xf32>
    %106 = vector.shape_cast %105 : vector<8xf32> to vector<8x1xf32>
    %107 = tpu.reciprocal %106 {approx = true} : vector<8x1xf32> -> vector<8x1xf32>
    %108 = vector.broadcast %107 : vector<8x1xf32> to vector<8x8xf32>
    %109 = arith.mulf %104, %108 : vector<8x8xf32>
    %110 = arith.truncf %109 : vector<8x8xf32> to vector<8x8xbf16>
    %cst_34 = arith.constant dense<0.000000e+00> : vector<8x4xf32>
    %111 = tpu.matmul %110, %96, %cst_34 {dimension_numbers = #tpu.dot_dimension_numbers<[1], [0], [0], [1], [0, 0, 1, 1], [], []>} : vector<8x8xbf16>, vector<8x4xbf16>, vector<8x4xf32> -> vector<8x4xf32>
    %112 = vector.extract_strided_slice %8 {offsets = [0, 16], sizes = [8, 4], strides = [1, 1]} : vector<8x32xf32> to vector<8x4xf32>
    %cst_35 = arith.constant 5.000000e-01 : f32
    %113 = vector.broadcast %cst_35 : f32 to vector<8x4xf32>
    %114 = arith.mulf %112, %113 : vector<8x4xf32>
    %115 = arith.truncf %114 : vector<8x4xf32> to vector<8x4xbf16>
    %116 = vector.extract_strided_slice %15 {offsets = [0, 16], sizes = [8, 4], strides = [1, 1]} : vector<8x32xf32> to vector<8x4xf32>
    %117 = arith.truncf %116 : vector<8x4xf32> to vector<8x4xbf16>
    %118 = vector.extract_strided_slice %16 {offsets = [0, 16], sizes = [8, 4], strides = [1, 1]} : vector<8x32xf32> to vector<8x4xf32>
    %119 = arith.truncf %118 : vector<8x4xf32> to vector<8x4xbf16>
    %cst_36 = arith.constant dense<0.000000e+00> : vector<8x8xf32>
    %120 = tpu.matmul %115, %117, %cst_36 {dimension_numbers = #tpu.dot_dimension_numbers<[1], [1], [0], [0], [0, 0, 1, 0], [], []>} : vector<8x4xbf16>, vector<8x4xbf16>, vector<8x8xf32> -> vector<8x8xf32>
    %cst_37 = arith.constant 0xFF800000 : f32
    %121 = vector.broadcast %cst_37 : f32 to vector<8x8xf32>
    %122 = arith.select %19, %120, %121 : vector<8x8xi1>, vector<8x8xf32>
    %cst_38 = arith.constant dense<0xFF800000> : vector<8xf32>
    %123 = vector.multi_reduction <maximumf>, %122, %cst_38 [1] : vector<8x8xf32> to vector<8xf32>
    %124 = vector.shape_cast %123 : vector<8xf32> to vector<8x1xf32>
    %125 = vector.broadcast %124 : vector<8x1xf32> to vector<8x8xf32>
    %126 = arith.subf %122, %125 : vector<8x8xf32>
    %127 = math.exp %126 : vector<8x8xf32>
    %cst_39 = arith.constant dense<0.000000e+00> : vector<8xf32>
    %128 = vector.multi_reduction <add>, %127, %cst_39 [1] : vector<8x8xf32> to vector<8xf32>
    %129 = vector.shape_cast %128 : vector<8xf32> to vector<8x1xf32>
    %130 = tpu.reciprocal %129 {approx = true} : vector<8x1xf32> -> vector<8x1xf32>
    %131 = vector.broadcast %130 : vector<8x1xf32> to vector<8x8xf32>
    %132 = arith.mulf %127, %131 : vector<8x8xf32>
    %133 = arith.truncf %132 : vector<8x8xf32> to vector<8x8xbf16>
    %cst_40 = arith.constant dense<0.000000e+00> : vector<8x4xf32>
    %134 = tpu.matmul %133, %119, %cst_40 {dimension_numbers = #tpu.dot_dimension_numbers<[1], [0], [0], [1], [0, 0, 1, 1], [], []>} : vector<8x8xbf16>, vector<8x4xbf16>, vector<8x4xf32> -> vector<8x4xf32>
    %135 = vector.extract_strided_slice %8 {offsets = [0, 20], sizes = [8, 4], strides = [1, 1]} : vector<8x32xf32> to vector<8x4xf32>
    %cst_41 = arith.constant 5.000000e-01 : f32
    %136 = vector.broadcast %cst_41 : f32 to vector<8x4xf32>
    %137 = arith.mulf %135, %136 : vector<8x4xf32>
    %138 = arith.truncf %137 : vector<8x4xf32> to vector<8x4xbf16>
    %139 = vector.extract_strided_slice %15 {offsets = [0, 20], sizes = [8, 4], strides = [1, 1]} : vector<8x32xf32> to vector<8x4xf32>
    %140 = arith.truncf %139 : vector<8x4xf32> to vector<8x4xbf16>
    %141 = vector.extract_strided_slice %16 {offsets = [0, 20], sizes = [8, 4], strides = [1, 1]} : vector<8x32xf32> to vector<8x4xf32>
    %142 = arith.truncf %141 : vector<8x4xf32> to vector<8x4xbf16>
    %cst_42 = arith.constant dense<0.000000e+00> : vector<8x8xf32>
    %143 = tpu.matmul %138, %140, %cst_42 {dimension_numbers = #tpu.dot_dimension_numbers<[1], [1], [0], [0], [0, 0, 1, 0], [], []>} : vector<8x4xbf16>, vector<8x4xbf16>, vector<8x8xf32> -> vector<8x8xf32>
    %cst_43 = arith.constant 0xFF800000 : f32
    %144 = vector.broadcast %cst_43 : f32 to vector<8x8xf32>
    %145 = arith.select %19, %143, %144 : vector<8x8xi1>, vector<8x8xf32>
    %cst_44 = arith.constant dense<0xFF800000> : vector<8xf32>
    %146 = vector.multi_reduction <maximumf>, %145, %cst_44 [1] : vector<8x8xf32> to vector<8xf32>
    %147 = vector.shape_cast %146 : vector<8xf32> to vector<8x1xf32>
    %148 = vector.broadcast %147 : vector<8x1xf32> to vector<8x8xf32>
    %149 = arith.subf %145, %148 : vector<8x8xf32>
    %150 = math.exp %149 : vector<8x8xf32>
    %cst_45 = arith.constant dense<0.000000e+00> : vector<8xf32>
    %151 = vector.multi_reduction <add>, %150, %cst_45 [1] : vector<8x8xf32> to vector<8xf32>
    %152 = vector.shape_cast %151 : vector<8xf32> to vector<8x1xf32>
    %153 = tpu.reciprocal %152 {approx = true} : vector<8x1xf32> -> vector<8x1xf32>
    %154 = vector.broadcast %153 : vector<8x1xf32> to vector<8x8xf32>
    %155 = arith.mulf %150, %154 : vector<8x8xf32>
    %156 = arith.truncf %155 : vector<8x8xf32> to vector<8x8xbf16>
    %cst_46 = arith.constant dense<0.000000e+00> : vector<8x4xf32>
    %157 = tpu.matmul %156, %142, %cst_46 {dimension_numbers = #tpu.dot_dimension_numbers<[1], [0], [0], [1], [0, 0, 1, 1], [], []>} : vector<8x8xbf16>, vector<8x4xbf16>, vector<8x4xf32> -> vector<8x4xf32>
    %158 = vector.extract_strided_slice %8 {offsets = [0, 24], sizes = [8, 4], strides = [1, 1]} : vector<8x32xf32> to vector<8x4xf32>
    %cst_47 = arith.constant 5.000000e-01 : f32
    %159 = vector.broadcast %cst_47 : f32 to vector<8x4xf32>
    %160 = arith.mulf %158, %159 : vector<8x4xf32>
    %161 = arith.truncf %160 : vector<8x4xf32> to vector<8x4xbf16>
    %162 = vector.extract_strided_slice %15 {offsets = [0, 24], sizes = [8, 4], strides = [1, 1]} : vector<8x32xf32> to vector<8x4xf32>
    %163 = arith.truncf %162 : vector<8x4xf32> to vector<8x4xbf16>
    %164 = vector.extract_strided_slice %16 {offsets = [0, 24], sizes = [8, 4], strides = [1, 1]} : vector<8x32xf32> to vector<8x4xf32>
    %165 = arith.truncf %164 : vector<8x4xf32> to vector<8x4xbf16>
    %cst_48 = arith.constant dense<0.000000e+00> : vector<8x8xf32>
    %166 = tpu.matmul %161, %163, %cst_48 {dimension_numbers = #tpu.dot_dimension_numbers<[1], [1], [0], [0], [0, 0, 1, 0], [], []>} : vector<8x4xbf16>, vector<8x4xbf16>, vector<8x8xf32> -> vector<8x8xf32>
    %cst_49 = arith.constant 0xFF800000 : f32
    %167 = vector.broadcast %cst_49 : f32 to vector<8x8xf32>
    %168 = arith.select %19, %166, %167 : vector<8x8xi1>, vector<8x8xf32>
    %cst_50 = arith.constant dense<0xFF800000> : vector<8xf32>
    %169 = vector.multi_reduction <maximumf>, %168, %cst_50 [1] : vector<8x8xf32> to vector<8xf32>
    %170 = vector.shape_cast %169 : vector<8xf32> to vector<8x1xf32>
    %171 = vector.broadcast %170 : vector<8x1xf32> to vector<8x8xf32>
    %172 = arith.subf %168, %171 : vector<8x8xf32>
    %173 = math.exp %172 : vector<8x8xf32>
    %cst_51 = arith.constant dense<0.000000e+00> : vector<8xf32>
    %174 = vector.multi_reduction <add>, %173, %cst_51 [1] : vector<8x8xf32> to vector<8xf32>
    %175 = vector.shape_cast %174 : vector<8xf32> to vector<8x1xf32>
    %176 = tpu.reciprocal %175 {approx = true} : vector<8x1xf32> -> vector<8x1xf32>
    %177 = vector.broadcast %176 : vector<8x1xf32> to vector<8x8xf32>
    %178 = arith.mulf %173, %177 : vector<8x8xf32>
    %179 = arith.truncf %178 : vector<8x8xf32> to vector<8x8xbf16>
    %cst_52 = arith.constant dense<0.000000e+00> : vector<8x4xf32>
    %180 = tpu.matmul %179, %165, %cst_52 {dimension_numbers = #tpu.dot_dimension_numbers<[1], [0], [0], [1], [0, 0, 1, 1], [], []>} : vector<8x8xbf16>, vector<8x4xbf16>, vector<8x4xf32> -> vector<8x4xf32>
    %181 = vector.extract_strided_slice %8 {offsets = [0, 28], sizes = [8, 4], strides = [1, 1]} : vector<8x32xf32> to vector<8x4xf32>
    %cst_53 = arith.constant 5.000000e-01 : f32
    %182 = vector.broadcast %cst_53 : f32 to vector<8x4xf32>
    %183 = arith.mulf %181, %182 : vector<8x4xf32>
    %184 = arith.truncf %183 : vector<8x4xf32> to vector<8x4xbf16>
    %185 = vector.extract_strided_slice %15 {offsets = [0, 28], sizes = [8, 4], strides = [1, 1]} : vector<8x32xf32> to vector<8x4xf32>
    %186 = arith.truncf %185 : vector<8x4xf32> to vector<8x4xbf16>
    %187 = vector.extract_strided_slice %16 {offsets = [0, 28], sizes = [8, 4], strides = [1, 1]} : vector<8x32xf32> to vector<8x4xf32>
    %188 = arith.truncf %187 : vector<8x4xf32> to vector<8x4xbf16>
    %cst_54 = arith.constant dense<0.000000e+00> : vector<8x8xf32>
    %189 = tpu.matmul %184, %186, %cst_54 {dimension_numbers = #tpu.dot_dimension_numbers<[1], [1], [0], [0], [0, 0, 1, 0], [], []>} : vector<8x4xbf16>, vector<8x4xbf16>, vector<8x8xf32> -> vector<8x8xf32>
    %cst_55 = arith.constant 0xFF800000 : f32
    %190 = vector.broadcast %cst_55 : f32 to vector<8x8xf32>
    %191 = arith.select %19, %189, %190 : vector<8x8xi1>, vector<8x8xf32>
    %cst_56 = arith.constant dense<0xFF800000> : vector<8xf32>
    %192 = vector.multi_reduction <maximumf>, %191, %cst_56 [1] : vector<8x8xf32> to vector<8xf32>
    %193 = vector.shape_cast %192 : vector<8xf32> to vector<8x1xf32>
    %194 = vector.broadcast %193 : vector<8x1xf32> to vector<8x8xf32>
    %195 = arith.subf %191, %194 : vector<8x8xf32>
    %196 = math.exp %195 : vector<8x8xf32>
    %cst_57 = arith.constant dense<0.000000e+00> : vector<8xf32>
    %197 = vector.multi_reduction <add>, %196, %cst_57 [1] : vector<8x8xf32> to vector<8xf32>
    %198 = vector.shape_cast %197 : vector<8xf32> to vector<8x1xf32>
    %199 = tpu.reciprocal %198 {approx = true} : vector<8x1xf32> -> vector<8x1xf32>
    %200 = vector.broadcast %199 : vector<8x1xf32> to vector<8x8xf32>
    %201 = arith.mulf %196, %200 : vector<8x8xf32>
    %202 = arith.truncf %201 : vector<8x8xf32> to vector<8x8xbf16>
    %cst_58 = arith.constant dense<0.000000e+00> : vector<8x4xf32>
    %203 = tpu.matmul %202, %188, %cst_58 {dimension_numbers = #tpu.dot_dimension_numbers<[1], [0], [0], [1], [0, 0, 1, 1], [], []>} : vector<8x8xbf16>, vector<8x4xbf16>, vector<8x4xf32> -> vector<8x4xf32>
    %204 = tpu.concatenate %42, %65, %88, %111, %134, %157, %180, %203 in 1 : vector<8x4xf32>, vector<8x4xf32>, vector<8x4xf32>, vector<8x4xf32>, vector<8x4xf32>, vector<8x4xf32>, vector<8x4xf32>, vector<8x4xf32> -> vector<8x32xf32>
    %205 = arith.truncf %204 : vector<8x32xf32> to vector<8x32xbf16>
    %c0_59 = arith.constant 0 : index
    %c0_60 = arith.constant 0 : index
    %206 = vector.load %arg6[%c0_59, %c0_60] : memref<32x32xbf16, #tpu.memory_space<vmem>>, vector<32x32xbf16>
    %cst_61 = arith.constant dense<0.000000e+00> : vector<8x32xf32>
    %207 = tpu.matmul %205, %206, %cst_61 {dimension_numbers = #tpu.dot_dimension_numbers<[1], [0], [0], [1], [0, 0, 1, 1], [], []>} : vector<8x32xbf16>, vector<32x32xbf16>, vector<8x32xf32> -> vector<8x32xf32>
    %c0_62 = arith.constant 0 : index
    %c0_63 = arith.constant 0 : index
    %208 = vector.load %arg7[%c0_62, %c0_63] : memref<1x32xf32, #tpu.memory_space<vmem>>, vector<1x32xf32>
    %209 = vector.broadcast %208 : vector<1x32xf32> to vector<8x32xf32>
    %210 = arith.addf %207, %209 : vector<8x32xf32>
    %211 = arith.addf %2, %210 : vector<8x32xf32>
    %c0_64 = arith.constant 0 : index
    %c0_65 = arith.constant 0 : index
    %212 = vector.load %arg8[%c0_64, %c0_65] : memref<1x32xf32, #tpu.memory_space<vmem>>, vector<1x32xf32>
    %c0_66 = arith.constant 0 : index
    %c0_67 = arith.constant 0 : index
    %213 = vector.load %arg9[%c0_66, %c0_67] : memref<1x32xf32, #tpu.memory_space<vmem>>, vector<1x32xf32>
    %cst_68 = arith.constant dense<0.000000e+00> : vector<8xf32>
    %214 = vector.multi_reduction <add>, %211, %cst_68 [1] : vector<8x32xf32> to vector<8xf32>
    %215 = vector.shape_cast %214 : vector<8xf32> to vector<8x1xf32>
    %cst_69 = arith.constant 3.200000e+01 : f32
    %216 = vector.broadcast %cst_69 : f32 to vector<8x1xf32>
    %217 = arith.divf %215, %216 : vector<8x1xf32>
    %218 = vector.broadcast %217 : vector<8x1xf32> to vector<8x32xf32>
    %219 = arith.subf %211, %218 : vector<8x32xf32>
    %220 = arith.mulf %219, %219 : vector<8x32xf32>
    %cst_70 = arith.constant dense<0.000000e+00> : vector<8xf32>
    %221 = vector.multi_reduction <add>, %220, %cst_70 [1] : vector<8x32xf32> to vector<8xf32>
    %222 = vector.shape_cast %221 : vector<8xf32> to vector<8x1xf32>
    %cst_71 = arith.constant 3.200000e+01 : f32
    %223 = vector.broadcast %cst_71 : f32 to vector<8x1xf32>
    %224 = arith.divf %222, %223 : vector<8x1xf32>
    %cst_72 = arith.constant 9.99999974E-6 : f32
    %225 = vector.broadcast %cst_72 : f32 to vector<8x1xf32>
    %226 = arith.addf %224, %225 : vector<8x1xf32>
    %227 = math.rsqrt %226 : vector<8x1xf32>
    %228 = vector.broadcast %227 : vector<8x1xf32> to vector<8x32xf32>
    %229 = arith.mulf %219, %228 : vector<8x32xf32>
    %230 = vector.broadcast %212 : vector<1x32xf32> to vector<8x32xf32>
    %231 = arith.mulf %229, %230 : vector<8x32xf32>
    %232 = vector.broadcast %213 : vector<1x32xf32> to vector<8x32xf32>
    %233 = arith.addf %231, %232 : vector<8x32xf32>
    %234 = arith.truncf %233 : vector<8x32xf32> to vector<8x32xbf16>
    %c0_73 = arith.constant 0 : index
    %c0_74 = arith.constant 0 : index
    %c0_75 = arith.constant 0 : index
    %235 = vector.load %arg10[%c0_73, %c0_74, %c0_75] : memref<1x8x32xbf16, #tpu.memory_space<vmem>>, vector<1x8x32xbf16>
    %236 = vector.shape_cast %235 : vector<1x8x32xbf16> to vector<8x32xbf16>
    %237 = vector.shape_cast %234 : vector<8x32xbf16> to vector<1x8x32xbf16>
    tpu.vector_store %arg10[%c0_73, %c0_74, %c0_75], %237 {strides = array<i32>} : memref<1x8x32xbf16, #tpu.memory_space<vmem>>, vector<1x8x32xbf16>,
    return
  }
  func.func @transform_0(%arg0: i32) -> (i32, i32, i32) {
    %c0_i32 = arith.constant 0 : i32
    %c0_i32_0 = arith.constant 0 : i32
    %c0_i32_1 = arith.constant 0 : i32
    return %arg0, %c0_i32, %c0_i32_0 : i32, i32, i32
  }
  func.func @transform_1(%arg0: i32) -> (i32, i32) {
    %c0_i32 = arith.constant 0 : i32
    %c0_i32_0 = arith.constant 0 : i32
    %c0_i32_1 = arith.constant 0 : i32
    return %c0_i32, %c0_i32_0 : i32, i32
  }
  func.func @transform_2(%arg0: i32) -> (i32, i32) {
    %c0_i32 = arith.constant 0 : i32
    %c0_i32_0 = arith.constant 0 : i32
    %c0_i32_1 = arith.constant 0 : i32
    return %c0_i32, %c0_i32_0 : i32, i32
  }
  func.func @transform_3(%arg0: i32) -> (i32, i32) {
    %c0_i32 = arith.constant 0 : i32
    %c0_i32_0 = arith.constant 0 : i32
    %c0_i32_1 = arith.constant 0 : i32
    return %c0_i32, %c0_i32_0 : i32, i32
  }
  func.func @transform_4(%arg0: i32) -> (i32, i32) {
    %c0_i32 = arith.constant 0 : i32
    %c0_i32_0 = arith.constant 0 : i32
    %c0_i32_1 = arith.constant 0 : i32
    return %c0_i32, %c0_i32_0 : i32, i32
  }
  func.func @transform_5(%arg0: i32) -> (i32, i32) {
    %c0_i32 = arith.constant 0 : i32
    %c0_i32_0 = arith.constant 0 : i32
    %c0_i32_1 = arith.constant 0 : i32
    return %c0_i32, %c0_i32_0 : i32, i32
  }
  func.func @transform_6(%arg0: i32) -> (i32, i32) {
    %c0_i32 = arith.constant 0 : i32
    %c0_i32_0 = arith.constant 0 : i32
    %c0_i32_1 = arith.constant 0 : i32
    return %c0_i32, %c0_i32_0 : i32, i32
  }
  func.func @transform_7(%arg0: i32) -> (i32, i32) {
    %c0_i32 = arith.constant 0 : i32
    %c0_i32_0 = arith.constant 0 : i32
    %c0_i32_1 = arith.constant 0 : i32
    return %c0_i32, %c0_i32_0 : i32, i32
  }
  func.func @transform_8(%arg0: i32) -> (i32, i32) {
    %c0_i32 = arith.constant 0 : i32
    %c0_i32_0 = arith.constant 0 : i32
    %c0_i32_1 = arith.constant 0 : i32
    return %c0_i32, %c0_i32_0 : i32, i32
  }
  func.func @transform_9(%arg0: i32) -> (i32, i32, i32) {
    %c0_i32 = arith.constant 0 : i32
    %c0_i32_0 = arith.constant 0 : i32
    %c0_i32_1 = arith.constant 0 : i32
    return %arg0, %c0_i32, %c0_i32_0 : i32, i32, i32
  }
}

module attributes {stable_mosaic.version = 11 : i64} {
  func.func @_mha_cross_kernel(%arg0: i32, %arg1: i32, %arg2: memref<1x8x32xbf16, #tpu.memory_space<vmem>>, %arg3: memref<1x16x32xbf16, #tpu.memory_space<vmem>>, %arg4: memref<32x32xbf16, #tpu.memory_space<vmem>>, %arg5: memref<1x32xf32, #tpu.memory_space<vmem>>, %arg6: memref<32x64xbf16, #tpu.memory_space<vmem>>, %arg7: memref<1x64xf32, #tpu.memory_space<vmem>>, %arg8: memref<32x32xbf16, #tpu.memory_space<vmem>>, %arg9: memref<1x32xf32, #tpu.memory_space<vmem>>, %arg10: memref<1x32xf32, #tpu.memory_space<vmem>>, %arg11: memref<1x32xf32, #tpu.memory_space<vmem>>, %arg12: memref<1x8x32xbf16, #tpu.memory_space<vmem>>) attributes {dimension_semantics = [#tpu.dimension_semantics<parallel>, #tpu.dimension_semantics<parallel>], iteration_bounds = array<i64: 2, 1>, scalar_prefetch = 0 : i64, scratch_operands = 0 : i64, tpu.core_type = #tpu.core_type<tc>, window_params = [{transform_indices = @transform_0, window_bounds = array<i64: 1, 8, 32>}, {transform_indices = @transform_1, window_bounds = array<i64: 1, 16, 32>}, {pipeline_mode = #tpu.pipeline_mode<synchronous>, transform_indices = @transform_2, window_bounds = array<i64: 32, 32>}, {pipeline_mode = #tpu.pipeline_mode<synchronous>, transform_indices = @transform_3, window_bounds = array<i64: 1, 32>}, {pipeline_mode = #tpu.pipeline_mode<synchronous>, transform_indices = @transform_4, window_bounds = array<i64: 32, 64>}, {pipeline_mode = #tpu.pipeline_mode<synchronous>, transform_indices = @transform_5, window_bounds = array<i64: 1, 64>}, {pipeline_mode = #tpu.pipeline_mode<synchronous>, transform_indices = @transform_6, window_bounds = array<i64: 32, 32>}, {pipeline_mode = #tpu.pipeline_mode<synchronous>, transform_indices = @transform_7, window_bounds = array<i64: 1, 32>}, {pipeline_mode = #tpu.pipeline_mode<synchronous>, transform_indices = @transform_8, window_bounds = array<i64: 1, 32>}, {pipeline_mode = #tpu.pipeline_mode<synchronous>, transform_indices = @transform_9, window_bounds = array<i64: 1, 32>}, {transform_indices = @transform_10, window_bounds = array<i64: 1, 8, 32>}]} {
    %c0 = arith.constant 0 : index
    %c0_0 = arith.constant 0 : index
    %c0_1 = arith.constant 0 : index
    %0 = vector.load %arg2[%c0, %c0_0, %c0_1] : memref<1x8x32xbf16, #tpu.memory_space<vmem>>, vector<1x8x32xbf16>
    %1 = vector.shape_cast %0 : vector<1x8x32xbf16> to vector<8x32xbf16>
    %2 = arith.extf %1 : vector<8x32xbf16> to vector<8x32xf32>
    %c0_2 = arith.constant 0 : index
    %c0_3 = arith.constant 0 : index
    %c0_4 = arith.constant 0 : index
    %3 = vector.load %arg3[%c0_2, %c0_3, %c0_4] : memref<1x16x32xbf16, #tpu.memory_space<vmem>>, vector<1x16x32xbf16>
    %4 = vector.shape_cast %3 : vector<1x16x32xbf16> to vector<16x32xbf16>
    %5 = arith.extf %4 : vector<16x32xbf16> to vector<16x32xf32>
    %6 = arith.truncf %2 : vector<8x32xf32> to vector<8x32xbf16>
    %c0_5 = arith.constant 0 : index
    %c0_6 = arith.constant 0 : index
    %7 = vector.load %arg4[%c0_5, %c0_6] : memref<32x32xbf16, #tpu.memory_space<vmem>>, vector<32x32xbf16>
    %cst = arith.constant dense<0.000000e+00> : vector<8x32xf32>
    %8 = tpu.matmul %6, %7, %cst {dimension_numbers = #tpu.dot_dimension_numbers<[1], [0], [0], [1], [0, 0, 1, 1], [], []>} : vector<8x32xbf16>, vector<32x32xbf16>, vector<8x32xf32> -> vector<8x32xf32>
    %c0_7 = arith.constant 0 : index
    %c0_8 = arith.constant 0 : index
    %9 = vector.load %arg5[%c0_7, %c0_8] : memref<1x32xf32, #tpu.memory_space<vmem>>, vector<1x32xf32>
    %10 = vector.broadcast %9 : vector<1x32xf32> to vector<8x32xf32>
    %11 = arith.addf %8, %10 : vector<8x32xf32>
    %12 = arith.truncf %5 : vector<16x32xf32> to vector<16x32xbf16>
    %c0_9 = arith.constant 0 : index
    %c0_10 = arith.constant 0 : index
    %13 = vector.load %arg6[%c0_9, %c0_10] : memref<32x64xbf16, #tpu.memory_space<vmem>>, vector<32x64xbf16>
    %cst_11 = arith.constant dense<0.000000e+00> : vector<16x64xf32>
    %14 = tpu.matmul %12, %13, %cst_11 {dimension_numbers = #tpu.dot_dimension_numbers<[1], [0], [0], [1], [0, 0, 1, 1], [], []>} : vector<16x32xbf16>, vector<32x64xbf16>, vector<16x64xf32> -> vector<16x64xf32>
    %c0_12 = arith.constant 0 : index
    %c0_13 = arith.constant 0 : index
    %15 = vector.load %arg7[%c0_12, %c0_13] : memref<1x64xf32, #tpu.memory_space<vmem>>, vector<1x64xf32>
    %16 = vector.broadcast %15 : vector<1x64xf32> to vector<16x64xf32>
    %17 = arith.addf %14, %16 : vector<16x64xf32>
    %18 = vector.extract_strided_slice %17 {offsets = [0, 0], sizes = [16, 32], strides = [1, 1]} : vector<16x64xf32> to vector<16x32xf32>
    %19 = vector.extract_strided_slice %17 {offsets = [0, 32], sizes = [16, 32], strides = [1, 1]} : vector<16x64xf32> to vector<16x32xf32>
    %20 = vector.extract_strided_slice %11 {offsets = [0, 0], sizes = [8, 4], strides = [1, 1]} : vector<8x32xf32> to vector<8x4xf32>
    %cst_14 = arith.constant 5.000000e-01 : f32
    %21 = vector.broadcast %cst_14 : f32 to vector<8x4xf32>
    %22 = arith.mulf %20, %21 : vector<8x4xf32>
    %23 = arith.truncf %22 : vector<8x4xf32> to vector<8x4xbf16>
    %24 = vector.extract_strided_slice %18 {offsets = [0, 0], sizes = [16, 4], strides = [1, 1]} : vector<16x32xf32> to vector<16x4xf32>
    %25 = arith.truncf %24 : vector<16x4xf32> to vector<16x4xbf16>
    %26 = vector.extract_strided_slice %19 {offsets = [0, 0], sizes = [16, 4], strides = [1, 1]} : vector<16x32xf32> to vector<16x4xf32>
    %27 = arith.truncf %26 : vector<16x4xf32> to vector<16x4xbf16>
    %cst_15 = arith.constant dense<0.000000e+00> : vector<8x16xf32>
    %28 = tpu.matmul %23, %25, %cst_15 {dimension_numbers = #tpu.dot_dimension_numbers<[1], [1], [0], [0], [0, 0, 1, 0], [], []>} : vector<8x4xbf16>, vector<16x4xbf16>, vector<8x16xf32> -> vector<8x16xf32>
    %cst_16 = arith.constant dense<0xFF800000> : vector<8xf32>
    %29 = vector.multi_reduction <maximumf>, %28, %cst_16 [1] : vector<8x16xf32> to vector<8xf32>
    %30 = vector.shape_cast %29 : vector<8xf32> to vector<8x1xf32>
    %31 = vector.broadcast %30 : vector<8x1xf32> to vector<8x16xf32>
    %32 = arith.subf %28, %31 : vector<8x16xf32>
    %33 = math.exp %32 : vector<8x16xf32>
    %cst_17 = arith.constant dense<0.000000e+00> : vector<8xf32>
    %34 = vector.multi_reduction <add>, %33, %cst_17 [1] : vector<8x16xf32> to vector<8xf32>
    %35 = vector.shape_cast %34 : vector<8xf32> to vector<8x1xf32>
    %36 = tpu.reciprocal %35 {approx = true} : vector<8x1xf32> -> vector<8x1xf32>
    %37 = vector.broadcast %36 : vector<8x1xf32> to vector<8x16xf32>
    %38 = arith.mulf %33, %37 : vector<8x16xf32>
    %39 = arith.truncf %38 : vector<8x16xf32> to vector<8x16xbf16>
    %cst_18 = arith.constant dense<0.000000e+00> : vector<8x4xf32>
    %40 = tpu.matmul %39, %27, %cst_18 {dimension_numbers = #tpu.dot_dimension_numbers<[1], [0], [0], [1], [0, 0, 1, 1], [], []>} : vector<8x16xbf16>, vector<16x4xbf16>, vector<8x4xf32> -> vector<8x4xf32>
    %41 = vector.extract_strided_slice %11 {offsets = [0, 4], sizes = [8, 4], strides = [1, 1]} : vector<8x32xf32> to vector<8x4xf32>
    %cst_19 = arith.constant 5.000000e-01 : f32
    %42 = vector.broadcast %cst_19 : f32 to vector<8x4xf32>
    %43 = arith.mulf %41, %42 : vector<8x4xf32>
    %44 = arith.truncf %43 : vector<8x4xf32> to vector<8x4xbf16>
    %45 = vector.extract_strided_slice %18 {offsets = [0, 4], sizes = [16, 4], strides = [1, 1]} : vector<16x32xf32> to vector<16x4xf32>
    %46 = arith.truncf %45 : vector<16x4xf32> to vector<16x4xbf16>
    %47 = vector.extract_strided_slice %19 {offsets = [0, 4], sizes = [16, 4], strides = [1, 1]} : vector<16x32xf32> to vector<16x4xf32>
    %48 = arith.truncf %47 : vector<16x4xf32> to vector<16x4xbf16>
    %cst_20 = arith.constant dense<0.000000e+00> : vector<8x16xf32>
    %49 = tpu.matmul %44, %46, %cst_20 {dimension_numbers = #tpu.dot_dimension_numbers<[1], [1], [0], [0], [0, 0, 1, 0], [], []>} : vector<8x4xbf16>, vector<16x4xbf16>, vector<8x16xf32> -> vector<8x16xf32>
    %cst_21 = arith.constant dense<0xFF800000> : vector<8xf32>
    %50 = vector.multi_reduction <maximumf>, %49, %cst_21 [1] : vector<8x16xf32> to vector<8xf32>
    %51 = vector.shape_cast %50 : vector<8xf32> to vector<8x1xf32>
    %52 = vector.broadcast %51 : vector<8x1xf32> to vector<8x16xf32>
    %53 = arith.subf %49, %52 : vector<8x16xf32>
    %54 = math.exp %53 : vector<8x16xf32>
    %cst_22 = arith.constant dense<0.000000e+00> : vector<8xf32>
    %55 = vector.multi_reduction <add>, %54, %cst_22 [1] : vector<8x16xf32> to vector<8xf32>
    %56 = vector.shape_cast %55 : vector<8xf32> to vector<8x1xf32>
    %57 = tpu.reciprocal %56 {approx = true} : vector<8x1xf32> -> vector<8x1xf32>
    %58 = vector.broadcast %57 : vector<8x1xf32> to vector<8x16xf32>
    %59 = arith.mulf %54, %58 : vector<8x16xf32>
    %60 = arith.truncf %59 : vector<8x16xf32> to vector<8x16xbf16>
    %cst_23 = arith.constant dense<0.000000e+00> : vector<8x4xf32>
    %61 = tpu.matmul %60, %48, %cst_23 {dimension_numbers = #tpu.dot_dimension_numbers<[1], [0], [0], [1], [0, 0, 1, 1], [], []>} : vector<8x16xbf16>, vector<16x4xbf16>, vector<8x4xf32> -> vector<8x4xf32>
    %62 = vector.extract_strided_slice %11 {offsets = [0, 8], sizes = [8, 4], strides = [1, 1]} : vector<8x32xf32> to vector<8x4xf32>
    %cst_24 = arith.constant 5.000000e-01 : f32
    %63 = vector.broadcast %cst_24 : f32 to vector<8x4xf32>
    %64 = arith.mulf %62, %63 : vector<8x4xf32>
    %65 = arith.truncf %64 : vector<8x4xf32> to vector<8x4xbf16>
    %66 = vector.extract_strided_slice %18 {offsets = [0, 8], sizes = [16, 4], strides = [1, 1]} : vector<16x32xf32> to vector<16x4xf32>
    %67 = arith.truncf %66 : vector<16x4xf32> to vector<16x4xbf16>
    %68 = vector.extract_strided_slice %19 {offsets = [0, 8], sizes = [16, 4], strides = [1, 1]} : vector<16x32xf32> to vector<16x4xf32>
    %69 = arith.truncf %68 : vector<16x4xf32> to vector<16x4xbf16>
    %cst_25 = arith.constant dense<0.000000e+00> : vector<8x16xf32>
    %70 = tpu.matmul %65, %67, %cst_25 {dimension_numbers = #tpu.dot_dimension_numbers<[1], [1], [0], [0], [0, 0, 1, 0], [], []>} : vector<8x4xbf16>, vector<16x4xbf16>, vector<8x16xf32> -> vector<8x16xf32>
    %cst_26 = arith.constant dense<0xFF800000> : vector<8xf32>
    %71 = vector.multi_reduction <maximumf>, %70, %cst_26 [1] : vector<8x16xf32> to vector<8xf32>
    %72 = vector.shape_cast %71 : vector<8xf32> to vector<8x1xf32>
    %73 = vector.broadcast %72 : vector<8x1xf32> to vector<8x16xf32>
    %74 = arith.subf %70, %73 : vector<8x16xf32>
    %75 = math.exp %74 : vector<8x16xf32>
    %cst_27 = arith.constant dense<0.000000e+00> : vector<8xf32>
    %76 = vector.multi_reduction <add>, %75, %cst_27 [1] : vector<8x16xf32> to vector<8xf32>
    %77 = vector.shape_cast %76 : vector<8xf32> to vector<8x1xf32>
    %78 = tpu.reciprocal %77 {approx = true} : vector<8x1xf32> -> vector<8x1xf32>
    %79 = vector.broadcast %78 : vector<8x1xf32> to vector<8x16xf32>
    %80 = arith.mulf %75, %79 : vector<8x16xf32>
    %81 = arith.truncf %80 : vector<8x16xf32> to vector<8x16xbf16>
    %cst_28 = arith.constant dense<0.000000e+00> : vector<8x4xf32>
    %82 = tpu.matmul %81, %69, %cst_28 {dimension_numbers = #tpu.dot_dimension_numbers<[1], [0], [0], [1], [0, 0, 1, 1], [], []>} : vector<8x16xbf16>, vector<16x4xbf16>, vector<8x4xf32> -> vector<8x4xf32>
    %83 = vector.extract_strided_slice %11 {offsets = [0, 12], sizes = [8, 4], strides = [1, 1]} : vector<8x32xf32> to vector<8x4xf32>
    %cst_29 = arith.constant 5.000000e-01 : f32
    %84 = vector.broadcast %cst_29 : f32 to vector<8x4xf32>
    %85 = arith.mulf %83, %84 : vector<8x4xf32>
    %86 = arith.truncf %85 : vector<8x4xf32> to vector<8x4xbf16>
    %87 = vector.extract_strided_slice %18 {offsets = [0, 12], sizes = [16, 4], strides = [1, 1]} : vector<16x32xf32> to vector<16x4xf32>
    %88 = arith.truncf %87 : vector<16x4xf32> to vector<16x4xbf16>
    %89 = vector.extract_strided_slice %19 {offsets = [0, 12], sizes = [16, 4], strides = [1, 1]} : vector<16x32xf32> to vector<16x4xf32>
    %90 = arith.truncf %89 : vector<16x4xf32> to vector<16x4xbf16>
    %cst_30 = arith.constant dense<0.000000e+00> : vector<8x16xf32>
    %91 = tpu.matmul %86, %88, %cst_30 {dimension_numbers = #tpu.dot_dimension_numbers<[1], [1], [0], [0], [0, 0, 1, 0], [], []>} : vector<8x4xbf16>, vector<16x4xbf16>, vector<8x16xf32> -> vector<8x16xf32>
    %cst_31 = arith.constant dense<0xFF800000> : vector<8xf32>
    %92 = vector.multi_reduction <maximumf>, %91, %cst_31 [1] : vector<8x16xf32> to vector<8xf32>
    %93 = vector.shape_cast %92 : vector<8xf32> to vector<8x1xf32>
    %94 = vector.broadcast %93 : vector<8x1xf32> to vector<8x16xf32>
    %95 = arith.subf %91, %94 : vector<8x16xf32>
    %96 = math.exp %95 : vector<8x16xf32>
    %cst_32 = arith.constant dense<0.000000e+00> : vector<8xf32>
    %97 = vector.multi_reduction <add>, %96, %cst_32 [1] : vector<8x16xf32> to vector<8xf32>
    %98 = vector.shape_cast %97 : vector<8xf32> to vector<8x1xf32>
    %99 = tpu.reciprocal %98 {approx = true} : vector<8x1xf32> -> vector<8x1xf32>
    %100 = vector.broadcast %99 : vector<8x1xf32> to vector<8x16xf32>
    %101 = arith.mulf %96, %100 : vector<8x16xf32>
    %102 = arith.truncf %101 : vector<8x16xf32> to vector<8x16xbf16>
    %cst_33 = arith.constant dense<0.000000e+00> : vector<8x4xf32>
    %103 = tpu.matmul %102, %90, %cst_33 {dimension_numbers = #tpu.dot_dimension_numbers<[1], [0], [0], [1], [0, 0, 1, 1], [], []>} : vector<8x16xbf16>, vector<16x4xbf16>, vector<8x4xf32> -> vector<8x4xf32>
    %104 = vector.extract_strided_slice %11 {offsets = [0, 16], sizes = [8, 4], strides = [1, 1]} : vector<8x32xf32> to vector<8x4xf32>
    %cst_34 = arith.constant 5.000000e-01 : f32
    %105 = vector.broadcast %cst_34 : f32 to vector<8x4xf32>
    %106 = arith.mulf %104, %105 : vector<8x4xf32>
    %107 = arith.truncf %106 : vector<8x4xf32> to vector<8x4xbf16>
    %108 = vector.extract_strided_slice %18 {offsets = [0, 16], sizes = [16, 4], strides = [1, 1]} : vector<16x32xf32> to vector<16x4xf32>
    %109 = arith.truncf %108 : vector<16x4xf32> to vector<16x4xbf16>
    %110 = vector.extract_strided_slice %19 {offsets = [0, 16], sizes = [16, 4], strides = [1, 1]} : vector<16x32xf32> to vector<16x4xf32>
    %111 = arith.truncf %110 : vector<16x4xf32> to vector<16x4xbf16>
    %cst_35 = arith.constant dense<0.000000e+00> : vector<8x16xf32>
    %112 = tpu.matmul %107, %109, %cst_35 {dimension_numbers = #tpu.dot_dimension_numbers<[1], [1], [0], [0], [0, 0, 1, 0], [], []>} : vector<8x4xbf16>, vector<16x4xbf16>, vector<8x16xf32> -> vector<8x16xf32>
    %cst_36 = arith.constant dense<0xFF800000> : vector<8xf32>
    %113 = vector.multi_reduction <maximumf>, %112, %cst_36 [1] : vector<8x16xf32> to vector<8xf32>
    %114 = vector.shape_cast %113 : vector<8xf32> to vector<8x1xf32>
    %115 = vector.broadcast %114 : vector<8x1xf32> to vector<8x16xf32>
    %116 = arith.subf %112, %115 : vector<8x16xf32>
    %117 = math.exp %116 : vector<8x16xf32>
    %cst_37 = arith.constant dense<0.000000e+00> : vector<8xf32>
    %118 = vector.multi_reduction <add>, %117, %cst_37 [1] : vector<8x16xf32> to vector<8xf32>
    %119 = vector.shape_cast %118 : vector<8xf32> to vector<8x1xf32>
    %120 = tpu.reciprocal %119 {approx = true} : vector<8x1xf32> -> vector<8x1xf32>
    %121 = vector.broadcast %120 : vector<8x1xf32> to vector<8x16xf32>
    %122 = arith.mulf %117, %121 : vector<8x16xf32>
    %123 = arith.truncf %122 : vector<8x16xf32> to vector<8x16xbf16>
    %cst_38 = arith.constant dense<0.000000e+00> : vector<8x4xf32>
    %124 = tpu.matmul %123, %111, %cst_38 {dimension_numbers = #tpu.dot_dimension_numbers<[1], [0], [0], [1], [0, 0, 1, 1], [], []>} : vector<8x16xbf16>, vector<16x4xbf16>, vector<8x4xf32> -> vector<8x4xf32>
    %125 = vector.extract_strided_slice %11 {offsets = [0, 20], sizes = [8, 4], strides = [1, 1]} : vector<8x32xf32> to vector<8x4xf32>
    %cst_39 = arith.constant 5.000000e-01 : f32
    %126 = vector.broadcast %cst_39 : f32 to vector<8x4xf32>
    %127 = arith.mulf %125, %126 : vector<8x4xf32>
    %128 = arith.truncf %127 : vector<8x4xf32> to vector<8x4xbf16>
    %129 = vector.extract_strided_slice %18 {offsets = [0, 20], sizes = [16, 4], strides = [1, 1]} : vector<16x32xf32> to vector<16x4xf32>
    %130 = arith.truncf %129 : vector<16x4xf32> to vector<16x4xbf16>
    %131 = vector.extract_strided_slice %19 {offsets = [0, 20], sizes = [16, 4], strides = [1, 1]} : vector<16x32xf32> to vector<16x4xf32>
    %132 = arith.truncf %131 : vector<16x4xf32> to vector<16x4xbf16>
    %cst_40 = arith.constant dense<0.000000e+00> : vector<8x16xf32>
    %133 = tpu.matmul %128, %130, %cst_40 {dimension_numbers = #tpu.dot_dimension_numbers<[1], [1], [0], [0], [0, 0, 1, 0], [], []>} : vector<8x4xbf16>, vector<16x4xbf16>, vector<8x16xf32> -> vector<8x16xf32>
    %cst_41 = arith.constant dense<0xFF800000> : vector<8xf32>
    %134 = vector.multi_reduction <maximumf>, %133, %cst_41 [1] : vector<8x16xf32> to vector<8xf32>
    %135 = vector.shape_cast %134 : vector<8xf32> to vector<8x1xf32>
    %136 = vector.broadcast %135 : vector<8x1xf32> to vector<8x16xf32>
    %137 = arith.subf %133, %136 : vector<8x16xf32>
    %138 = math.exp %137 : vector<8x16xf32>
    %cst_42 = arith.constant dense<0.000000e+00> : vector<8xf32>
    %139 = vector.multi_reduction <add>, %138, %cst_42 [1] : vector<8x16xf32> to vector<8xf32>
    %140 = vector.shape_cast %139 : vector<8xf32> to vector<8x1xf32>
    %141 = tpu.reciprocal %140 {approx = true} : vector<8x1xf32> -> vector<8x1xf32>
    %142 = vector.broadcast %141 : vector<8x1xf32> to vector<8x16xf32>
    %143 = arith.mulf %138, %142 : vector<8x16xf32>
    %144 = arith.truncf %143 : vector<8x16xf32> to vector<8x16xbf16>
    %cst_43 = arith.constant dense<0.000000e+00> : vector<8x4xf32>
    %145 = tpu.matmul %144, %132, %cst_43 {dimension_numbers = #tpu.dot_dimension_numbers<[1], [0], [0], [1], [0, 0, 1, 1], [], []>} : vector<8x16xbf16>, vector<16x4xbf16>, vector<8x4xf32> -> vector<8x4xf32>
    %146 = vector.extract_strided_slice %11 {offsets = [0, 24], sizes = [8, 4], strides = [1, 1]} : vector<8x32xf32> to vector<8x4xf32>
    %cst_44 = arith.constant 5.000000e-01 : f32
    %147 = vector.broadcast %cst_44 : f32 to vector<8x4xf32>
    %148 = arith.mulf %146, %147 : vector<8x4xf32>
    %149 = arith.truncf %148 : vector<8x4xf32> to vector<8x4xbf16>
    %150 = vector.extract_strided_slice %18 {offsets = [0, 24], sizes = [16, 4], strides = [1, 1]} : vector<16x32xf32> to vector<16x4xf32>
    %151 = arith.truncf %150 : vector<16x4xf32> to vector<16x4xbf16>
    %152 = vector.extract_strided_slice %19 {offsets = [0, 24], sizes = [16, 4], strides = [1, 1]} : vector<16x32xf32> to vector<16x4xf32>
    %153 = arith.truncf %152 : vector<16x4xf32> to vector<16x4xbf16>
    %cst_45 = arith.constant dense<0.000000e+00> : vector<8x16xf32>
    %154 = tpu.matmul %149, %151, %cst_45 {dimension_numbers = #tpu.dot_dimension_numbers<[1], [1], [0], [0], [0, 0, 1, 0], [], []>} : vector<8x4xbf16>, vector<16x4xbf16>, vector<8x16xf32> -> vector<8x16xf32>
    %cst_46 = arith.constant dense<0xFF800000> : vector<8xf32>
    %155 = vector.multi_reduction <maximumf>, %154, %cst_46 [1] : vector<8x16xf32> to vector<8xf32>
    %156 = vector.shape_cast %155 : vector<8xf32> to vector<8x1xf32>
    %157 = vector.broadcast %156 : vector<8x1xf32> to vector<8x16xf32>
    %158 = arith.subf %154, %157 : vector<8x16xf32>
    %159 = math.exp %158 : vector<8x16xf32>
    %cst_47 = arith.constant dense<0.000000e+00> : vector<8xf32>
    %160 = vector.multi_reduction <add>, %159, %cst_47 [1] : vector<8x16xf32> to vector<8xf32>
    %161 = vector.shape_cast %160 : vector<8xf32> to vector<8x1xf32>
    %162 = tpu.reciprocal %161 {approx = true} : vector<8x1xf32> -> vector<8x1xf32>
    %163 = vector.broadcast %162 : vector<8x1xf32> to vector<8x16xf32>
    %164 = arith.mulf %159, %163 : vector<8x16xf32>
    %165 = arith.truncf %164 : vector<8x16xf32> to vector<8x16xbf16>
    %cst_48 = arith.constant dense<0.000000e+00> : vector<8x4xf32>
    %166 = tpu.matmul %165, %153, %cst_48 {dimension_numbers = #tpu.dot_dimension_numbers<[1], [0], [0], [1], [0, 0, 1, 1], [], []>} : vector<8x16xbf16>, vector<16x4xbf16>, vector<8x4xf32> -> vector<8x4xf32>
    %167 = vector.extract_strided_slice %11 {offsets = [0, 28], sizes = [8, 4], strides = [1, 1]} : vector<8x32xf32> to vector<8x4xf32>
    %cst_49 = arith.constant 5.000000e-01 : f32
    %168 = vector.broadcast %cst_49 : f32 to vector<8x4xf32>
    %169 = arith.mulf %167, %168 : vector<8x4xf32>
    %170 = arith.truncf %169 : vector<8x4xf32> to vector<8x4xbf16>
    %171 = vector.extract_strided_slice %18 {offsets = [0, 28], sizes = [16, 4], strides = [1, 1]} : vector<16x32xf32> to vector<16x4xf32>
    %172 = arith.truncf %171 : vector<16x4xf32> to vector<16x4xbf16>
    %173 = vector.extract_strided_slice %19 {offsets = [0, 28], sizes = [16, 4], strides = [1, 1]} : vector<16x32xf32> to vector<16x4xf32>
    %174 = arith.truncf %173 : vector<16x4xf32> to vector<16x4xbf16>
    %cst_50 = arith.constant dense<0.000000e+00> : vector<8x16xf32>
    %175 = tpu.matmul %170, %172, %cst_50 {dimension_numbers = #tpu.dot_dimension_numbers<[1], [1], [0], [0], [0, 0, 1, 0], [], []>} : vector<8x4xbf16>, vector<16x4xbf16>, vector<8x16xf32> -> vector<8x16xf32>
    %cst_51 = arith.constant dense<0xFF800000> : vector<8xf32>
    %176 = vector.multi_reduction <maximumf>, %175, %cst_51 [1] : vector<8x16xf32> to vector<8xf32>
    %177 = vector.shape_cast %176 : vector<8xf32> to vector<8x1xf32>
    %178 = vector.broadcast %177 : vector<8x1xf32> to vector<8x16xf32>
    %179 = arith.subf %175, %178 : vector<8x16xf32>
    %180 = math.exp %179 : vector<8x16xf32>
    %cst_52 = arith.constant dense<0.000000e+00> : vector<8xf32>
    %181 = vector.multi_reduction <add>, %180, %cst_52 [1] : vector<8x16xf32> to vector<8xf32>
    %182 = vector.shape_cast %181 : vector<8xf32> to vector<8x1xf32>
    %183 = tpu.reciprocal %182 {approx = true} : vector<8x1xf32> -> vector<8x1xf32>
    %184 = vector.broadcast %183 : vector<8x1xf32> to vector<8x16xf32>
    %185 = arith.mulf %180, %184 : vector<8x16xf32>
    %186 = arith.truncf %185 : vector<8x16xf32> to vector<8x16xbf16>
    %cst_53 = arith.constant dense<0.000000e+00> : vector<8x4xf32>
    %187 = tpu.matmul %186, %174, %cst_53 {dimension_numbers = #tpu.dot_dimension_numbers<[1], [0], [0], [1], [0, 0, 1, 1], [], []>} : vector<8x16xbf16>, vector<16x4xbf16>, vector<8x4xf32> -> vector<8x4xf32>
    %188 = tpu.concatenate %40, %61, %82, %103, %124, %145, %166, %187 in 1 : vector<8x4xf32>, vector<8x4xf32>, vector<8x4xf32>, vector<8x4xf32>, vector<8x4xf32>, vector<8x4xf32>, vector<8x4xf32>, vector<8x4xf32> -> vector<8x32xf32>
    %189 = arith.truncf %188 : vector<8x32xf32> to vector<8x32xbf16>
    %c0_54 = arith.constant 0 : index
    %c0_55 = arith.constant 0 : index
    %190 = vector.load %arg8[%c0_54, %c0_55] : memref<32x32xbf16, #tpu.memory_space<vmem>>, vector<32x32xbf16>
    %cst_56 = arith.constant dense<0.000000e+00> : vector<8x32xf32>
    %191 = tpu.matmul %189, %190, %cst_56 {dimension_numbers = #tpu.dot_dimension_numbers<[1], [0], [0], [1], [0, 0, 1, 1], [], []>} : vector<8x32xbf16>, vector<32x32xbf16>, vector<8x32xf32> -> vector<8x32xf32>
    %c0_57 = arith.constant 0 : index
    %c0_58 = arith.constant 0 : index
    %192 = vector.load %arg9[%c0_57, %c0_58] : memref<1x32xf32, #tpu.memory_space<vmem>>, vector<1x32xf32>
    %193 = vector.broadcast %192 : vector<1x32xf32> to vector<8x32xf32>
    %194 = arith.addf %191, %193 : vector<8x32xf32>
    %195 = arith.addf %2, %194 : vector<8x32xf32>
    %c0_59 = arith.constant 0 : index
    %c0_60 = arith.constant 0 : index
    %196 = vector.load %arg10[%c0_59, %c0_60] : memref<1x32xf32, #tpu.memory_space<vmem>>, vector<1x32xf32>
    %c0_61 = arith.constant 0 : index
    %c0_62 = arith.constant 0 : index
    %197 = vector.load %arg11[%c0_61, %c0_62] : memref<1x32xf32, #tpu.memory_space<vmem>>, vector<1x32xf32>
    %cst_63 = arith.constant dense<0.000000e+00> : vector<8xf32>
    %198 = vector.multi_reduction <add>, %195, %cst_63 [1] : vector<8x32xf32> to vector<8xf32>
    %199 = vector.shape_cast %198 : vector<8xf32> to vector<8x1xf32>
    %cst_64 = arith.constant 3.200000e+01 : f32
    %200 = vector.broadcast %cst_64 : f32 to vector<8x1xf32>
    %201 = arith.divf %199, %200 : vector<8x1xf32>
    %202 = vector.broadcast %201 : vector<8x1xf32> to vector<8x32xf32>
    %203 = arith.subf %195, %202 : vector<8x32xf32>
    %204 = arith.mulf %203, %203 : vector<8x32xf32>
    %cst_65 = arith.constant dense<0.000000e+00> : vector<8xf32>
    %205 = vector.multi_reduction <add>, %204, %cst_65 [1] : vector<8x32xf32> to vector<8xf32>
    %206 = vector.shape_cast %205 : vector<8xf32> to vector<8x1xf32>
    %cst_66 = arith.constant 3.200000e+01 : f32
    %207 = vector.broadcast %cst_66 : f32 to vector<8x1xf32>
    %208 = arith.divf %206, %207 : vector<8x1xf32>
    %cst_67 = arith.constant 9.99999974E-6 : f32
    %209 = vector.broadcast %cst_67 : f32 to vector<8x1xf32>
    %210 = arith.addf %208, %209 : vector<8x1xf32>
    %211 = math.rsqrt %210 : vector<8x1xf32>
    %212 = vector.broadcast %211 : vector<8x1xf32> to vector<8x32xf32>
    %213 = arith.mulf %203, %212 : vector<8x32xf32>
    %214 = vector.broadcast %196 : vector<1x32xf32> to vector<8x32xf32>
    %215 = arith.mulf %213, %214 : vector<8x32xf32>
    %216 = vector.broadcast %197 : vector<1x32xf32> to vector<8x32xf32>
    %217 = arith.addf %215, %216 : vector<8x32xf32>
    %218 = arith.truncf %217 : vector<8x32xf32> to vector<8x32xbf16>
    %c0_68 = arith.constant 0 : index
    %c0_69 = arith.constant 0 : index
    %c0_70 = arith.constant 0 : index
    %219 = vector.load %arg12[%c0_68, %c0_69, %c0_70] : memref<1x8x32xbf16, #tpu.memory_space<vmem>>, vector<1x8x32xbf16>
    %220 = vector.shape_cast %219 : vector<1x8x32xbf16> to vector<8x32xbf16>
    %221 = vector.shape_cast %218 : vector<8x32xbf16> to vector<1x8x32xbf16>
    tpu.vector_store %arg12[%c0_68, %c0_69, %c0_70], %221 {strides = array<i32>} : memref<1x8x32xbf16, #tpu.memory_space<vmem>>, vector<1x8x32xbf16>,
    return
  }
  func.func @transform_0(%arg0: i32, %arg1: i32) -> (i32, i32, i32) {
    %c0_i32 = arith.constant 0 : i32
    %c0_i32_0 = arith.constant 0 : i32
    return %arg0, %arg1, %c0_i32 : i32, i32, i32
  }
  func.func @transform_1(%arg0: i32, %arg1: i32) -> (i32, i32, i32) {
    %c0_i32 = arith.constant 0 : i32
    %c0_i32_0 = arith.constant 0 : i32
    %c0_i32_1 = arith.constant 0 : i32
    return %arg0, %c0_i32, %c0_i32_0 : i32, i32, i32
  }
  func.func @transform_2(%arg0: i32, %arg1: i32) -> (i32, i32) {
    %c0_i32 = arith.constant 0 : i32
    %c0_i32_0 = arith.constant 0 : i32
    %c0_i32_1 = arith.constant 0 : i32
    return %c0_i32, %c0_i32_0 : i32, i32
  }
  func.func @transform_3(%arg0: i32, %arg1: i32) -> (i32, i32) {
    %c0_i32 = arith.constant 0 : i32
    %c0_i32_0 = arith.constant 0 : i32
    %c0_i32_1 = arith.constant 0 : i32
    return %c0_i32, %c0_i32_0 : i32, i32
  }
  func.func @transform_4(%arg0: i32, %arg1: i32) -> (i32, i32) {
    %c0_i32 = arith.constant 0 : i32
    %c0_i32_0 = arith.constant 0 : i32
    %c0_i32_1 = arith.constant 0 : i32
    return %c0_i32, %c0_i32_0 : i32, i32
  }
  func.func @transform_5(%arg0: i32, %arg1: i32) -> (i32, i32) {
    %c0_i32 = arith.constant 0 : i32
    %c0_i32_0 = arith.constant 0 : i32
    %c0_i32_1 = arith.constant 0 : i32
    return %c0_i32, %c0_i32_0 : i32, i32
  }
  func.func @transform_6(%arg0: i32, %arg1: i32) -> (i32, i32) {
    %c0_i32 = arith.constant 0 : i32
    %c0_i32_0 = arith.constant 0 : i32
    %c0_i32_1 = arith.constant 0 : i32
    return %c0_i32, %c0_i32_0 : i32, i32
  }
  func.func @transform_7(%arg0: i32, %arg1: i32) -> (i32, i32) {
    %c0_i32 = arith.constant 0 : i32
    %c0_i32_0 = arith.constant 0 : i32
    %c0_i32_1 = arith.constant 0 : i32
    return %c0_i32, %c0_i32_0 : i32, i32
  }
  func.func @transform_8(%arg0: i32, %arg1: i32) -> (i32, i32) {
    %c0_i32 = arith.constant 0 : i32
    %c0_i32_0 = arith.constant 0 : i32
    %c0_i32_1 = arith.constant 0 : i32
    return %c0_i32, %c0_i32_0 : i32, i32
  }
  func.func @transform_9(%arg0: i32, %arg1: i32) -> (i32, i32) {
    %c0_i32 = arith.constant 0 : i32
    %c0_i32_0 = arith.constant 0 : i32
    %c0_i32_1 = arith.constant 0 : i32
    return %c0_i32, %c0_i32_0 : i32, i32
  }
  func.func @transform_10(%arg0: i32, %arg1: i32) -> (i32, i32, i32) {
    %c0_i32 = arith.constant 0 : i32
    %c0_i32_0 = arith.constant 0 : i32
    return %arg0, %arg1, %c0_i32 : i32, i32, i32
  }
}

module attributes {stable_mosaic.version = 11 : i64} {
  func.func @_ffn_block_kernel(%arg0: i32, %arg1: i32, %arg2: memref<8x32xbf16, #tpu.memory_space<vmem>>, %arg3: memref<32x128xbf16, #tpu.memory_space<vmem>>, %arg4: memref<1x128xf32, #tpu.memory_space<vmem>>, %arg5: memref<128x32xbf16, #tpu.memory_space<vmem>>, %arg6: memref<1x32xf32, #tpu.memory_space<vmem>>, %arg7: memref<1x32xf32, #tpu.memory_space<vmem>>, %arg8: memref<1x32xf32, #tpu.memory_space<vmem>>, %arg9: memref<8x32xbf16, #tpu.memory_space<vmem>>, %arg10: memref<8x32xf32, #tpu.memory_space<vmem>>) attributes {dimension_semantics = [#tpu.dimension_semantics<parallel>, #tpu.dimension_semantics<arbitrary>], iteration_bounds = array<i64: 2, 1>, scalar_prefetch = 0 : i64, scratch_operands = 1 : i64, tpu.core_type = #tpu.core_type<tc>, window_params = [{transform_indices = @transform_0, window_bounds = array<i64: 8, 32>}, {transform_indices = @transform_1, window_bounds = array<i64: 32, 128>}, {transform_indices = @transform_2, window_bounds = array<i64: 1, 128>}, {transform_indices = @transform_3, window_bounds = array<i64: 128, 32>}, {pipeline_mode = #tpu.pipeline_mode<synchronous>, transform_indices = @transform_4, window_bounds = array<i64: 1, 32>}, {pipeline_mode = #tpu.pipeline_mode<synchronous>, transform_indices = @transform_5, window_bounds = array<i64: 1, 32>}, {pipeline_mode = #tpu.pipeline_mode<synchronous>, transform_indices = @transform_6, window_bounds = array<i64: 1, 32>}, {transform_indices = @transform_7, window_bounds = array<i64: 8, 32>}]} {
    %c0_i32 = arith.constant 0 : i32
    %0 = arith.cmpi eq, %arg1, %c0_i32 : i32
    %1 = arith.extui %0 : i1 to i32
    %c0_i32_0 = arith.constant 0 : i32
    %2 = arith.cmpi ne, %1, %c0_i32_0 : i32
    scf.if %2 {
      %cst_32 = arith.constant 0.000000e+00 : f32
      %64 = vector.broadcast %cst_32 : f32 to vector<8x32xf32>
      %c0_33 = arith.constant 0 : index
      %c0_34 = arith.constant 0 : index
      %65 = vector.load %arg10[%c0_33, %c0_34] : memref<8x32xf32, #tpu.memory_space<vmem>>, vector<8x32xf32>
      tpu.vector_store %arg10[%c0_33, %c0_34], %64 {strides = array<i32>} : memref<8x32xf32, #tpu.memory_space<vmem>>, vector<8x32xf32>,
    } else {
    }
    %c0 = arith.constant 0 : index
    %c0_1 = arith.constant 0 : index
    %3 = vector.load %arg2[%c0, %c0_1] : memref<8x32xbf16, #tpu.memory_space<vmem>>, vector<8x32xbf16>
    %4 = arith.extf %3 : vector<8x32xbf16> to vector<8x32xf32>
    %5 = arith.truncf %4 : vector<8x32xf32> to vector<8x32xbf16>
    %c0_2 = arith.constant 0 : index
    %c0_3 = arith.constant 0 : index
    %6 = vector.load %arg3[%c0_2, %c0_3] : memref<32x128xbf16, #tpu.memory_space<vmem>>, vector<32x128xbf16>
    %cst = arith.constant dense<0.000000e+00> : vector<8x128xf32>
    %7 = tpu.matmul %5, %6, %cst {dimension_numbers = #tpu.dot_dimension_numbers<[1], [0], [0], [1], [0, 0, 1, 1], [], []>} : vector<8x32xbf16>, vector<32x128xbf16>, vector<8x128xf32> -> vector<8x128xf32>
    %c0_4 = arith.constant 0 : index
    %c0_5 = arith.constant 0 : index
    %8 = vector.load %arg4[%c0_4, %c0_5] : memref<1x128xf32, #tpu.memory_space<vmem>>, vector<1x128xf32>
    %9 = vector.broadcast %8 : vector<1x128xf32> to vector<8x128xf32>
    %10 = arith.addf %7, %9 : vector<8x128xf32>
    %cst_6 = arith.constant 5.000000e-01 : f32
    %11 = vector.broadcast %cst_6 : f32 to vector<8x128xf32>
    %12 = arith.mulf %11, %10 : vector<8x128xf32>
    %cst_7 = arith.constant 0.707106769 : f32
    %13 = vector.broadcast %cst_7 : f32 to vector<8x128xf32>
    %14 = arith.mulf %10, %13 : vector<8x128xf32>
    %cst_8 = arith.constant 0.000000e+00 : f32
    %15 = vector.broadcast %cst_8 : f32 to vector<8x128xf32>
    %16 = arith.cmpf oge, %14, %15 : vector<8x128xf32>
    %cst_9 = arith.constant 0.000000e+00 : f32
    %17 = vector.broadcast %cst_9 : f32 to vector<8x128xf32>
    %18 = arith.subf %17, %14 : vector<8x128xf32>
    %19 = arith.select %16, %14, %18 : vector<8x128xi1>, vector<8x128xf32>
    %cst_10 = arith.constant 0.327591091 : f32
    %20 = vector.broadcast %cst_10 : f32 to vector<8x128xf32>
    %21 = arith.mulf %20, %19 : vector<8x128xf32>
    %cst_11 = arith.constant 1.000000e+00 : f32
    %22 = vector.broadcast %cst_11 : f32 to vector<8x128xf32>
    %23 = arith.addf %22, %21 : vector<8x128xf32>
    %cst_12 = arith.constant 1.000000e+00 : f32
    %24 = vector.broadcast %cst_12 : f32 to vector<8x128xf32>
    %25 = arith.divf %24, %23 : vector<8x128xf32>
    %cst_13 = arith.constant 1.06140542 : f32
    %26 = vector.broadcast %cst_13 : f32 to vector<8x128xf32>
    %27 = arith.mulf %26, %25 : vector<8x128xf32>
    %cst_14 = arith.constant -1.45315206 : f32
    %28 = vector.broadcast %cst_14 : f32 to vector<8x128xf32>
    %29 = arith.addf %27, %28 : vector<8x128xf32>
    %30 = arith.mulf %29, %25 : vector<8x128xf32>
    %cst_15 = arith.constant 1.42141378 : f32
    %31 = vector.broadcast %cst_15 : f32 to vector<8x128xf32>
    %32 = arith.addf %30, %31 : vector<8x128xf32>
    %33 = arith.mulf %32, %25 : vector<8x128xf32>
    %cst_16 = arith.constant -0.284496725 : f32
    %34 = vector.broadcast %cst_16 : f32 to vector<8x128xf32>
    %35 = arith.addf %33, %34 : vector<8x128xf32>
    %36 = arith.mulf %35, %25 : vector<8x128xf32>
    %cst_17 = arith.constant 0.254829586 : f32
    %37 = vector.broadcast %cst_17 : f32 to vector<8x128xf32>
    %38 = arith.addf %36, %37 : vector<8x128xf32>
    %39 = arith.mulf %38, %25 : vector<8x128xf32>
    %cst_18 = arith.constant 0.000000e+00 : f32
    %40 = vector.broadcast %cst_18 : f32 to vector<8x128xf32>
    %41 = arith.subf %40, %19 : vector<8x128xf32>
    %42 = arith.mulf %41, %19 : vector<8x128xf32>
    %43 = math.exp %42 : vector<8x128xf32>
    %44 = arith.mulf %39, %43 : vector<8x128xf32>
    %cst_19 = arith.constant 1.000000e+00 : f32
    %45 = vector.broadcast %cst_19 : f32 to vector<8x128xf32>
    %46 = arith.subf %45, %44 : vector<8x128xf32>
    %cst_20 = arith.constant 0.000000e+00 : f32
    %47 = vector.broadcast %cst_20 : f32 to vector<8x128xf32>
    %48 = arith.cmpf oge, %14, %47 : vector<8x128xf32>
    %cst_21 = arith.constant 0.000000e+00 : f32
    %49 = vector.broadcast %cst_21 : f32 to vector<8x128xf32>
    %50 = arith.subf %49, %46 : vector<8x128xf32>
    %51 = arith.select %48, %46, %50 : vector<8x128xi1>, vector<8x128xf32>
    %cst_22 = arith.constant 1.000000e+00 : f32
    %52 = vector.broadcast %cst_22 : f32 to vector<8x128xf32>
    %53 = arith.addf %52, %51 : vector<8x128xf32>
    %54 = arith.mulf %12, %53 : vector<8x128xf32>
    %c0_23 = arith.constant 0 : index
    %c0_24 = arith.constant 0 : index
    %55 = vector.load %arg10[%c0_23, %c0_24] : memref<8x32xf32, #tpu.memory_space<vmem>>, vector<8x32xf32>
    %56 = arith.truncf %54 : vector<8x128xf32> to vector<8x128xbf16>
    %c0_25 = arith.constant 0 : index
    %c0_26 = arith.constant 0 : index
    %57 = vector.load %arg5[%c0_25, %c0_26] : memref<128x32xbf16, #tpu.memory_space<vmem>>, vector<128x32xbf16>
    %cst_27 = arith.constant dense<0.000000e+00> : vector<8x32xf32>
    %58 = tpu.matmul %56, %57, %cst_27 {dimension_numbers = #tpu.dot_dimension_numbers<[1], [0], [0], [1], [0, 0, 1, 1], [], []>} : vector<8x128xbf16>, vector<128x32xbf16>, vector<8x32xf32> -> vector<8x32xf32>
    %59 = arith.addf %55, %58 : vector<8x32xf32>
    %c0_28 = arith.constant 0 : index
    %c0_29 = arith.constant 0 : index
    %60 = vector.load %arg10[%c0_28, %c0_29] : memref<8x32xf32, #tpu.memory_space<vmem>>, vector<8x32xf32>
    tpu.vector_store %arg10[%c0_28, %c0_29], %59 {strides = array<i32>} : memref<8x32xf32, #tpu.memory_space<vmem>>, vector<8x32xf32>,
    %c0_i32_30 = arith.constant 0 : i32
    %61 = arith.cmpi eq, %arg1, %c0_i32_30 : i32
    %62 = arith.extui %61 : i1 to i32
    %c0_i32_31 = arith.constant 0 : i32
    %63 = arith.cmpi ne, %62, %c0_i32_31 : i32
    scf.if %63 {
      %c0_32 = arith.constant 0 : index
      %c0_33 = arith.constant 0 : index
      %64 = vector.load %arg10[%c0_32, %c0_33] : memref<8x32xf32, #tpu.memory_space<vmem>>, vector<8x32xf32>
      %c0_34 = arith.constant 0 : index
      %c0_35 = arith.constant 0 : index
      %65 = vector.load %arg6[%c0_34, %c0_35] : memref<1x32xf32, #tpu.memory_space<vmem>>, vector<1x32xf32>
      %66 = vector.broadcast %65 : vector<1x32xf32> to vector<8x32xf32>
      %67 = arith.addf %64, %66 : vector<8x32xf32>
      %68 = arith.addf %4, %67 : vector<8x32xf32>
      %c0_36 = arith.constant 0 : index
      %c0_37 = arith.constant 0 : index
      %69 = vector.load %arg7[%c0_36, %c0_37] : memref<1x32xf32, #tpu.memory_space<vmem>>, vector<1x32xf32>
      %c0_38 = arith.constant 0 : index
      %c0_39 = arith.constant 0 : index
      %70 = vector.load %arg8[%c0_38, %c0_39] : memref<1x32xf32, #tpu.memory_space<vmem>>, vector<1x32xf32>
      %cst_40 = arith.constant dense<0.000000e+00> : vector<8xf32>
      %71 = vector.multi_reduction <add>, %68, %cst_40 [1] : vector<8x32xf32> to vector<8xf32>
      %72 = vector.shape_cast %71 : vector<8xf32> to vector<8x1xf32>
      %cst_41 = arith.constant 3.200000e+01 : f32
      %73 = vector.broadcast %cst_41 : f32 to vector<8x1xf32>
      %74 = arith.divf %72, %73 : vector<8x1xf32>
      %75 = vector.broadcast %74 : vector<8x1xf32> to vector<8x32xf32>
      %76 = arith.subf %68, %75 : vector<8x32xf32>
      %77 = arith.mulf %76, %76 : vector<8x32xf32>
      %cst_42 = arith.constant dense<0.000000e+00> : vector<8xf32>
      %78 = vector.multi_reduction <add>, %77, %cst_42 [1] : vector<8x32xf32> to vector<8xf32>
      %79 = vector.shape_cast %78 : vector<8xf32> to vector<8x1xf32>
      %cst_43 = arith.constant 3.200000e+01 : f32
      %80 = vector.broadcast %cst_43 : f32 to vector<8x1xf32>
      %81 = arith.divf %79, %80 : vector<8x1xf32>
      %cst_44 = arith.constant 9.99999974E-6 : f32
      %82 = vector.broadcast %cst_44 : f32 to vector<8x1xf32>
      %83 = arith.addf %81, %82 : vector<8x1xf32>
      %84 = math.rsqrt %83 : vector<8x1xf32>
      %85 = vector.broadcast %84 : vector<8x1xf32> to vector<8x32xf32>
      %86 = arith.mulf %76, %85 : vector<8x32xf32>
      %87 = vector.broadcast %69 : vector<1x32xf32> to vector<8x32xf32>
      %88 = arith.mulf %86, %87 : vector<8x32xf32>
      %89 = vector.broadcast %70 : vector<1x32xf32> to vector<8x32xf32>
      %90 = arith.addf %88, %89 : vector<8x32xf32>
      %91 = arith.truncf %90 : vector<8x32xf32> to vector<8x32xbf16>
      %c0_45 = arith.constant 0 : index
      %c0_46 = arith.constant 0 : index
      %92 = vector.load %arg9[%c0_45, %c0_46] : memref<8x32xbf16, #tpu.memory_space<vmem>>, vector<8x32xbf16>
      tpu.vector_store %arg9[%c0_45, %c0_46], %91 {strides = array<i32>} : memref<8x32xbf16, #tpu.memory_space<vmem>>, vector<8x32xbf16>,
    } else {
    }
    return
  }
  func.func @transform_0(%arg0: i32, %arg1: i32) -> (i32, i32) {
    %c0_i32 = arith.constant 0 : i32
    %c0_i32_0 = arith.constant 0 : i32
    return %arg0, %c0_i32 : i32, i32
  }
  func.func @transform_1(%arg0: i32, %arg1: i32) -> (i32, i32) {
    %c0_i32 = arith.constant 0 : i32
    %c0_i32_0 = arith.constant 0 : i32
    return %c0_i32, %arg1 : i32, i32
  }
  func.func @transform_2(%arg0: i32, %arg1: i32) -> (i32, i32) {
    %c0_i32 = arith.constant 0 : i32
    %c0_i32_0 = arith.constant 0 : i32
    return %c0_i32, %arg1 : i32, i32
  }
  func.func @transform_3(%arg0: i32, %arg1: i32) -> (i32, i32) {
    %c0_i32 = arith.constant 0 : i32
    %c0_i32_0 = arith.constant 0 : i32
    return %arg1, %c0_i32 : i32, i32
  }
  func.func @transform_4(%arg0: i32, %arg1: i32) -> (i32, i32) {
    %c0_i32 = arith.constant 0 : i32
    %c0_i32_0 = arith.constant 0 : i32
    %c0_i32_1 = arith.constant 0 : i32
    return %c0_i32, %c0_i32_0 : i32, i32
  }
  func.func @transform_5(%arg0: i32, %arg1: i32) -> (i32, i32) {
    %c0_i32 = arith.constant 0 : i32
    %c0_i32_0 = arith.constant 0 : i32
    %c0_i32_1 = arith.constant 0 : i32
    return %c0_i32, %c0_i32_0 : i32, i32
  }
  func.func @transform_6(%arg0: i32, %arg1: i32) -> (i32, i32) {
    %c0_i32 = arith.constant 0 : i32
    %c0_i32_0 = arith.constant 0 : i32
    %c0_i32_1 = arith.constant 0 : i32
    return %c0_i32, %c0_i32_0 : i32, i32
  }
  func.func @transform_7(%arg0: i32, %arg1: i32) -> (i32, i32) {
    %c0_i32 = arith.constant 0 : i32
    %c0_i32_0 = arith.constant 0 : i32
    return %arg0, %c0_i32 : i32, i32
  }
}

module attributes {stable_mosaic.version = 11 : i64} {
  func.func @_ln_linear_kernel(%arg0: i32, %arg1: i32, %arg2: memref<8x32xbf16, #tpu.memory_space<vmem>>, %arg3: memref<1x32xf32, #tpu.memory_space<vmem>>, %arg4: memref<1x32xf32, #tpu.memory_space<vmem>>, %arg5: memref<32x40xbf16, #tpu.memory_space<vmem>>, %arg6: memref<1x40xf32, #tpu.memory_space<vmem>>, %arg7: memref<8x40xf32, #tpu.memory_space<vmem>>) attributes {dimension_semantics = [#tpu.dimension_semantics<parallel>, #tpu.dimension_semantics<parallel>], iteration_bounds = array<i64: 2, 1>, scalar_prefetch = 0 : i64, scratch_operands = 0 : i64, tpu.core_type = #tpu.core_type<tc>, window_params = [{transform_indices = @transform_0, window_bounds = array<i64: 8, 32>}, {pipeline_mode = #tpu.pipeline_mode<synchronous>, transform_indices = @transform_1, window_bounds = array<i64: 1, 32>}, {pipeline_mode = #tpu.pipeline_mode<synchronous>, transform_indices = @transform_2, window_bounds = array<i64: 1, 32>}, {transform_indices = @transform_3, window_bounds = array<i64: 32, 40>}, {transform_indices = @transform_4, window_bounds = array<i64: 1, 40>}, {transform_indices = @transform_5, window_bounds = array<i64: 8, 40>}]} {
    %c0 = arith.constant 0 : index
    %c0_0 = arith.constant 0 : index
    %0 = vector.load %arg2[%c0, %c0_0] : memref<8x32xbf16, #tpu.memory_space<vmem>>, vector<8x32xbf16>
    %1 = arith.extf %0 : vector<8x32xbf16> to vector<8x32xf32>
    %c0_1 = arith.constant 0 : index
    %c0_2 = arith.constant 0 : index
    %2 = vector.load %arg3[%c0_1, %c0_2] : memref<1x32xf32, #tpu.memory_space<vmem>>, vector<1x32xf32>
    %c0_3 = arith.constant 0 : index
    %c0_4 = arith.constant 0 : index
    %3 = vector.load %arg4[%c0_3, %c0_4] : memref<1x32xf32, #tpu.memory_space<vmem>>, vector<1x32xf32>
    %cst = arith.constant dense<0.000000e+00> : vector<8xf32>
    %4 = vector.multi_reduction <add>, %1, %cst [1] : vector<8x32xf32> to vector<8xf32>
    %5 = vector.shape_cast %4 : vector<8xf32> to vector<8x1xf32>
    %cst_5 = arith.constant 3.200000e+01 : f32
    %6 = vector.broadcast %cst_5 : f32 to vector<8x1xf32>
    %7 = arith.divf %5, %6 : vector<8x1xf32>
    %8 = vector.broadcast %7 : vector<8x1xf32> to vector<8x32xf32>
    %9 = arith.subf %1, %8 : vector<8x32xf32>
    %10 = arith.mulf %9, %9 : vector<8x32xf32>
    %cst_6 = arith.constant dense<0.000000e+00> : vector<8xf32>
    %11 = vector.multi_reduction <add>, %10, %cst_6 [1] : vector<8x32xf32> to vector<8xf32>
    %12 = vector.shape_cast %11 : vector<8xf32> to vector<8x1xf32>
    %cst_7 = arith.constant 3.200000e+01 : f32
    %13 = vector.broadcast %cst_7 : f32 to vector<8x1xf32>
    %14 = arith.divf %12, %13 : vector<8x1xf32>
    %cst_8 = arith.constant 9.99999974E-6 : f32
    %15 = vector.broadcast %cst_8 : f32 to vector<8x1xf32>
    %16 = arith.addf %14, %15 : vector<8x1xf32>
    %17 = math.rsqrt %16 : vector<8x1xf32>
    %18 = vector.broadcast %17 : vector<8x1xf32> to vector<8x32xf32>
    %19 = arith.mulf %9, %18 : vector<8x32xf32>
    %20 = vector.broadcast %2 : vector<1x32xf32> to vector<8x32xf32>
    %21 = arith.mulf %19, %20 : vector<8x32xf32>
    %22 = vector.broadcast %3 : vector<1x32xf32> to vector<8x32xf32>
    %23 = arith.addf %21, %22 : vector<8x32xf32>
    %24 = arith.truncf %23 : vector<8x32xf32> to vector<8x32xbf16>
    %c0_9 = arith.constant 0 : index
    %c0_10 = arith.constant 0 : index
    %25 = vector.load %arg5[%c0_9, %c0_10] : memref<32x40xbf16, #tpu.memory_space<vmem>>, vector<32x40xbf16>
    %cst_11 = arith.constant dense<0.000000e+00> : vector<8x40xf32>
    %26 = tpu.matmul %24, %25, %cst_11 {dimension_numbers = #tpu.dot_dimension_numbers<[1], [0], [0], [1], [0, 0, 1, 1], [], []>} : vector<8x32xbf16>, vector<32x40xbf16>, vector<8x40xf32> -> vector<8x40xf32>
    %c0_12 = arith.constant 0 : index
    %c0_13 = arith.constant 0 : index
    %27 = vector.load %arg6[%c0_12, %c0_13] : memref<1x40xf32, #tpu.memory_space<vmem>>, vector<1x40xf32>
    %28 = vector.broadcast %27 : vector<1x40xf32> to vector<8x40xf32>
    %29 = arith.addf %26, %28 : vector<8x40xf32>
    %c0_14 = arith.constant 0 : index
    %c0_15 = arith.constant 0 : index
    %30 = vector.load %arg7[%c0_14, %c0_15] : memref<8x40xf32, #tpu.memory_space<vmem>>, vector<8x40xf32>
    tpu.vector_store %arg7[%c0_14, %c0_15], %29 {strides = array<i32>} : memref<8x40xf32, #tpu.memory_space<vmem>>, vector<8x40xf32>,
    return
  }
  func.func @transform_0(%arg0: i32, %arg1: i32) -> (i32, i32) {
    %c0_i32 = arith.constant 0 : i32
    %c0_i32_0 = arith.constant 0 : i32
    return %arg0, %c0_i32 : i32, i32
  }
  func.func @transform_1(%arg0: i32, %arg1: i32) -> (i32, i32) {
    %c0_i32 = arith.constant 0 : i32
    %c0_i32_0 = arith.constant 0 : i32
    %c0_i32_1 = arith.constant 0 : i32
    return %c0_i32, %c0_i32_0 : i32, i32
  }
  func.func @transform_2(%arg0: i32, %arg1: i32) -> (i32, i32) {
    %c0_i32 = arith.constant 0 : i32
    %c0_i32_0 = arith.constant 0 : i32
    %c0_i32_1 = arith.constant 0 : i32
    return %c0_i32, %c0_i32_0 : i32, i32
  }
  func.func @transform_3(%arg0: i32, %arg1: i32) -> (i32, i32) {
    %c0_i32 = arith.constant 0 : i32
    %c0_i32_0 = arith.constant 0 : i32
    return %c0_i32, %arg1 : i32, i32
  }
  func.func @transform_4(%arg0: i32, %arg1: i32) -> (i32, i32) {
    %c0_i32 = arith.constant 0 : i32
    %c0_i32_0 = arith.constant 0 : i32
    return %c0_i32, %arg1 : i32, i32
  }
  func.func @transform_5(%arg0: i32, %arg1: i32) -> (i32, i32) {
    %c0_i32 = arith.constant 0 : i32
    return %arg0, %arg1 : i32, i32
  }
}

</mosaic_0001>

<llo_original>
// kernel: _lambda_.12
$region0: #{_lambda_.12}
  #allocation0 [shape = 'u32[]', space=smem, size = 0x4, offset = 0x4, fixed_abs, tag = 'smem constant byte address 0x4 - core index']
  #allocation1 [shape = 'u32[144,128]{1,0:T(1,128)}', space=vmem, size = 0x12000, scoped, tag = 'internal scratch']
  %s0 = inlined_call_operand.vmem [shape: bf16[32,16], index: 0, kind: input, shape index: {}]
  %s1 = inlined_call_operand.vmem [shape: f32[1,16], index: 1, kind: input, shape index: {}]
  %s2 = inlined_call_operand.vmem [shape: f32[1,16], index: 2, kind: input, shape index: {}]
  %s3 = inlined_call_operand.vmem [shape: bf16[16,32], index: 3, kind: input, shape index: {}]
  %s4 = inlined_call_operand.vmem [shape: f32[1,32], index: 4, kind: input, shape index: {}]
  %s5 = inlined_call_operand.vmem [shape: bf16[32,32], index: 5, kind: output, shape index: {}]
  %s6 = sld [smem:[#allocation0]]
  $region53: #{_lambda_.12} parent=0
    _
  %s8 = ssub.s32 1, %s6
  %s9 = scalar_select 0, %s8, %s6
  loop: start=0, step=1, limit=4
  $region2: #{_lambda_.12} parent=0 // loop_pre_header
    _
  $region3: #{_lambda_.12} parent=0 // loop_header
    %s11 = sphi 0, %s15
    %p12 = scmp.ge.s32.totalorder %s11, 4
    %s18 = sphi 0, %s30
    %s19 = sphi 0, %s26
    %s20 = sphi 0, %s18
    %s21 = sphi 0, %s19
    %s22 = sphi 0, %s20
    %s23 = sphi 0, %s21
    %s33 = sphi 0, %s35
    %s36 = sphi 0, %s33
    %s37 = sphi 0, %s36
    %s53 = sphi 0, %s37
    %s57 = sphi 0, %s57
    %s59 = sphi 0, %s57
    %s60 = sphi 0, %s59
    %s74 = sphi 0, %s60
    %s78 = sphi 0, %s78
    %s80 = sphi 0, %s78
    %s81 = sphi 0, %s80
    %s95 = sphi 0, %s81
    %s101 = sphi 0, %s103
    %s104 = sphi 0, %s101
    %s105 = sphi 0, %s104
    %s121 = sphi 0, %s105
    %s127 = sphi 0, %s129
    %s130 = sphi 0, %s127
    %s131 = sphi 0, %s130
    %s147 = sphi 0, %s131
    %s155 = sphi 0, %s157
    %s158 = sphi 0, %s155
    %s159 = sphi 0, %s158
    %s175 = sphi 0, %s159
  $region4: #{_lambda_.12} parent=0 // loop_header_branch
    %14 = sbr.rel (%p12) target = $region8
  $region5: #{_lambda_.12} parent=0 // loop_body
    %s16 = ssub.s32 %s11, 1
    %s17 = ssub.s32 %s11, 2
    %s24 = sadd.s32 1, %s19
    %p25 = scmp.ge.s32.totalorder %s24, 1
    %s26 = scalar_select %p25, 0, %s24
    %s27 = sadd.s32 1, %s18
    %s28 = scalar_select %p25, %s27, %s18
    %p29 = scmp.ge.s32.totalorder %s28, 2
    %s30 = scalar_select %p29, 0, %s28
    %s31 = ssub.s32 %s18, %s30
    %p32 = scmp.eq.s32.totalorder %s31, 0
    %s34 = sadd.s32 %s33, 1
    %s35 = scalar_select %p32, %s33, %s34
    %p38 = pneg %p32
    %p39 = scmp.eq.s32.totalorder %s11, 1
    %p40 = por %p38, %p39
    %p41 = scmp.ne.s32.totalorder %s33, %s36
    %p42 = scmp.eq.s32.totalorder %s11, 0
    %p43 = por %p41, %p42
    %p44 = scmp.ne.s32.totalorder %s33, %s36
    %p45 = scmp.eq.s32.totalorder %s16, 1
    %p46 = por %p44, %p45
    %p47 = scmp.ne.s32.totalorder %s36, %s37
    %p48 = scmp.eq.s32.totalorder %s16, 0
    %p49 = por %p47, %p48
    %p50 = scmp.ne.s32.totalorder %s36, %s37
    %p51 = scmp.eq.s32.totalorder %s17, 1
    %p52 = por %p50, %p51
    %p54 = scmp.ne.s32.totalorder %s37, %s53
    %p55 = scmp.eq.s32.totalorder %s17, 0
    %p56 = por %p54, %p55
    %s58 = sadd.s32 %s57, 1
    %p61 = scmp.eq.s32.totalorder %s11, 1
    %p62 = scmp.ne.s32.totalorder %s57, %s59
    %p63 = scmp.eq.s32.totalorder %s11, 0
    %p64 = por %p62, %p63
    %p65 = scmp.ne.s32.totalorder %s57, %s59
    %p66 = scmp.eq.s32.totalorder %s16, 1
    %p67 = por %p65, %p66
    %p68 = scmp.ne.s32.totalorder %s59, %s60
    %p69 = scmp.eq.s32.totalorder %s16, 0
    %p70 = por %p68, %p69
    %p71 = scmp.ne.s32.totalorder %s59, %s60
    %p72 = scmp.eq.s32.totalorder %s17, 1
    %p73 = por %p71, %p72
    %p75 = scmp.ne.s32.totalorder %s60, %s74
    %p76 = scmp.eq.s32.totalorder %s17, 0
    %p77 = por %p75, %p76
    %s79 = sadd.s32 %s78, 1
    %p82 = scmp.eq.s32.totalorder %s11, 1
    %p83 = scmp.ne.s32.totalorder %s78, %s80
    %p84 = scmp.eq.s32.totalorder %s11, 0
    %p85 = por %p83, %p84
    %p86 = scmp.ne.s32.totalorder %s78, %s80
    %p87 = scmp.eq.s32.totalorder %s16, 1
    %p88 = por %p86, %p87
    %p89 = scmp.ne.s32.totalorder %s80, %s81
    %p90 = scmp.eq.s32.totalorder %s16, 0
    %p91 = por %p89, %p90
    %p92 = scmp.ne.s32.totalorder %s80, %s81
    %p93 = scmp.eq.s32.totalorder %s17, 1
    %p94 = por %p92, %p93
    %p96 = scmp.ne.s32.totalorder %s81, %s95
    %p97 = scmp.eq.s32.totalorder %s17, 0
    %p98 = por %p96, %p97
    %s99 = ssub.s32 %s19, %s26
    %p100 = scmp.eq.s32.totalorder %s99, 0
    %s102 = sadd.s32 %s101, 1
    %s103 = scalar_select %p100, %s101, %s102
    %p106 = pneg %p100
    %p107 = scmp.eq.s32.totalorder %s11, 1
    %p108 = por %p106, %p107
    %p109 = scmp.ne.s32.totalorder %s101, %s104
    %p110 = scmp.eq.s32.totalorder %s11, 0
    %p111 = por %p109, %p110
    %p112 = scmp.ne.s32.totalorder %s101, %s104
    %p113 = scmp.eq.s32.totalorder %s16, 1
    %p114 = por %p112, %p113
    %p115 = scmp.ne.s32.totalorder %s104, %s105
    %p116 = scmp.eq.s32.totalorder %s16, 0
    %p117 = por %p115, %p116
    %p118 = scmp.ne.s32.totalorder %s104, %s105
    %p119 = scmp.eq.s32.totalorder %s17, 1
    %p120 = por %p118, %p119
    %p122 = scmp.ne.s32.totalorder %s105, %s121
    %p123 = scmp.eq.s32.totalorder %s17, 0
    %p124 = por %p122, %p123
    %s125 = ssub.s32 %s19, %s26
    %p126 = scmp.eq.s32.totalorder %s125, 0
    %s128 = sadd.s32 %s127, 1
    %s129 = scalar_select %p126, %s127, %s128
    %p132 = pneg %p126
    %p133 = scmp.eq.s32.totalorder %s11, 1
    %p134 = por %p132, %p133
    %p135 = scmp.ne.s32.totalorder %s127, %s130
    %p136 = scmp.eq.s32.totalorder %s11, 0
    %p137 = por %p135, %p136
    %p138 = scmp.ne.s32.totalorder %s127, %s130
    %p139 = scmp.eq.s32.totalorder %s16, 1
    %p140 = por %p138, %p139
    %p141 = scmp.ne.s32.totalorder %s130, %s131
    %p142 = scmp.eq.s32.totalorder %s16, 0
    %p143 = por %p141, %p142
    %p144 = scmp.ne.s32.totalorder %s130, %s131
    %p145 = scmp.eq.s32.totalorder %s17, 1
    %p146 = por %p144, %p145
    %p148 = scmp.ne.s32.totalorder %s131, %s147
    %p149 = scmp.eq.s32.totalorder %s17, 0
    %p150 = por %p148, %p149
    %s151 = ssub.s32 %s18, %s30
    %s152 = ssub.s32 %s19, %s26
    %s153 = sor.u32 %s151, %s152
    %p154 = scmp.eq.s32.totalorder %s153, 0
    %s156 = sadd.s32 %s155, 1
    %s157 = scalar_select %p154, %s155, %s156
    %p160 = pneg %p154
    %p161 = scmp.eq.s32.totalorder %s11, 1
    %p162 = por %p160, %p161
    %p163 = scmp.ne.s32.totalorder %s155, %s158
    %p164 = scmp.eq.s32.totalorder %s11, 0
    %p165 = por %p163, %p164
    %p166 = scmp.ne.s32.totalorder %s155, %s158
    %p167 = scmp.eq.s32.totalorder %s16, 1
    %p168 = por %p166, %p167
    %p169 = scmp.ne.s32.totalorder %s158, %s159
    %p170 = scmp.eq.s32.totalorder %s16, 0
    %p171 = por %p169, %p170
    %p172 = scmp.ne.s32.totalorder %s158, %s159
    %p173 = scmp.eq.s32.totalorder %s17, 1
    %p174 = por %p172, %p173
    %p176 = scmp.ne.s32.totalorder %s159, %s175
    %p177 = scmp.eq.s32.totalorder %s17, 0
    %p178 = por %p176, %p177
    %p179 = scmp.le.s32.totalorder 1, %s11
    %p180 = scmp.lt.s32.totalorder %s11, 3
    %p181 = pnand %p179, %p180
    %p182 = pneg %p181
    // Predicated region
    $region9: #{_lambda_.12} parent=5 // pred_check
      _
    $region10: #{_lambda_.12} parent=5 // pred_check_branch
      %184 = sbr.rel (%p181) target = $region12
    $region11: #{_lambda_.12} parent=5 // pred_region
      %s185 = ssub.s32 %s11, 1
      // Predicated region
      $region13: #{_lambda_.12} parent=11 // pred_check
        %p186 = pneg %p70
      $region14: #{_lambda_.12} parent=11 // pred_check_branch
        %188 = sbr.rel (%p186) target = $region16
      $region15: #{_lambda_.12} parent=11 // pred_region
        _
      $region16: #{_lambda_.12} parent=11 // pred_fallthru
        _
      // Predicated region
      $region17: #{_lambda_.12} parent=11 // pred_check
        %p189 = pneg %p91
      $region18: #{_lambda_.12} parent=11 // pred_check_branch
        %191 = sbr.rel (%p189) target = $region20
      $region19: #{_lambda_.12} parent=11 // pred_region
        _
      $region20: #{_lambda_.12} parent=11 // pred_fallthru
        _
      // Predicated region
      $region21: #{_lambda_.12} parent=11 // pred_check
        %p192 = pneg %p117
      $region22: #{_lambda_.12} parent=11 // pred_check_branch
        %194 = sbr.rel (%p192) target = $region24
      $region23: #{_lambda_.12} parent=11 // pred_region
        %p195 = scmp.lt.s32.totalorder %s21, 0
        %s196 = scalar_select %p195, %s21, 0
        %s197 = smul.addr %s196, 4
        %s198 = scalar_lea.vmem %s3, %s197
      $region24: #{_lambda_.12} parent=11 // pred_fallthru
        _
      // Predicated region
      $region25: #{_lambda_.12} parent=11 // pred_check
        %p199 = pneg %p143
      $region26: #{_lambda_.12} parent=11 // pred_check_branch
        %201 = sbr.rel (%p199) target = $region28
      $region27: #{_lambda_.12} parent=11 // pred_region
        %p202 = scmp.lt.s32.totalorder %s21, 0
        %s203 = scalar_select %p202, %s21, 0
        %s204 = scalar_lea.vmem %s4, %s203
      $region28: #{_lambda_.12} parent=11 // pred_fallthru
        _
    $region12: #{_lambda_.12} parent=5 // pred_fallthru
      _
    %p205 = scmp.lt.s32.totalorder %s11, 2
    // Predicated region
    $region29: #{_lambda_.12} parent=5 // pred_check
      %p206 = pneg %p205
    $region30: #{_lambda_.12} parent=5 // pred_check_branch
      %208 = sbr.rel (%p206) target = $region32
    $region31: #{_lambda_.12} parent=5 // pred_region
      // Predicated region
      $region33: #{_lambda_.12} parent=31 // pred_check
        %p209 = pneg %p43
      $region34: #{_lambda_.12} parent=31 // pred_check_branch
        %211 = sbr.rel (%p209) target = $region36
      $region35: #{_lambda_.12} parent=31 // pred_region
        %s212 = smul.u32 2, %s18
        %p213 = scmp.lt.s32.totalorder %s212, 3
        %s214 = scalar_select %p213, %s212, 3
        %s215 = smul.addr %s214, 4
        %s216 = scalar_lea.vmem %s0, %s215
        %s217 = smul.u32 2, %s18
      $region36: #{_lambda_.12} parent=31 // pred_fallthru
        _
    $region32: #{_lambda_.12} parent=5 // pred_fallthru
      _
    %p218 = scmp.le.s32.totalorder 1, %s11
    %p219 = scmp.lt.s32.totalorder %s11, 3
    %p220 = pnand %p218, %p219
    %p221 = pneg %p220
    // Predicated region
    $region37: #{_lambda_.12} parent=5 // pred_check
      _
    $region38: #{_lambda_.12} parent=5 // pred_check_branch
      %223 = sbr.rel (%p220) target = $region40
    $region39: #{_lambda_.12} parent=5 // pred_region
      %s224 = ssub.s32 %s11, 1
      %s225 = smul.u32 2, %s20
      %p226 = scmp.lt.s32.totalorder %s225, 3
      %s227 = scalar_select %p226, %s225, 3
      %s228 = smul.addr %s227, 4
      %s229 = scalar_lea.vmem %s0, %s228
      %p230 = pneg %p49
      %p231 = pneg %p46
      %p232 = pneg %p70
      %p233 = pneg %p67
      %p234 = pneg %p91
      %p235 = pneg %p88
      %p236 = scmp.lt.s32.totalorder %s21, 0
      %s237 = scalar_select %p236, %s21, 0
      %s238 = smul.addr %s237, 4
      %s239 = scalar_lea.vmem %s3, %s238
      %p240 = pneg %p117
      %p241 = pneg %p114
      %p242 = scmp.lt.s32.totalorder %s21, 0
      %s243 = scalar_select %p242, %s21, 0
      %s244 = scalar_lea.vmem %s4, %s243
      %p245 = pneg %p143
      %p246 = pneg %p140
      %p247 = pneg %p171
      %p248 = pneg %p168
      %s249 = smul.u32 2, %s20
      %p250 = scmp.lt.s32.totalorder %s249, 3
      %s251 = scalar_select %p250, %s249, 3
      %p252 = scmp.lt.s32.totalorder %s21, 0
      %s253 = scalar_select %p252, %s21, 0
      %s254 = sadd.s32 %s253, %s251
      %s255 = smul.addr %s254, 4
      %s256 = scalar_lea.vmem %s5, %s255
      %s257 = smul.u32 2, %s20
      %p258 = scmp.lt.s32.totalorder %s257, 3
      %s259 = scalar_select %p258, %s257, 3
      %s260 = smul.addr %s259, 4
      %s261 = scalar_lea.vmem %s0, %s260
      %s262 = smul.u32 2, %s20
      %p263 = scmp.lt.s32.totalorder %s21, 0
      %s264 = scalar_select %p263, %s21, 0
      %s265 = smul.addr %s264, 4
      %s266 = scalar_lea.vmem %s3, %s265
      %p267 = scmp.lt.s32.totalorder %s21, 0
      %s268 = scalar_select %p267, %s21, 0
      %s269 = scalar_lea.vmem %s4, %s268
      %s270 = smul.u32 2, %s20
      %p271 = scmp.lt.s32.totalorder %s270, 3
      %s272 = scalar_select %p271, %s270, 3
      %p273 = scmp.lt.s32.totalorder %s21, 0
      %s274 = scalar_select %p273, %s21, 0
      %s275 = sadd.s32 %s274, %s272
      %s276 = smul.addr %s275, 4
      %s277 = scalar_lea.vmem %s5, %s276
      %s278 = smul.u32 2, %s20
      %v280 = vld [vmem:[%s261] sm:$0xf]
      %v281 = vld [vmem:[%s261 + $0x4] sm:$0xf]
      %v282 = vunpack.c.l.bf16 %v280
      %v283 = vunpack.c.l.bf16 %v281
      %v284 = vld [vmem:[%s1] sm:$0x1]
      %v285 = vld [vmem:[%s2] sm:$0x1]
      %vm286 = vcmask 130048
      %v287 = vsel %vm286, %v282, 0.0
      %288 = vadd.xlane.f32.xlu0 %v287
      %v289 = vpop.xlane.xlu0 %288
      %v290 = vsel %vm286, %v283, 0.0
      %291 = vadd.xlane.f32.xlu0 %v290
      %v292 = vpop.xlane.xlu0 %291
      %v293 = vrcp.pop 16.0
      %v294 = vmul.f32 %v289, %v293
      %v295 = vmul.f32 %v292, %v293
      %v296 = vsub.f32 %v282, %v294
      %v297 = vsub.f32 %v283, %v295
      %v298 = vmul.f32 %v296, %v296
      %v299 = vmul.f32 %v297, %v297
      %v300 = vsel %vm286, %v298, 0.0
      %301 = vadd.xlane.f32.xlu0 %v300
      %v302 = vpop.xlane.xlu0 %301
      %v303 = vsel %vm286, %v299, 0.0
      %304 = vadd.xlane.f32.xlu0 %v303
      %v305 = vpop.xlane.xlu0 %304
      %v306 = vmul.f32 %v302, %v293
      %v307 = vmul.f32 %v305, %v293
      %v308 = vadd.f32 %v306, 1e-05
      %v309 = vadd.f32 %v307, 1e-05
      %v310 = vrsqrt.pop %v308
      %v311 = vrsqrt.pop %v309
      %v312 = vmul.f32 %v296, %v310
      %v313 = vmul.f32 %v297, %v311
      %v315 = vlaneseq
      %v316 = vshrl.u32 %v315, 7
      %v317 = vsub.s32 0, %v316
      %v318 = vrot.slane %v284, %v317
      %v320 = vmul.f32 %v312, %v318
      %v321 = vmul.f32 %v313, %v318
      %v323 = vlaneseq
      %v324 = vshrl.u32 %v323, 7
      %v325 = vsub.s32 0, %v324
      %v326 = vrot.slane %v285, %v325
      %v328 = vadd.f32 %v320, %v326
      %v329 = vadd.f32 %v321, %v326
      %v330 = vpack.c.bf16 %v329, %v328
      %v331 = vld [vmem:[%s266] sm:$0xf]
      %v332 = vld [vmem:[%s266 + $0x4] sm:$0xf]
      %v333 = vld [vmem:[%s269] sm:$0x1]
      %v335 = vlaneseq
      %v336 = vshrl.u32 %v335, 7
      %v337 = vsub.s32 0, %v336
      %v338 = vrot.slane %v333, %v337
      %v342 = vunpack.c.l.b16 %v331
      %v343 = vunpack.c.l.b16 %v332
      %v344 = vpack.c.b16 %v343, %v342
      %v347 = vsel %vm286, %v330, 0
      %349 = vmatprep.subr.bf16.mxu0 0
      %350 = vmatpush1.bf16.msra.mxu0 0
      %351 = vmatprep.subr.bf16.mxu0 0
      %352 = vmatpush1.bf16.msra.mxu0 0
      %353 = vmatprep.subr.bf16.mxu0 0
      %354 = vmatpush1.bf16.msra.mxu0 0
      %355 = vmatprep.subr.bf16.mxu0 0
      %356 = vmatpush1.bf16.msra.mxu0 0
      %357 = vmatprep.subr.bf16.mxu0 0
      %358 = vmatpush1.bf16.msra.mxu0 0
      %359 = vmatprep.subr.bf16.mxu0 0
      %360 = vmatpush1.bf16.msra.mxu0 0
      %361 = vmatprep.subr.bf16.mxu0 0
      %362 = vmatpush1.bf16.msra.mxu0 0
      %363 = vmatprep.subr.bf16.mxu0 0
      %364 = vmatpush1.bf16.msra.mxu0 %v344
      %365 = vmatprep.subr.bf16.mxu0 0
      %366 = vmatpush2.bf16.msra.mxu0 0
      %367 = vmatprep.subr.bf16.mxu0 0
      %368 = vmatpush2.bf16.msra.mxu0 0
      %369 = vmatprep.subr.bf16.mxu0 0
      %370 = vmatpush2.bf16.msra.mxu0 0
      %371 = vmatprep.subr.bf16.mxu0 0
      %372 = vmatpush2.bf16.msra.mxu0 0
      %373 = vmatprep.subr.bf16.mxu0 0
      %374 = vmatpush2.bf16.msra.mxu0 0
      %375 = vmatprep.subr.bf16.mxu0 0
      %376 = vmatpush2.bf16.msra.mxu0 0
      %377 = vmatprep.subr.bf16.mxu0 0
      %378 = vmatpush2.bf16.msra.mxu0 0
      %379 = vmatprep.subr.bf16.mxu0 0
      %380 = vmatpush2.bf16.msra.mxu0 0
      %381 = vmatprep.mubr.bf16.mxu0 0
      %382 = vmatmul.mubr.bf16.gmra.mxu0 %v347
      %v383 = vpop.f32.mrf.mxu0
      %v384 = vadd.f32 %v338, %v383
      %v385 = vpop.f32.mrf.mxu0
      %v386 = vpop.f32.mrf.mxu0
      %v387 = vadd.f32 %v338, %v386
      %v388 = vpop.f32.mrf.mxu0
      %389 = vdwg.mxu0
      %v390 = vpack.c.bf16 %v387, %v384
      %v392 = vunpack.c.l.b16 %v390
      %v393 = vunpack.c.h.b16 %v390
      %v394 = vpack.c.b16 %v392, %v392
      %v395 = vpack.c.b16 %v393, %v393
      %vm398 = vcmask 257024
      %399 = vst.msk [vmem:[%s277] sm:$0xf] %vm398, %v394
      %400 = vst.msk [vmem:[%s277 + $0x4] sm:$0xf] %vm398, %v395
      %s401 = smul.u32 2, %s20
      %p402 = scmp.lt.s32.totalorder %s401, 3
      %s403 = scalar_select %p402, %s401, 3
      %p404 = scmp.lt.s32.totalorder %s21, 0
      %s405 = scalar_select %p404, %s21, 0
      %s406 = sadd.s32 %s405, %s403
      %s407 = smul.addr %s406, 4
      %s408 = scalar_lea.vmem %s5, %s407
      // Predicated region
      $region41: #{_lambda_.12} parent=39 // pred_check
        %p409 = pneg %p168
      $region42: #{_lambda_.12} parent=39 // pred_check_branch
        %411 = sbr.rel (%p409) target = $region44
      $region43: #{_lambda_.12} parent=39 // pred_region
        %s412 = smul.u32 2, %s20
      $region44: #{_lambda_.12} parent=39 // pred_fallthru
        _
    $region40: #{_lambda_.12} parent=5 // pred_fallthru
      _
    %p413 = scmp.le.s32.totalorder 2, %s11
    // Predicated region
    $region45: #{_lambda_.12} parent=5 // pred_check
      %p414 = pneg %p413
    $region46: #{_lambda_.12} parent=5 // pred_check_branch
      %416 = sbr.rel (%p414) target = $region48
    $region47: #{_lambda_.12} parent=5 // pred_region
      %s417 = ssub.s32 %s11, 2
      // Predicated region
      $region49: #{_lambda_.12} parent=47 // pred_check
        %p418 = pneg %p174
      $region50: #{_lambda_.12} parent=47 // pred_check_branch
        %420 = sbr.rel (%p418) target = $region52
      $region51: #{_lambda_.12} parent=47 // pred_region
        %s421 = smul.u32 2, %s22
        %p422 = scmp.lt.s32.totalorder %s421, 3
        %s423 = scalar_select %p422, %s421, 3
        %p424 = scmp.lt.s32.totalorder %s23, 0
        %s425 = scalar_select %p424, %s23, 0
        %s426 = sadd.s32 %s425, %s423
        %s427 = smul.addr %s426, 4
        %s428 = scalar_lea.vmem %s5, %s427
      $region52: #{_lambda_.12} parent=47 // pred_fallthru
        _
    $region48: #{_lambda_.12} parent=5 // pred_fallthru
      _
  $region6: #{_lambda_.12} parent=0 // loop_footer
    %s15 = sadd.s32 1, %s11
  $region7: #{_lambda_.12} parent=0 // loop_footer_branch
    %10 = sbr.rel target = $region3
  $region8: #{_lambda_.12} parent=0 // loop_exit
    _

// kernel: _lambda_.14
$region0: #{_lambda_.14}
  #allocation0 [shape = 'u32[]', space=smem, size = 0x4, offset = 0x4, fixed_abs, tag = 'smem constant byte address 0x4 - core index']
  #allocation1 [shape = 'u32[144,128]{1,0:T(1,128)}', space=vmem, size = 0x12000, scoped, tag = 'internal scratch']
  #allocation2 [shape = 'f32[16,32]{1,0:T(8,128)}', space=vmem, size = 0x2000, scoped, tag = 'scratch operand']
  %s0 = inlined_call_operand.vmem [shape: bf16[32,32], index: 0, kind: input, shape index: {}]
  %s1 = inlined_call_operand.vmem [shape: bf16[32,128], index: 1, kind: input, shape index: {}]
  %s2 = inlined_call_operand.vmem [shape: f32[1,128], index: 2, kind: input, shape index: {}]
  %s3 = inlined_call_operand.vmem [shape: bf16[128,32], index: 3, kind: input, shape index: {}]
  %s4 = inlined_call_operand.vmem [shape: f32[1,32], index: 4, kind: input, shape index: {}]
  %s5 = inlined_call_operand.vmem [shape: f32[1,32], index: 5, kind: input, shape index: {}]
  %s6 = inlined_call_operand.vmem [shape: f32[1,32], index: 6, kind: input, shape index: {}]
  %s7 = inlined_call_operand.vmem [shape: bf16[32,32], index: 7, kind: output, shape index: {}]
  %s8 = sld [smem:[#allocation0]]
  $region69: #{_lambda_.14} parent=0
    _
  %s10 = ssub.s32 1, %s8
  %s11 = scalar_select 0, %s10, %s8
  loop: start=0, step=1, limit=4
  $region2: #{_lambda_.14} parent=0 // loop_pre_header
    _
  $region3: #{_lambda_.14} parent=0 // loop_header
    %s13 = sphi 0, %s17
    %p14 = scmp.ge.s32.totalorder %s13, 4
    %s20 = sphi 0, %s32
    %s21 = sphi 0, %s28
    %s22 = sphi 0, %s20
    %s23 = sphi 0, %s21
    %s24 = sphi 0, %s22
    %s25 = sphi 0, %s23
    %s35 = sphi 0, %s37
    %s38 = sphi 0, %s35
    %s39 = sphi 0, %s38
    %s55 = sphi 0, %s39
    %s61 = sphi 0, %s63
    %s64 = sphi 0, %s61
    %s65 = sphi 0, %s64
    %s81 = sphi 0, %s65
    %s87 = sphi 0, %s89
    %s90 = sphi 0, %s87
    %s91 = sphi 0, %s90
    %s107 = sphi 0, %s91
    %s113 = sphi 0, %s115
    %s116 = sphi 0, %s113
    %s117 = sphi 0, %s116
    %s133 = sphi 0, %s117
    %s137 = sphi 0, %s137
    %s139 = sphi 0, %s137
    %s140 = sphi 0, %s139
    %s154 = sphi 0, %s140
    %s158 = sphi 0, %s158
    %s160 = sphi 0, %s158
    %s161 = sphi 0, %s160
    %s175 = sphi 0, %s161
    %s179 = sphi 0, %s179
    %s181 = sphi 0, %s179
    %s182 = sphi 0, %s181
    %s196 = sphi 0, %s182
    %s202 = sphi 0, %s204
    %s205 = sphi 0, %s202
    %s206 = sphi 0, %s205
    %s222 = sphi 0, %s206
  $region4: #{_lambda_.14} parent=0 // loop_header_branch
    %16 = sbr.rel (%p14) target = $region8
  $region5: #{_lambda_.14} parent=0 // loop_body
    %s18 = ssub.s32 %s13, 1
    %s19 = ssub.s32 %s13, 2
    %s26 = sadd.s32 1, %s21
    %p27 = scmp.ge.s32.totalorder %s26, 1
    %s28 = scalar_select %p27, 0, %s26
    %s29 = sadd.s32 1, %s20
    %s30 = scalar_select %p27, %s29, %s20
    %p31 = scmp.ge.s32.totalorder %s30, 2
    %s32 = scalar_select %p31, 0, %s30
    %s33 = ssub.s32 %s20, %s32
    %p34 = scmp.eq.s32.totalorder %s33, 0
    %s36 = sadd.s32 %s35, 1
    %s37 = scalar_select %p34, %s35, %s36
    %p40 = pneg %p34
    %p41 = scmp.eq.s32.totalorder %s13, 1
    %p42 = por %p40, %p41
    %p43 = scmp.ne.s32.totalorder %s35, %s38
    %p44 = scmp.eq.s32.totalorder %s13, 0
    %p45 = por %p43, %p44
    %p46 = scmp.ne.s32.totalorder %s35, %s38
    %p47 = scmp.eq.s32.totalorder %s18, 1
    %p48 = por %p46, %p47
    %p49 = scmp.ne.s32.totalorder %s38, %s39
    %p50 = scmp.eq.s32.totalorder %s18, 0
    %p51 = por %p49, %p50
    %p52 = scmp.ne.s32.totalorder %s38, %s39
    %p53 = scmp.eq.s32.totalorder %s19, 1
    %p54 = por %p52, %p53
    %p56 = scmp.ne.s32.totalorder %s39, %s55
    %p57 = scmp.eq.s32.totalorder %s19, 0
    %p58 = por %p56, %p57
    %s59 = ssub.s32 %s21, %s28
    %p60 = scmp.eq.s32.totalorder %s59, 0
    %s62 = sadd.s32 %s61, 1
    %s63 = scalar_select %p60, %s61, %s62
    %p66 = pneg %p60
    %p67 = scmp.eq.s32.totalorder %s13, 1
    %p68 = por %p66, %p67
    %p69 = scmp.ne.s32.totalorder %s61, %s64
    %p70 = scmp.eq.s32.totalorder %s13, 0
    %p71 = por %p69, %p70
    %p72 = scmp.ne.s32.totalorder %s61, %s64
    %p73 = scmp.eq.s32.totalorder %s18, 1
    %p74 = por %p72, %p73
    %p75 = scmp.ne.s32.totalorder %s64, %s65
    %p76 = scmp.eq.s32.totalorder %s18, 0
    %p77 = por %p75, %p76
    %p78 = scmp.ne.s32.totalorder %s64, %s65
    %p79 = scmp.eq.s32.totalorder %s19, 1
    %p80 = por %p78, %p79
    %p82 = scmp.ne.s32.totalorder %s65, %s81
    %p83 = scmp.eq.s32.totalorder %s19, 0
    %p84 = por %p82, %p83
    %s85 = ssub.s32 %s21, %s28
    %p86 = scmp.eq.s32.totalorder %s85, 0
    %s88 = sadd.s32 %s87, 1
    %s89 = scalar_select %p86, %s87, %s88
    %p92 = pneg %p86
    %p93 = scmp.eq.s32.totalorder %s13, 1
    %p94 = por %p92, %p93
    %p95 = scmp.ne.s32.totalorder %s87, %s90
    %p96 = scmp.eq.s32.totalorder %s13, 0
    %p97 = por %p95, %p96
    %p98 = scmp.ne.s32.totalorder %s87, %s90
    %p99 = scmp.eq.s32.totalorder %s18, 1
    %p100 = por %p98, %p99
    %p101 = scmp.ne.s32.totalorder %s90, %s91
    %p102 = scmp.eq.s32.totalorder %s18, 0
    %p103 = por %p101, %p102
    %p104 = scmp.ne.s32.totalorder %s90, %s91
    %p105 = scmp.eq.s32.totalorder %s19, 1
    %p106 = por %p104, %p105
    %p108 = scmp.ne.s32.totalorder %s91, %s107
    %p109 = scmp.eq.s32.totalorder %s19, 0
    %p110 = por %p108, %p109
    %s111 = ssub.s32 %s21, %s28
    %p112 = scmp.eq.s32.totalorder %s111, 0
    %s114 = sadd.s32 %s113, 1
    %s115 = scalar_select %p112, %s113, %s114
    %p118 = pneg %p112
    %p119 = scmp.eq.s32.totalorder %s13, 1
    %p120 = por %p118, %p119
    %p121 = scmp.ne.s32.totalorder %s113, %s116
    %p122 = scmp.eq.s32.totalorder %s13, 0
    %p123 = por %p121, %p122
    %p124 = scmp.ne.s32.totalorder %s113, %s116
    %p125 = scmp.eq.s32.totalorder %s18, 1
    %p126 = por %p124, %p125
    %p127 = scmp.ne.s32.totalorder %s116, %s117
    %p128 = scmp.eq.s32.totalorder %s18, 0
    %p129 = por %p127, %p128
    %p130 = scmp.ne.s32.totalorder %s116, %s117
    %p131 = scmp.eq.s32.totalorder %s19, 1
    %p132 = por %p130, %p131
    %p134 = scmp.ne.s32.totalorder %s117, %s133
    %p135 = scmp.eq.s32.totalorder %s19, 0
    %p136 = por %p134, %p135
    %s138 = sadd.s32 %s137, 1
    %p141 = scmp.eq.s32.totalorder %s13, 1
    %p142 = scmp.ne.s32.totalorder %s137, %s139
    %p143 = scmp.eq.s32.totalorder %s13, 0
    %p144 = por %p142, %p143
    %p145 = scmp.ne.s32.totalorder %s137, %s139
    %p146 = scmp.eq.s32.totalorder %s18, 1
    %p147 = por %p145, %p146
    %p148 = scmp.ne.s32.totalorder %s139, %s140
    %p149 = scmp.eq.s32.totalorder %s18, 0
    %p150 = por %p148, %p149
    %p151 = scmp.ne.s32.totalorder %s139, %s140
    %p152 = scmp.eq.s32.totalorder %s19, 1
    %p153 = por %p151, %p152
    %p155 = scmp.ne.s32.totalorder %s140, %s154
    %p156 = scmp.eq.s32.totalorder %s19, 0
    %p157 = por %p155, %p156
    %s159 = sadd.s32 %s158, 1
    %p162 = scmp.eq.s32.totalorder %s13, 1
    %p163 = scmp.ne.s32.totalorder %s158, %s160
    %p164 = scmp.eq.s32.totalorder %s13, 0
    %p165 = por %p163, %p164
    %p166 = scmp.ne.s32.totalorder %s158, %s160
    %p167 = scmp.eq.s32.totalorder %s18, 1
    %p168 = por %p166, %p167
    %p169 = scmp.ne.s32.totalorder %s160, %s161
    %p170 = scmp.eq.s32.totalorder %s18, 0
    %p171 = por %p169, %p170
    %p172 = scmp.ne.s32.totalorder %s160, %s161
    %p173 = scmp.eq.s32.totalorder %s19, 1
    %p174 = por %p172, %p173
    %p176 = scmp.ne.s32.totalorder %s161, %s175
    %p177 = scmp.eq.s32.totalorder %s19, 0
    %p178 = por %p176, %p177
    %s180 = sadd.s32 %s179, 1
    %p183 = scmp.eq.s32.totalorder %s13, 1
    %p184 = scmp.ne.s32.totalorder %s179, %s181
    %p185 = scmp.eq.s32.totalorder %s13, 0
    %p186 = por %p184, %p185
    %p187 = scmp.ne.s32.totalorder %s179, %s181
    %p188 = scmp.eq.s32.totalorder %s18, 1
    %p189 = por %p187, %p188
    %p190 = scmp.ne.s32.totalorder %s181, %s182
    %p191 = scmp.eq.s32.totalorder %s18, 0
    %p192 = por %p190, %p191
    %p193 = scmp.ne.s32.totalorder %s181, %s182
    %p194 = scmp.eq.s32.totalorder %s19, 1
    %p195 = por %p193, %p194
    %p197 = scmp.ne.s32.totalorder %s182, %s196
    %p198 = scmp.eq.s32.totalorder %s19, 0
    %p199 = por %p197, %p198
    %s200 = ssub.s32 %s20, %s32
    %p201 = scmp.eq.s32.totalorder %s200, 0
    %s203 = sadd.s32 %s202, 1
    %s204 = scalar_select %p201, %s202, %s203
    %p207 = pneg %p201
    %p208 = scmp.eq.s32.totalorder %s13, 1
    %p209 = por %p207, %p208
    %p210 = scmp.ne.s32.totalorder %s202, %s205
    %p211 = scmp.eq.s32.totalorder %s13, 0
    %p212 = por %p210, %p211
    %p213 = scmp.ne.s32.totalorder %s202, %s205
    %p214 = scmp.eq.s32.totalorder %s18, 1
    %p215 = por %p213, %p214
    %p216 = scmp.ne.s32.totalorder %s205, %s206
    %p217 = scmp.eq.s32.totalorder %s18, 0
    %p218 = por %p216, %p217
    %p219 = scmp.ne.s32.totalorder %s205, %s206
    %p220 = scmp.eq.s32.totalorder %s19, 1
    %p221 = por %p219, %p220
    %p223 = scmp.ne.s32.totalorder %s206, %s222
    %p224 = scmp.eq.s32.totalorder %s19, 0
    %p225 = por %p223, %p224
    %p226 = scmp.le.s32.totalorder 1, %s13
    %p227 = scmp.lt.s32.totalorder %s13, 3
    %p228 = pnand %p226, %p227
    %p229 = pneg %p228
    // Predicated region
    $region9: #{_lambda_.14} parent=5 // pred_check
      _
    $region10: #{_lambda_.14} parent=5 // pred_check_branch
      %231 = sbr.rel (%p228) target = $region12
    $region11: #{_lambda_.14} parent=5 // pred_region
      %s232 = ssub.s32 %s13, 1
      // Predicated region
      $region13: #{_lambda_.14} parent=11 // pred_check
        %p233 = pneg %p77
      $region14: #{_lambda_.14} parent=11 // pred_check_branch
        %235 = sbr.rel (%p233) target = $region16
      $region15: #{_lambda_.14} parent=11 // pred_region
        %p236 = scmp.lt.s32.totalorder %s23, 0
        %s237 = scalar_select %p236, %s23, 0
        %s238 = smul.addr %s237, 4
        %s239 = scalar_lea.vmem %s1, %s238
      $region16: #{_lambda_.14} parent=11 // pred_fallthru
        _
      // Predicated region
      $region17: #{_lambda_.14} parent=11 // pred_check
        %p240 = pneg %p103
      $region18: #{_lambda_.14} parent=11 // pred_check_branch
        %242 = sbr.rel (%p240) target = $region20
      $region19: #{_lambda_.14} parent=11 // pred_region
        %p243 = scmp.lt.s32.totalorder %s23, 0
        %s244 = scalar_select %p243, %s23, 0
        %s245 = scalar_lea.vmem %s2, %s244
      $region20: #{_lambda_.14} parent=11 // pred_fallthru
        _
      // Predicated region
      $region21: #{_lambda_.14} parent=11 // pred_check
        %p246 = pneg %p129
      $region22: #{_lambda_.14} parent=11 // pred_check_branch
        %248 = sbr.rel (%p246) target = $region24
      $region23: #{_lambda_.14} parent=11 // pred_region
        %s249 = smul.u32 16, %s23
        %p250 = scmp.lt.s32.totalorder %s249, 15
        %s251 = scalar_select %p250, %s249, 15
        %s252 = smul.addr %s251, 4
        %s253 = scalar_lea.vmem %s3, %s252
        %s254 = smul.u32 16, %s23
      $region24: #{_lambda_.14} parent=11 // pred_fallthru
        _
      // Predicated region
      $region25: #{_lambda_.14} parent=11 // pred_check
        %p255 = pneg %p150
      $region26: #{_lambda_.14} parent=11 // pred_check_branch
        %257 = sbr.rel (%p255) target = $region28
      $region27: #{_lambda_.14} parent=11 // pred_region
        _
      $region28: #{_lambda_.14} parent=11 // pred_fallthru
        _
      // Predicated region
      $region29: #{_lambda_.14} parent=11 // pred_check
        %p258 = pneg %p171
      $region30: #{_lambda_.14} parent=11 // pred_check_branch
        %260 = sbr.rel (%p258) target = $region32
      $region31: #{_lambda_.14} parent=11 // pred_region
        _
      $region32: #{_lambda_.14} parent=11 // pred_fallthru
        _
      // Predicated region
      $region33: #{_lambda_.14} parent=11 // pred_check
        %p261 = pneg %p192
      $region34: #{_lambda_.14} parent=11 // pred_check_branch
        %263 = sbr.rel (%p261) target = $region36
      $region35: #{_lambda_.14} parent=11 // pred_region
        _
      $region36: #{_lambda_.14} parent=11 // pred_fallthru
        _
    $region12: #{_lambda_.14} parent=5 // pred_fallthru
      _
    %p264 = scmp.lt.s32.totalorder %s13, 2
    // Predicated region
    $region37: #{_lambda_.14} parent=5 // pred_check
      %p265 = pneg %p264
    $region38: #{_lambda_.14} parent=5 // pred_check_branch
      %267 = sbr.rel (%p265) target = $region40
    $region39: #{_lambda_.14} parent=5 // pred_region
      // Predicated region
      $region41: #{_lambda_.14} parent=39 // pred_check
        %p268 = pneg %p45
      $region42: #{_lambda_.14} parent=39 // pred_check_branch
        %270 = sbr.rel (%p268) target = $region44
      $region43: #{_lambda_.14} parent=39 // pred_region
        %s271 = smul.u32 2, %s20
        %p272 = scmp.lt.s32.totalorder %s271, 3
        %s273 = scalar_select %p272, %s271, 3
        %s274 = smul.addr %s273, 4
        %s275 = scalar_lea.vmem %s0, %s274
        %s276 = smul.u32 2, %s20
      $region44: #{_lambda_.14} parent=39 // pred_fallthru
        _
    $region40: #{_lambda_.14} parent=5 // pred_fallthru
      _
    %p277 = scmp.le.s32.totalorder 1, %s13
    %p278 = scmp.lt.s32.totalorder %s13, 3
    %p279 = pnand %p277, %p278
    %p280 = pneg %p279
    // Predicated region
    $region45: #{_lambda_.14} parent=5 // pred_check
      _
    $region46: #{_lambda_.14} parent=5 // pred_check_branch
      %282 = sbr.rel (%p279) target = $region48
    $region47: #{_lambda_.14} parent=5 // pred_region
      %s283 = ssub.s32 %s13, 1
      %s284 = smul.u32 2, %s22
      %p285 = scmp.lt.s32.totalorder %s284, 3
      %s286 = scalar_select %p285, %s284, 3
      %s287 = smul.addr %s286, 4
      %s288 = scalar_lea.vmem %s0, %s287
      %p289 = pneg %p51
      %p290 = pneg %p48
      %p291 = scmp.lt.s32.totalorder %s23, 0
      %s292 = scalar_select %p291, %s23, 0
      %s293 = smul.addr %s292, 4
      %s294 = scalar_lea.vmem %s1, %s293
      %p295 = pneg %p77
      %p296 = pneg %p74
      %p297 = scmp.lt.s32.totalorder %s23, 0
      %s298 = scalar_select %p297, %s23, 0
      %s299 = scalar_lea.vmem %s2, %s298
      %p300 = pneg %p103
      %p301 = pneg %p100
      %s302 = smul.u32 16, %s23
      %p303 = scmp.lt.s32.totalorder %s302, 15
      %s304 = scalar_select %p303, %s302, 15
      %s305 = smul.addr %s304, 4
      %s306 = scalar_lea.vmem %s3, %s305
      %p307 = pneg %p129
      %p308 = pneg %p126
      %p309 = pneg %p150
      %p310 = pneg %p147
      %p311 = pneg %p171
      %p312 = pneg %p168
      %p313 = pneg %p192
      %p314 = pneg %p189
      %p315 = pneg %p218
      %p316 = pneg %p215
      %s317 = smul.u32 2, %s22
      %p318 = scmp.lt.s32.totalorder %s317, 3
      %s319 = scalar_select %p318, %s317, 3
      %s320 = smul.addr %s319, 4
      %s321 = scalar_lea.vmem %s7, %s320
      %s322 = smul.u32 2, %s22
      %p323 = scmp.lt.s32.totalorder %s322, 3
      %s324 = scalar_select %p323, %s322, 3
      %s325 = smul.addr %s324, 4
      %s326 = scalar_lea.vmem %s0, %s325
      %s327 = smul.u32 2, %s22
      %p328 = scmp.lt.s32.totalorder %s23, 0
      %s329 = scalar_select %p328, %s23, 0
      %s330 = smul.addr %s329, 4
      %s331 = scalar_lea.vmem %s1, %s330
      %p332 = scmp.lt.s32.totalorder %s23, 0
      %s333 = scalar_select %p332, %s23, 0
      %s334 = scalar_lea.vmem %s2, %s333
      %s335 = smul.u32 16, %s23
      %p336 = scmp.lt.s32.totalorder %s335, 15
      %s337 = scalar_select %p336, %s335, 15
      %s338 = smul.addr %s337, 4
      %s339 = scalar_lea.vmem %s3, %s338
      %s340 = smul.u32 16, %s23
      %s341 = smul.u32 2, %s22
      %p342 = scmp.lt.s32.totalorder %s341, 3
      %s343 = scalar_select %p342, %s341, 3
      %s344 = smul.addr %s343, 4
      %s345 = scalar_lea.vmem %s7, %s344
      %s346 = smul.u32 2, %s22
      %p348 = scmp.eq.s32.totalorder %s23, 0
      // Predicated region
      $region49: #{_lambda_.14} parent=47 // pred_check
        %p349 = pneg %p348
      $region50: #{_lambda_.14} parent=47 // pred_check_branch
        %351 = sbr.rel (%p349) target = $region52
      $region51: #{_lambda_.14} parent=47 // pred_region
        %vm352 = vcmask 261120
        %353 = vst.msk [vmem:[#allocation2] sm:$0xff] %vm352, 0.0
        %354 = vst.msk [vmem:[#allocation2 + $0x8] sm:$0xff] %vm352, 0.0
      $region52: #{_lambda_.14} parent=47 // pred_fallthru
        _
      %v355 = vld [vmem:[%s326] sm:$0xf]
      %v356 = vld [vmem:[%s326 + $0x4] sm:$0xf]
      %v357 = vunpack.c.l.bf16 %v355
      %v358 = vunpack.c.l.bf16 %v356
      %v359 = vld [vmem:[%s331] sm:$0xf]
      %v360 = vld [vmem:[%s331 + $0x4] sm:$0xf]
      %v361 = vld [vmem:[%s331 + $0x8] sm:$0xf]
      %v362 = vld [vmem:[%s331 + $0xc] sm:$0xf]
      %v363 = vld [vmem:[%s334] sm:$0x1]
      %v365 = vlaneseq
      %v366 = vshrl.u32 %v365, 7
      %v367 = vsub.s32 0, %v366
      %v368 = vrot.slane %v363, %v367
      %v372 = vunpack.c.l.b16 %v355
      %v373 = vunpack.c.l.b16 %v356
      %v374 = vpack.c.b16 %v373, %v372
      %v379 = vunpack.c.l.b16 %v359
      %v380 = vunpack.c.l.b16 %v360
      %v381 = vunpack.c.l.b16 %v361
      %v382 = vunpack.c.l.b16 %v362
      %v383 = vpack.c.b16 %v380, %v379
      %v384 = vpack.c.b16 %v382, %v381
      %vm387 = vcmask 261120
      %v389 = vsel %vm387, %v374, 0
      %391 = vmatprep.subr.bf16.mxu0 0
      %392 = vmatpush1.bf16.msra.mxu0 0
      %393 = vmatprep.subr.bf16.mxu0 0
      %394 = vmatpush1.bf16.msra.mxu0 0
      %395 = vmatprep.subr.bf16.mxu0 0
      %396 = vmatpush1.bf16.msra.mxu0 0
      %397 = vmatprep.subr.bf16.mxu0 0
      %398 = vmatpush1.bf16.msra.mxu0 0
      %399 = vmatprep.subr.bf16.mxu0 0
      %400 = vmatpush1.bf16.msra.mxu0 0
      %401 = vmatprep.subr.bf16.mxu0 0
      %402 = vmatpush1.bf16.msra.mxu0 0
      %403 = vmatprep.subr.bf16.mxu0 0
      %404 = vmatpush1.bf16.msra.mxu0 %v384
      %405 = vmatprep.subr.bf16.mxu0 0
      %406 = vmatpush1.bf16.msra.mxu0 %v383
      %407 = vmatprep.subr.bf16.mxu0 0
      %408 = vmatpush2.bf16.msra.mxu0 0
      %409 = vmatprep.subr.bf16.mxu0 0
      %410 = vmatpush2.bf16.msra.mxu0 0
      %411 = vmatprep.subr.bf16.mxu0 0
      %412 = vmatpush2.bf16.msra.mxu0 0
      %413 = vmatprep.subr.bf16.mxu0 0
      %414 = vmatpush2.bf16.msra.mxu0 0
      %415 = vmatprep.subr.bf16.mxu0 0
      %416 = vmatpush2.bf16.msra.mxu0 0
      %417 = vmatprep.subr.bf16.mxu0 0
      %418 = vmatpush2.bf16.msra.mxu0 0
      %419 = vmatprep.subr.bf16.mxu0 0
      %420 = vmatpush2.bf16.msra.mxu0 0
      %421 = vmatprep.subr.bf16.mxu0 0
      %422 = vmatpush2.bf16.msra.mxu0 0
      %423 = vmatprep.mubr.bf16.mxu0 0
      %424 = vmatmul.mubr.bf16.gmra.mxu0 %v389
      %v425 = vpop.f32.mrf.mxu0
      %v426 = vadd.f32 %v368, %v425
      %v427 = vpop.f32.mrf.mxu0
      %v428 = vpop.f32.mrf.mxu0
      %v429 = vadd.f32 %v368, %v428
      %v430 = vpop.f32.mrf.mxu0
      %431 = vdwg.mxu0
      %v432 = vmul.f32 %v426, 0.5
      %v433 = vmul.f32 %v429, 0.5
      %v434 = vmul.f32 %v426, 0.70710677
      %v435 = vmul.f32 %v429, 0.70710677
      %vm436 = vcmp.ge.f32.partialorder %v434, 0.0
      %vm437 = vcmp.ge.f32.partialorder %v435, 0.0
      %v438 = vsub.f32 0.0, %v434
      %v439 = vsub.f32 0.0, %v435
      %v440 = vsel %vm436, %v434, %v438
      %v441 = vsel %vm437, %v435, %v439
      %v442 = vmul.f32 %v440, 0.3275911
      %v443 = vmul.f32 %v441, 0.3275911
      %v444 = vadd.f32 %v442, 1.0
      %v445 = vadd.f32 %v443, 1.0
      %v446 = vrcp.pop %v444
      %v447 = vmul.f32 1.0, %v446
      %v448 = vrcp.pop %v445
      %v449 = vmul.f32 1.0, %v448
      %v450 = vmul.f32 %v447, 1.0614054
      %v451 = vmul.f32 %v449, 1.0614054
      %v452 = vadd.f32 %v450, -1.4531521
      %v453 = vadd.f32 %v451, -1.4531521
      %v454 = vmul.f32 %v452, %v447
      %v455 = vmul.f32 %v453, %v449
      %v456 = vadd.f32 %v454, 1.4214138
      %v457 = vadd.f32 %v455, 1.4214138
      %v458 = vmul.f32 %v456, %v447
      %v459 = vmul.f32 %v457, %v449
      %v460 = vadd.f32 %v458, -0.28449672
      %v461 = vadd.f32 %v459, -0.28449672
      %v462 = vmul.f32 %v460, %v447
      %v463 = vmul.f32 %v461, %v449
      %v464 = vadd.f32 %v462, 0.2548296
      %v465 = vadd.f32 %v463, 0.2548296
      %v466 = vmul.f32 %v464, %v447
      %v467 = vmul.f32 %v465, %v449
      %v468 = vsub.f32 0.0, %v440
      %v469 = vsub.f32 0.0, %v441
      %v470 = vmul.f32 %v468, %v440
      %v471 = vmul.f32 %v469, %v441
      %v472 = vmul.f32 %v470, 1.442695
      %v473 = vpow.pop %v472
      %v474 = vmul.f32 %v471, 1.442695
      %v475 = vpow.pop %v474
      %v476 = vmul.f32 %v466, %v473
      %v477 = vmul.f32 %v467, %v475
      %v478 = vsub.f32 1.0, %v476
      %v479 = vsub.f32 1.0, %v477
      %v480 = vsub.f32 0.0, %v478
      %v481 = vsub.f32 0.0, %v479
      %v482 = vsel %vm436, %v478, %v480
      %v483 = vsel %vm437, %v479, %v481
      %v484 = vadd.f32 %v482, 1.0
      %v485 = vadd.f32 %v483, 1.0
      %v486 = vmul.f32 %v432, %v484
      %v487 = vmul.f32 %v433, %v485
      %v488 = vld [vmem:[#allocation2] sm:$0xff]
      %v489 = vld [vmem:[#allocation2 + $0x8] sm:$0xff]
      %v490 = vpack.c.bf16 %v487, %v486
      %v491 = vld [vmem:[%s339] sm:$0xf]
      %v492 = vld [vmem:[%s339 + $0x4] sm:$0xf]
      %v493 = vld [vmem:[%s339 + $0x8] sm:$0xf]
      %v494 = vld [vmem:[%s339 + $0xc] sm:$0xf]
      %v495 = vld [vmem:[%s339 + $0x10] sm:$0xf]
      %v496 = vld [vmem:[%s339 + $0x14] sm:$0xf]
      %v497 = vld [vmem:[%s339 + $0x18] sm:$0xf]
      %v498 = vld [vmem:[%s339 + $0x1c] sm:$0xf]
      %v499 = vld [vmem:[%s339 + $0x20] sm:$0xf]
      %v500 = vld [vmem:[%s339 + $0x24] sm:$0xf]
      %v501 = vld [vmem:[%s339 + $0x28] sm:$0xf]
      %v502 = vld [vmem:[%s339 + $0x2c] sm:$0xf]
      %v503 = vld [vmem:[%s339 + $0x30] sm:$0xf]
      %v504 = vld [vmem:[%s339 + $0x34] sm:$0xf]
      %v505 = vld [vmem:[%s339 + $0x38] sm:$0xf]
      %v506 = vld [vmem:[%s339 + $0x3c] sm:$0xf]
      %v523 = vunpack.c.l.b16 %v491
      %v524 = vunpack.c.l.b16 %v492
      %v525 = vunpack.c.l.b16 %v493
      %v526 = vunpack.c.l.b16 %v494
      %v527 = vunpack.c.l.b16 %v495
      %v528 = vunpack.c.l.b16 %v496
      %v529 = vunpack.c.l.b16 %v497
      %v530 = vunpack.c.l.b16 %v498
      %v531 = vunpack.c.l.b16 %v499
      %v532 = vunpack.c.l.b16 %v500
      %v533 = vunpack.c.l.b16 %v501
      %v534 = vunpack.c.l.b16 %v502
      %v535 = vunpack.c.l.b16 %v503
      %v536 = vunpack.c.l.b16 %v504
      %v537 = vunpack.c.l.b16 %v505
      %v538 = vunpack.c.l.b16 %v506
      %v539 = vpack.c.b16 %v524, %v523
      %v540 = vpack.c.b16 %v526, %v525
      %v541 = vpack.c.b16 %v528, %v527
      %v542 = vpack.c.b16 %v530, %v529
      %v543 = vpack.c.b16 %v532, %v531
      %v544 = vpack.c.b16 %v534, %v533
      %v545 = vpack.c.b16 %v536, %v535
      %v546 = vpack.c.b16 %v538, %v537
      %555 = vmatprep.subr.bf16.mxu0 0
      %556 = vmatpush1.bf16.msra.mxu0 %v546
      %557 = vmatprep.subr.bf16.mxu0 0
      %558 = vmatpush1.bf16.msra.mxu0 %v545
      %559 = vmatprep.subr.bf16.mxu0 0
      %560 = vmatpush1.bf16.msra.mxu0 %v544
      %561 = vmatprep.subr.bf16.mxu0 0
      %562 = vmatpush1.bf16.msra.mxu0 %v543
      %563 = vmatprep.subr.bf16.mxu0 0
      %564 = vmatpush1.bf16.msra.mxu0 %v542
      %565 = vmatprep.subr.bf16.mxu0 0
      %566 = vmatpush1.bf16.msra.mxu0 %v541
      %567 = vmatprep.subr.bf16.mxu0 0
      %568 = vmatpush1.bf16.msra.mxu0 %v540
      %569 = vmatprep.subr.bf16.mxu0 0
      %570 = vmatpush1.bf16.msra.mxu0 %v539
      %571 = vmatprep.subr.bf16.mxu0 0
      %572 = vmatpush2.bf16.msra.mxu0 0
      %573 = vmatprep.subr.bf16.mxu0 0
      %574 = vmatpush2.bf16.msra.mxu0 0
      %575 = vmatprep.subr.bf16.mxu0 0
      %576 = vmatpush2.bf16.msra.mxu0 0
      %577 = vmatprep.subr.bf16.mxu0 0
      %578 = vmatpush2.bf16.msra.mxu0 0
      %579 = vmatprep.subr.bf16.mxu0 0
      %580 = vmatpush2.bf16.msra.mxu0 0
      %581 = vmatprep.subr.bf16.mxu0 0
      %582 = vmatpush2.bf16.msra.mxu0 0
      %583 = vmatprep.subr.bf16.mxu0 0
      %584 = vmatpush2.bf16.msra.mxu0 0
      %585 = vmatprep.subr.bf16.mxu0 0
      %586 = vmatpush2.bf16.msra.mxu0 0
      %587 = vmatprep.mubr.bf16.mxu0 0
      %588 = vmatmul.mubr.bf16.gmra.mxu0 %v490
      %v589 = vpop.f32.mrf.mxu0
      %v590 = vadd.f32 0.0, %v589
      %v591 = vpop.f32.mrf.mxu0
      %v592 = vpop.f32.mrf.mxu0
      %v593 = vadd.f32 0.0, %v592
      %v594 = vpop.f32.mrf.mxu0
      %595 = vdwg.mxu0
      %v596 = vadd.f32 %v488, %v590
      %v597 = vadd.f32 %v489, %v593
      %598 = vst.msk [vmem:[#allocation2] sm:$0xff] %vm387, %v596
      %599 = vst.msk [vmem:[#allocation2 + $0x8] sm:$0xff] %vm387, %v597
      // Predicated region
      $region53: #{_lambda_.14} parent=47 // pred_check
        %p600 = pneg %p348
      $region54: #{_lambda_.14} parent=47 // pred_check_branch
        %602 = sbr.rel (%p600) target = $region56
      $region55: #{_lambda_.14} parent=47 // pred_region
        %v603 = vld [vmem:[#allocation2] sm:$0xff]
        %v604 = vld [vmem:[#allocation2 + $0x8] sm:$0xff]
        %v605 = vld [vmem:[%s4] sm:$0x1]
        %v607 = vlaneseq
        %v608 = vshrl.u32 %v607, 7
        %v609 = vsub.s32 0, %v608
        %v610 = vrot.slane %v605, %v609
        %v612 = vadd.f32 %v603, %v610
        %v613 = vadd.f32 %v604, %v610
        %v614 = vadd.f32 %v357, %v612
        %v615 = vadd.f32 %v358, %v613
        %v616 = vld [vmem:[%s5] sm:$0x1]
        %v617 = vld [vmem:[%s6] sm:$0x1]
        %v618 = vsel %vm387, %v614, 0.0
        %619 = vadd.xlane.f32.xlu0 %v618
        %v620 = vpop.xlane.xlu0 %619
        %v621 = vsel %vm387, %v615, 0.0
        %622 = vadd.xlane.f32.xlu0 %v621
        %v623 = vpop.xlane.xlu0 %622
        %v624 = vrcp.pop 32.0
        %v625 = vmul.f32 %v620, %v624
        %v626 = vmul.f32 %v623, %v624
        %v627 = vsub.f32 %v614, %v625
        %v628 = vsub.f32 %v615, %v626
        %v629 = vmul.f32 %v627, %v627
        %v630 = vmul.f32 %v628, %v628
        %v631 = vsel %vm387, %v629, 0.0
        %632 = vadd.xlane.f32.xlu0 %v631
        %v633 = vpop.xlane.xlu0 %632
        %v634 = vsel %vm387, %v630, 0.0
        %635 = vadd.xlane.f32.xlu0 %v634
        %v636 = vpop.xlane.xlu0 %635
        %v637 = vmul.f32 %v633, %v624
        %v638 = vmul.f32 %v636, %v624
        %v639 = vadd.f32 %v637, 1e-05
        %v640 = vadd.f32 %v638, 1e-05
        %v641 = vrsqrt.pop %v639
        %v642 = vrsqrt.pop %v640
        %v643 = vmul.f32 %v627, %v641
        %v644 = vmul.f32 %v628, %v642
        %v646 = vlaneseq
        %v647 = vshrl.u32 %v646, 7
        %v648 = vsub.s32 0, %v647
        %v649 = vrot.slane %v616, %v648
        %v651 = vmul.f32 %v643, %v649
        %v652 = vmul.f32 %v644, %v649
        %v654 = vlaneseq
        %v655 = vshrl.u32 %v654, 7
        %v656 = vsub.s32 0, %v655
        %v657 = vrot.slane %v617, %v656
        %v659 = vadd.f32 %v651, %v657
        %v660 = vadd.f32 %v652, %v657
        %v661 = vpack.c.bf16 %v660, %v659
        %v663 = vunpack.c.l.b16 %v661
        %v664 = vunpack.c.h.b16 %v661
        %v665 = vpack.c.b16 %v663, %v663
        %v666 = vpack.c.b16 %v664, %v664
        %vm669 = vcmask 257024
        %670 = vst.msk [vmem:[%s345] sm:$0xf] %vm669, %v665
        %671 = vst.msk [vmem:[%s345 + $0x4] sm:$0xf] %vm669, %v666
      $region56: #{_lambda_.14} parent=47 // pred_fallthru
        _
      %s672 = smul.u32 2, %s22
      %p673 = scmp.lt.s32.totalorder %s672, 3
      %s674 = scalar_select %p673, %s672, 3
      %s675 = smul.addr %s674, 4
      %s676 = scalar_lea.vmem %s7, %s675
      // Predicated region
      $region57: #{_lambda_.14} parent=47 // pred_check
        %p677 = pneg %p215
      $region58: #{_lambda_.14} parent=47 // pred_check_branch
        %679 = sbr.rel (%p677) target = $region60
      $region59: #{_lambda_.14} parent=47 // pred_region
        %s680 = smul.u32 2, %s22
      $region60: #{_lambda_.14} parent=47 // pred_fallthru
        _
    $region48: #{_lambda_.14} parent=5 // pred_fallthru
      _
    %p681 = scmp.le.s32.totalorder 2, %s13
    // Predicated region
    $region61: #{_lambda_.14} parent=5 // pred_check
      %p682 = pneg %p681
    $region62: #{_lambda_.14} parent=5 // pred_check_branch
      %684 = sbr.rel (%p682) target = $region64
    $region63: #{_lambda_.14} parent=5 // pred_region
      %s685 = ssub.s32 %s13, 2
      // Predicated region
      $region65: #{_lambda_.14} parent=63 // pred_check
        %p686 = pneg %p221
      $region66: #{_lambda_.14} parent=63 // pred_check_branch
        %688 = sbr.rel (%p686) target = $region68
      $region67: #{_lambda_.14} parent=63 // pred_region
        %s689 = smul.u32 2, %s24
        %p690 = scmp.lt.s32.totalorder %s689, 3
        %s691 = scalar_select %p690, %s689, 3
        %s692 = smul.addr %s691, 4
        %s693 = scalar_lea.vmem %s7, %s692
      $region68: #{_lambda_.14} parent=63 // pred_fallthru
        _
    $region64: #{_lambda_.14} parent=5 // pred_fallthru
      _
  $region6: #{_lambda_.14} parent=0 // loop_footer
    %s17 = sadd.s32 1, %s13
  $region7: #{_lambda_.14} parent=0 // loop_footer_branch
    %12 = sbr.rel target = $region3
  $region8: #{_lambda_.14} parent=0 // loop_exit
    _

// kernel: _lambda_.16
$region0: #{_lambda_.16}
  #allocation0 [shape = 'u32[]', space=smem, size = 0x4, offset = 0x4, fixed_abs, tag = 'smem constant byte address 0x4 - core index']
  #allocation1 [shape = 'u32[144,128]{1,0:T(1,128)}', space=vmem, size = 0x12000, scoped, tag = 'internal scratch']
  #allocation2 [shape = 'f32[16,32]{1,0:T(8,128)}', space=vmem, size = 0x2000, scoped, tag = 'scratch operand']
  %s0 = inlined_call_operand.vmem [shape: bf16[32,32], index: 0, kind: input, shape index: {}]
  %s1 = inlined_call_operand.vmem [shape: bf16[32,128], index: 1, kind: input, shape index: {}]
  %s2 = inlined_call_operand.vmem [shape: f32[1,128], index: 2, kind: input, shape index: {}]
  %s3 = inlined_call_operand.vmem [shape: bf16[128,32], index: 3, kind: input, shape index: {}]
  %s4 = inlined_call_operand.vmem [shape: f32[1,32], index: 4, kind: input, shape index: {}]
  %s5 = inlined_call_operand.vmem [shape: f32[1,32], index: 5, kind: input, shape index: {}]
  %s6 = inlined_call_operand.vmem [shape: f32[1,32], index: 6, kind: input, shape index: {}]
  %s7 = inlined_call_operand.vmem [shape: f32[1,32], index: 7, kind: input, shape index: {}]
  %s8 = inlined_call_operand.vmem [shape: f32[1,32], index: 8, kind: input, shape index: {}]
  %s9 = inlined_call_operand.vmem [shape: bf16[32,32], index: 9, kind: output, shape index: {}]
  %s10 = sld [smem:[#allocation0]]
  $region77: #{_lambda_.16} parent=0
    _
  %s12 = ssub.s32 1, %s10
  %s13 = scalar_select 0, %s12, %s10
  loop: start=0, step=1, limit=4
  $region2: #{_lambda_.16} parent=0 // loop_pre_header
    _
  $region3: #{_lambda_.16} parent=0 // loop_header
    %s15 = sphi 0, %s19
    %p16 = scmp.ge.s32.totalorder %s15, 4
    %s22 = sphi 0, %s34
    %s23 = sphi 0, %s30
    %s24 = sphi 0, %s22
    %s25 = sphi 0, %s23
    %s26 = sphi 0, %s24
    %s27 = sphi 0, %s25
    %s37 = sphi 0, %s39
    %s40 = sphi 0, %s37
    %s41 = sphi 0, %s40
    %s57 = sphi 0, %s41
    %s63 = sphi 0, %s65
    %s66 = sphi 0, %s63
    %s67 = sphi 0, %s66
    %s83 = sphi 0, %s67
    %s89 = sphi 0, %s91
    %s92 = sphi 0, %s89
    %s93 = sphi 0, %s92
    %s109 = sphi 0, %s93
    %s115 = sphi 0, %s117
    %s118 = sphi 0, %s115
    %s119 = sphi 0, %s118
    %s135 = sphi 0, %s119
    %s139 = sphi 0, %s139
    %s141 = sphi 0, %s139
    %s142 = sphi 0, %s141
    %s156 = sphi 0, %s142
    %s160 = sphi 0, %s160
    %s162 = sphi 0, %s160
    %s163 = sphi 0, %s162
    %s177 = sphi 0, %s163
    %s181 = sphi 0, %s181
    %s183 = sphi 0, %s181
    %s184 = sphi 0, %s183
    %s198 = sphi 0, %s184
    %s202 = sphi 0, %s202
    %s204 = sphi 0, %s202
    %s205 = sphi 0, %s204
    %s219 = sphi 0, %s205
    %s223 = sphi 0, %s223
    %s225 = sphi 0, %s223
    %s226 = sphi 0, %s225
    %s240 = sphi 0, %s226
    %s246 = sphi 0, %s248
    %s249 = sphi 0, %s246
    %s250 = sphi 0, %s249
    %s266 = sphi 0, %s250
  $region4: #{_lambda_.16} parent=0 // loop_header_branch
    %18 = sbr.rel (%p16) target = $region8
  $region5: #{_lambda_.16} parent=0 // loop_body
    %s20 = ssub.s32 %s15, 1
    %s21 = ssub.s32 %s15, 2
    %s28 = sadd.s32 1, %s23
    %p29 = scmp.ge.s32.totalorder %s28, 1
    %s30 = scalar_select %p29, 0, %s28
    %s31 = sadd.s32 1, %s22
    %s32 = scalar_select %p29, %s31, %s22
    %p33 = scmp.ge.s32.totalorder %s32, 2
    %s34 = scalar_select %p33, 0, %s32
    %s35 = ssub.s32 %s22, %s34
    %p36 = scmp.eq.s32.totalorder %s35, 0
    %s38 = sadd.s32 %s37, 1
    %s39 = scalar_select %p36, %s37, %s38
    %p42 = pneg %p36
    %p43 = scmp.eq.s32.totalorder %s15, 1
    %p44 = por %p42, %p43
    %p45 = scmp.ne.s32.totalorder %s37, %s40
    %p46 = scmp.eq.s32.totalorder %s15, 0
    %p47 = por %p45, %p46
    %p48 = scmp.ne.s32.totalorder %s37, %s40
    %p49 = scmp.eq.s32.totalorder %s20, 1
    %p50 = por %p48, %p49
    %p51 = scmp.ne.s32.totalorder %s40, %s41
    %p52 = scmp.eq.s32.totalorder %s20, 0
    %p53 = por %p51, %p52
    %p54 = scmp.ne.s32.totalorder %s40, %s41
    %p55 = scmp.eq.s32.totalorder %s21, 1
    %p56 = por %p54, %p55
    %p58 = scmp.ne.s32.totalorder %s41, %s57
    %p59 = scmp.eq.s32.totalorder %s21, 0
    %p60 = por %p58, %p59
    %s61 = ssub.s32 %s23, %s30
    %p62 = scmp.eq.s32.totalorder %s61, 0
    %s64 = sadd.s32 %s63, 1
    %s65 = scalar_select %p62, %s63, %s64
    %p68 = pneg %p62
    %p69 = scmp.eq.s32.totalorder %s15, 1
    %p70 = por %p68, %p69
    %p71 = scmp.ne.s32.totalorder %s63, %s66
    %p72 = scmp.eq.s32.totalorder %s15, 0
    %p73 = por %p71, %p72
    %p74 = scmp.ne.s32.totalorder %s63, %s66
    %p75 = scmp.eq.s32.totalorder %s20, 1
    %p76 = por %p74, %p75
    %p77 = scmp.ne.s32.totalorder %s66, %s67
    %p78 = scmp.eq.s32.totalorder %s20, 0
    %p79 = por %p77, %p78
    %p80 = scmp.ne.s32.totalorder %s66, %s67
    %p81 = scmp.eq.s32.totalorder %s21, 1
    %p82 = por %p80, %p81
    %p84 = scmp.ne.s32.totalorder %s67, %s83
    %p85 = scmp.eq.s32.totalorder %s21, 0
    %p86 = por %p84, %p85
    %s87 = ssub.s32 %s23, %s30
    %p88 = scmp.eq.s32.totalorder %s87, 0
    %s90 = sadd.s32 %s89, 1
    %s91 = scalar_select %p88, %s89, %s90
    %p94 = pneg %p88
    %p95 = scmp.eq.s32.totalorder %s15, 1
    %p96 = por %p94, %p95
    %p97 = scmp.ne.s32.totalorder %s89, %s92
    %p98 = scmp.eq.s32.totalorder %s15, 0
    %p99 = por %p97, %p98
    %p100 = scmp.ne.s32.totalorder %s89, %s92
    %p101 = scmp.eq.s32.totalorder %s20, 1
    %p102 = por %p100, %p101
    %p103 = scmp.ne.s32.totalorder %s92, %s93
    %p104 = scmp.eq.s32.totalorder %s20, 0
    %p105 = por %p103, %p104
    %p106 = scmp.ne.s32.totalorder %s92, %s93
    %p107 = scmp.eq.s32.totalorder %s21, 1
    %p108 = por %p106, %p107
    %p110 = scmp.ne.s32.totalorder %s93, %s109
    %p111 = scmp.eq.s32.totalorder %s21, 0
    %p112 = por %p110, %p111
    %s113 = ssub.s32 %s23, %s30
    %p114 = scmp.eq.s32.totalorder %s113, 0
    %s116 = sadd.s32 %s115, 1
    %s117 = scalar_select %p114, %s115, %s116
    %p120 = pneg %p114
    %p121 = scmp.eq.s32.totalorder %s15, 1
    %p122 = por %p120, %p121
    %p123 = scmp.ne.s32.totalorder %s115, %s118
    %p124 = scmp.eq.s32.totalorder %s15, 0
    %p125 = por %p123, %p124
    %p126 = scmp.ne.s32.totalorder %s115, %s118
    %p127 = scmp.eq.s32.totalorder %s20, 1
    %p128 = por %p126, %p127
    %p129 = scmp.ne.s32.totalorder %s118, %s119
    %p130 = scmp.eq.s32.totalorder %s20, 0
    %p131 = por %p129, %p130
    %p132 = scmp.ne.s32.totalorder %s118, %s119
    %p133 = scmp.eq.s32.totalorder %s21, 1
    %p134 = por %p132, %p133
    %p136 = scmp.ne.s32.totalorder %s119, %s135
    %p137 = scmp.eq.s32.totalorder %s21, 0
    %p138 = por %p136, %p137
    %s140 = sadd.s32 %s139, 1
    %p143 = scmp.eq.s32.totalorder %s15, 1
    %p144 = scmp.ne.s32.totalorder %s139, %s141
    %p145 = scmp.eq.s32.totalorder %s15, 0
    %p146 = por %p144, %p145
    %p147 = scmp.ne.s32.totalorder %s139, %s141
    %p148 = scmp.eq.s32.totalorder %s20, 1
    %p149 = por %p147, %p148
    %p150 = scmp.ne.s32.totalorder %s141, %s142
    %p151 = scmp.eq.s32.totalorder %s20, 0
    %p152 = por %p150, %p151
    %p153 = scmp.ne.s32.totalorder %s141, %s142
    %p154 = scmp.eq.s32.totalorder %s21, 1
    %p155 = por %p153, %p154
    %p157 = scmp.ne.s32.totalorder %s142, %s156
    %p158 = scmp.eq.s32.totalorder %s21, 0
    %p159 = por %p157, %p158
    %s161 = sadd.s32 %s160, 1
    %p164 = scmp.eq.s32.totalorder %s15, 1
    %p165 = scmp.ne.s32.totalorder %s160, %s162
    %p166 = scmp.eq.s32.totalorder %s15, 0
    %p167 = por %p165, %p166
    %p168 = scmp.ne.s32.totalorder %s160, %s162
    %p169 = scmp.eq.s32.totalorder %s20, 1
    %p170 = por %p168, %p169
    %p171 = scmp.ne.s32.totalorder %s162, %s163
    %p172 = scmp.eq.s32.totalorder %s20, 0
    %p173 = por %p171, %p172
    %p174 = scmp.ne.s32.totalorder %s162, %s163
    %p175 = scmp.eq.s32.totalorder %s21, 1
    %p176 = por %p174, %p175
    %p178 = scmp.ne.s32.totalorder %s163, %s177
    %p179 = scmp.eq.s32.totalorder %s21, 0
    %p180 = por %p178, %p179
    %s182 = sadd.s32 %s181, 1
    %p185 = scmp.eq.s32.totalorder %s15, 1
    %p186 = scmp.ne.s32.totalorder %s181, %s183
    %p187 = scmp.eq.s32.totalorder %s15, 0
    %p188 = por %p186, %p187
    %p189 = scmp.ne.s32.totalorder %s181, %s183
    %p190 = scmp.eq.s32.totalorder %s20, 1
    %p191 = por %p189, %p190
    %p192 = scmp.ne.s32.totalorder %s183, %s184
    %p193 = scmp.eq.s32.totalorder %s20, 0
    %p194 = por %p192, %p193
    %p195 = scmp.ne.s32.totalorder %s183, %s184
    %p196 = scmp.eq.s32.totalorder %s21, 1
    %p197 = por %p195, %p196
    %p199 = scmp.ne.s32.totalorder %s184, %s198
    %p200 = scmp.eq.s32.totalorder %s21, 0
    %p201 = por %p199, %p200
    %s203 = sadd.s32 %s202, 1
    %p206 = scmp.eq.s32.totalorder %s15, 1
    %p207 = scmp.ne.s32.totalorder %s202, %s204
    %p208 = scmp.eq.s32.totalorder %s15, 0
    %p209 = por %p207, %p208
    %p210 = scmp.ne.s32.totalorder %s202, %s204
    %p211 = scmp.eq.s32.totalorder %s20, 1
    %p212 = por %p210, %p211
    %p213 = scmp.ne.s32.totalorder %s204, %s205
    %p214 = scmp.eq.s32.totalorder %s20, 0
    %p215 = por %p213, %p214
    %p216 = scmp.ne.s32.totalorder %s204, %s205
    %p217 = scmp.eq.s32.totalorder %s21, 1
    %p218 = por %p216, %p217
    %p220 = scmp.ne.s32.totalorder %s205, %s219
    %p221 = scmp.eq.s32.totalorder %s21, 0
    %p222 = por %p220, %p221
    %s224 = sadd.s32 %s223, 1
    %p227 = scmp.eq.s32.totalorder %s15, 1
    %p228 = scmp.ne.s32.totalorder %s223, %s225
    %p229 = scmp.eq.s32.totalorder %s15, 0
    %p230 = por %p228, %p229
    %p231 = scmp.ne.s32.totalorder %s223, %s225
    %p232 = scmp.eq.s32.totalorder %s20, 1
    %p233 = por %p231, %p232
    %p234 = scmp.ne.s32.totalorder %s225, %s226
    %p235 = scmp.eq.s32.totalorder %s20, 0
    %p236 = por %p234, %p235
    %p237 = scmp.ne.s32.totalorder %s225, %s226
    %p238 = scmp.eq.s32.totalorder %s21, 1
    %p239 = por %p237, %p238
    %p241 = scmp.ne.s32.totalorder %s226, %s240
    %p242 = scmp.eq.s32.totalorder %s21, 0
    %p243 = por %p241, %p242
    %s244 = ssub.s32 %s22, %s34
    %p245 = scmp.eq.s32.totalorder %s244, 0
    %s247 = sadd.s32 %s246, 1
    %s248 = scalar_select %p245, %s246, %s247
    %p251 = pneg %p245
    %p252 = scmp.eq.s32.totalorder %s15, 1
    %p253 = por %p251, %p252
    %p254 = scmp.ne.s32.totalorder %s246, %s249
    %p255 = scmp.eq.s32.totalorder %s15, 0
    %p256 = por %p254, %p255
    %p257 = scmp.ne.s32.totalorder %s246, %s249
    %p258 = scmp.eq.s32.totalorder %s20, 1
    %p259 = por %p257, %p258
    %p260 = scmp.ne.s32.totalorder %s249, %s250
    %p261 = scmp.eq.s32.totalorder %s20, 0
    %p262 = por %p260, %p261
    %p263 = scmp.ne.s32.totalorder %s249, %s250
    %p264 = scmp.eq.s32.totalorder %s21, 1
    %p265 = por %p263, %p264
    %p267 = scmp.ne.s32.totalorder %s250, %s266
    %p268 = scmp.eq.s32.totalorder %s21, 0
    %p269 = por %p267, %p268
    %p270 = scmp.le.s32.totalorder 1, %s15
    %p271 = scmp.lt.s32.totalorder %s15, 3
    %p272 = pnand %p270, %p271
    %p273 = pneg %p272
    // Predicated region
    $region9: #{_lambda_.16} parent=5 // pred_check
      _
    $region10: #{_lambda_.16} parent=5 // pred_check_branch
      %275 = sbr.rel (%p272) target = $region12
    $region11: #{_lambda_.16} parent=5 // pred_region
      %s276 = ssub.s32 %s15, 1
      // Predicated region
      $region13: #{_lambda_.16} parent=11 // pred_check
        %p277 = pneg %p79
      $region14: #{_lambda_.16} parent=11 // pred_check_branch
        %279 = sbr.rel (%p277) target = $region16
      $region15: #{_lambda_.16} parent=11 // pred_region
        %p280 = scmp.lt.s32.totalorder %s25, 0
        %s281 = scalar_select %p280, %s25, 0
        %s282 = smul.addr %s281, 4
        %s283 = scalar_lea.vmem %s1, %s282
      $region16: #{_lambda_.16} parent=11 // pred_fallthru
        _
      // Predicated region
      $region17: #{_lambda_.16} parent=11 // pred_check
        %p284 = pneg %p105
      $region18: #{_lambda_.16} parent=11 // pred_check_branch
        %286 = sbr.rel (%p284) target = $region20
      $region19: #{_lambda_.16} parent=11 // pred_region
        %p287 = scmp.lt.s32.totalorder %s25, 0
        %s288 = scalar_select %p287, %s25, 0
        %s289 = scalar_lea.vmem %s2, %s288
      $region20: #{_lambda_.16} parent=11 // pred_fallthru
        _
      // Predicated region
      $region21: #{_lambda_.16} parent=11 // pred_check
        %p290 = pneg %p131
      $region22: #{_lambda_.16} parent=11 // pred_check_branch
        %292 = sbr.rel (%p290) target = $region24
      $region23: #{_lambda_.16} parent=11 // pred_region
        %s293 = smul.u32 16, %s25
        %p294 = scmp.lt.s32.totalorder %s293, 15
        %s295 = scalar_select %p294, %s293, 15
        %s296 = smul.addr %s295, 4
        %s297 = scalar_lea.vmem %s3, %s296
        %s298 = smul.u32 16, %s25
      $region24: #{_lambda_.16} parent=11 // pred_fallthru
        _
      // Predicated region
      $region25: #{_lambda_.16} parent=11 // pred_check
        %p299 = pneg %p152
      $region26: #{_lambda_.16} parent=11 // pred_check_branch
        %301 = sbr.rel (%p299) target = $region28
      $region27: #{_lambda_.16} parent=11 // pred_region
        _
      $region28: #{_lambda_.16} parent=11 // pred_fallthru
        _
      // Predicated region
      $region29: #{_lambda_.16} parent=11 // pred_check
        %p302 = pneg %p173
      $region30: #{_lambda_.16} parent=11 // pred_check_branch
        %304 = sbr.rel (%p302) target = $region32
      $region31: #{_lambda_.16} parent=11 // pred_region
        _
      $region32: #{_lambda_.16} parent=11 // pred_fallthru
        _
      // Predicated region
      $region33: #{_lambda_.16} parent=11 // pred_check
        %p305 = pneg %p194
      $region34: #{_lambda_.16} parent=11 // pred_check_branch
        %307 = sbr.rel (%p305) target = $region36
      $region35: #{_lambda_.16} parent=11 // pred_region
        _
      $region36: #{_lambda_.16} parent=11 // pred_fallthru
        _
      // Predicated region
      $region37: #{_lambda_.16} parent=11 // pred_check
        %p308 = pneg %p215
      $region38: #{_lambda_.16} parent=11 // pred_check_branch
        %310 = sbr.rel (%p308) target = $region40
      $region39: #{_lambda_.16} parent=11 // pred_region
        _
      $region40: #{_lambda_.16} parent=11 // pred_fallthru
        _
      // Predicated region
      $region41: #{_lambda_.16} parent=11 // pred_check
        %p311 = pneg %p236
      $region42: #{_lambda_.16} parent=11 // pred_check_branch
        %313 = sbr.rel (%p311) target = $region44
      $region43: #{_lambda_.16} parent=11 // pred_region
        _
      $region44: #{_lambda_.16} parent=11 // pred_fallthru
        _
    $region12: #{_lambda_.16} parent=5 // pred_fallthru
      _
    %p314 = scmp.lt.s32.totalorder %s15, 2
    // Predicated region
    $region45: #{_lambda_.16} parent=5 // pred_check
      %p315 = pneg %p314
    $region46: #{_lambda_.16} parent=5 // pred_check_branch
      %317 = sbr.rel (%p315) target = $region48
    $region47: #{_lambda_.16} parent=5 // pred_region
      // Predicated region
      $region49: #{_lambda_.16} parent=47 // pred_check
        %p318 = pneg %p47
      $region50: #{_lambda_.16} parent=47 // pred_check_branch
        %320 = sbr.rel (%p318) target = $region52
      $region51: #{_lambda_.16} parent=47 // pred_region
        %s321 = smul.u32 2, %s22
        %p322 = scmp.lt.s32.totalorder %s321, 3
        %s323 = scalar_select %p322, %s321, 3
        %s324 = smul.addr %s323, 4
        %s325 = scalar_lea.vmem %s0, %s324
        %s326 = smul.u32 2, %s22
      $region52: #{_lambda_.16} parent=47 // pred_fallthru
        _
    $region48: #{_lambda_.16} parent=5 // pred_fallthru
      _
    %p327 = scmp.le.s32.totalorder 1, %s15
    %p328 = scmp.lt.s32.totalorder %s15, 3
    %p329 = pnand %p327, %p328
    %p330 = pneg %p329
    // Predicated region
    $region53: #{_lambda_.16} parent=5 // pred_check
      _
    $region54: #{_lambda_.16} parent=5 // pred_check_branch
      %332 = sbr.rel (%p329) target = $region56
    $region55: #{_lambda_.16} parent=5 // pred_region
      %s333 = ssub.s32 %s15, 1
      %s334 = smul.u32 2, %s24
      %p335 = scmp.lt.s32.totalorder %s334, 3
      %s336 = scalar_select %p335, %s334, 3
      %s337 = smul.addr %s336, 4
      %s338 = scalar_lea.vmem %s0, %s337
      %p339 = pneg %p53
      %p340 = pneg %p50
      %p341 = scmp.lt.s32.totalorder %s25, 0
      %s342 = scalar_select %p341, %s25, 0
      %s343 = smul.addr %s342, 4
      %s344 = scalar_lea.vmem %s1, %s343
      %p345 = pneg %p79
      %p346 = pneg %p76
      %p347 = scmp.lt.s32.totalorder %s25, 0
      %s348 = scalar_select %p347, %s25, 0
      %s349 = scalar_lea.vmem %s2, %s348
      %p350 = pneg %p105
      %p351 = pneg %p102
      %s352 = smul.u32 16, %s25
      %p353 = scmp.lt.s32.totalorder %s352, 15
      %s354 = scalar_select %p353, %s352, 15
      %s355 = smul.addr %s354, 4
      %s356 = scalar_lea.vmem %s3, %s355
      %p357 = pneg %p131
      %p358 = pneg %p128
      %p359 = pneg %p152
      %p360 = pneg %p149
      %p361 = pneg %p173
      %p362 = pneg %p170
      %p363 = pneg %p194
      %p364 = pneg %p191
      %p365 = pneg %p215
      %p366 = pneg %p212
      %p367 = pneg %p236
      %p368 = pneg %p233
      %p369 = pneg %p262
      %p370 = pneg %p259
      %s371 = smul.u32 2, %s24
      %p372 = scmp.lt.s32.totalorder %s371, 3
      %s373 = scalar_select %p372, %s371, 3
      %s374 = smul.addr %s373, 4
      %s375 = scalar_lea.vmem %s9, %s374
      %s376 = smul.u32 2, %s24
      %p377 = scmp.lt.s32.totalorder %s376, 3
      %s378 = scalar_select %p377, %s376, 3
      %s379 = smul.addr %s378, 4
      %s380 = scalar_lea.vmem %s0, %s379
      %s381 = smul.u32 2, %s24
      %p382 = scmp.lt.s32.totalorder %s25, 0
      %s383 = scalar_select %p382, %s25, 0
      %s384 = smul.addr %s383, 4
      %s385 = scalar_lea.vmem %s1, %s384
      %p386 = scmp.lt.s32.totalorder %s25, 0
      %s387 = scalar_select %p386, %s25, 0
      %s388 = scalar_lea.vmem %s2, %s387
      %s389 = smul.u32 16, %s25
      %p390 = scmp.lt.s32.totalorder %s389, 15
      %s391 = scalar_select %p390, %s389, 15
      %s392 = smul.addr %s391, 4
      %s393 = scalar_lea.vmem %s3, %s392
      %s394 = smul.u32 16, %s25
      %s395 = smul.u32 2, %s24
      %p396 = scmp.lt.s32.totalorder %s395, 3
      %s397 = scalar_select %p396, %s395, 3
      %s398 = smul.addr %s397, 4
      %s399 = scalar_lea.vmem %s9, %s398
      %s400 = smul.u32 2, %s24
      %p402 = scmp.eq.s32.totalorder %s25, 0
      // Predicated region
      $region57: #{_lambda_.16} parent=55 // pred_check
        %p403 = pneg %p402
      $region58: #{_lambda_.16} parent=55 // pred_check_branch
        %405 = sbr.rel (%p403) target = $region60
      $region59: #{_lambda_.16} parent=55 // pred_region
        %vm406 = vcmask 261120
        %407 = vst.msk [vmem:[#allocation2] sm:$0xff] %vm406, 0.0
        %408 = vst.msk [vmem:[#allocation2 + $0x8] sm:$0xff] %vm406, 0.0
      $region60: #{_lambda_.16} parent=55 // pred_fallthru
        _
      %v409 = vld [vmem:[%s380] sm:$0xf]
      %v410 = vld [vmem:[%s380 + $0x4] sm:$0xf]
      %v411 = vunpack.c.l.bf16 %v409
      %v412 = vunpack.c.l.bf16 %v410
      %v413 = vld [vmem:[%s385] sm:$0xf]
      %v414 = vld [vmem:[%s385 + $0x4] sm:$0xf]
      %v415 = vld [vmem:[%s385 + $0x8] sm:$0xf]
      %v416 = vld [vmem:[%s385 + $0xc] sm:$0xf]
      %v417 = vld [vmem:[%s388] sm:$0x1]
      %v419 = vlaneseq
      %v420 = vshrl.u32 %v419, 7
      %v421 = vsub.s32 0, %v420
      %v422 = vrot.slane %v417, %v421
      %v426 = vunpack.c.l.b16 %v409
      %v427 = vunpack.c.l.b16 %v410
      %v428 = vpack.c.b16 %v427, %v426
      %v433 = vunpack.c.l.b16 %v413
      %v434 = vunpack.c.l.b16 %v414
      %v435 = vunpack.c.l.b16 %v415
      %v436 = vunpack.c.l.b16 %v416
      %v437 = vpack.c.b16 %v434, %v433
      %v438 = vpack.c.b16 %v436, %v435
      %vm441 = vcmask 261120
      %v443 = vsel %vm441, %v428, 0
      %445 = vmatprep.subr.bf16.mxu0 0
      %446 = vmatpush1.bf16.msra.mxu0 0
      %447 = vmatprep.subr.bf16.mxu0 0
      %448 = vmatpush1.bf16.msra.mxu0 0
      %449 = vmatprep.subr.bf16.mxu0 0
      %450 = vmatpush1.bf16.msra.mxu0 0
      %451 = vmatprep.subr.bf16.mxu0 0
      %452 = vmatpush1.bf16.msra.mxu0 0
      %453 = vmatprep.subr.bf16.mxu0 0
      %454 = vmatpush1.bf16.msra.mxu0 0
      %455 = vmatprep.subr.bf16.mxu0 0
      %456 = vmatpush1.bf16.msra.mxu0 0
      %457 = vmatprep.subr.bf16.mxu0 0
      %458 = vmatpush1.bf16.msra.mxu0 %v438
      %459 = vmatprep.subr.bf16.mxu0 0
      %460 = vmatpush1.bf16.msra.mxu0 %v437
      %461 = vmatprep.subr.bf16.mxu0 0
      %462 = vmatpush2.bf16.msra.mxu0 0
      %463 = vmatprep.subr.bf16.mxu0 0
      %464 = vmatpush2.bf16.msra.mxu0 0
      %465 = vmatprep.subr.bf16.mxu0 0
      %466 = vmatpush2.bf16.msra.mxu0 0
      %467 = vmatprep.subr.bf16.mxu0 0
      %468 = vmatpush2.bf16.msra.mxu0 0
      %469 = vmatprep.subr.bf16.mxu0 0
      %470 = vmatpush2.bf16.msra.mxu0 0
      %471 = vmatprep.subr.bf16.mxu0 0
      %472 = vmatpush2.bf16.msra.mxu0 0
      %473 = vmatprep.subr.bf16.mxu0 0
      %474 = vmatpush2.bf16.msra.mxu0 0
      %475 = vmatprep.subr.bf16.mxu0 0
      %476 = vmatpush2.bf16.msra.mxu0 0
      %477 = vmatprep.mubr.bf16.mxu0 0
      %478 = vmatmul.mubr.bf16.gmra.mxu0 %v443
      %v479 = vpop.f32.mrf.mxu0
      %v480 = vadd.f32 %v422, %v479
      %v481 = vpop.f32.mrf.mxu0
      %v482 = vpop.f32.mrf.mxu0
      %v483 = vadd.f32 %v422, %v482
      %v484 = vpop.f32.mrf.mxu0
      %485 = vdwg.mxu0
      %v486 = vmul.f32 %v480, 0.5
      %v487 = vmul.f32 %v483, 0.5
      %v488 = vmul.f32 %v480, 0.70710677
      %v489 = vmul.f32 %v483, 0.70710677
      %vm490 = vcmp.ge.f32.partialorder %v488, 0.0
      %vm491 = vcmp.ge.f32.partialorder %v489, 0.0
      %v492 = vsub.f32 0.0, %v488
      %v493 = vsub.f32 0.0, %v489
      %v494 = vsel %vm490, %v488, %v492
      %v495 = vsel %vm491, %v489, %v493
      %v496 = vmul.f32 %v494, 0.3275911
      %v497 = vmul.f32 %v495, 0.3275911
      %v498 = vadd.f32 %v496, 1.0
      %v499 = vadd.f32 %v497, 1.0
      %v500 = vrcp.pop %v498
      %v501 = vmul.f32 1.0, %v500
      %v502 = vrcp.pop %v499
      %v503 = vmul.f32 1.0, %v502
      %v504 = vmul.f32 %v501, 1.0614054
      %v505 = vmul.f32 %v503, 1.0614054
      %v506 = vadd.f32 %v504, -1.4531521
      %v507 = vadd.f32 %v505, -1.4531521
      %v508 = vmul.f32 %v506, %v501
      %v509 = vmul.f32 %v507, %v503
      %v510 = vadd.f32 %v508, 1.4214138
      %v511 = vadd.f32 %v509, 1.4214138
      %v512 = vmul.f32 %v510, %v501
      %v513 = vmul.f32 %v511, %v503
      %v514 = vadd.f32 %v512, -0.28449672
      %v515 = vadd.f32 %v513, -0.28449672
      %v516 = vmul.f32 %v514, %v501
      %v517 = vmul.f32 %v515, %v503
      %v518 = vadd.f32 %v516, 0.2548296
      %v519 = vadd.f32 %v517, 0.2548296
      %v520 = vmul.f32 %v518, %v501
      %v521 = vmul.f32 %v519, %v503
      %v522 = vsub.f32 0.0, %v494
      %v523 = vsub.f32 0.0, %v495
      %v524 = vmul.f32 %v522, %v494
      %v525 = vmul.f32 %v523, %v495
      %v526 = vmul.f32 %v524, 1.442695
      %v527 = vpow.pop %v526
      %v528 = vmul.f32 %v525, 1.442695
      %v529 = vpow.pop %v528
      %v530 = vmul.f32 %v520, %v527
      %v531 = vmul.f32 %v521, %v529
      %v532 = vsub.f32 1.0, %v530
      %v533 = vsub.f32 1.0, %v531
      %v534 = vsub.f32 0.0, %v532
      %v535 = vsub.f32 0.0, %v533
      %v536 = vsel %vm490, %v532, %v534
      %v537 = vsel %vm491, %v533, %v535
      %v538 = vadd.f32 %v536, 1.0
      %v539 = vadd.f32 %v537, 1.0
      %v540 = vmul.f32 %v486, %v538
      %v541 = vmul.f32 %v487, %v539
      %v542 = vld [vmem:[#allocation2] sm:$0xff]
      %v543 = vld [vmem:[#allocation2 + $0x8] sm:$0xff]
      %v544 = vpack.c.bf16 %v541, %v540
      %v545 = vld [vmem:[%s393] sm:$0xf]
      %v546 = vld [vmem:[%s393 + $0x4] sm:$0xf]
      %v547 = vld [vmem:[%s393 + $0x8] sm:$0xf]
      %v548 = vld [vmem:[%s393 + $0xc] sm:$0xf]
      %v549 = vld [vmem:[%s393 + $0x10] sm:$0xf]
      %v550 = vld [vmem:[%s393 + $0x14] sm:$0xf]
      %v551 = vld [vmem:[%s393 + $0x18] sm:$0xf]
      %v552 = vld [vmem:[%s393 + $0x1c] sm:$0xf]
      %v553 = vld [vmem:[%s393 + $0x20] sm:$0xf]
      %v554 = vld [vmem:[%s393 + $0x24] sm:$0xf]
      %v555 = vld [vmem:[%s393 + $0x28] sm:$0xf]
      %v556 = vld [vmem:[%s393 + $0x2c] sm:$0xf]
      %v557 = vld [vmem:[%s393 + $0x30] sm:$0xf]
      %v558 = vld [vmem:[%s393 + $0x34] sm:$0xf]
      %v559 = vld [vmem:[%s393 + $0x38] sm:$0xf]
      %v560 = vld [vmem:[%s393 + $0x3c] sm:$0xf]
      %v577 = vunpack.c.l.b16 %v545
      %v578 = vunpack.c.l.b16 %v546
      %v579 = vunpack.c.l.b16 %v547
      %v580 = vunpack.c.l.b16 %v548
      %v581 = vunpack.c.l.b16 %v549
      %v582 = vunpack.c.l.b16 %v550
      %v583 = vunpack.c.l.b16 %v551
      %v584 = vunpack.c.l.b16 %v552
      %v585 = vunpack.c.l.b16 %v553
      %v586 = vunpack.c.l.b16 %v554
      %v587 = vunpack.c.l.b16 %v555
      %v588 = vunpack.c.l.b16 %v556
      %v589 = vunpack.c.l.b16 %v557
      %v590 = vunpack.c.l.b16 %v558
      %v591 = vunpack.c.l.b16 %v559
      %v592 = vunpack.c.l.b16 %v560
      %v593 = vpack.c.b16 %v578, %v577
      %v594 = vpack.c.b16 %v580, %v579
      %v595 = vpack.c.b16 %v582, %v581
      %v596 = vpack.c.b16 %v584, %v583
      %v597 = vpack.c.b16 %v586, %v585
      %v598 = vpack.c.b16 %v588, %v587
      %v599 = vpack.c.b16 %v590, %v589
      %v600 = vpack.c.b16 %v592, %v591
      %609 = vmatprep.subr.bf16.mxu0 0
      %610 = vmatpush1.bf16.msra.mxu0 %v600
      %611 = vmatprep.subr.bf16.mxu0 0
      %612 = vmatpush1.bf16.msra.mxu0 %v599
      %613 = vmatprep.subr.bf16.mxu0 0
      %614 = vmatpush1.bf16.msra.mxu0 %v598
      %615 = vmatprep.subr.bf16.mxu0 0
      %616 = vmatpush1.bf16.msra.mxu0 %v597
      %617 = vmatprep.subr.bf16.mxu0 0
      %618 = vmatpush1.bf16.msra.mxu0 %v596
      %619 = vmatprep.subr.bf16.mxu0 0
      %620 = vmatpush1.bf16.msra.mxu0 %v595
      %621 = vmatprep.subr.bf16.mxu0 0
      %622 = vmatpush1.bf16.msra.mxu0 %v594
      %623 = vmatprep.subr.bf16.mxu0 0
      %624 = vmatpush1.bf16.msra.mxu0 %v593
      %625 = vmatprep.subr.bf16.mxu0 0
      %626 = vmatpush2.bf16.msra.mxu0 0
      %627 = vmatprep.subr.bf16.mxu0 0
      %628 = vmatpush2.bf16.msra.mxu0 0
      %629 = vmatprep.subr.bf16.mxu0 0
      %630 = vmatpush2.bf16.msra.mxu0 0
      %631 = vmatprep.subr.bf16.mxu0 0
      %632 = vmatpush2.bf16.msra.mxu0 0
      %633 = vmatprep.subr.bf16.mxu0 0
      %634 = vmatpush2.bf16.msra.mxu0 0
      %635 = vmatprep.subr.bf16.mxu0 0
      %636 = vmatpush2.bf16.msra.mxu0 0
      %637 = vmatprep.subr.bf16.mxu0 0
      %638 = vmatpush2.bf16.msra.mxu0 0
      %639 = vmatprep.subr.bf16.mxu0 0
      %640 = vmatpush2.bf16.msra.mxu0 0
      %641 = vmatprep.mubr.bf16.mxu0 0
      %642 = vmatmul.mubr.bf16.gmra.mxu0 %v544
      %v643 = vpop.f32.mrf.mxu0
      %v644 = vadd.f32 0.0, %v643
      %v645 = vpop.f32.mrf.mxu0
      %v646 = vpop.f32.mrf.mxu0
      %v647 = vadd.f32 0.0, %v646
      %v648 = vpop.f32.mrf.mxu0
      %649 = vdwg.mxu0
      %v650 = vadd.f32 %v542, %v644
      %v651 = vadd.f32 %v543, %v647
      %652 = vst.msk [vmem:[#allocation2] sm:$0xff] %vm441, %v650
      %653 = vst.msk [vmem:[#allocation2 + $0x8] sm:$0xff] %vm441, %v651
      // Predicated region
      $region61: #{_lambda_.16} parent=55 // pred_check
        %p654 = pneg %p402
      $region62: #{_lambda_.16} parent=55 // pred_check_branch
        %656 = sbr.rel (%p654) target = $region64
      $region63: #{_lambda_.16} parent=55 // pred_region
        %v657 = vld [vmem:[#allocation2] sm:$0xff]
        %v658 = vld [vmem:[#allocation2 + $0x8] sm:$0xff]
        %v659 = vld [vmem:[%s4] sm:$0x1]
        %v661 = vlaneseq
        %v662 = vshrl.u32 %v661, 7
        %v663 = vsub.s32 0, %v662
        %v664 = vrot.slane %v659, %v663
        %v666 = vadd.f32 %v657, %v664
        %v667 = vadd.f32 %v658, %v664
        %v668 = vadd.f32 %v411, %v666
        %v669 = vadd.f32 %v412, %v667
        %v670 = vld [vmem:[%s5] sm:$0x1]
        %v671 = vld [vmem:[%s6] sm:$0x1]
        %v672 = vsel %vm441, %v668, 0.0
        %673 = vadd.xlane.f32.xlu0 %v672
        %v674 = vpop.xlane.xlu0 %673
        %v675 = vsel %vm441, %v669, 0.0
        %676 = vadd.xlane.f32.xlu0 %v675
        %v677 = vpop.xlane.xlu0 %676
        %v678 = vrcp.pop 32.0
        %v679 = vmul.f32 %v674, %v678
        %v680 = vmul.f32 %v677, %v678
        %v681 = vsub.f32 %v668, %v679
        %v682 = vsub.f32 %v669, %v680
        %v683 = vmul.f32 %v681, %v681
        %v684 = vmul.f32 %v682, %v682
        %v685 = vsel %vm441, %v683, 0.0
        %686 = vadd.xlane.f32.xlu0 %v685
        %v687 = vpop.xlane.xlu0 %686
        %v688 = vsel %vm441, %v684, 0.0
        %689 = vadd.xlane.f32.xlu0 %v688
        %v690 = vpop.xlane.xlu0 %689
        %v691 = vmul.f32 %v687, %v678
        %v692 = vmul.f32 %v690, %v678
        %v693 = vadd.f32 %v691, 1e-05
        %v694 = vadd.f32 %v692, 1e-05
        %v695 = vrsqrt.pop %v693
        %v696 = vrsqrt.pop %v694
        %v697 = vmul.f32 %v681, %v695
        %v698 = vmul.f32 %v682, %v696
        %v700 = vlaneseq
        %v701 = vshrl.u32 %v700, 7
        %v702 = vsub.s32 0, %v701
        %v703 = vrot.slane %v670, %v702
        %v705 = vmul.f32 %v697, %v703
        %v706 = vmul.f32 %v698, %v703
        %v708 = vlaneseq
        %v709 = vshrl.u32 %v708, 7
        %v710 = vsub.s32 0, %v709
        %v711 = vrot.slane %v671, %v710
        %v713 = vadd.f32 %v705, %v711
        %v714 = vadd.f32 %v706, %v711
        %v715 = vld [vmem:[%s7] sm:$0x1]
        %v716 = vld [vmem:[%s8] sm:$0x1]
        %v717 = vsel %vm441, %v713, 0.0
        %718 = vadd.xlane.f32.xlu0 %v717
        %v719 = vpop.xlane.xlu0 %718
        %v720 = vsel %vm441, %v714, 0.0
        %721 = vadd.xlane.f32.xlu0 %v720
        %v722 = vpop.xlane.xlu0 %721
        %v723 = vmul.f32 %v719, %v678
        %v724 = vmul.f32 %v722, %v678
        %v725 = vsub.f32 %v713, %v723
        %v726 = vsub.f32 %v714, %v724
        %v727 = vmul.f32 %v725, %v725
        %v728 = vmul.f32 %v726, %v726
        %v729 = vsel %vm441, %v727, 0.0
        %730 = vadd.xlane.f32.xlu0 %v729
        %v731 = vpop.xlane.xlu0 %730
        %v732 = vsel %vm441, %v728, 0.0
        %733 = vadd.xlane.f32.xlu0 %v732
        %v734 = vpop.xlane.xlu0 %733
        %v735 = vmul.f32 %v731, %v678
        %v736 = vmul.f32 %v734, %v678
        %v737 = vadd.f32 %v735, 1e-05
        %v738 = vadd.f32 %v736, 1e-05
        %v739 = vrsqrt.pop %v737
        %v740 = vrsqrt.pop %v738
        %v741 = vmul.f32 %v725, %v739
        %v742 = vmul.f32 %v726, %v740
        %v744 = vlaneseq
        %v745 = vshrl.u32 %v744, 7
        %v746 = vsub.s32 0, %v745
        %v747 = vrot.slane %v715, %v746
        %v749 = vmul.f32 %v741, %v747
        %v750 = vmul.f32 %v742, %v747
        %v752 = vlaneseq
        %v753 = vshrl.u32 %v752, 7
        %v754 = vsub.s32 0, %v753
        %v755 = vrot.slane %v716, %v754
        %v757 = vadd.f32 %v749, %v755
        %v758 = vadd.f32 %v750, %v755
        %v759 = vpack.c.bf16 %v758, %v757
        %v761 = vunpack.c.l.b16 %v759
        %v762 = vunpack.c.h.b16 %v759
        %v763 = vpack.c.b16 %v761, %v761
        %v764 = vpack.c.b16 %v762, %v762
        %vm767 = vcmask 257024
        %768 = vst.msk [vmem:[%s399] sm:$0xf] %vm767, %v763
        %769 = vst.msk [vmem:[%s399 + $0x4] sm:$0xf] %vm767, %v764
      $region64: #{_lambda_.16} parent=55 // pred_fallthru
        _
      %s770 = smul.u32 2, %s24
      %p771 = scmp.lt.s32.totalorder %s770, 3
      %s772 = scalar_select %p771, %s770, 3
      %s773 = smul.addr %s772, 4
      %s774 = scalar_lea.vmem %s9, %s773
      // Predicated region
      $region65: #{_lambda_.16} parent=55 // pred_check
        %p775 = pneg %p259
      $region66: #{_lambda_.16} parent=55 // pred_check_branch
        %777 = sbr.rel (%p775) target = $region68
      $region67: #{_lambda_.16} parent=55 // pred_region
        %s778 = smul.u32 2, %s24
      $region68: #{_lambda_.16} parent=55 // pred_fallthru
        _
    $region56: #{_lambda_.16} parent=5 // pred_fallthru
      _
    %p779 = scmp.le.s32.totalorder 2, %s15
    // Predicated region
    $region69: #{_lambda_.16} parent=5 // pred_check
      %p780 = pneg %p779
    $region70: #{_lambda_.16} parent=5 // pred_check_branch
      %782 = sbr.rel (%p780) target = $region72
    $region71: #{_lambda_.16} parent=5 // pred_region
      %s783 = ssub.s32 %s15, 2
      // Predicated region
      $region73: #{_lambda_.16} parent=71 // pred_check
        %p784 = pneg %p265
      $region74: #{_lambda_.16} parent=71 // pred_check_branch
        %786 = sbr.rel (%p784) target = $region76
      $region75: #{_lambda_.16} parent=71 // pred_region
        %s787 = smul.u32 2, %s26
        %p788 = scmp.lt.s32.totalorder %s787, 3
        %s789 = scalar_select %p788, %s787, 3
        %s790 = smul.addr %s789, 4
        %s791 = scalar_lea.vmem %s9, %s790
      $region76: #{_lambda_.16} parent=71 // pred_fallthru
        _
    $region72: #{_lambda_.16} parent=5 // pred_fallthru
      _
  $region6: #{_lambda_.16} parent=0 // loop_footer
    %s19 = sadd.s32 1, %s15
  $region7: #{_lambda_.16} parent=0 // loop_footer_branch
    %14 = sbr.rel target = $region3
  $region8: #{_lambda_.16} parent=0 // loop_exit
    _

// kernel: _lambda_.13
$region0: #{_lambda_.13}
  #allocation0 [shape = 'u32[]', space=smem, size = 0x4, offset = 0x4, fixed_abs, tag = 'smem constant byte address 0x4 - core index']
  #allocation1 [shape = 'u32[144,128]{1,0:T(1,128)}', space=vmem, size = 0x12000, scoped, tag = 'internal scratch']
  %s0 = inlined_call_operand.vmem [shape: bf16[2,16,32], index: 0, kind: input, shape index: {}]
  %s1 = inlined_call_operand.vmem [shape: bf16[32,32], index: 1, kind: input, shape index: {}]
  %s2 = inlined_call_operand.vmem [shape: f32[1,32], index: 2, kind: input, shape index: {}]
  %s3 = inlined_call_operand.vmem [shape: bf16[32,64], index: 3, kind: input, shape index: {}]
  %s4 = inlined_call_operand.vmem [shape: f32[1,64], index: 4, kind: input, shape index: {}]
  %s5 = inlined_call_operand.vmem [shape: bf16[32,32], index: 5, kind: input, shape index: {}]
  %s6 = inlined_call_operand.vmem [shape: f32[1,32], index: 6, kind: input, shape index: {}]
  %s7 = inlined_call_operand.vmem [shape: f32[1,32], index: 7, kind: input, shape index: {}]
  %s8 = inlined_call_operand.vmem [shape: f32[1,32], index: 8, kind: input, shape index: {}]
  %s9 = inlined_call_operand.vmem [shape: bf16[2,16,32], index: 9, kind: output, shape index: {}]
  %s10 = sld [smem:[#allocation0]]
  $region69: #{_lambda_.13} parent=0
    _
  %s12 = ssub.s32 1, %s10
  %s13 = scalar_select 0, %s12, %s10
  loop: start=0, step=1, limit=4
  $region2: #{_lambda_.13} parent=0 // loop_pre_header
    _
  $region3: #{_lambda_.13} parent=0 // loop_header
    %s15 = sphi 0, %s19
    %p16 = scmp.ge.s32.totalorder %s15, 4
    %s25 = sphi 0, %s27
    %s28 = sphi 0, %s25
    %s29 = sphi 0, %s28
    %s45 = sphi 0, %s29
    %s49 = sphi 0, %s49
    %s51 = sphi 0, %s49
    %s52 = sphi 0, %s51
    %s66 = sphi 0, %s52
    %s70 = sphi 0, %s70
    %s72 = sphi 0, %s70
    %s73 = sphi 0, %s72
    %s87 = sphi 0, %s73
    %s91 = sphi 0, %s91
    %s93 = sphi 0, %s91
    %s94 = sphi 0, %s93
    %s108 = sphi 0, %s94
    %s112 = sphi 0, %s112
    %s114 = sphi 0, %s112
    %s115 = sphi 0, %s114
    %s129 = sphi 0, %s115
    %s133 = sphi 0, %s133
    %s135 = sphi 0, %s133
    %s136 = sphi 0, %s135
    %s150 = sphi 0, %s136
    %s154 = sphi 0, %s154
    %s156 = sphi 0, %s154
    %s157 = sphi 0, %s156
    %s171 = sphi 0, %s157
    %s175 = sphi 0, %s175
    %s177 = sphi 0, %s175
    %s178 = sphi 0, %s177
    %s192 = sphi 0, %s178
    %s196 = sphi 0, %s196
    %s198 = sphi 0, %s196
    %s199 = sphi 0, %s198
    %s213 = sphi 0, %s199
    %s219 = sphi 0, %s221
    %s222 = sphi 0, %s219
    %s223 = sphi 0, %s222
    %s239 = sphi 0, %s223
  $region4: #{_lambda_.13} parent=0 // loop_header_branch
    %18 = sbr.rel (%p16) target = $region8
  $region5: #{_lambda_.13} parent=0 // loop_body
    %s20 = ssub.s32 %s15, 1
    %s21 = ssub.s32 %s15, 2
    %s22 = sadd.s32 %s15, 1
    %s23 = ssub.s32 %s15, %s22
    %p24 = scmp.eq.s32.totalorder %s23, 0
    %s26 = sadd.s32 %s25, 1
    %s27 = scalar_select %p24, %s25, %s26
    %p30 = pneg %p24
    %p31 = scmp.eq.s32.totalorder %s15, 1
    %p32 = por %p30, %p31
    %p33 = scmp.ne.s32.totalorder %s25, %s28
    %p34 = scmp.eq.s32.totalorder %s15, 0
    %p35 = por %p33, %p34
    %p36 = scmp.ne.s32.totalorder %s25, %s28
    %p37 = scmp.eq.s32.totalorder %s20, 1
    %p38 = por %p36, %p37
    %p39 = scmp.ne.s32.totalorder %s28, %s29
    %p40 = scmp.eq.s32.totalorder %s20, 0
    %p41 = por %p39, %p40
    %p42 = scmp.ne.s32.totalorder %s28, %s29
    %p43 = scmp.eq.s32.totalorder %s21, 1
    %p44 = por %p42, %p43
    %p46 = scmp.ne.s32.totalorder %s29, %s45
    %p47 = scmp.eq.s32.totalorder %s21, 0
    %p48 = por %p46, %p47
    %s50 = sadd.s32 %s49, 1
    %p53 = scmp.eq.s32.totalorder %s15, 1
    %p54 = scmp.ne.s32.totalorder %s49, %s51
    %p55 = scmp.eq.s32.totalorder %s15, 0
    %p56 = por %p54, %p55
    %p57 = scmp.ne.s32.totalorder %s49, %s51
    %p58 = scmp.eq.s32.totalorder %s20, 1
    %p59 = por %p57, %p58
    %p60 = scmp.ne.s32.totalorder %s51, %s52
    %p61 = scmp.eq.s32.totalorder %s20, 0
    %p62 = por %p60, %p61
    %p63 = scmp.ne.s32.totalorder %s51, %s52
    %p64 = scmp.eq.s32.totalorder %s21, 1
    %p65 = por %p63, %p64
    %p67 = scmp.ne.s32.totalorder %s52, %s66
    %p68 = scmp.eq.s32.totalorder %s21, 0
    %p69 = por %p67, %p68
    %s71 = sadd.s32 %s70, 1
    %p74 = scmp.eq.s32.totalorder %s15, 1
    %p75 = scmp.ne.s32.totalorder %s70, %s72
    %p76 = scmp.eq.s32.totalorder %s15, 0
    %p77 = por %p75, %p76
    %p78 = scmp.ne.s32.totalorder %s70, %s72
    %p79 = scmp.eq.s32.totalorder %s20, 1
    %p80 = por %p78, %p79
    %p81 = scmp.ne.s32.totalorder %s72, %s73
    %p82 = scmp.eq.s32.totalorder %s20, 0
    %p83 = por %p81, %p82
    %p84 = scmp.ne.s32.totalorder %s72, %s73
    %p85 = scmp.eq.s32.totalorder %s21, 1
    %p86 = por %p84, %p85
    %p88 = scmp.ne.s32.totalorder %s73, %s87
    %p89 = scmp.eq.s32.totalorder %s21, 0
    %p90 = por %p88, %p89
    %s92 = sadd.s32 %s91, 1
    %p95 = scmp.eq.s32.totalorder %s15, 1
    %p96 = scmp.ne.s32.totalorder %s91, %s93
    %p97 = scmp.eq.s32.totalorder %s15, 0
    %p98 = por %p96, %p97
    %p99 = scmp.ne.s32.totalorder %s91, %s93
    %p100 = scmp.eq.s32.totalorder %s20, 1
    %p101 = por %p99, %p100
    %p102 = scmp.ne.s32.totalorder %s93, %s94
    %p103 = scmp.eq.s32.totalorder %s20, 0
    %p104 = por %p102, %p103
    %p105 = scmp.ne.s32.totalorder %s93, %s94
    %p106 = scmp.eq.s32.totalorder %s21, 1
    %p107 = por %p105, %p106
    %p109 = scmp.ne.s32.totalorder %s94, %s108
    %p110 = scmp.eq.s32.totalorder %s21, 0
    %p111 = por %p109, %p110
    %s113 = sadd.s32 %s112, 1
    %p116 = scmp.eq.s32.totalorder %s15, 1
    %p117 = scmp.ne.s32.totalorder %s112, %s114
    %p118 = scmp.eq.s32.totalorder %s15, 0
    %p119 = por %p117, %p118
    %p120 = scmp.ne.s32.totalorder %s112, %s114
    %p121 = scmp.eq.s32.totalorder %s20, 1
    %p122 = por %p120, %p121
    %p123 = scmp.ne.s32.totalorder %s114, %s115
    %p124 = scmp.eq.s32.totalorder %s20, 0
    %p125 = por %p123, %p124
    %p126 = scmp.ne.s32.totalorder %s114, %s115
    %p127 = scmp.eq.s32.totalorder %s21, 1
    %p128 = por %p126, %p127
    %p130 = scmp.ne.s32.totalorder %s115, %s129
    %p131 = scmp.eq.s32.totalorder %s21, 0
    %p132 = por %p130, %p131
    %s134 = sadd.s32 %s133, 1
    %p137 = scmp.eq.s32.totalorder %s15, 1
    %p138 = scmp.ne.s32.totalorder %s133, %s135
    %p139 = scmp.eq.s32.totalorder %s15, 0
    %p140 = por %p138, %p139
    %p141 = scmp.ne.s32.totalorder %s133, %s135
    %p142 = scmp.eq.s32.totalorder %s20, 1
    %p143 = por %p141, %p142
    %p144 = scmp.ne.s32.totalorder %s135, %s136
    %p145 = scmp.eq.s32.totalorder %s20, 0
    %p146 = por %p144, %p145
    %p147 = scmp.ne.s32.totalorder %s135, %s136
    %p148 = scmp.eq.s32.totalorder %s21, 1
    %p149 = por %p147, %p148
    %p151 = scmp.ne.s32.totalorder %s136, %s150
    %p152 = scmp.eq.s32.totalorder %s21, 0
    %p153 = por %p151, %p152
    %s155 = sadd.s32 %s154, 1
    %p158 = scmp.eq.s32.totalorder %s15, 1
    %p159 = scmp.ne.s32.totalorder %s154, %s156
    %p160 = scmp.eq.s32.totalorder %s15, 0
    %p161 = por %p159, %p160
    %p162 = scmp.ne.s32.totalorder %s154, %s156
    %p163 = scmp.eq.s32.totalorder %s20, 1
    %p164 = por %p162, %p163
    %p165 = scmp.ne.s32.totalorder %s156, %s157
    %p166 = scmp.eq.s32.totalorder %s20, 0
    %p167 = por %p165, %p166
    %p168 = scmp.ne.s32.totalorder %s156, %s157
    %p169 = scmp.eq.s32.totalorder %s21, 1
    %p170 = por %p168, %p169
    %p172 = scmp.ne.s32.totalorder %s157, %s171
    %p173 = scmp.eq.s32.totalorder %s21, 0
    %p174 = por %p172, %p173
    %s176 = sadd.s32 %s175, 1
    %p179 = scmp.eq.s32.totalorder %s15, 1
    %p180 = scmp.ne.s32.totalorder %s175, %s177
    %p181 = scmp.eq.s32.totalorder %s15, 0
    %p182 = por %p180, %p181
    %p183 = scmp.ne.s32.totalorder %s175, %s177
    %p184 = scmp.eq.s32.totalorder %s20, 1
    %p185 = por %p183, %p184
    %p186 = scmp.ne.s32.totalorder %s177, %s178
    %p187 = scmp.eq.s32.totalorder %s20, 0
    %p188 = por %p186, %p187
    %p189 = scmp.ne.s32.totalorder %s177, %s178
    %p190 = scmp.eq.s32.totalorder %s21, 1
    %p191 = por %p189, %p190
    %p193 = scmp.ne.s32.totalorder %s178, %s192
    %p194 = scmp.eq.s32.totalorder %s21, 0
    %p195 = por %p193, %p194
    %s197 = sadd.s32 %s196, 1
    %p200 = scmp.eq.s32.totalorder %s15, 1
    %p201 = scmp.ne.s32.totalorder %s196, %s198
    %p202 = scmp.eq.s32.totalorder %s15, 0
    %p203 = por %p201, %p202
    %p204 = scmp.ne.s32.totalorder %s196, %s198
    %p205 = scmp.eq.s32.totalorder %s20, 1
    %p206 = por %p204, %p205
    %p207 = scmp.ne.s32.totalorder %s198, %s199
    %p208 = scmp.eq.s32.totalorder %s20, 0
    %p209 = por %p207, %p208
    %p210 = scmp.ne.s32.totalorder %s198, %s199
    %p211 = scmp.eq.s32.totalorder %s21, 1
    %p212 = por %p210, %p211
    %p214 = scmp.ne.s32.totalorder %s199, %s213
    %p215 = scmp.eq.s32.totalorder %s21, 0
    %p216 = por %p214, %p215
    %s217 = ssub.s32 %s15, %s22
    %p218 = scmp.eq.s32.totalorder %s217, 0
    %s220 = sadd.s32 %s219, 1
    %s221 = scalar_select %p218, %s219, %s220
    %p224 = pneg %p218
    %p225 = scmp.eq.s32.totalorder %s15, 1
    %p226 = por %p224, %p225
    %p227 = scmp.ne.s32.totalorder %s219, %s222
    %p228 = scmp.eq.s32.totalorder %s15, 0
    %p229 = por %p227, %p228
    %p230 = scmp.ne.s32.totalorder %s219, %s222
    %p231 = scmp.eq.s32.totalorder %s20, 1
    %p232 = por %p230, %p231
    %p233 = scmp.ne.s32.totalorder %s222, %s223
    %p234 = scmp.eq.s32.totalorder %s20, 0
    %p235 = por %p233, %p234
    %p236 = scmp.ne.s32.totalorder %s222, %s223
    %p237 = scmp.eq.s32.totalorder %s21, 1
    %p238 = por %p236, %p237
    %p240 = scmp.ne.s32.totalorder %s223, %s239
    %p241 = scmp.eq.s32.totalorder %s21, 0
    %p242 = por %p240, %p241
    %p243 = scmp.le.s32.totalorder 1, %s15
    %p244 = scmp.lt.s32.totalorder %s15, 3
    %p245 = pnand %p243, %p244
    %p246 = pneg %p245
    // Predicated region
    $region9: #{_lambda_.13} parent=5 // pred_check
      _
    $region10: #{_lambda_.13} parent=5 // pred_check_branch
      %248 = sbr.rel (%p245) target = $region12
    $region11: #{_lambda_.13} parent=5 // pred_region
      %s249 = ssub.s32 %s15, 1
      // Predicated region
      $region13: #{_lambda_.13} parent=11 // pred_check
        %p250 = pneg %p62
      $region14: #{_lambda_.13} parent=11 // pred_check_branch
        %252 = sbr.rel (%p250) target = $region16
      $region15: #{_lambda_.13} parent=11 // pred_region
        _
      $region16: #{_lambda_.13} parent=11 // pred_fallthru
        _
      // Predicated region
      $region17: #{_lambda_.13} parent=11 // pred_check
        %p253 = pneg %p83
      $region18: #{_lambda_.13} parent=11 // pred_check_branch
        %255 = sbr.rel (%p253) target = $region20
      $region19: #{_lambda_.13} parent=11 // pred_region
        _
      $region20: #{_lambda_.13} parent=11 // pred_fallthru
        _
      // Predicated region
      $region21: #{_lambda_.13} parent=11 // pred_check
        %p256 = pneg %p104
      $region22: #{_lambda_.13} parent=11 // pred_check_branch
        %258 = sbr.rel (%p256) target = $region24
      $region23: #{_lambda_.13} parent=11 // pred_region
        _
      $region24: #{_lambda_.13} parent=11 // pred_fallthru
        _
      // Predicated region
      $region25: #{_lambda_.13} parent=11 // pred_check
        %p259 = pneg %p125
      $region26: #{_lambda_.13} parent=11 // pred_check_branch
        %261 = sbr.rel (%p259) target = $region28
      $region27: #{_lambda_.13} parent=11 // pred_region
        _
      $region28: #{_lambda_.13} parent=11 // pred_fallthru
        _
      // Predicated region
      $region29: #{_lambda_.13} parent=11 // pred_check
        %p262 = pneg %p146
      $region30: #{_lambda_.13} parent=11 // pred_check_branch
        %264 = sbr.rel (%p262) target = $region32
      $region31: #{_lambda_.13} parent=11 // pred_region
        _
      $region32: #{_lambda_.13} parent=11 // pred_fallthru
        _
      // Predicated region
      $region33: #{_lambda_.13} parent=11 // pred_check
        %p265 = pneg %p167
      $region34: #{_lambda_.13} parent=11 // pred_check_branch
        %267 = sbr.rel (%p265) target = $region36
      $region35: #{_lambda_.13} parent=11 // pred_region
        _
      $region36: #{_lambda_.13} parent=11 // pred_fallthru
        _
      // Predicated region
      $region37: #{_lambda_.13} parent=11 // pred_check
        %p268 = pneg %p188
      $region38: #{_lambda_.13} parent=11 // pred_check_branch
        %270 = sbr.rel (%p268) target = $region40
      $region39: #{_lambda_.13} parent=11 // pred_region
        _
      $region40: #{_lambda_.13} parent=11 // pred_fallthru
        _
      // Predicated region
      $region41: #{_lambda_.13} parent=11 // pred_check
        %p271 = pneg %p209
      $region42: #{_lambda_.13} parent=11 // pred_check_branch
        %273 = sbr.rel (%p271) target = $region44
      $region43: #{_lambda_.13} parent=11 // pred_region
        _
      $region44: #{_lambda_.13} parent=11 // pred_fallthru
        _
    $region12: #{_lambda_.13} parent=5 // pred_fallthru
      _
    %p274 = scmp.lt.s32.totalorder %s15, 2
    // Predicated region
    $region45: #{_lambda_.13} parent=5 // pred_check
      %p275 = pneg %p274
    $region46: #{_lambda_.13} parent=5 // pred_check_branch
      %277 = sbr.rel (%p275) target = $region48
    $region47: #{_lambda_.13} parent=5 // pred_region
      // Predicated region
      $region49: #{_lambda_.13} parent=47 // pred_check
        %p278 = pneg %p35
      $region50: #{_lambda_.13} parent=47 // pred_check_branch
        %280 = sbr.rel (%p278) target = $region52
      $region51: #{_lambda_.13} parent=47 // pred_region
        %p281 = scmp.lt.s32.totalorder %s15, 1
        %s282 = scalar_select %p281, %s15, 1
        %s283 = smul.addr %s282, 2
        %s284 = smul.addr %s283, 4
        %s285 = scalar_lea.vmem %s0, %s284
      $region52: #{_lambda_.13} parent=47 // pred_fallthru
        _
    $region48: #{_lambda_.13} parent=5 // pred_fallthru
      _
    %p286 = scmp.le.s32.totalorder 1, %s15
    %p287 = scmp.lt.s32.totalorder %s15, 3
    %p288 = pnand %p286, %p287
    %p289 = pneg %p288
    // Predicated region
    $region53: #{_lambda_.13} parent=5 // pred_check
      _
    $region54: #{_lambda_.13} parent=5 // pred_check_branch
      %291 = sbr.rel (%p288) target = $region56
    $region55: #{_lambda_.13} parent=5 // pred_region
      %s292 = ssub.s32 %s15, 1
      %p293 = scmp.lt.s32.totalorder %s20, 1
      %s294 = scalar_select %p293, %s20, 1
      %s295 = smul.addr %s294, 2
      %s296 = smul.addr %s295, 4
      %s297 = scalar_lea.vmem %s0, %s296
      %p298 = pneg %p41
      %p299 = pneg %p38
      %p300 = pneg %p62
      %p301 = pneg %p59
      %p302 = pneg %p83
      %p303 = pneg %p80
      %p304 = pneg %p104
      %p305 = pneg %p101
      %p306 = pneg %p125
      %p307 = pneg %p122
      %p308 = pneg %p146
      %p309 = pneg %p143
      %p310 = pneg %p167
      %p311 = pneg %p164
      %p312 = pneg %p188
      %p313 = pneg %p185
      %p314 = pneg %p209
      %p315 = pneg %p206
      %p316 = pneg %p235
      %p317 = pneg %p232
      %p318 = scmp.lt.s32.totalorder %s20, 1
      %s319 = scalar_select %p318, %s20, 1
      %s320 = smul.addr %s319, 2
      %s321 = smul.addr %s320, 4
      %s322 = scalar_lea.vmem %s9, %s321
      %p323 = scmp.lt.s32.totalorder %s20, 1
      %s324 = scalar_select %p323, %s20, 1
      %s325 = smul.addr %s324, 2
      %s326 = smul.addr %s325, 4
      %s327 = scalar_lea.vmem %s0, %s326
      %p328 = scmp.lt.s32.totalorder %s20, 1
      %s329 = scalar_select %p328, %s20, 1
      %s330 = smul.addr %s329, 2
      %s331 = smul.addr %s330, 4
      %s332 = scalar_lea.vmem %s9, %s331
      %v334 = vld [vmem:[%s327] sm:$0xf]
      %v335 = vld [vmem:[%s327 + $0x4] sm:$0xf]
      %v336 = vunpack.c.l.bf16 %v334
      %v337 = vunpack.c.l.bf16 %v335
      %v338 = vld [vmem:[%s1] sm:$0xf]
      %v339 = vld [vmem:[%s1 + $0x4] sm:$0xf]
      %v340 = vld [vmem:[%s1 + $0x8] sm:$0xf]
      %v341 = vld [vmem:[%s1 + $0xc] sm:$0xf]
      %v342 = vld [vmem:[%s2] sm:$0x1]
      %v344 = vlaneseq
      %v345 = vshrl.u32 %v344, 7
      %v346 = vsub.s32 0, %v345
      %v347 = vrot.slane %v342, %v346
      %v351 = vunpack.c.l.b16 %v334
      %v352 = vunpack.c.l.b16 %v335
      %v353 = vpack.c.b16 %v352, %v351
      %v358 = vunpack.c.l.b16 %v338
      %v359 = vunpack.c.l.b16 %v339
      %v360 = vunpack.c.l.b16 %v340
      %v361 = vunpack.c.l.b16 %v341
      %v362 = vpack.c.b16 %v359, %v358
      %v363 = vpack.c.b16 %v361, %v360
      %vm366 = vcmask 261120
      %v368 = vsel %vm366, %v353, 0
      %370 = vmatprep.subr.bf16.mxu0 0
      %371 = vmatpush1.bf16.msra.mxu0 0
      %372 = vmatprep.subr.bf16.mxu0 0
      %373 = vmatpush1.bf16.msra.mxu0 0
      %374 = vmatprep.subr.bf16.mxu0 0
      %375 = vmatpush1.bf16.msra.mxu0 0
      %376 = vmatprep.subr.bf16.mxu0 0
      %377 = vmatpush1.bf16.msra.mxu0 0
      %378 = vmatprep.subr.bf16.mxu0 0
      %379 = vmatpush1.bf16.msra.mxu0 0
      %380 = vmatprep.subr.bf16.mxu0 0
      %381 = vmatpush1.bf16.msra.mxu0 0
      %382 = vmatprep.subr.bf16.mxu0 0
      %383 = vmatpush1.bf16.msra.mxu0 %v363
      %384 = vmatprep.subr.bf16.mxu0 0
      %385 = vmatpush1.bf16.msra.mxu0 %v362
      %386 = vmatprep.subr.bf16.mxu0 0
      %387 = vmatpush2.bf16.msra.mxu0 0
      %388 = vmatprep.subr.bf16.mxu0 0
      %389 = vmatpush2.bf16.msra.mxu0 0
      %390 = vmatprep.subr.bf16.mxu0 0
      %391 = vmatpush2.bf16.msra.mxu0 0
      %392 = vmatprep.subr.bf16.mxu0 0
      %393 = vmatpush2.bf16.msra.mxu0 0
      %394 = vmatprep.subr.bf16.mxu0 0
      %395 = vmatpush2.bf16.msra.mxu0 0
      %396 = vmatprep.subr.bf16.mxu0 0
      %397 = vmatpush2.bf16.msra.mxu0 0
      %398 = vmatprep.subr.bf16.mxu0 0
      %399 = vmatpush2.bf16.msra.mxu0 0
      %400 = vmatprep.subr.bf16.mxu0 0
      %401 = vmatpush2.bf16.msra.mxu0 0
      %402 = vmatprep.mubr.bf16.mxu0 0
      %403 = vmatmul.mubr.bf16.gmra.mxu0 %v368
      %v404 = vpop.f32.mrf.mxu0
      %v405 = vadd.f32 %v347, %v404
      %v406 = vpop.f32.mrf.mxu0
      %v407 = vpop.f32.mrf.mxu0
      %v408 = vadd.f32 %v347, %v407
      %v409 = vpop.f32.mrf.mxu0
      %410 = vdwg.mxu0
      %v411 = vld [vmem:[%s3] sm:$0xf]
      %v412 = vld [vmem:[%s3 + $0x4] sm:$0xf]
      %v413 = vld [vmem:[%s3 + $0x8] sm:$0xf]
      %v414 = vld [vmem:[%s3 + $0xc] sm:$0xf]
      %v415 = vld [vmem:[%s4] sm:$0x1]
      %v417 = vlaneseq
      %v418 = vshrl.u32 %v417, 7
      %v419 = vsub.s32 0, %v418
      %v420 = vrot.slane %v415, %v419
      %v426 = vunpack.c.l.b16 %v411
      %v427 = vunpack.c.l.b16 %v412
      %v428 = vunpack.c.l.b16 %v413
      %v429 = vunpack.c.l.b16 %v414
      %v430 = vpack.c.b16 %v427, %v426
      %v431 = vpack.c.b16 %v429, %v428
      %434 = vmatprep.subr.bf16.mxu0 0
      %435 = vmatpush1.bf16.msra.mxu0 0
      %436 = vmatprep.subr.bf16.mxu0 0
      %437 = vmatpush1.bf16.msra.mxu0 0
      %438 = vmatprep.subr.bf16.mxu0 0
      %439 = vmatpush1.bf16.msra.mxu0 0
      %440 = vmatprep.subr.bf16.mxu0 0
      %441 = vmatpush1.bf16.msra.mxu0 0
      %442 = vmatprep.subr.bf16.mxu0 0
      %443 = vmatpush1.bf16.msra.mxu0 0
      %444 = vmatprep.subr.bf16.mxu0 0
      %445 = vmatpush1.bf16.msra.mxu0 0
      %446 = vmatprep.subr.bf16.mxu0 0
      %447 = vmatpush1.bf16.msra.mxu0 %v431
      %448 = vmatprep.subr.bf16.mxu0 0
      %449 = vmatpush1.bf16.msra.mxu0 %v430
      %450 = vmatprep.subr.bf16.mxu0 0
      %451 = vmatpush2.bf16.msra.mxu0 0
      %452 = vmatprep.subr.bf16.mxu0 0
      %453 = vmatpush2.bf16.msra.mxu0 0
      %454 = vmatprep.subr.bf16.mxu0 0
      %455 = vmatpush2.bf16.msra.mxu0 0
      %456 = vmatprep.subr.bf16.mxu0 0
      %457 = vmatpush2.bf16.msra.mxu0 0
      %458 = vmatprep.subr.bf16.mxu0 0
      %459 = vmatpush2.bf16.msra.mxu0 0
      %460 = vmatprep.subr.bf16.mxu0 0
      %461 = vmatpush2.bf16.msra.mxu0 0
      %462 = vmatprep.subr.bf16.mxu0 0
      %463 = vmatpush2.bf16.msra.mxu0 0
      %464 = vmatprep.subr.bf16.mxu0 0
      %465 = vmatpush2.bf16.msra.mxu0 0
      %466 = vmatprep.mubr.bf16.mxu0 0
      %467 = vmatmul.mubr.bf16.gmra.mxu0 %v368
      %v468 = vpop.f32.mrf.mxu0
      %v469 = vadd.f32 %v420, %v468
      %v470 = vpop.f32.mrf.mxu0
      %v471 = vpop.f32.mrf.mxu0
      %v472 = vadd.f32 %v420, %v471
      %v473 = vpop.f32.mrf.mxu0
      %474 = vdwg.mxu0
      %v475 = vmul.f32 %v405, 0.5
      %v476 = vmul.f32 %v408, 0.5
      %v477 = vpack.c.bf16 %v476, %v475
      %v478 = vpack.c.bf16 %v472, %v469
      %vm479 = vcmask 31744
      %v481 = vsel %vm479, %v477, 0
      %v484 = vsel %vm479, %v478, 0
      %486 = vmatprep.subr.bf16.mxu0 0
      %487 = vmatpush1.bf16.xpose.msra.mxu0 0
      %488 = vmatprep.subr.bf16.mxu0 0
      %489 = vmatpush1.bf16.xpose.msra.mxu0 0
      %490 = vmatprep.subr.bf16.mxu0 0
      %491 = vmatpush1.bf16.xpose.msra.mxu0 0
      %492 = vmatprep.subr.bf16.mxu0 0
      %493 = vmatpush1.bf16.xpose.msra.mxu0 0
      %494 = vmatprep.subr.bf16.mxu0 0
      %495 = vmatpush1.bf16.xpose.msra.mxu0 0
      %496 = vmatprep.subr.bf16.mxu0 0
      %497 = vmatpush1.bf16.xpose.msra.mxu0 0
      %498 = vmatprep.subr.bf16.mxu0 0
      %499 = vmatpush1.bf16.xpose.msra.mxu0 0
      %500 = vmatprep.subr.bf16.mxu0 0
      %501 = vmatpush1.bf16.xpose.msra.mxu0 %v484
      %502 = vmatprep.subr.bf16.mxu0 0
      %503 = vmatpush2.bf16.xpose.msra.mxu0 0
      %504 = vmatprep.subr.bf16.mxu0 0
      %505 = vmatpush2.bf16.xpose.msra.mxu0 0
      %506 = vmatprep.subr.bf16.mxu0 0
      %507 = vmatpush2.bf16.xpose.msra.mxu0 0
      %508 = vmatprep.subr.bf16.mxu0 0
      %509 = vmatpush2.bf16.xpose.msra.mxu0 0
      %510 = vmatprep.subr.bf16.mxu0 0
      %511 = vmatpush2.bf16.xpose.msra.mxu0 0
      %512 = vmatprep.subr.bf16.mxu0 0
      %513 = vmatpush2.bf16.xpose.msra.mxu0 0
      %514 = vmatprep.subr.bf16.mxu0 0
      %515 = vmatpush2.bf16.xpose.msra.mxu0 0
      %516 = vmatprep.subr.bf16.mxu0 0
      %517 = vmatpush2.bf16.xpose.msra.mxu0 0
      %518 = vmatprep.mubr.bf16.mxu0 0
      %519 = vmatmul.mubr.bf16.gmra.mxu0 %v481
      %v520 = vpop.f32.mrf.mxu0
      %v521 = vadd.f32 0.0, %v520
      %v522 = vpop.f32.mrf.mxu0
      %v523 = vpop.f32.mrf.mxu0
      %v524 = vadd.f32 0.0, %v523
      %v525 = vpop.f32.mrf.mxu0
      %526 = vdwg.mxu0
      %vm527 = vcmask 130048
      %v528 = vsel %vm527, %v521, -inf
      %529 = vmax.xlane.f32.xlu0 %v528
      %v530 = vpop.xlane.xlu0 %529
      %v531 = vsel %vm527, %v524, -inf
      %532 = vmax.xlane.f32.xlu0 %v531
      %v533 = vpop.xlane.xlu0 %532
      %v534 = vsub.f32 %v521, %v530
      %v535 = vsub.f32 %v524, %v533
      %v536 = vmul.f32 %v534, 1.442695
      %v537 = vpow.pop %v536
      %v538 = vmul.f32 %v535, 1.442695
      %v539 = vpow.pop %v538
      %v540 = vsel %vm527, %v537, 0.0
      %541 = vadd.xlane.f32.xlu0 %v540
      %v542 = vpop.xlane.xlu0 %541
      %v543 = vsel %vm527, %v539, 0.0
      %544 = vadd.xlane.f32.xlu0 %v543
      %v545 = vpop.xlane.xlu0 %544
      %v546 = vrcp.pop %v542
      %v547 = vrcp.pop %v545
      %v548 = vmul.f32 %v537, %v546
      %v549 = vmul.f32 %v539, %v547
      %v550 = vpack.c.bf16 %v549, %v548
      %552 = vrot.lane.b32.xlu0 %v478, 96
      %v553 = vpop.permute.xlu0 %552
      %v556 = vsel %vm527, %v550, 0
      %558 = vmatprep.subr.bf16.mxu0 0
      %559 = vmatpush1.bf16.msra.mxu0 0
      %560 = vmatprep.subr.bf16.mxu0 0
      %561 = vmatpush1.bf16.msra.mxu0 0
      %562 = vmatprep.subr.bf16.mxu0 0
      %563 = vmatpush1.bf16.msra.mxu0 0
      %564 = vmatprep.subr.bf16.mxu0 0
      %565 = vmatpush1.bf16.msra.mxu0 0
      %566 = vmatprep.subr.bf16.mxu0 0
      %567 = vmatpush1.bf16.msra.mxu0 0
      %568 = vmatprep.subr.bf16.mxu0 0
      %569 = vmatpush1.bf16.msra.mxu0 0
      %570 = vmatprep.subr.bf16.mxu0 0
      %571 = vmatpush1.bf16.msra.mxu0 0
      %572 = vmatprep.subr.bf16.mxu0 0
      %573 = vmatpush1.bf16.msra.mxu0 %v553
      %574 = vmatprep.subr.bf16.mxu0 0
      %575 = vmatpush2.bf16.msra.mxu0 0
      %576 = vmatprep.subr.bf16.mxu0 0
      %577 = vmatpush2.bf16.msra.mxu0 0
      %578 = vmatprep.subr.bf16.mxu0 0
      %579 = vmatpush2.bf16.msra.mxu0 0
      %580 = vmatprep.subr.bf16.mxu0 0
      %581 = vmatpush2.bf16.msra.mxu0 0
      %582 = vmatprep.subr.bf16.mxu0 0
      %583 = vmatpush2.bf16.msra.mxu0 0
      %584 = vmatprep.subr.bf16.mxu0 0
      %585 = vmatpush2.bf16.msra.mxu0 0
      %586 = vmatprep.subr.bf16.mxu0 0
      %587 = vmatpush2.bf16.msra.mxu0 0
      %588 = vmatprep.subr.bf16.mxu0 0
      %589 = vmatpush2.bf16.msra.mxu0 0
      %590 = vmatprep.mubr.bf16.mxu0 0
      %591 = vmatmul.mubr.bf16.gmra.mxu0 %v556
      %v592 = vpop.f32.mrf.mxu0
      %v593 = vadd.f32 0.0, %v592
      %v594 = vpop.f32.mrf.mxu0
      %v595 = vpop.f32.mrf.mxu0
      %v596 = vadd.f32 0.0, %v595
      %v597 = vpop.f32.mrf.mxu0
      %598 = vdwg.mxu0
      %600 = vrot.lane.b32.xlu0 %v477, 124
      %v601 = vpop.permute.xlu0 %600
      %602 = vrot.lane.b32.xlu0 %v478, 124
      %v603 = vpop.permute.xlu0 %602
      %v605 = vsel %vm479, %v601, 0
      %v608 = vsel %vm479, %v603, 0
      %610 = vmatprep.subr.bf16.mxu0 0
      %611 = vmatpush1.bf16.xpose.msra.mxu0 0
      %612 = vmatprep.subr.bf16.mxu0 0
      %613 = vmatpush1.bf16.xpose.msra.mxu0 0
      %614 = vmatprep.subr.bf16.mxu0 0
      %615 = vmatpush1.bf16.xpose.msra.mxu0 0
      %616 = vmatprep.subr.bf16.mxu0 0
      %617 = vmatpush1.bf16.xpose.msra.mxu0 0
      %618 = vmatprep.subr.bf16.mxu0 0
      %619 = vmatpush1.bf16.xpose.msra.mxu0 0
      %620 = vmatprep.subr.bf16.mxu0 0
      %621 = vmatpush1.bf16.xpose.msra.mxu0 0
      %622 = vmatprep.subr.bf16.mxu0 0
      %623 = vmatpush1.bf16.xpose.msra.mxu0 0
      %624 = vmatprep.subr.bf16.mxu0 0
      %625 = vmatpush1.bf16.xpose.msra.mxu0 %v608
      %626 = vmatprep.subr.bf16.mxu0 0
      %627 = vmatpush2.bf16.xpose.msra.mxu0 0
      %628 = vmatprep.subr.bf16.mxu0 0
      %629 = vmatpush2.bf16.xpose.msra.mxu0 0
      %630 = vmatprep.subr.bf16.mxu0 0
      %631 = vmatpush2.bf16.xpose.msra.mxu0 0
      %632 = vmatprep.subr.bf16.mxu0 0
      %633 = vmatpush2.bf16.xpose.msra.mxu0 0
      %634 = vmatprep.subr.bf16.mxu0 0
      %635 = vmatpush2.bf16.xpose.msra.mxu0 0
      %636 = vmatprep.subr.bf16.mxu0 0
      %637 = vmatpush2.bf16.xpose.msra.mxu0 0
      %638 = vmatprep.subr.bf16.mxu0 0
      %639 = vmatpush2.bf16.xpose.msra.mxu0 0
      %640 = vmatprep.subr.bf16.mxu0 0
      %641 = vmatpush2.bf16.xpose.msra.mxu0 0
      %642 = vmatprep.mubr.bf16.mxu0 0
      %643 = vmatmul.mubr.bf16.gmra.mxu0 %v605
      %v644 = vpop.f32.mrf.mxu0
      %v645 = vadd.f32 0.0, %v644
      %v646 = vpop.f32.mrf.mxu0
      %v647 = vpop.f32.mrf.mxu0
      %v648 = vadd.f32 0.0, %v647
      %v649 = vpop.f32.mrf.mxu0
      %650 = vdwg.mxu0
      %v651 = vsel %vm527, %v645, -inf
      %652 = vmax.xlane.f32.xlu0 %v651
      %v653 = vpop.xlane.xlu0 %652
      %v654 = vsel %vm527, %v648, -inf
      %655 = vmax.xlane.f32.xlu0 %v654
      %v656 = vpop.xlane.xlu0 %655
      %v657 = vsub.f32 %v645, %v653
      %v658 = vsub.f32 %v648, %v656
      %v659 = vmul.f32 %v657, 1.442695
      %v660 = vpow.pop %v659
      %v661 = vmul.f32 %v658, 1.442695
      %v662 = vpow.pop %v661
      %v663 = vsel %vm527, %v660, 0.0
      %664 = vadd.xlane.f32.xlu0 %v663
      %v665 = vpop.xlane.xlu0 %664
      %v666 = vsel %vm527, %v662, 0.0
      %667 = vadd.xlane.f32.xlu0 %v666
      %v668 = vpop.xlane.xlu0 %667
      %v669 = vrcp.pop %v665
      %v670 = vrcp.pop %v668
      %v671 = vmul.f32 %v660, %v669
      %v672 = vmul.f32 %v662, %v670
      %v673 = vpack.c.bf16 %v672, %v671
      %674 = vrot.lane.b32.xlu0 %v478, 92
      %v675 = vpop.permute.xlu0 %674
      %v678 = vsel %vm527, %v673, 0
      %680 = vmatprep.subr.bf16.mxu0 0
      %681 = vmatpush1.bf16.msra.mxu0 0
      %682 = vmatprep.subr.bf16.mxu0 0
      %683 = vmatpush1.bf16.msra.mxu0 0
      %684 = vmatprep.subr.bf16.mxu0 0
      %685 = vmatpush1.bf16.msra.mxu0 0
      %686 = vmatprep.subr.bf16.mxu0 0
      %687 = vmatpush1.bf16.msra.mxu0 0
      %688 = vmatprep.subr.bf16.mxu0 0
      %689 = vmatpush1.bf16.msra.mxu0 0
      %690 = vmatprep.subr.bf16.mxu0 0
      %691 = vmatpush1.bf16.msra.mxu0 0
      %692 = vmatprep.subr.bf16.mxu0 0
      %693 = vmatpush1.bf16.msra.mxu0 0
      %694 = vmatprep.subr.bf16.mxu0 0
      %695 = vmatpush1.bf16.msra.mxu0 %v675
      %696 = vmatprep.subr.bf16.mxu0 0
      %697 = vmatpush2.bf16.msra.mxu0 0
      %698 = vmatprep.subr.bf16.mxu0 0
      %699 = vmatpush2.bf16.msra.mxu0 0
      %700 = vmatprep.subr.bf16.mxu0 0
      %701 = vmatpush2.bf16.msra.mxu0 0
      %702 = vmatprep.subr.bf16.mxu0 0
      %703 = vmatpush2.bf16.msra.mxu0 0
      %704 = vmatprep.subr.bf16.mxu0 0
      %705 = vmatpush2.bf16.msra.mxu0 0
      %706 = vmatprep.subr.bf16.mxu0 0
      %707 = vmatpush2.bf16.msra.mxu0 0
      %708 = vmatprep.subr.bf16.mxu0 0
      %709 = vmatpush2.bf16.msra.mxu0 0
      %710 = vmatprep.subr.bf16.mxu0 0
      %711 = vmatpush2.bf16.msra.mxu0 0
      %712 = vmatprep.mubr.bf16.mxu0 0
      %713 = vmatmul.mubr.bf16.gmra.mxu0 %v678
      %v714 = vpop.f32.mrf.mxu0
      %v715 = vadd.f32 0.0, %v714
      %v716 = vpop.f32.mrf.mxu0
      %v717 = vpop.f32.mrf.mxu0
      %v718 = vadd.f32 0.0, %v717
      %v719 = vpop.f32.mrf.mxu0
      %720 = vdwg.mxu0
      %721 = vrot.lane.b32.xlu0 %v477, 120
      %v722 = vpop.permute.xlu0 %721
      %723 = vrot.lane.b32.xlu0 %v478, 120
      %v724 = vpop.permute.xlu0 %723
      %v726 = vsel %vm479, %v722, 0
      %v729 = vsel %vm479, %v724, 0
      %731 = vmatprep.subr.bf16.mxu0 0
      %732 = vmatpush1.bf16.xpose.msra.mxu0 0
      %733 = vmatprep.subr.bf16.mxu0 0
      %734 = vmatpush1.bf16.xpose.msra.mxu0 0
      %735 = vmatprep.subr.bf16.mxu0 0
      %736 = vmatpush1.bf16.xpose.msra.mxu0 0
      %737 = vmatprep.subr.bf16.mxu0 0
      %738 = vmatpush1.bf16.xpose.msra.mxu0 0
      %739 = vmatprep.subr.bf16.mxu0 0
      %740 = vmatpush1.bf16.xpose.msra.mxu0 0
      %741 = vmatprep.subr.bf16.mxu0 0
      %742 = vmatpush1.bf16.xpose.msra.mxu0 0
      %743 = vmatprep.subr.bf16.mxu0 0
      %744 = vmatpush1.bf16.xpose.msra.mxu0 0
      %745 = vmatprep.subr.bf16.mxu0 0
      %746 = vmatpush1.bf16.xpose.msra.mxu0 %v729
      %747 = vmatprep.subr.bf16.mxu0 0
      %748 = vmatpush2.bf16.xpose.msra.mxu0 0
      %749 = vmatprep.subr.bf16.mxu0 0
      %750 = vmatpush2.bf16.xpose.msra.mxu0 0
      %751 = vmatprep.subr.bf16.mxu0 0
      %752 = vmatpush2.bf16.xpose.msra.mxu0 0
      %753 = vmatprep.subr.bf16.mxu0 0
      %754 = vmatpush2.bf16.xpose.msra.mxu0 0
      %755 = vmatprep.subr.bf16.mxu0 0
      %756 = vmatpush2.bf16.xpose.msra.mxu0 0
      %757 = vmatprep.subr.bf16.mxu0 0
      %758 = vmatpush2.bf16.xpose.msra.mxu0 0
      %759 = vmatprep.subr.bf16.mxu0 0
      %760 = vmatpush2.bf16.xpose.msra.mxu0 0
      %761 = vmatprep.subr.bf16.mxu0 0
      %762 = vmatpush2.bf16.xpose.msra.mxu0 0
      %763 = vmatprep.mubr.bf16.mxu0 0
      %764 = vmatmul.mubr.bf16.gmra.mxu0 %v726
      %v765 = vpop.f32.mrf.mxu0
      %v766 = vadd.f32 0.0, %v765
      %v767 = vpop.f32.mrf.mxu0
      %v768 = vpop.f32.mrf.mxu0
      %v769 = vadd.f32 0.0, %v768
      %v770 = vpop.f32.mrf.mxu0
      %771 = vdwg.mxu0
      %v772 = vsel %vm527, %v766, -inf
      %773 = vmax.xlane.f32.xlu0 %v772
      %v774 = vpop.xlane.xlu0 %773
      %v775 = vsel %vm527, %v769, -inf
      %776 = vmax.xlane.f32.xlu0 %v775
      %v777 = vpop.xlane.xlu0 %776
      %v778 = vsub.f32 %v766, %v774
      %v779 = vsub.f32 %v769, %v777
      %v780 = vmul.f32 %v778, 1.442695
      %v781 = vpow.pop %v780
      %v782 = vmul.f32 %v779, 1.442695
      %v783 = vpow.pop %v782
      %v784 = vsel %vm527, %v781, 0.0
      %785 = vadd.xlane.f32.xlu0 %v784
      %v786 = vpop.xlane.xlu0 %785
      %v787 = vsel %vm527, %v783, 0.0
      %788 = vadd.xlane.f32.xlu0 %v787
      %v789 = vpop.xlane.xlu0 %788
      %v790 = vrcp.pop %v786
      %v791 = vrcp.pop %v789
      %v792 = vmul.f32 %v781, %v790
      %v793 = vmul.f32 %v783, %v791
      %v794 = vpack.c.bf16 %v793, %v792
      %795 = vrot.lane.b32.xlu0 %v478, 88
      %v796 = vpop.permute.xlu0 %795
      %v799 = vsel %vm527, %v794, 0
      %801 = vmatprep.subr.bf16.mxu0 0
      %802 = vmatpush1.bf16.msra.mxu0 0
      %803 = vmatprep.subr.bf16.mxu0 0
      %804 = vmatpush1.bf16.msra.mxu0 0
      %805 = vmatprep.subr.bf16.mxu0 0
      %806 = vmatpush1.bf16.msra.mxu0 0
      %807 = vmatprep.subr.bf16.mxu0 0
      %808 = vmatpush1.bf16.msra.mxu0 0
      %809 = vmatprep.subr.bf16.mxu0 0
      %810 = vmatpush1.bf16.msra.mxu0 0
      %811 = vmatprep.subr.bf16.mxu0 0
      %812 = vmatpush1.bf16.msra.mxu0 0
      %813 = vmatprep.subr.bf16.mxu0 0
      %814 = vmatpush1.bf16.msra.mxu0 0
      %815 = vmatprep.subr.bf16.mxu0 0
      %816 = vmatpush1.bf16.msra.mxu0 %v796
      %817 = vmatprep.subr.bf16.mxu0 0
      %818 = vmatpush2.bf16.msra.mxu0 0
      %819 = vmatprep.subr.bf16.mxu0 0
      %820 = vmatpush2.bf16.msra.mxu0 0
      %821 = vmatprep.subr.bf16.mxu0 0
      %822 = vmatpush2.bf16.msra.mxu0 0
      %823 = vmatprep.subr.bf16.mxu0 0
      %824 = vmatpush2.bf16.msra.mxu0 0
      %825 = vmatprep.subr.bf16.mxu0 0
      %826 = vmatpush2.bf16.msra.mxu0 0
      %827 = vmatprep.subr.bf16.mxu0 0
      %828 = vmatpush2.bf16.msra.mxu0 0
      %829 = vmatprep.subr.bf16.mxu0 0
      %830 = vmatpush2.bf16.msra.mxu0 0
      %831 = vmatprep.subr.bf16.mxu0 0
      %832 = vmatpush2.bf16.msra.mxu0 0
      %833 = vmatprep.mubr.bf16.mxu0 0
      %834 = vmatmul.mubr.bf16.gmra.mxu0 %v799
      %v835 = vpop.f32.mrf.mxu0
      %v836 = vadd.f32 0.0, %v835
      %v837 = vpop.f32.mrf.mxu0
      %v838 = vpop.f32.mrf.mxu0
      %v839 = vadd.f32 0.0, %v838
      %v840 = vpop.f32.mrf.mxu0
      %841 = vdwg.mxu0
      %842 = vrot.lane.b32.xlu0 %v477, 116
      %v843 = vpop.permute.xlu0 %842
      %844 = vrot.lane.b32.xlu0 %v478, 116
      %v845 = vpop.permute.xlu0 %844
      %v847 = vsel %vm479, %v843, 0
      %v850 = vsel %vm479, %v845, 0
      %852 = vmatprep.subr.bf16.mxu0 0
      %853 = vmatpush1.bf16.xpose.msra.mxu0 0
      %854 = vmatprep.subr.bf16.mxu0 0
      %855 = vmatpush1.bf16.xpose.msra.mxu0 0
      %856 = vmatprep.subr.bf16.mxu0 0
      %857 = vmatpush1.bf16.xpose.msra.mxu0 0
      %858 = vmatprep.subr.bf16.mxu0 0
      %859 = vmatpush1.bf16.xpose.msra.mxu0 0
      %860 = vmatprep.subr.bf16.mxu0 0
      %861 = vmatpush1.bf16.xpose.msra.mxu0 0
      %862 = vmatprep.subr.bf16.mxu0 0
      %863 = vmatpush1.bf16.xpose.msra.mxu0 0
      %864 = vmatprep.subr.bf16.mxu0 0
      %865 = vmatpush1.bf16.xpose.msra.mxu0 0
      %866 = vmatprep.subr.bf16.mxu0 0
      %867 = vmatpush1.bf16.xpose.msra.mxu0 %v850
      %868 = vmatprep.subr.bf16.mxu0 0
      %869 = vmatpush2.bf16.xpose.msra.mxu0 0
      %870 = vmatprep.subr.bf16.mxu0 0
      %871 = vmatpush2.bf16.xpose.msra.mxu0 0
      %872 = vmatprep.subr.bf16.mxu0 0
      %873 = vmatpush2.bf16.xpose.msra.mxu0 0
      %874 = vmatprep.subr.bf16.mxu0 0
      %875 = vmatpush2.bf16.xpose.msra.mxu0 0
      %876 = vmatprep.subr.bf16.mxu0 0
      %877 = vmatpush2.bf16.xpose.msra.mxu0 0
      %878 = vmatprep.subr.bf16.mxu0 0
      %879 = vmatpush2.bf16.xpose.msra.mxu0 0
      %880 = vmatprep.subr.bf16.mxu0 0
      %881 = vmatpush2.bf16.xpose.msra.mxu0 0
      %882 = vmatprep.subr.bf16.mxu0 0
      %883 = vmatpush2.bf16.xpose.msra.mxu0 0
      %884 = vmatprep.mubr.bf16.mxu0 0
      %885 = vmatmul.mubr.bf16.gmra.mxu0 %v847
      %v886 = vpop.f32.mrf.mxu0
      %v887 = vadd.f32 0.0, %v886
      %v888 = vpop.f32.mrf.mxu0
      %v889 = vpop.f32.mrf.mxu0
      %v890 = vadd.f32 0.0, %v889
      %v891 = vpop.f32.mrf.mxu0
      %892 = vdwg.mxu0
      %v893 = vsel %vm527, %v887, -inf
      %894 = vmax.xlane.f32.xlu0 %v893
      %v895 = vpop.xlane.xlu0 %894
      %v896 = vsel %vm527, %v890, -inf
      %897 = vmax.xlane.f32.xlu0 %v896
      %v898 = vpop.xlane.xlu0 %897
      %v899 = vsub.f32 %v887, %v895
      %v900 = vsub.f32 %v890, %v898
      %v901 = vmul.f32 %v899, 1.442695
      %v902 = vpow.pop %v901
      %v903 = vmul.f32 %v900, 1.442695
      %v904 = vpow.pop %v903
      %v905 = vsel %vm527, %v902, 0.0
      %906 = vadd.xlane.f32.xlu0 %v905
      %v907 = vpop.xlane.xlu0 %906
      %v908 = vsel %vm527, %v904, 0.0
      %909 = vadd.xlane.f32.xlu0 %v908
      %v910 = vpop.xlane.xlu0 %909
      %v911 = vrcp.pop %v907
      %v912 = vrcp.pop %v910
      %v913 = vmul.f32 %v902, %v911
      %v914 = vmul.f32 %v904, %v912
      %v915 = vpack.c.bf16 %v914, %v913
      %916 = vrot.lane.b32.xlu0 %v478, 84
      %v917 = vpop.permute.xlu0 %916
      %v920 = vsel %vm527, %v915, 0
      %922 = vmatprep.subr.bf16.mxu0 0
      %923 = vmatpush1.bf16.msra.mxu0 0
      %924 = vmatprep.subr.bf16.mxu0 0
      %925 = vmatpush1.bf16.msra.mxu0 0
      %926 = vmatprep.subr.bf16.mxu0 0
      %927 = vmatpush1.bf16.msra.mxu0 0
      %928 = vmatprep.subr.bf16.mxu0 0
      %929 = vmatpush1.bf16.msra.mxu0 0
      %930 = vmatprep.subr.bf16.mxu0 0
      %931 = vmatpush1.bf16.msra.mxu0 0
      %932 = vmatprep.subr.bf16.mxu0 0
      %933 = vmatpush1.bf16.msra.mxu0 0
      %934 = vmatprep.subr.bf16.mxu0 0
      %935 = vmatpush1.bf16.msra.mxu0 0
      %936 = vmatprep.subr.bf16.mxu0 0
      %937 = vmatpush1.bf16.msra.mxu0 %v917
      %938 = vmatprep.subr.bf16.mxu0 0
      %939 = vmatpush2.bf16.msra.mxu0 0
      %940 = vmatprep.subr.bf16.mxu0 0
      %941 = vmatpush2.bf16.msra.mxu0 0
      %942 = vmatprep.subr.bf16.mxu0 0
      %943 = vmatpush2.bf16.msra.mxu0 0
      %944 = vmatprep.subr.bf16.mxu0 0
      %945 = vmatpush2.bf16.msra.mxu0 0
      %946 = vmatprep.subr.bf16.mxu0 0
      %947 = vmatpush2.bf16.msra.mxu0 0
      %948 = vmatprep.subr.bf16.mxu0 0
      %949 = vmatpush2.bf16.msra.mxu0 0
      %950 = vmatprep.subr.bf16.mxu0 0
      %951 = vmatpush2.bf16.msra.mxu0 0
      %952 = vmatprep.subr.bf16.mxu0 0
      %953 = vmatpush2.bf16.msra.mxu0 0
      %954 = vmatprep.mubr.bf16.mxu0 0
      %955 = vmatmul.mubr.bf16.gmra.mxu0 %v920
      %v956 = vpop.f32.mrf.mxu0
      %v957 = vadd.f32 0.0, %v956
      %v958 = vpop.f32.mrf.mxu0
      %v959 = vpop.f32.mrf.mxu0
      %v960 = vadd.f32 0.0, %v959
      %v961 = vpop.f32.mrf.mxu0
      %962 = vdwg.mxu0
      %963 = vrot.lane.b32.xlu0 %v477, 112
      %v964 = vpop.permute.xlu0 %963
      %965 = vrot.lane.b32.xlu0 %v478, 112
      %v966 = vpop.permute.xlu0 %965
      %v968 = vsel %vm479, %v964, 0
      %v971 = vsel %vm479, %v966, 0
      %973 = vmatprep.subr.bf16.mxu0 0
      %974 = vmatpush1.bf16.xpose.msra.mxu0 0
      %975 = vmatprep.subr.bf16.mxu0 0
      %976 = vmatpush1.bf16.xpose.msra.mxu0 0
      %977 = vmatprep.subr.bf16.mxu0 0
      %978 = vmatpush1.bf16.xpose.msra.mxu0 0
      %979 = vmatprep.subr.bf16.mxu0 0
      %980 = vmatpush1.bf16.xpose.msra.mxu0 0
      %981 = vmatprep.subr.bf16.mxu0 0
      %982 = vmatpush1.bf16.xpose.msra.mxu0 0
      %983 = vmatprep.subr.bf16.mxu0 0
      %984 = vmatpush1.bf16.xpose.msra.mxu0 0
      %985 = vmatprep.subr.bf16.mxu0 0
      %986 = vmatpush1.bf16.xpose.msra.mxu0 0
      %987 = vmatprep.subr.bf16.mxu0 0
      %988 = vmatpush1.bf16.xpose.msra.mxu0 %v971
      %989 = vmatprep.subr.bf16.mxu0 0
      %990 = vmatpush2.bf16.xpose.msra.mxu0 0
      %991 = vmatprep.subr.bf16.mxu0 0
      %992 = vmatpush2.bf16.xpose.msra.mxu0 0
      %993 = vmatprep.subr.bf16.mxu0 0
      %994 = vmatpush2.bf16.xpose.msra.mxu0 0
      %995 = vmatprep.subr.bf16.mxu0 0
      %996 = vmatpush2.bf16.xpose.msra.mxu0 0
      %997 = vmatprep.subr.bf16.mxu0 0
      %998 = vmatpush2.bf16.xpose.msra.mxu0 0
      %999 = vmatprep.subr.bf16.mxu0 0
      %1000 = vmatpush2.bf16.xpose.msra.mxu0 0
      %1001 = vmatprep.subr.bf16.mxu0 0
      %1002 = vmatpush2.bf16.xpose.msra.mxu0 0
      %1003 = vmatprep.subr.bf16.mxu0 0
      %1004 = vmatpush2.bf16.xpose.msra.mxu0 0
      %1005 = vmatprep.mubr.bf16.mxu0 0
      %1006 = vmatmul.mubr.bf16.gmra.mxu0 %v968
      %v1007 = vpop.f32.mrf.mxu0
      %v1008 = vadd.f32 0.0, %v1007
      %v1009 = vpop.f32.mrf.mxu0
      %v1010 = vpop.f32.mrf.mxu0
      %v1011 = vadd.f32 0.0, %v1010
      %v1012 = vpop.f32.mrf.mxu0
      %1013 = vdwg.mxu0
      %v1014 = vsel %vm527, %v1008, -inf
      %1015 = vmax.xlane.f32.xlu0 %v1014
      %v1016 = vpop.xlane.xlu0 %1015
      %v1017 = vsel %vm527, %v1011, -inf
      %1018 = vmax.xlane.f32.xlu0 %v1017
      %v1019 = vpop.xlane.xlu0 %1018
      %v1020 = vsub.f32 %v1008, %v1016
      %v1021 = vsub.f32 %v1011, %v1019
      %v1022 = vmul.f32 %v1020, 1.442695
      %v1023 = vpow.pop %v1022
      %v1024 = vmul.f32 %v1021, 1.442695
      %v1025 = vpow.pop %v1024
      %v1026 = vsel %vm527, %v1023, 0.0
      %1027 = vadd.xlane.f32.xlu0 %v1026
      %v1028 = vpop.xlane.xlu0 %1027
      %v1029 = vsel %vm527, %v1025, 0.0
      %1030 = vadd.xlane.f32.xlu0 %v1029
      %v1031 = vpop.xlane.xlu0 %1030
      %v1032 = vrcp.pop %v1028
      %v1033 = vrcp.pop %v1031
      %v1034 = vmul.f32 %v1023, %v1032
      %v1035 = vmul.f32 %v1025, %v1033
      %v1036 = vpack.c.bf16 %v1035, %v1034
      %1037 = vrot.lane.b32.xlu0 %v478, 80
      %v1038 = vpop.permute.xlu0 %1037
      %v1041 = vsel %vm527, %v1036, 0
      %1043 = vmatprep.subr.bf16.mxu0 0
      %1044 = vmatpush1.bf16.msra.mxu0 0
      %1045 = vmatprep.subr.bf16.mxu0 0
      %1046 = vmatpush1.bf16.msra.mxu0 0
      %1047 = vmatprep.subr.bf16.mxu0 0
      %1048 = vmatpush1.bf16.msra.mxu0 0
      %1049 = vmatprep.subr.bf16.mxu0 0
      %1050 = vmatpush1.bf16.msra.mxu0 0
      %1051 = vmatprep.subr.bf16.mxu0 0
      %1052 = vmatpush1.bf16.msra.mxu0 0
      %1053 = vmatprep.subr.bf16.mxu0 0
      %1054 = vmatpush1.bf16.msra.mxu0 0
      %1055 = vmatprep.subr.bf16.mxu0 0
      %1056 = vmatpush1.bf16.msra.mxu0 0
      %1057 = vmatprep.subr.bf16.mxu0 0
      %1058 = vmatpush1.bf16.msra.mxu0 %v1038
      %1059 = vmatprep.subr.bf16.mxu0 0
      %1060 = vmatpush2.bf16.msra.mxu0 0
      %1061 = vmatprep.subr.bf16.mxu0 0
      %1062 = vmatpush2.bf16.msra.mxu0 0
      %1063 = vmatprep.subr.bf16.mxu0 0
      %1064 = vmatpush2.bf16.msra.mxu0 0
      %1065 = vmatprep.subr.bf16.mxu0 0
      %1066 = vmatpush2.bf16.msra.mxu0 0
      %1067 = vmatprep.subr.bf16.mxu0 0
      %1068 = vmatpush2.bf16.msra.mxu0 0
      %1069 = vmatprep.subr.bf16.mxu0 0
      %1070 = vmatpush2.bf16.msra.mxu0 0
      %1071 = vmatprep.subr.bf16.mxu0 0
      %1072 = vmatpush2.bf16.msra.mxu0 0
      %1073 = vmatprep.subr.bf16.mxu0 0
      %1074 = vmatpush2.bf16.msra.mxu0 0
      %1075 = vmatprep.mubr.bf16.mxu0 0
      %1076 = vmatmul.mubr.bf16.gmra.mxu0 %v1041
      %v1077 = vpop.f32.mrf.mxu0
      %v1078 = vadd.f32 0.0, %v1077
      %v1079 = vpop.f32.mrf.mxu0
      %v1080 = vpop.f32.mrf.mxu0
      %v1081 = vadd.f32 0.0, %v1080
      %v1082 = vpop.f32.mrf.mxu0
      %1083 = vdwg.mxu0
      %1084 = vrot.lane.b32.xlu0 %v477, 108
      %v1085 = vpop.permute.xlu0 %1084
      %1086 = vrot.lane.b32.xlu0 %v478, 108
      %v1087 = vpop.permute.xlu0 %1086
      %v1089 = vsel %vm479, %v1085, 0
      %v1092 = vsel %vm479, %v1087, 0
      %1094 = vmatprep.subr.bf16.mxu0 0
      %1095 = vmatpush1.bf16.xpose.msra.mxu0 0
      %1096 = vmatprep.subr.bf16.mxu0 0
      %1097 = vmatpush1.bf16.xpose.msra.mxu0 0
      %1098 = vmatprep.subr.bf16.mxu0 0
      %1099 = vmatpush1.bf16.xpose.msra.mxu0 0
      %1100 = vmatprep.subr.bf16.mxu0 0
      %1101 = vmatpush1.bf16.xpose.msra.mxu0 0
      %1102 = vmatprep.subr.bf16.mxu0 0
      %1103 = vmatpush1.bf16.xpose.msra.mxu0 0
      %1104 = vmatprep.subr.bf16.mxu0 0
      %1105 = vmatpush1.bf16.xpose.msra.mxu0 0
      %1106 = vmatprep.subr.bf16.mxu0 0
      %1107 = vmatpush1.bf16.xpose.msra.mxu0 0
      %1108 = vmatprep.subr.bf16.mxu0 0
      %1109 = vmatpush1.bf16.xpose.msra.mxu0 %v1092
      %1110 = vmatprep.subr.bf16.mxu0 0
      %1111 = vmatpush2.bf16.xpose.msra.mxu0 0
      %1112 = vmatprep.subr.bf16.mxu0 0
      %1113 = vmatpush2.bf16.xpose.msra.mxu0 0
      %1114 = vmatprep.subr.bf16.mxu0 0
      %1115 = vmatpush2.bf16.xpose.msra.mxu0 0
      %1116 = vmatprep.subr.bf16.mxu0 0
      %1117 = vmatpush2.bf16.xpose.msra.mxu0 0
      %1118 = vmatprep.subr.bf16.mxu0 0
      %1119 = vmatpush2.bf16.xpose.msra.mxu0 0
      %1120 = vmatprep.subr.bf16.mxu0 0
      %1121 = vmatpush2.bf16.xpose.msra.mxu0 0
      %1122 = vmatprep.subr.bf16.mxu0 0
      %1123 = vmatpush2.bf16.xpose.msra.mxu0 0
      %1124 = vmatprep.subr.bf16.mxu0 0
      %1125 = vmatpush2.bf16.xpose.msra.mxu0 0
      %1126 = vmatprep.mubr.bf16.mxu0 0
      %1127 = vmatmul.mubr.bf16.gmra.mxu0 %v1089
      %v1128 = vpop.f32.mrf.mxu0
      %v1129 = vadd.f32 0.0, %v1128
      %v1130 = vpop.f32.mrf.mxu0
      %v1131 = vpop.f32.mrf.mxu0
      %v1132 = vadd.f32 0.0, %v1131
      %v1133 = vpop.f32.mrf.mxu0
      %1134 = vdwg.mxu0
      %v1135 = vsel %vm527, %v1129, -inf
      %1136 = vmax.xlane.f32.xlu0 %v1135
      %v1137 = vpop.xlane.xlu0 %1136
      %v1138 = vsel %vm527, %v1132, -inf
      %1139 = vmax.xlane.f32.xlu0 %v1138
      %v1140 = vpop.xlane.xlu0 %1139
      %v1141 = vsub.f32 %v1129, %v1137
      %v1142 = vsub.f32 %v1132, %v1140
      %v1143 = vmul.f32 %v1141, 1.442695
      %v1144 = vpow.pop %v1143
      %v1145 = vmul.f32 %v1142, 1.442695
      %v1146 = vpow.pop %v1145
      %v1147 = vsel %vm527, %v1144, 0.0
      %1148 = vadd.xlane.f32.xlu0 %v1147
      %v1149 = vpop.xlane.xlu0 %1148
      %v1150 = vsel %vm527, %v1146, 0.0
      %1151 = vadd.xlane.f32.xlu0 %v1150
      %v1152 = vpop.xlane.xlu0 %1151
      %v1153 = vrcp.pop %v1149
      %v1154 = vrcp.pop %v1152
      %v1155 = vmul.f32 %v1144, %v1153
      %v1156 = vmul.f32 %v1146, %v1154
      %v1157 = vpack.c.bf16 %v1156, %v1155
      %1158 = vrot.lane.b32.xlu0 %v478, 76
      %v1159 = vpop.permute.xlu0 %1158
      %v1162 = vsel %vm527, %v1157, 0
      %1164 = vmatprep.subr.bf16.mxu0 0
      %1165 = vmatpush1.bf16.msra.mxu0 0
      %1166 = vmatprep.subr.bf16.mxu0 0
      %1167 = vmatpush1.bf16.msra.mxu0 0
      %1168 = vmatprep.subr.bf16.mxu0 0
      %1169 = vmatpush1.bf16.msra.mxu0 0
      %1170 = vmatprep.subr.bf16.mxu0 0
      %1171 = vmatpush1.bf16.msra.mxu0 0
      %1172 = vmatprep.subr.bf16.mxu0 0
      %1173 = vmatpush1.bf16.msra.mxu0 0
      %1174 = vmatprep.subr.bf16.mxu0 0
      %1175 = vmatpush1.bf16.msra.mxu0 0
      %1176 = vmatprep.subr.bf16.mxu0 0
      %1177 = vmatpush1.bf16.msra.mxu0 0
      %1178 = vmatprep.subr.bf16.mxu0 0
      %1179 = vmatpush1.bf16.msra.mxu0 %v1159
      %1180 = vmatprep.subr.bf16.mxu0 0
      %1181 = vmatpush2.bf16.msra.mxu0 0
      %1182 = vmatprep.subr.bf16.mxu0 0
      %1183 = vmatpush2.bf16.msra.mxu0 0
      %1184 = vmatprep.subr.bf16.mxu0 0
      %1185 = vmatpush2.bf16.msra.mxu0 0
      %1186 = vmatprep.subr.bf16.mxu0 0
      %1187 = vmatpush2.bf16.msra.mxu0 0
      %1188 = vmatprep.subr.bf16.mxu0 0
      %1189 = vmatpush2.bf16.msra.mxu0 0
      %1190 = vmatprep.subr.bf16.mxu0 0
      %1191 = vmatpush2.bf16.msra.mxu0 0
      %1192 = vmatprep.subr.bf16.mxu0 0
      %1193 = vmatpush2.bf16.msra.mxu0 0
      %1194 = vmatprep.subr.bf16.mxu0 0
      %1195 = vmatpush2.bf16.msra.mxu0 0
      %1196 = vmatprep.mubr.bf16.mxu0 0
      %1197 = vmatmul.mubr.bf16.gmra.mxu0 %v1162
      %v1198 = vpop.f32.mrf.mxu0
      %v1199 = vadd.f32 0.0, %v1198
      %v1200 = vpop.f32.mrf.mxu0
      %v1201 = vpop.f32.mrf.mxu0
      %v1202 = vadd.f32 0.0, %v1201
      %v1203 = vpop.f32.mrf.mxu0
      %1204 = vdwg.mxu0
      %1205 = vrot.lane.b32.xlu0 %v477, 104
      %v1206 = vpop.permute.xlu0 %1205
      %1207 = vrot.lane.b32.xlu0 %v478, 104
      %v1208 = vpop.permute.xlu0 %1207
      %v1210 = vsel %vm479, %v1206, 0
      %v1213 = vsel %vm479, %v1208, 0
      %1215 = vmatprep.subr.bf16.mxu0 0
      %1216 = vmatpush1.bf16.xpose.msra.mxu0 0
      %1217 = vmatprep.subr.bf16.mxu0 0
      %1218 = vmatpush1.bf16.xpose.msra.mxu0 0
      %1219 = vmatprep.subr.bf16.mxu0 0
      %1220 = vmatpush1.bf16.xpose.msra.mxu0 0
      %1221 = vmatprep.subr.bf16.mxu0 0
      %1222 = vmatpush1.bf16.xpose.msra.mxu0 0
      %1223 = vmatprep.subr.bf16.mxu0 0
      %1224 = vmatpush1.bf16.xpose.msra.mxu0 0
      %1225 = vmatprep.subr.bf16.mxu0 0
      %1226 = vmatpush1.bf16.xpose.msra.mxu0 0
      %1227 = vmatprep.subr.bf16.mxu0 0
      %1228 = vmatpush1.bf16.xpose.msra.mxu0 0
      %1229 = vmatprep.subr.bf16.mxu0 0
      %1230 = vmatpush1.bf16.xpose.msra.mxu0 %v1213
      %1231 = vmatprep.subr.bf16.mxu0 0
      %1232 = vmatpush2.bf16.xpose.msra.mxu0 0
      %1233 = vmatprep.subr.bf16.mxu0 0
      %1234 = vmatpush2.bf16.xpose.msra.mxu0 0
      %1235 = vmatprep.subr.bf16.mxu0 0
      %1236 = vmatpush2.bf16.xpose.msra.mxu0 0
      %1237 = vmatprep.subr.bf16.mxu0 0
      %1238 = vmatpush2.bf16.xpose.msra.mxu0 0
      %1239 = vmatprep.subr.bf16.mxu0 0
      %1240 = vmatpush2.bf16.xpose.msra.mxu0 0
      %1241 = vmatprep.subr.bf16.mxu0 0
      %1242 = vmatpush2.bf16.xpose.msra.mxu0 0
      %1243 = vmatprep.subr.bf16.mxu0 0
      %1244 = vmatpush2.bf16.xpose.msra.mxu0 0
      %1245 = vmatprep.subr.bf16.mxu0 0
      %1246 = vmatpush2.bf16.xpose.msra.mxu0 0
      %1247 = vmatprep.mubr.bf16.mxu0 0
      %1248 = vmatmul.mubr.bf16.gmra.mxu0 %v1210
      %v1249 = vpop.f32.mrf.mxu0
      %v1250 = vadd.f32 0.0, %v1249
      %v1251 = vpop.f32.mrf.mxu0
      %v1252 = vpop.f32.mrf.mxu0
      %v1253 = vadd.f32 0.0, %v1252
      %v1254 = vpop.f32.mrf.mxu0
      %1255 = vdwg.mxu0
      %v1256 = vsel %vm527, %v1250, -inf
      %1257 = vmax.xlane.f32.xlu0 %v1256
      %v1258 = vpop.xlane.xlu0 %1257
      %v1259 = vsel %vm527, %v1253, -inf
      %1260 = vmax.xlane.f32.xlu0 %v1259
      %v1261 = vpop.xlane.xlu0 %1260
      %v1262 = vsub.f32 %v1250, %v1258
      %v1263 = vsub.f32 %v1253, %v1261
      %v1264 = vmul.f32 %v1262, 1.442695
      %v1265 = vpow.pop %v1264
      %v1266 = vmul.f32 %v1263, 1.442695
      %v1267 = vpow.pop %v1266
      %v1268 = vsel %vm527, %v1265, 0.0
      %1269 = vadd.xlane.f32.xlu0 %v1268
      %v1270 = vpop.xlane.xlu0 %1269
      %v1271 = vsel %vm527, %v1267, 0.0
      %1272 = vadd.xlane.f32.xlu0 %v1271
      %v1273 = vpop.xlane.xlu0 %1272
      %v1274 = vrcp.pop %v1270
      %v1275 = vrcp.pop %v1273
      %v1276 = vmul.f32 %v1265, %v1274
      %v1277 = vmul.f32 %v1267, %v1275
      %v1278 = vpack.c.bf16 %v1277, %v1276
      %1279 = vrot.lane.b32.xlu0 %v478, 72
      %v1280 = vpop.permute.xlu0 %1279
      %v1283 = vsel %vm527, %v1278, 0
      %1285 = vmatprep.subr.bf16.mxu0 0
      %1286 = vmatpush1.bf16.msra.mxu0 0
      %1287 = vmatprep.subr.bf16.mxu0 0
      %1288 = vmatpush1.bf16.msra.mxu0 0
      %1289 = vmatprep.subr.bf16.mxu0 0
      %1290 = vmatpush1.bf16.msra.mxu0 0
      %1291 = vmatprep.subr.bf16.mxu0 0
      %1292 = vmatpush1.bf16.msra.mxu0 0
      %1293 = vmatprep.subr.bf16.mxu0 0
      %1294 = vmatpush1.bf16.msra.mxu0 0
      %1295 = vmatprep.subr.bf16.mxu0 0
      %1296 = vmatpush1.bf16.msra.mxu0 0
      %1297 = vmatprep.subr.bf16.mxu0 0
      %1298 = vmatpush1.bf16.msra.mxu0 0
      %1299 = vmatprep.subr.bf16.mxu0 0
      %1300 = vmatpush1.bf16.msra.mxu0 %v1280
      %1301 = vmatprep.subr.bf16.mxu0 0
      %1302 = vmatpush2.bf16.msra.mxu0 0
      %1303 = vmatprep.subr.bf16.mxu0 0
      %1304 = vmatpush2.bf16.msra.mxu0 0
      %1305 = vmatprep.subr.bf16.mxu0 0
      %1306 = vmatpush2.bf16.msra.mxu0 0
      %1307 = vmatprep.subr.bf16.mxu0 0
      %1308 = vmatpush2.bf16.msra.mxu0 0
      %1309 = vmatprep.subr.bf16.mxu0 0
      %1310 = vmatpush2.bf16.msra.mxu0 0
      %1311 = vmatprep.subr.bf16.mxu0 0
      %1312 = vmatpush2.bf16.msra.mxu0 0
      %1313 = vmatprep.subr.bf16.mxu0 0
      %1314 = vmatpush2.bf16.msra.mxu0 0
      %1315 = vmatprep.subr.bf16.mxu0 0
      %1316 = vmatpush2.bf16.msra.mxu0 0
      %1317 = vmatprep.mubr.bf16.mxu0 0
      %1318 = vmatmul.mubr.bf16.gmra.mxu0 %v1283
      %v1319 = vpop.f32.mrf.mxu0
      %v1320 = vadd.f32 0.0, %v1319
      %v1321 = vpop.f32.mrf.mxu0
      %v1322 = vpop.f32.mrf.mxu0
      %v1323 = vadd.f32 0.0, %v1322
      %v1324 = vpop.f32.mrf.mxu0
      %1325 = vdwg.mxu0
      %1326 = vrot.lane.b32.xlu0 %v477, 100
      %v1327 = vpop.permute.xlu0 %1326
      %1328 = vrot.lane.b32.xlu0 %v478, 100
      %v1329 = vpop.permute.xlu0 %1328
      %v1331 = vsel %vm479, %v1327, 0
      %v1334 = vsel %vm479, %v1329, 0
      %1336 = vmatprep.subr.bf16.mxu0 0
      %1337 = vmatpush1.bf16.xpose.msra.mxu0 0
      %1338 = vmatprep.subr.bf16.mxu0 0
      %1339 = vmatpush1.bf16.xpose.msra.mxu0 0
      %1340 = vmatprep.subr.bf16.mxu0 0
      %1341 = vmatpush1.bf16.xpose.msra.mxu0 0
      %1342 = vmatprep.subr.bf16.mxu0 0
      %1343 = vmatpush1.bf16.xpose.msra.mxu0 0
      %1344 = vmatprep.subr.bf16.mxu0 0
      %1345 = vmatpush1.bf16.xpose.msra.mxu0 0
      %1346 = vmatprep.subr.bf16.mxu0 0
      %1347 = vmatpush1.bf16.xpose.msra.mxu0 0
      %1348 = vmatprep.subr.bf16.mxu0 0
      %1349 = vmatpush1.bf16.xpose.msra.mxu0 0
      %1350 = vmatprep.subr.bf16.mxu0 0
      %1351 = vmatpush1.bf16.xpose.msra.mxu0 %v1334
      %1352 = vmatprep.subr.bf16.mxu0 0
      %1353 = vmatpush2.bf16.xpose.msra.mxu0 0
      %1354 = vmatprep.subr.bf16.mxu0 0
      %1355 = vmatpush2.bf16.xpose.msra.mxu0 0
      %1356 = vmatprep.subr.bf16.mxu0 0
      %1357 = vmatpush2.bf16.xpose.msra.mxu0 0
      %1358 = vmatprep.subr.bf16.mxu0 0
      %1359 = vmatpush2.bf16.xpose.msra.mxu0 0
      %1360 = vmatprep.subr.bf16.mxu0 0
      %1361 = vmatpush2.bf16.xpose.msra.mxu0 0
      %1362 = vmatprep.subr.bf16.mxu0 0
      %1363 = vmatpush2.bf16.xpose.msra.mxu0 0
      %1364 = vmatprep.subr.bf16.mxu0 0
      %1365 = vmatpush2.bf16.xpose.msra.mxu0 0
      %1366 = vmatprep.subr.bf16.mxu0 0
      %1367 = vmatpush2.bf16.xpose.msra.mxu0 0
      %1368 = vmatprep.mubr.bf16.mxu0 0
      %1369 = vmatmul.mubr.bf16.gmra.mxu0 %v1331
      %v1370 = vpop.f32.mrf.mxu0
      %v1371 = vadd.f32 0.0, %v1370
      %v1372 = vpop.f32.mrf.mxu0
      %v1373 = vpop.f32.mrf.mxu0
      %v1374 = vadd.f32 0.0, %v1373
      %v1375 = vpop.f32.mrf.mxu0
      %1376 = vdwg.mxu0
      %v1377 = vsel %vm527, %v1371, -inf
      %1378 = vmax.xlane.f32.xlu0 %v1377
      %v1379 = vpop.xlane.xlu0 %1378
      %v1380 = vsel %vm527, %v1374, -inf
      %1381 = vmax.xlane.f32.xlu0 %v1380
      %v1382 = vpop.xlane.xlu0 %1381
      %v1383 = vsub.f32 %v1371, %v1379
      %v1384 = vsub.f32 %v1374, %v1382
      %v1385 = vmul.f32 %v1383, 1.442695
      %v1386 = vpow.pop %v1385
      %v1387 = vmul.f32 %v1384, 1.442695
      %v1388 = vpow.pop %v1387
      %v1389 = vsel %vm527, %v1386, 0.0
      %1390 = vadd.xlane.f32.xlu0 %v1389
      %v1391 = vpop.xlane.xlu0 %1390
      %v1392 = vsel %vm527, %v1388, 0.0
      %1393 = vadd.xlane.f32.xlu0 %v1392
      %v1394 = vpop.xlane.xlu0 %1393
      %v1395 = vrcp.pop %v1391
      %v1396 = vrcp.pop %v1394
      %v1397 = vmul.f32 %v1386, %v1395
      %v1398 = vmul.f32 %v1388, %v1396
      %v1399 = vpack.c.bf16 %v1398, %v1397
      %1400 = vrot.lane.b32.xlu0 %v478, 68
      %v1401 = vpop.permute.xlu0 %1400
      %v1404 = vsel %vm527, %v1399, 0
      %1406 = vmatprep.subr.bf16.mxu0 0
      %1407 = vmatpush1.bf16.msra.mxu0 0
      %1408 = vmatprep.subr.bf16.mxu0 0
      %1409 = vmatpush1.bf16.msra.mxu0 0
      %1410 = vmatprep.subr.bf16.mxu0 0
      %1411 = vmatpush1.bf16.msra.mxu0 0
      %1412 = vmatprep.subr.bf16.mxu0 0
      %1413 = vmatpush1.bf16.msra.mxu0 0
      %1414 = vmatprep.subr.bf16.mxu0 0
      %1415 = vmatpush1.bf16.msra.mxu0 0
      %1416 = vmatprep.subr.bf16.mxu0 0
      %1417 = vmatpush1.bf16.msra.mxu0 0
      %1418 = vmatprep.subr.bf16.mxu0 0
      %1419 = vmatpush1.bf16.msra.mxu0 0
      %1420 = vmatprep.subr.bf16.mxu0 0
      %1421 = vmatpush1.bf16.msra.mxu0 %v1401
      %1422 = vmatprep.subr.bf16.mxu0 0
      %1423 = vmatpush2.bf16.msra.mxu0 0
      %1424 = vmatprep.subr.bf16.mxu0 0
      %1425 = vmatpush2.bf16.msra.mxu0 0
      %1426 = vmatprep.subr.bf16.mxu0 0
      %1427 = vmatpush2.bf16.msra.mxu0 0
      %1428 = vmatprep.subr.bf16.mxu0 0
      %1429 = vmatpush2.bf16.msra.mxu0 0
      %1430 = vmatprep.subr.bf16.mxu0 0
      %1431 = vmatpush2.bf16.msra.mxu0 0
      %1432 = vmatprep.subr.bf16.mxu0 0
      %1433 = vmatpush2.bf16.msra.mxu0 0
      %1434 = vmatprep.subr.bf16.mxu0 0
      %1435 = vmatpush2.bf16.msra.mxu0 0
      %1436 = vmatprep.subr.bf16.mxu0 0
      %1437 = vmatpush2.bf16.msra.mxu0 0
      %1438 = vmatprep.mubr.bf16.mxu0 0
      %1439 = vmatmul.mubr.bf16.gmra.mxu0 %v1404
      %v1440 = vpop.f32.mrf.mxu0
      %v1441 = vadd.f32 0.0, %v1440
      %v1442 = vpop.f32.mrf.mxu0
      %v1443 = vpop.f32.mrf.mxu0
      %v1444 = vadd.f32 0.0, %v1443
      %v1445 = vpop.f32.mrf.mxu0
      %1446 = vdwg.mxu0
      %1449 = vrot.lane.b32.xlu0 %v715, 4
      %v1450 = vpop.permute.xlu0 %1449
      %1451 = vrot.lane.b32.xlu0 %v718, 4
      %v1452 = vpop.permute.xlu0 %1451
      %1457 = vrot.lane.b32.xlu0 %v836, 8
      %v1458 = vpop.permute.xlu0 %1457
      %1459 = vrot.lane.b32.xlu0 %v839, 8
      %v1460 = vpop.permute.xlu0 %1459
      %1465 = vrot.lane.b32.xlu0 %v957, 12
      %v1466 = vpop.permute.xlu0 %1465
      %1467 = vrot.lane.b32.xlu0 %v960, 12
      %v1468 = vpop.permute.xlu0 %1467
      %1473 = vrot.lane.b32.xlu0 %v1078, 16
      %v1474 = vpop.permute.xlu0 %1473
      %1475 = vrot.lane.b32.xlu0 %v1081, 16
      %v1476 = vpop.permute.xlu0 %1475
      %1481 = vrot.lane.b32.xlu0 %v1199, 20
      %v1482 = vpop.permute.xlu0 %1481
      %1483 = vrot.lane.b32.xlu0 %v1202, 20
      %v1484 = vpop.permute.xlu0 %1483
      %1489 = vrot.lane.b32.xlu0 %v1320, 24
      %v1490 = vpop.permute.xlu0 %1489
      %1491 = vrot.lane.b32.xlu0 %v1323, 24
      %v1492 = vpop.permute.xlu0 %1491
      %1497 = vrot.lane.b32.xlu0 %v1441, 28
      %v1498 = vpop.permute.xlu0 %1497
      %1499 = vrot.lane.b32.xlu0 %v1444, 28
      %v1500 = vpop.permute.xlu0 %1499
      %v1503 = vsel %vm479, %v593, %v1450
      %v1504 = vsel %vm479, %v596, %v1452
      %vm1505 = vcmask 64512
      %v1506 = vsel %vm1505, %v1503, %v1458
      %v1507 = vsel %vm1505, %v1504, %v1460
      %vm1508 = vcmask 97280
      %v1509 = vsel %vm1508, %v1506, %v1466
      %v1510 = vsel %vm1508, %v1507, %v1468
      %v1511 = vsel %vm527, %v1509, %v1474
      %v1512 = vsel %vm527, %v1510, %v1476
      %vm1513 = vcmask 162816
      %v1514 = vsel %vm1513, %v1511, %v1482
      %v1515 = vsel %vm1513, %v1512, %v1484
      %vm1516 = vcmask 195584
      %v1517 = vsel %vm1516, %v1514, %v1490
      %v1518 = vsel %vm1516, %v1515, %v1492
      %vm1519 = vcmask 228352
      %v1520 = vsel %vm1519, %v1517, %v1498
      %v1521 = vsel %vm1519, %v1518, %v1500
      %v1522 = vpack.c.bf16 %v1521, %v1520
      %v1523 = vld [vmem:[%s5] sm:$0xf]
      %v1524 = vld [vmem:[%s5 + $0x4] sm:$0xf]
      %v1525 = vld [vmem:[%s5 + $0x8] sm:$0xf]
      %v1526 = vld [vmem:[%s5 + $0xc] sm:$0xf]
      %v1527 = vld [vmem:[%s6] sm:$0x1]
      %v1529 = vlaneseq
      %v1530 = vshrl.u32 %v1529, 7
      %v1531 = vsub.s32 0, %v1530
      %v1532 = vrot.slane %v1527, %v1531
      %v1538 = vunpack.c.l.b16 %v1523
      %v1539 = vunpack.c.l.b16 %v1524
      %v1540 = vunpack.c.l.b16 %v1525
      %v1541 = vunpack.c.l.b16 %v1526
      %v1542 = vpack.c.b16 %v1539, %v1538
      %v1543 = vpack.c.b16 %v1541, %v1540
      %v1547 = vsel %vm366, %v1522, 0
      %1549 = vmatprep.subr.bf16.mxu0 0
      %1550 = vmatpush1.bf16.msra.mxu0 0
      %1551 = vmatprep.subr.bf16.mxu0 0
      %1552 = vmatpush1.bf16.msra.mxu0 0
      %1553 = vmatprep.subr.bf16.mxu0 0
      %1554 = vmatpush1.bf16.msra.mxu0 0
      %1555 = vmatprep.subr.bf16.mxu0 0
      %1556 = vmatpush1.bf16.msra.mxu0 0
      %1557 = vmatprep.subr.bf16.mxu0 0
      %1558 = vmatpush1.bf16.msra.mxu0 0
      %1559 = vmatprep.subr.bf16.mxu0 0
      %1560 = vmatpush1.bf16.msra.mxu0 0
      %1561 = vmatprep.subr.bf16.mxu0 0
      %1562 = vmatpush1.bf16.msra.mxu0 %v1543
      %1563 = vmatprep.subr.bf16.mxu0 0
      %1564 = vmatpush1.bf16.msra.mxu0 %v1542
      %1565 = vmatprep.subr.bf16.mxu0 0
      %1566 = vmatpush2.bf16.msra.mxu0 0
      %1567 = vmatprep.subr.bf16.mxu0 0
      %1568 = vmatpush2.bf16.msra.mxu0 0
      %1569 = vmatprep.subr.bf16.mxu0 0
      %1570 = vmatpush2.bf16.msra.mxu0 0
      %1571 = vmatprep.subr.bf16.mxu0 0
      %1572 = vmatpush2.bf16.msra.mxu0 0
      %1573 = vmatprep.subr.bf16.mxu0 0
      %1574 = vmatpush2.bf16.msra.mxu0 0
      %1575 = vmatprep.subr.bf16.mxu0 0
      %1576 = vmatpush2.bf16.msra.mxu0 0
      %1577 = vmatprep.subr.bf16.mxu0 0
      %1578 = vmatpush2.bf16.msra.mxu0 0
      %1579 = vmatprep.subr.bf16.mxu0 0
      %1580 = vmatpush2.bf16.msra.mxu0 0
      %1581 = vmatprep.mubr.bf16.mxu0 0
      %1582 = vmatmul.mubr.bf16.gmra.mxu0 %v1547
      %v1583 = vpop.f32.mrf.mxu0
      %v1584 = vadd.f32 %v1532, %v1583
      %v1585 = vpop.f32.mrf.mxu0
      %v1586 = vpop.f32.mrf.mxu0
      %v1587 = vadd.f32 %v1532, %v1586
      %v1588 = vpop.f32.mrf.mxu0
      %1589 = vdwg.mxu0
      %v1590 = vadd.f32 %v336, %v1584
      %v1591 = vadd.f32 %v337, %v1587
      %v1592 = vld [vmem:[%s7] sm:$0x1]
      %v1593 = vld [vmem:[%s8] sm:$0x1]
      %v1594 = vsel %vm366, %v1590, 0.0
      %1595 = vadd.xlane.f32.xlu0 %v1594
      %v1596 = vpop.xlane.xlu0 %1595
      %v1597 = vsel %vm366, %v1591, 0.0
      %1598 = vadd.xlane.f32.xlu0 %v1597
      %v1599 = vpop.xlane.xlu0 %1598
      %v1600 = vrcp.pop 32.0
      %v1601 = vmul.f32 %v1596, %v1600
      %v1602 = vmul.f32 %v1599, %v1600
      %v1603 = vsub.f32 %v1590, %v1601
      %v1604 = vsub.f32 %v1591, %v1602
      %v1605 = vmul.f32 %v1603, %v1603
      %v1606 = vmul.f32 %v1604, %v1604
      %v1607 = vsel %vm366, %v1605, 0.0
      %1608 = vadd.xlane.f32.xlu0 %v1607
      %v1609 = vpop.xlane.xlu0 %1608
      %v1610 = vsel %vm366, %v1606, 0.0
      %1611 = vadd.xlane.f32.xlu0 %v1610
      %v1612 = vpop.xlane.xlu0 %1611
      %v1613 = vmul.f32 %v1609, %v1600
      %v1614 = vmul.f32 %v1612, %v1600
      %v1615 = vadd.f32 %v1613, 1e-05
      %v1616 = vadd.f32 %v1614, 1e-05
      %v1617 = vrsqrt.pop %v1615
      %v1618 = vrsqrt.pop %v1616
      %v1619 = vmul.f32 %v1603, %v1617
      %v1620 = vmul.f32 %v1604, %v1618
      %v1622 = vlaneseq
      %v1623 = vshrl.u32 %v1622, 7
      %v1624 = vsub.s32 0, %v1623
      %v1625 = vrot.slane %v1592, %v1624
      %v1627 = vmul.f32 %v1619, %v1625
      %v1628 = vmul.f32 %v1620, %v1625
      %v1630 = vlaneseq
      %v1631 = vshrl.u32 %v1630, 7
      %v1632 = vsub.s32 0, %v1631
      %v1633 = vrot.slane %v1593, %v1632
      %v1635 = vadd.f32 %v1627, %v1633
      %v1636 = vadd.f32 %v1628, %v1633
      %v1637 = vpack.c.bf16 %v1636, %v1635
      %v1639 = vunpack.c.l.b16 %v1637
      %v1640 = vunpack.c.h.b16 %v1637
      %v1641 = vpack.c.b16 %v1639, %v1639
      %v1642 = vpack.c.b16 %v1640, %v1640
      %vm1645 = vcmask 257024
      %1646 = vst.msk [vmem:[%s332] sm:$0xf] %vm1645, %v1641
      %1647 = vst.msk [vmem:[%s332 + $0x4] sm:$0xf] %vm1645, %v1642
      %p1648 = scmp.lt.s32.totalorder %s20, 1
      %s1649 = scalar_select %p1648, %s20, 1
      %s1650 = smul.addr %s1649, 2
      %s1651 = smul.addr %s1650, 4
      %s1652 = scalar_lea.vmem %s9, %s1651
      // Predicated region
      $region57: #{_lambda_.13} parent=55 // pred_check
        %p1653 = pneg %p232
      $region58: #{_lambda_.13} parent=55 // pred_check_branch
        %1655 = sbr.rel (%p1653) target = $region60
      $region59: #{_lambda_.13} parent=55 // pred_region
        _
      $region60: #{_lambda_.13} parent=55 // pred_fallthru
        _
    $region56: #{_lambda_.13} parent=5 // pred_fallthru
      _
    %p1656 = scmp.le.s32.totalorder 2, %s15
    // Predicated region
    $region61: #{_lambda_.13} parent=5 // pred_check
      %p1657 = pneg %p1656
    $region62: #{_lambda_.13} parent=5 // pred_check_branch
      %1659 = sbr.rel (%p1657) target = $region64
    $region63: #{_lambda_.13} parent=5 // pred_region
      %s1660 = ssub.s32 %s15, 2
      // Predicated region
      $region65: #{_lambda_.13} parent=63 // pred_check
        %p1661 = pneg %p238
      $region66: #{_lambda_.13} parent=63 // pred_check_branch
        %1663 = sbr.rel (%p1661) target = $region68
      $region67: #{_lambda_.13} parent=63 // pred_region
        %p1664 = scmp.lt.s32.totalorder %s21, 1
        %s1665 = scalar_select %p1664, %s21, 1
        %s1666 = smul.addr %s1665, 2
        %s1667 = smul.addr %s1666, 4
        %s1668 = scalar_lea.vmem %s9, %s1667
      $region68: #{_lambda_.13} parent=63 // pred_fallthru
        _
    $region64: #{_lambda_.13} parent=5 // pred_fallthru
      _
  $region6: #{_lambda_.13} parent=0 // loop_footer
    %s19 = sadd.s32 1, %s15
  $region7: #{_lambda_.13} parent=0 // loop_footer_branch
    %14 = sbr.rel target = $region3
  $region8: #{_lambda_.13} parent=0 // loop_exit
    _

// kernel: _lambda_.19
$region0: #{_lambda_.19}
  #allocation0 [shape = 'u32[]', space=smem, size = 0x4, offset = 0x4, fixed_abs, tag = 'smem constant byte address 0x4 - core index']
  #allocation1 [shape = 'u32[144,128]{1,0:T(1,128)}', space=vmem, size = 0x12000, scoped, tag = 'internal scratch']
  #allocation2 [shape = 'f32[8,32]{1,0:T(8,128)}', space=vmem, size = 0x1000, scoped, tag = 'scratch operand']
  %s0 = inlined_call_operand.vmem [shape: bf16[16,32], index: 0, kind: input, shape index: {}]
  %s1 = inlined_call_operand.vmem [shape: bf16[32,128], index: 1, kind: input, shape index: {}]
  %s2 = inlined_call_operand.vmem [shape: f32[1,128], index: 2, kind: input, shape index: {}]
  %s3 = inlined_call_operand.vmem [shape: bf16[128,32], index: 3, kind: input, shape index: {}]
  %s4 = inlined_call_operand.vmem [shape: f32[1,32], index: 4, kind: input, shape index: {}]
  %s5 = inlined_call_operand.vmem [shape: f32[1,32], index: 5, kind: input, shape index: {}]
  %s6 = inlined_call_operand.vmem [shape: f32[1,32], index: 6, kind: input, shape index: {}]
  %s7 = inlined_call_operand.vmem [shape: bf16[16,32], index: 7, kind: output, shape index: {}]
  %s8 = sld [smem:[#allocation0]]
  $region69: #{_lambda_.19} parent=0
    _
  %s10 = ssub.s32 1, %s8
  %s11 = scalar_select 0, %s10, %s8
  loop: start=0, step=1, limit=4
  $region2: #{_lambda_.19} parent=0 // loop_pre_header
    _
  $region3: #{_lambda_.19} parent=0 // loop_header
    %s13 = sphi 0, %s17
    %p14 = scmp.ge.s32.totalorder %s13, 4
    %s20 = sphi 0, %s32
    %s21 = sphi 0, %s28
    %s22 = sphi 0, %s20
    %s23 = sphi 0, %s21
    %s24 = sphi 0, %s22
    %s25 = sphi 0, %s23
    %s35 = sphi 0, %s37
    %s38 = sphi 0, %s35
    %s39 = sphi 0, %s38
    %s55 = sphi 0, %s39
    %s61 = sphi 0, %s63
    %s64 = sphi 0, %s61
    %s65 = sphi 0, %s64
    %s81 = sphi 0, %s65
    %s87 = sphi 0, %s89
    %s90 = sphi 0, %s87
    %s91 = sphi 0, %s90
    %s107 = sphi 0, %s91
    %s113 = sphi 0, %s115
    %s116 = sphi 0, %s113
    %s117 = sphi 0, %s116
    %s133 = sphi 0, %s117
    %s137 = sphi 0, %s137
    %s139 = sphi 0, %s137
    %s140 = sphi 0, %s139
    %s154 = sphi 0, %s140
    %s158 = sphi 0, %s158
    %s160 = sphi 0, %s158
    %s161 = sphi 0, %s160
    %s175 = sphi 0, %s161
    %s179 = sphi 0, %s179
    %s181 = sphi 0, %s179
    %s182 = sphi 0, %s181
    %s196 = sphi 0, %s182
    %s202 = sphi 0, %s204
    %s205 = sphi 0, %s202
    %s206 = sphi 0, %s205
    %s222 = sphi 0, %s206
  $region4: #{_lambda_.19} parent=0 // loop_header_branch
    %16 = sbr.rel (%p14) target = $region8
  $region5: #{_lambda_.19} parent=0 // loop_body
    %s18 = ssub.s32 %s13, 1
    %s19 = ssub.s32 %s13, 2
    %s26 = sadd.s32 1, %s21
    %p27 = scmp.ge.s32.totalorder %s26, 1
    %s28 = scalar_select %p27, 0, %s26
    %s29 = sadd.s32 1, %s20
    %s30 = scalar_select %p27, %s29, %s20
    %p31 = scmp.ge.s32.totalorder %s30, 2
    %s32 = scalar_select %p31, 0, %s30
    %s33 = ssub.s32 %s20, %s32
    %p34 = scmp.eq.s32.totalorder %s33, 0
    %s36 = sadd.s32 %s35, 1
    %s37 = scalar_select %p34, %s35, %s36
    %p40 = pneg %p34
    %p41 = scmp.eq.s32.totalorder %s13, 1
    %p42 = por %p40, %p41
    %p43 = scmp.ne.s32.totalorder %s35, %s38
    %p44 = scmp.eq.s32.totalorder %s13, 0
    %p45 = por %p43, %p44
    %p46 = scmp.ne.s32.totalorder %s35, %s38
    %p47 = scmp.eq.s32.totalorder %s18, 1
    %p48 = por %p46, %p47
    %p49 = scmp.ne.s32.totalorder %s38, %s39
    %p50 = scmp.eq.s32.totalorder %s18, 0
    %p51 = por %p49, %p50
    %p52 = scmp.ne.s32.totalorder %s38, %s39
    %p53 = scmp.eq.s32.totalorder %s19, 1
    %p54 = por %p52, %p53
    %p56 = scmp.ne.s32.totalorder %s39, %s55
    %p57 = scmp.eq.s32.totalorder %s19, 0
    %p58 = por %p56, %p57
    %s59 = ssub.s32 %s21, %s28
    %p60 = scmp.eq.s32.totalorder %s59, 0
    %s62 = sadd.s32 %s61, 1
    %s63 = scalar_select %p60, %s61, %s62
    %p66 = pneg %p60
    %p67 = scmp.eq.s32.totalorder %s13, 1
    %p68 = por %p66, %p67
    %p69 = scmp.ne.s32.totalorder %s61, %s64
    %p70 = scmp.eq.s32.totalorder %s13, 0
    %p71 = por %p69, %p70
    %p72 = scmp.ne.s32.totalorder %s61, %s64
    %p73 = scmp.eq.s32.totalorder %s18, 1
    %p74 = por %p72, %p73
    %p75 = scmp.ne.s32.totalorder %s64, %s65
    %p76 = scmp.eq.s32.totalorder %s18, 0
    %p77 = por %p75, %p76
    %p78 = scmp.ne.s32.totalorder %s64, %s65
    %p79 = scmp.eq.s32.totalorder %s19, 1
    %p80 = por %p78, %p79
    %p82 = scmp.ne.s32.totalorder %s65, %s81
    %p83 = scmp.eq.s32.totalorder %s19, 0
    %p84 = por %p82, %p83
    %s85 = ssub.s32 %s21, %s28
    %p86 = scmp.eq.s32.totalorder %s85, 0
    %s88 = sadd.s32 %s87, 1
    %s89 = scalar_select %p86, %s87, %s88
    %p92 = pneg %p86
    %p93 = scmp.eq.s32.totalorder %s13, 1
    %p94 = por %p92, %p93
    %p95 = scmp.ne.s32.totalorder %s87, %s90
    %p96 = scmp.eq.s32.totalorder %s13, 0
    %p97 = por %p95, %p96
    %p98 = scmp.ne.s32.totalorder %s87, %s90
    %p99 = scmp.eq.s32.totalorder %s18, 1
    %p100 = por %p98, %p99
    %p101 = scmp.ne.s32.totalorder %s90, %s91
    %p102 = scmp.eq.s32.totalorder %s18, 0
    %p103 = por %p101, %p102
    %p104 = scmp.ne.s32.totalorder %s90, %s91
    %p105 = scmp.eq.s32.totalorder %s19, 1
    %p106 = por %p104, %p105
    %p108 = scmp.ne.s32.totalorder %s91, %s107
    %p109 = scmp.eq.s32.totalorder %s19, 0
    %p110 = por %p108, %p109
    %s111 = ssub.s32 %s21, %s28
    %p112 = scmp.eq.s32.totalorder %s111, 0
    %s114 = sadd.s32 %s113, 1
    %s115 = scalar_select %p112, %s113, %s114
    %p118 = pneg %p112
    %p119 = scmp.eq.s32.totalorder %s13, 1
    %p120 = por %p118, %p119
    %p121 = scmp.ne.s32.totalorder %s113, %s116
    %p122 = scmp.eq.s32.totalorder %s13, 0
    %p123 = por %p121, %p122
    %p124 = scmp.ne.s32.totalorder %s113, %s116
    %p125 = scmp.eq.s32.totalorder %s18, 1
    %p126 = por %p124, %p125
    %p127 = scmp.ne.s32.totalorder %s116, %s117
    %p128 = scmp.eq.s32.totalorder %s18, 0
    %p129 = por %p127, %p128
    %p130 = scmp.ne.s32.totalorder %s116, %s117
    %p131 = scmp.eq.s32.totalorder %s19, 1
    %p132 = por %p130, %p131
    %p134 = scmp.ne.s32.totalorder %s117, %s133
    %p135 = scmp.eq.s32.totalorder %s19, 0
    %p136 = por %p134, %p135
    %s138 = sadd.s32 %s137, 1
    %p141 = scmp.eq.s32.totalorder %s13, 1
    %p142 = scmp.ne.s32.totalorder %s137, %s139
    %p143 = scmp.eq.s32.totalorder %s13, 0
    %p144 = por %p142, %p143
    %p145 = scmp.ne.s32.totalorder %s137, %s139
    %p146 = scmp.eq.s32.totalorder %s18, 1
    %p147 = por %p145, %p146
    %p148 = scmp.ne.s32.totalorder %s139, %s140
    %p149 = scmp.eq.s32.totalorder %s18, 0
    %p150 = por %p148, %p149
    %p151 = scmp.ne.s32.totalorder %s139, %s140
    %p152 = scmp.eq.s32.totalorder %s19, 1
    %p153 = por %p151, %p152
    %p155 = scmp.ne.s32.totalorder %s140, %s154
    %p156 = scmp.eq.s32.totalorder %s19, 0
    %p157 = por %p155, %p156
    %s159 = sadd.s32 %s158, 1
    %p162 = scmp.eq.s32.totalorder %s13, 1
    %p163 = scmp.ne.s32.totalorder %s158, %s160
    %p164 = scmp.eq.s32.totalorder %s13, 0
    %p165 = por %p163, %p164
    %p166 = scmp.ne.s32.totalorder %s158, %s160
    %p167 = scmp.eq.s32.totalorder %s18, 1
    %p168 = por %p166, %p167
    %p169 = scmp.ne.s32.totalorder %s160, %s161
    %p170 = scmp.eq.s32.totalorder %s18, 0
    %p171 = por %p169, %p170
    %p172 = scmp.ne.s32.totalorder %s160, %s161
    %p173 = scmp.eq.s32.totalorder %s19, 1
    %p174 = por %p172, %p173
    %p176 = scmp.ne.s32.totalorder %s161, %s175
    %p177 = scmp.eq.s32.totalorder %s19, 0
    %p178 = por %p176, %p177
    %s180 = sadd.s32 %s179, 1
    %p183 = scmp.eq.s32.totalorder %s13, 1
    %p184 = scmp.ne.s32.totalorder %s179, %s181
    %p185 = scmp.eq.s32.totalorder %s13, 0
    %p186 = por %p184, %p185
    %p187 = scmp.ne.s32.totalorder %s179, %s181
    %p188 = scmp.eq.s32.totalorder %s18, 1
    %p189 = por %p187, %p188
    %p190 = scmp.ne.s32.totalorder %s181, %s182
    %p191 = scmp.eq.s32.totalorder %s18, 0
    %p192 = por %p190, %p191
    %p193 = scmp.ne.s32.totalorder %s181, %s182
    %p194 = scmp.eq.s32.totalorder %s19, 1
    %p195 = por %p193, %p194
    %p197 = scmp.ne.s32.totalorder %s182, %s196
    %p198 = scmp.eq.s32.totalorder %s19, 0
    %p199 = por %p197, %p198
    %s200 = ssub.s32 %s20, %s32
    %p201 = scmp.eq.s32.totalorder %s200, 0
    %s203 = sadd.s32 %s202, 1
    %s204 = scalar_select %p201, %s202, %s203
    %p207 = pneg %p201
    %p208 = scmp.eq.s32.totalorder %s13, 1
    %p209 = por %p207, %p208
    %p210 = scmp.ne.s32.totalorder %s202, %s205
    %p211 = scmp.eq.s32.totalorder %s13, 0
    %p212 = por %p210, %p211
    %p213 = scmp.ne.s32.totalorder %s202, %s205
    %p214 = scmp.eq.s32.totalorder %s18, 1
    %p215 = por %p213, %p214
    %p216 = scmp.ne.s32.totalorder %s205, %s206
    %p217 = scmp.eq.s32.totalorder %s18, 0
    %p218 = por %p216, %p217
    %p219 = scmp.ne.s32.totalorder %s205, %s206
    %p220 = scmp.eq.s32.totalorder %s19, 1
    %p221 = por %p219, %p220
    %p223 = scmp.ne.s32.totalorder %s206, %s222
    %p224 = scmp.eq.s32.totalorder %s19, 0
    %p225 = por %p223, %p224
    %p226 = scmp.le.s32.totalorder 1, %s13
    %p227 = scmp.lt.s32.totalorder %s13, 3
    %p228 = pnand %p226, %p227
    %p229 = pneg %p228
    // Predicated region
    $region9: #{_lambda_.19} parent=5 // pred_check
      _
    $region10: #{_lambda_.19} parent=5 // pred_check_branch
      %231 = sbr.rel (%p228) target = $region12
    $region11: #{_lambda_.19} parent=5 // pred_region
      %s232 = ssub.s32 %s13, 1
      // Predicated region
      $region13: #{_lambda_.19} parent=11 // pred_check
        %p233 = pneg %p77
      $region14: #{_lambda_.19} parent=11 // pred_check_branch
        %235 = sbr.rel (%p233) target = $region16
      $region15: #{_lambda_.19} parent=11 // pred_region
        %p236 = scmp.lt.s32.totalorder %s23, 0
        %s237 = scalar_select %p236, %s23, 0
        %s238 = smul.addr %s237, 4
        %s239 = scalar_lea.vmem %s1, %s238
      $region16: #{_lambda_.19} parent=11 // pred_fallthru
        _
      // Predicated region
      $region17: #{_lambda_.19} parent=11 // pred_check
        %p240 = pneg %p103
      $region18: #{_lambda_.19} parent=11 // pred_check_branch
        %242 = sbr.rel (%p240) target = $region20
      $region19: #{_lambda_.19} parent=11 // pred_region
        %p243 = scmp.lt.s32.totalorder %s23, 0
        %s244 = scalar_select %p243, %s23, 0
        %s245 = scalar_lea.vmem %s2, %s244
      $region20: #{_lambda_.19} parent=11 // pred_fallthru
        _
      // Predicated region
      $region21: #{_lambda_.19} parent=11 // pred_check
        %p246 = pneg %p129
      $region22: #{_lambda_.19} parent=11 // pred_check_branch
        %248 = sbr.rel (%p246) target = $region24
      $region23: #{_lambda_.19} parent=11 // pred_region
        %s249 = smul.u32 16, %s23
        %p250 = scmp.lt.s32.totalorder %s249, 15
        %s251 = scalar_select %p250, %s249, 15
        %s252 = smul.addr %s251, 4
        %s253 = scalar_lea.vmem %s3, %s252
        %s254 = smul.u32 16, %s23
      $region24: #{_lambda_.19} parent=11 // pred_fallthru
        _
      // Predicated region
      $region25: #{_lambda_.19} parent=11 // pred_check
        %p255 = pneg %p150
      $region26: #{_lambda_.19} parent=11 // pred_check_branch
        %257 = sbr.rel (%p255) target = $region28
      $region27: #{_lambda_.19} parent=11 // pred_region
        _
      $region28: #{_lambda_.19} parent=11 // pred_fallthru
        _
      // Predicated region
      $region29: #{_lambda_.19} parent=11 // pred_check
        %p258 = pneg %p171
      $region30: #{_lambda_.19} parent=11 // pred_check_branch
        %260 = sbr.rel (%p258) target = $region32
      $region31: #{_lambda_.19} parent=11 // pred_region
        _
      $region32: #{_lambda_.19} parent=11 // pred_fallthru
        _
      // Predicated region
      $region33: #{_lambda_.19} parent=11 // pred_check
        %p261 = pneg %p192
      $region34: #{_lambda_.19} parent=11 // pred_check_branch
        %263 = sbr.rel (%p261) target = $region36
      $region35: #{_lambda_.19} parent=11 // pred_region
        _
      $region36: #{_lambda_.19} parent=11 // pred_fallthru
        _
    $region12: #{_lambda_.19} parent=5 // pred_fallthru
      _
    %p264 = scmp.lt.s32.totalorder %s13, 2
    // Predicated region
    $region37: #{_lambda_.19} parent=5 // pred_check
      %p265 = pneg %p264
    $region38: #{_lambda_.19} parent=5 // pred_check_branch
      %267 = sbr.rel (%p265) target = $region40
    $region39: #{_lambda_.19} parent=5 // pred_region
      // Predicated region
      $region41: #{_lambda_.19} parent=39 // pred_check
        %p268 = pneg %p45
      $region42: #{_lambda_.19} parent=39 // pred_check_branch
        %270 = sbr.rel (%p268) target = $region44
      $region43: #{_lambda_.19} parent=39 // pred_region
        %p271 = scmp.lt.s32.totalorder %s20, 1
        %s272 = scalar_select %p271, %s20, 1
        %s273 = smul.addr %s272, 4
        %s274 = scalar_lea.vmem %s0, %s273
      $region44: #{_lambda_.19} parent=39 // pred_fallthru
        _
    $region40: #{_lambda_.19} parent=5 // pred_fallthru
      _
    %p275 = scmp.le.s32.totalorder 1, %s13
    %p276 = scmp.lt.s32.totalorder %s13, 3
    %p277 = pnand %p275, %p276
    %p278 = pneg %p277
    // Predicated region
    $region45: #{_lambda_.19} parent=5 // pred_check
      _
    $region46: #{_lambda_.19} parent=5 // pred_check_branch
      %280 = sbr.rel (%p277) target = $region48
    $region47: #{_lambda_.19} parent=5 // pred_region
      %s281 = ssub.s32 %s13, 1
      %p282 = scmp.lt.s32.totalorder %s22, 1
      %s283 = scalar_select %p282, %s22, 1
      %s284 = smul.addr %s283, 4
      %s285 = scalar_lea.vmem %s0, %s284
      %p286 = pneg %p51
      %p287 = pneg %p48
      %p288 = scmp.lt.s32.totalorder %s23, 0
      %s289 = scalar_select %p288, %s23, 0
      %s290 = smul.addr %s289, 4
      %s291 = scalar_lea.vmem %s1, %s290
      %p292 = pneg %p77
      %p293 = pneg %p74
      %p294 = scmp.lt.s32.totalorder %s23, 0
      %s295 = scalar_select %p294, %s23, 0
      %s296 = scalar_lea.vmem %s2, %s295
      %p297 = pneg %p103
      %p298 = pneg %p100
      %s299 = smul.u32 16, %s23
      %p300 = scmp.lt.s32.totalorder %s299, 15
      %s301 = scalar_select %p300, %s299, 15
      %s302 = smul.addr %s301, 4
      %s303 = scalar_lea.vmem %s3, %s302
      %p304 = pneg %p129
      %p305 = pneg %p126
      %p306 = pneg %p150
      %p307 = pneg %p147
      %p308 = pneg %p171
      %p309 = pneg %p168
      %p310 = pneg %p192
      %p311 = pneg %p189
      %p312 = pneg %p218
      %p313 = pneg %p215
      %p314 = scmp.lt.s32.totalorder %s22, 1
      %s315 = scalar_select %p314, %s22, 1
      %s316 = smul.addr %s315, 4
      %s317 = scalar_lea.vmem %s7, %s316
      %p318 = scmp.lt.s32.totalorder %s22, 1
      %s319 = scalar_select %p318, %s22, 1
      %s320 = smul.addr %s319, 4
      %s321 = scalar_lea.vmem %s0, %s320
      %p322 = scmp.lt.s32.totalorder %s23, 0
      %s323 = scalar_select %p322, %s23, 0
      %s324 = smul.addr %s323, 4
      %s325 = scalar_lea.vmem %s1, %s324
      %p326 = scmp.lt.s32.totalorder %s23, 0
      %s327 = scalar_select %p326, %s23, 0
      %s328 = scalar_lea.vmem %s2, %s327
      %s329 = smul.u32 16, %s23
      %p330 = scmp.lt.s32.totalorder %s329, 15
      %s331 = scalar_select %p330, %s329, 15
      %s332 = smul.addr %s331, 4
      %s333 = scalar_lea.vmem %s3, %s332
      %s334 = smul.u32 16, %s23
      %p335 = scmp.lt.s32.totalorder %s22, 1
      %s336 = scalar_select %p335, %s22, 1
      %s337 = smul.addr %s336, 4
      %s338 = scalar_lea.vmem %s7, %s337
      %p340 = scmp.eq.s32.totalorder %s23, 0
      // Predicated region
      $region49: #{_lambda_.19} parent=47 // pred_check
        %p341 = pneg %p340
      $region50: #{_lambda_.19} parent=47 // pred_check_branch
        %343 = sbr.rel (%p341) target = $region52
      $region51: #{_lambda_.19} parent=47 // pred_region
        %vm344 = vcmask 261120
        %345 = vst.msk [vmem:[#allocation2] sm:$0xff] %vm344, 0.0
      $region52: #{_lambda_.19} parent=47 // pred_fallthru
        _
      %v346 = vld [vmem:[%s321] sm:$0xf]
      %v347 = vunpack.c.l.bf16 %v346
      %v348 = vld [vmem:[%s325] sm:$0xf]
      %v349 = vld [vmem:[%s325 + $0x4] sm:$0xf]
      %v350 = vld [vmem:[%s325 + $0x8] sm:$0xf]
      %v351 = vld [vmem:[%s325 + $0xc] sm:$0xf]
      %v352 = vld [vmem:[%s328] sm:$0x1]
      %v354 = vlaneseq
      %v355 = vshrl.u32 %v354, 7
      %v356 = vsub.s32 0, %v355
      %v357 = vrot.slane %v352, %v356
      %v363 = vunpack.c.l.b16 %v348
      %v364 = vunpack.c.l.b16 %v349
      %v365 = vunpack.c.l.b16 %v350
      %v366 = vunpack.c.l.b16 %v351
      %v367 = vpack.c.b16 %v364, %v363
      %v368 = vpack.c.b16 %v366, %v365
      %vm371 = vcmask 261120
      %v373 = vsel %vm371, %v346, 0
      %375 = vmatprep.subr.bf16.mxu0 0
      %376 = vmatpush1.bf16.msra.mxu0 0
      %377 = vmatprep.subr.bf16.mxu0 0
      %378 = vmatpush1.bf16.msra.mxu0 0
      %379 = vmatprep.subr.bf16.mxu0 0
      %380 = vmatpush1.bf16.msra.mxu0 0
      %381 = vmatprep.subr.bf16.mxu0 0
      %382 = vmatpush1.bf16.msra.mxu0 0
      %383 = vmatprep.subr.bf16.mxu0 0
      %384 = vmatpush1.bf16.msra.mxu0 0
      %385 = vmatprep.subr.bf16.mxu0 0
      %386 = vmatpush1.bf16.msra.mxu0 0
      %387 = vmatprep.subr.bf16.mxu0 0
      %388 = vmatpush1.bf16.msra.mxu0 %v368
      %389 = vmatprep.subr.bf16.mxu0 0
      %390 = vmatpush1.bf16.msra.mxu0 %v367
      %391 = vmatprep.subr.bf16.mxu0 0
      %392 = vmatpush2.bf16.msra.mxu0 0
      %393 = vmatprep.subr.bf16.mxu0 0
      %394 = vmatpush2.bf16.msra.mxu0 0
      %395 = vmatprep.subr.bf16.mxu0 0
      %396 = vmatpush2.bf16.msra.mxu0 0
      %397 = vmatprep.subr.bf16.mxu0 0
      %398 = vmatpush2.bf16.msra.mxu0 0
      %399 = vmatprep.subr.bf16.mxu0 0
      %400 = vmatpush2.bf16.msra.mxu0 0
      %401 = vmatprep.subr.bf16.mxu0 0
      %402 = vmatpush2.bf16.msra.mxu0 0
      %403 = vmatprep.subr.bf16.mxu0 0
      %404 = vmatpush2.bf16.msra.mxu0 0
      %405 = vmatprep.subr.bf16.mxu0 0
      %406 = vmatpush2.bf16.msra.mxu0 0
      %407 = vmatprep.mubr.bf16.mxu0 0
      %408 = vmatmul.mubr.bf16.gmra.mxu0 %v373
      %v409 = vpop.f32.mrf.mxu0
      %v410 = vadd.f32 %v357, %v409
      %v411 = vpop.f32.mrf.mxu0
      %v412 = vpop.f32.mrf.mxu0
      %v413 = vpop.f32.mrf.mxu0
      %414 = vdwg.mxu0
      %v415 = vmul.f32 %v410, 0.5
      %v416 = vmul.f32 %v410, 0.70710677
      %vm417 = vcmp.ge.f32.partialorder %v416, 0.0
      %v418 = vsub.f32 0.0, %v416
      %v419 = vsel %vm417, %v416, %v418
      %v420 = vmul.f32 %v419, 0.3275911
      %v421 = vadd.f32 %v420, 1.0
      %v422 = vrcp.pop %v421
      %v423 = vmul.f32 1.0, %v422
      %v424 = vmul.f32 %v423, 1.0614054
      %v425 = vadd.f32 %v424, -1.4531521
      %v426 = vmul.f32 %v425, %v423
      %v427 = vadd.f32 %v426, 1.4214138
      %v428 = vmul.f32 %v427, %v423
      %v429 = vadd.f32 %v428, -0.28449672
      %v430 = vmul.f32 %v429, %v423
      %v431 = vadd.f32 %v430, 0.2548296
      %v432 = vmul.f32 %v431, %v423
      %v433 = vsub.f32 0.0, %v419
      %v434 = vmul.f32 %v433, %v419
      %v435 = vmul.f32 %v434, 1.442695
      %v436 = vpow.pop %v435
      %v437 = vmul.f32 %v432, %v436
      %v438 = vsub.f32 1.0, %v437
      %v439 = vsub.f32 0.0, %v438
      %v440 = vsel %vm417, %v438, %v439
      %v441 = vadd.f32 %v440, 1.0
      %v442 = vmul.f32 %v415, %v441
      %v443 = vld [vmem:[#allocation2] sm:$0xff]
      %v444 = vpack.c.bf16 %v442, %v442
      %v445 = vld [vmem:[%s333] sm:$0xf]
      %v446 = vld [vmem:[%s333 + $0x4] sm:$0xf]
      %v447 = vld [vmem:[%s333 + $0x8] sm:$0xf]
      %v448 = vld [vmem:[%s333 + $0xc] sm:$0xf]
      %v449 = vld [vmem:[%s333 + $0x10] sm:$0xf]
      %v450 = vld [vmem:[%s333 + $0x14] sm:$0xf]
      %v451 = vld [vmem:[%s333 + $0x18] sm:$0xf]
      %v452 = vld [vmem:[%s333 + $0x1c] sm:$0xf]
      %v453 = vld [vmem:[%s333 + $0x20] sm:$0xf]
      %v454 = vld [vmem:[%s333 + $0x24] sm:$0xf]
      %v455 = vld [vmem:[%s333 + $0x28] sm:$0xf]
      %v456 = vld [vmem:[%s333 + $0x2c] sm:$0xf]
      %v457 = vld [vmem:[%s333 + $0x30] sm:$0xf]
      %v458 = vld [vmem:[%s333 + $0x34] sm:$0xf]
      %v459 = vld [vmem:[%s333 + $0x38] sm:$0xf]
      %v460 = vld [vmem:[%s333 + $0x3c] sm:$0xf]
      %v477 = vunpack.c.l.b16 %v445
      %v478 = vunpack.c.l.b16 %v446
      %v479 = vunpack.c.l.b16 %v447
      %v480 = vunpack.c.l.b16 %v448
      %v481 = vunpack.c.l.b16 %v449
      %v482 = vunpack.c.l.b16 %v450
      %v483 = vunpack.c.l.b16 %v451
      %v484 = vunpack.c.l.b16 %v452
      %v485 = vunpack.c.l.b16 %v453
      %v486 = vunpack.c.l.b16 %v454
      %v487 = vunpack.c.l.b16 %v455
      %v488 = vunpack.c.l.b16 %v456
      %v489 = vunpack.c.l.b16 %v457
      %v490 = vunpack.c.l.b16 %v458
      %v491 = vunpack.c.l.b16 %v459
      %v492 = vunpack.c.l.b16 %v460
      %v493 = vpack.c.b16 %v478, %v477
      %v494 = vpack.c.b16 %v480, %v479
      %v495 = vpack.c.b16 %v482, %v481
      %v496 = vpack.c.b16 %v484, %v483
      %v497 = vpack.c.b16 %v486, %v485
      %v498 = vpack.c.b16 %v488, %v487
      %v499 = vpack.c.b16 %v490, %v489
      %v500 = vpack.c.b16 %v492, %v491
      %509 = vmatprep.subr.bf16.mxu0 0
      %510 = vmatpush1.bf16.msra.mxu0 %v500
      %511 = vmatprep.subr.bf16.mxu0 0
      %512 = vmatpush1.bf16.msra.mxu0 %v499
      %513 = vmatprep.subr.bf16.mxu0 0
      %514 = vmatpush1.bf16.msra.mxu0 %v498
      %515 = vmatprep.subr.bf16.mxu0 0
      %516 = vmatpush1.bf16.msra.mxu0 %v497
      %517 = vmatprep.subr.bf16.mxu0 0
      %518 = vmatpush1.bf16.msra.mxu0 %v496
      %519 = vmatprep.subr.bf16.mxu0 0
      %520 = vmatpush1.bf16.msra.mxu0 %v495
      %521 = vmatprep.subr.bf16.mxu0 0
      %522 = vmatpush1.bf16.msra.mxu0 %v494
      %523 = vmatprep.subr.bf16.mxu0 0
      %524 = vmatpush1.bf16.msra.mxu0 %v493
      %525 = vmatprep.subr.bf16.mxu0 0
      %526 = vmatpush2.bf16.msra.mxu0 0
      %527 = vmatprep.subr.bf16.mxu0 0
      %528 = vmatpush2.bf16.msra.mxu0 0
      %529 = vmatprep.subr.bf16.mxu0 0
      %530 = vmatpush2.bf16.msra.mxu0 0
      %531 = vmatprep.subr.bf16.mxu0 0
      %532 = vmatpush2.bf16.msra.mxu0 0
      %533 = vmatprep.subr.bf16.mxu0 0
      %534 = vmatpush2.bf16.msra.mxu0 0
      %535 = vmatprep.subr.bf16.mxu0 0
      %536 = vmatpush2.bf16.msra.mxu0 0
      %537 = vmatprep.subr.bf16.mxu0 0
      %538 = vmatpush2.bf16.msra.mxu0 0
      %539 = vmatprep.subr.bf16.mxu0 0
      %540 = vmatpush2.bf16.msra.mxu0 0
      %541 = vmatprep.mubr.bf16.mxu0 0
      %542 = vmatmul.mubr.bf16.gmra.mxu0 %v444
      %v543 = vpop.f32.mrf.mxu0
      %v544 = vadd.f32 0.0, %v543
      %v545 = vpop.f32.mrf.mxu0
      %v546 = vpop.f32.mrf.mxu0
      %v547 = vpop.f32.mrf.mxu0
      %548 = vdwg.mxu0
      %v549 = vadd.f32 %v443, %v544
      %550 = vst.msk [vmem:[#allocation2] sm:$0xff] %vm371, %v549
      // Predicated region
      $region53: #{_lambda_.19} parent=47 // pred_check
        %p551 = pneg %p340
      $region54: #{_lambda_.19} parent=47 // pred_check_branch
        %553 = sbr.rel (%p551) target = $region56
      $region55: #{_lambda_.19} parent=47 // pred_region
        %v554 = vld [vmem:[#allocation2] sm:$0xff]
        %v555 = vld [vmem:[%s4] sm:$0x1]
        %v557 = vlaneseq
        %v558 = vshrl.u32 %v557, 7
        %v559 = vsub.s32 0, %v558
        %v560 = vrot.slane %v555, %v559
        %v562 = vadd.f32 %v554, %v560
        %v563 = vadd.f32 %v347, %v562
        %v564 = vld [vmem:[%s5] sm:$0x1]
        %v565 = vld [vmem:[%s6] sm:$0x1]
        %v566 = vsel %vm371, %v563, 0.0
        %567 = vadd.xlane.f32.xlu0 %v566
        %v568 = vpop.xlane.xlu0 %567
        %v569 = vrcp.pop 32.0
        %v570 = vmul.f32 %v568, %v569
        %v571 = vsub.f32 %v563, %v570
        %v572 = vmul.f32 %v571, %v571
        %v573 = vsel %vm371, %v572, 0.0
        %574 = vadd.xlane.f32.xlu0 %v573
        %v575 = vpop.xlane.xlu0 %574
        %v576 = vmul.f32 %v575, %v569
        %v577 = vadd.f32 %v576, 1e-05
        %v578 = vrsqrt.pop %v577
        %v579 = vmul.f32 %v571, %v578
        %v581 = vlaneseq
        %v582 = vshrl.u32 %v581, 7
        %v583 = vsub.s32 0, %v582
        %v584 = vrot.slane %v564, %v583
        %v586 = vmul.f32 %v579, %v584
        %v588 = vlaneseq
        %v589 = vshrl.u32 %v588, 7
        %v590 = vsub.s32 0, %v589
        %v591 = vrot.slane %v565, %v590
        %v593 = vadd.f32 %v586, %v591
        %v594 = vpack.c.bf16 %v593, %v593
        %vm595 = vcmask 257024
        %596 = vst.msk [vmem:[%s338] sm:$0xf] %vm595, %v594
      $region56: #{_lambda_.19} parent=47 // pred_fallthru
        _
      %p597 = scmp.lt.s32.totalorder %s22, 1
      %s598 = scalar_select %p597, %s22, 1
      %s599 = smul.addr %s598, 4
      %s600 = scalar_lea.vmem %s7, %s599
      // Predicated region
      $region57: #{_lambda_.19} parent=47 // pred_check
        %p601 = pneg %p215
      $region58: #{_lambda_.19} parent=47 // pred_check_branch
        %603 = sbr.rel (%p601) target = $region60
      $region59: #{_lambda_.19} parent=47 // pred_region
        _
      $region60: #{_lambda_.19} parent=47 // pred_fallthru
        _
    $region48: #{_lambda_.19} parent=5 // pred_fallthru
      _
    %p604 = scmp.le.s32.totalorder 2, %s13
    // Predicated region
    $region61: #{_lambda_.19} parent=5 // pred_check
      %p605 = pneg %p604
    $region62: #{_lambda_.19} parent=5 // pred_check_branch
      %607 = sbr.rel (%p605) target = $region64
    $region63: #{_lambda_.19} parent=5 // pred_region
      %s608 = ssub.s32 %s13, 2
      // Predicated region
      $region65: #{_lambda_.19} parent=63 // pred_check
        %p609 = pneg %p221
      $region66: #{_lambda_.19} parent=63 // pred_check_branch
        %611 = sbr.rel (%p609) target = $region68
      $region67: #{_lambda_.19} parent=63 // pred_region
        %p612 = scmp.lt.s32.totalorder %s24, 1
        %s613 = scalar_select %p612, %s24, 1
        %s614 = smul.addr %s613, 4
        %s615 = scalar_lea.vmem %s7, %s614
      $region68: #{_lambda_.19} parent=63 // pred_fallthru
        _
    $region64: #{_lambda_.19} parent=5 // pred_fallthru
      _
  $region6: #{_lambda_.19} parent=0 // loop_footer
    %s17 = sadd.s32 1, %s13
  $region7: #{_lambda_.19} parent=0 // loop_footer_branch
    %12 = sbr.rel target = $region3
  $region8: #{_lambda_.19} parent=0 // loop_exit
    _

// kernel: _lambda_.23
$region0: #{_lambda_.23}
  #allocation0 [shape = 'u32[]', space=smem, size = 0x4, offset = 0x4, fixed_abs, tag = 'smem constant byte address 0x4 - core index']
  #allocation1 [shape = 'u32[144,128]{1,0:T(1,128)}', space=vmem, size = 0x12000, scoped, tag = 'internal scratch']
  %s0 = inlined_call_operand.vmem [shape: bf16[16,32], index: 0, kind: input, shape index: {}]
  %s1 = inlined_call_operand.vmem [shape: f32[1,32], index: 1, kind: input, shape index: {}]
  %s2 = inlined_call_operand.vmem [shape: f32[1,32], index: 2, kind: input, shape index: {}]
  %s3 = inlined_call_operand.vmem [shape: bf16[32,40], index: 3, kind: input, shape index: {}]
  %s4 = inlined_call_operand.vmem [shape: f32[1,40], index: 4, kind: input, shape index: {}]
  %s5 = inlined_call_operand.vmem [shape: f32[16,40], index: 5, kind: output, shape index: {}]
  %s6 = sld [smem:[#allocation0]]
  $region53: #{_lambda_.23} parent=0
    _
  %s8 = ssub.s32 1, %s6
  %s9 = scalar_select 0, %s8, %s6
  loop: start=0, step=1, limit=4
  $region2: #{_lambda_.23} parent=0 // loop_pre_header
    _
  $region3: #{_lambda_.23} parent=0 // loop_header
    %s11 = sphi 0, %s15
    %p12 = scmp.ge.s32.totalorder %s11, 4
    %s18 = sphi 0, %s30
    %s19 = sphi 0, %s26
    %s20 = sphi 0, %s18
    %s21 = sphi 0, %s19
    %s22 = sphi 0, %s20
    %s23 = sphi 0, %s21
    %s33 = sphi 0, %s35
    %s36 = sphi 0, %s33
    %s37 = sphi 0, %s36
    %s53 = sphi 0, %s37
    %s57 = sphi 0, %s57
    %s59 = sphi 0, %s57
    %s60 = sphi 0, %s59
    %s74 = sphi 0, %s60
    %s78 = sphi 0, %s78
    %s80 = sphi 0, %s78
    %s81 = sphi 0, %s80
    %s95 = sphi 0, %s81
    %s101 = sphi 0, %s103
    %s104 = sphi 0, %s101
    %s105 = sphi 0, %s104
    %s121 = sphi 0, %s105
    %s127 = sphi 0, %s129
    %s130 = sphi 0, %s127
    %s131 = sphi 0, %s130
    %s147 = sphi 0, %s131
    %s155 = sphi 0, %s157
    %s158 = sphi 0, %s155
    %s159 = sphi 0, %s158
    %s175 = sphi 0, %s159
  $region4: #{_lambda_.23} parent=0 // loop_header_branch
    %14 = sbr.rel (%p12) target = $region8
  $region5: #{_lambda_.23} parent=0 // loop_body
    %s16 = ssub.s32 %s11, 1
    %s17 = ssub.s32 %s11, 2
    %s24 = sadd.s32 1, %s19
    %p25 = scmp.ge.s32.totalorder %s24, 1
    %s26 = scalar_select %p25, 0, %s24
    %s27 = sadd.s32 1, %s18
    %s28 = scalar_select %p25, %s27, %s18
    %p29 = scmp.ge.s32.totalorder %s28, 2
    %s30 = scalar_select %p29, 0, %s28
    %s31 = ssub.s32 %s18, %s30
    %p32 = scmp.eq.s32.totalorder %s31, 0
    %s34 = sadd.s32 %s33, 1
    %s35 = scalar_select %p32, %s33, %s34
    %p38 = pneg %p32
    %p39 = scmp.eq.s32.totalorder %s11, 1
    %p40 = por %p38, %p39
    %p41 = scmp.ne.s32.totalorder %s33, %s36
    %p42 = scmp.eq.s32.totalorder %s11, 0
    %p43 = por %p41, %p42
    %p44 = scmp.ne.s32.totalorder %s33, %s36
    %p45 = scmp.eq.s32.totalorder %s16, 1
    %p46 = por %p44, %p45
    %p47 = scmp.ne.s32.totalorder %s36, %s37
    %p48 = scmp.eq.s32.totalorder %s16, 0
    %p49 = por %p47, %p48
    %p50 = scmp.ne.s32.totalorder %s36, %s37
    %p51 = scmp.eq.s32.totalorder %s17, 1
    %p52 = por %p50, %p51
    %p54 = scmp.ne.s32.totalorder %s37, %s53
    %p55 = scmp.eq.s32.totalorder %s17, 0
    %p56 = por %p54, %p55
    %s58 = sadd.s32 %s57, 1
    %p61 = scmp.eq.s32.totalorder %s11, 1
    %p62 = scmp.ne.s32.totalorder %s57, %s59
    %p63 = scmp.eq.s32.totalorder %s11, 0
    %p64 = por %p62, %p63
    %p65 = scmp.ne.s32.totalorder %s57, %s59
    %p66 = scmp.eq.s32.totalorder %s16, 1
    %p67 = por %p65, %p66
    %p68 = scmp.ne.s32.totalorder %s59, %s60
    %p69 = scmp.eq.s32.totalorder %s16, 0
    %p70 = por %p68, %p69
    %p71 = scmp.ne.s32.totalorder %s59, %s60
    %p72 = scmp.eq.s32.totalorder %s17, 1
    %p73 = por %p71, %p72
    %p75 = scmp.ne.s32.totalorder %s60, %s74
    %p76 = scmp.eq.s32.totalorder %s17, 0
    %p77 = por %p75, %p76
    %s79 = sadd.s32 %s78, 1
    %p82 = scmp.eq.s32.totalorder %s11, 1
    %p83 = scmp.ne.s32.totalorder %s78, %s80
    %p84 = scmp.eq.s32.totalorder %s11, 0
    %p85 = por %p83, %p84
    %p86 = scmp.ne.s32.totalorder %s78, %s80
    %p87 = scmp.eq.s32.totalorder %s16, 1
    %p88 = por %p86, %p87
    %p89 = scmp.ne.s32.totalorder %s80, %s81
    %p90 = scmp.eq.s32.totalorder %s16, 0
    %p91 = por %p89, %p90
    %p92 = scmp.ne.s32.totalorder %s80, %s81
    %p93 = scmp.eq.s32.totalorder %s17, 1
    %p94 = por %p92, %p93
    %p96 = scmp.ne.s32.totalorder %s81, %s95
    %p97 = scmp.eq.s32.totalorder %s17, 0
    %p98 = por %p96, %p97
    %s99 = ssub.s32 %s19, %s26
    %p100 = scmp.eq.s32.totalorder %s99, 0
    %s102 = sadd.s32 %s101, 1
    %s103 = scalar_select %p100, %s101, %s102
    %p106 = pneg %p100
    %p107 = scmp.eq.s32.totalorder %s11, 1
    %p108 = por %p106, %p107
    %p109 = scmp.ne.s32.totalorder %s101, %s104
    %p110 = scmp.eq.s32.totalorder %s11, 0
    %p111 = por %p109, %p110
    %p112 = scmp.ne.s32.totalorder %s101, %s104
    %p113 = scmp.eq.s32.totalorder %s16, 1
    %p114 = por %p112, %p113
    %p115 = scmp.ne.s32.totalorder %s104, %s105
    %p116 = scmp.eq.s32.totalorder %s16, 0
    %p117 = por %p115, %p116
    %p118 = scmp.ne.s32.totalorder %s104, %s105
    %p119 = scmp.eq.s32.totalorder %s17, 1
    %p120 = por %p118, %p119
    %p122 = scmp.ne.s32.totalorder %s105, %s121
    %p123 = scmp.eq.s32.totalorder %s17, 0
    %p124 = por %p122, %p123
    %s125 = ssub.s32 %s19, %s26
    %p126 = scmp.eq.s32.totalorder %s125, 0
    %s128 = sadd.s32 %s127, 1
    %s129 = scalar_select %p126, %s127, %s128
    %p132 = pneg %p126
    %p133 = scmp.eq.s32.totalorder %s11, 1
    %p134 = por %p132, %p133
    %p135 = scmp.ne.s32.totalorder %s127, %s130
    %p136 = scmp.eq.s32.totalorder %s11, 0
    %p137 = por %p135, %p136
    %p138 = scmp.ne.s32.totalorder %s127, %s130
    %p139 = scmp.eq.s32.totalorder %s16, 1
    %p140 = por %p138, %p139
    %p141 = scmp.ne.s32.totalorder %s130, %s131
    %p142 = scmp.eq.s32.totalorder %s16, 0
    %p143 = por %p141, %p142
    %p144 = scmp.ne.s32.totalorder %s130, %s131
    %p145 = scmp.eq.s32.totalorder %s17, 1
    %p146 = por %p144, %p145
    %p148 = scmp.ne.s32.totalorder %s131, %s147
    %p149 = scmp.eq.s32.totalorder %s17, 0
    %p150 = por %p148, %p149
    %s151 = ssub.s32 %s18, %s30
    %s152 = ssub.s32 %s19, %s26
    %s153 = sor.u32 %s151, %s152
    %p154 = scmp.eq.s32.totalorder %s153, 0
    %s156 = sadd.s32 %s155, 1
    %s157 = scalar_select %p154, %s155, %s156
    %p160 = pneg %p154
    %p161 = scmp.eq.s32.totalorder %s11, 1
    %p162 = por %p160, %p161
    %p163 = scmp.ne.s32.totalorder %s155, %s158
    %p164 = scmp.eq.s32.totalorder %s11, 0
    %p165 = por %p163, %p164
    %p166 = scmp.ne.s32.totalorder %s155, %s158
    %p167 = scmp.eq.s32.totalorder %s16, 1
    %p168 = por %p166, %p167
    %p169 = scmp.ne.s32.totalorder %s158, %s159
    %p170 = scmp.eq.s32.totalorder %s16, 0
    %p171 = por %p169, %p170
    %p172 = scmp.ne.s32.totalorder %s158, %s159
    %p173 = scmp.eq.s32.totalorder %s17, 1
    %p174 = por %p172, %p173
    %p176 = scmp.ne.s32.totalorder %s159, %s175
    %p177 = scmp.eq.s32.totalorder %s17, 0
    %p178 = por %p176, %p177
    %p179 = scmp.le.s32.totalorder 1, %s11
    %p180 = scmp.lt.s32.totalorder %s11, 3
    %p181 = pnand %p179, %p180
    %p182 = pneg %p181
    // Predicated region
    $region9: #{_lambda_.23} parent=5 // pred_check
      _
    $region10: #{_lambda_.23} parent=5 // pred_check_branch
      %184 = sbr.rel (%p181) target = $region12
    $region11: #{_lambda_.23} parent=5 // pred_region
      %s185 = ssub.s32 %s11, 1
      // Predicated region
      $region13: #{_lambda_.23} parent=11 // pred_check
        %p186 = pneg %p70
      $region14: #{_lambda_.23} parent=11 // pred_check_branch
        %188 = sbr.rel (%p186) target = $region16
      $region15: #{_lambda_.23} parent=11 // pred_region
        _
      $region16: #{_lambda_.23} parent=11 // pred_fallthru
        _
      // Predicated region
      $region17: #{_lambda_.23} parent=11 // pred_check
        %p189 = pneg %p91
      $region18: #{_lambda_.23} parent=11 // pred_check_branch
        %191 = sbr.rel (%p189) target = $region20
      $region19: #{_lambda_.23} parent=11 // pred_region
        _
      $region20: #{_lambda_.23} parent=11 // pred_fallthru
        _
      // Predicated region
      $region21: #{_lambda_.23} parent=11 // pred_check
        %p192 = pneg %p117
      $region22: #{_lambda_.23} parent=11 // pred_check_branch
        %194 = sbr.rel (%p192) target = $region24
      $region23: #{_lambda_.23} parent=11 // pred_region
        %p195 = scmp.lt.s32.totalorder %s21, 0
        %s196 = scalar_select %p195, %s21, 0
        %s197 = smul.addr %s196, 4
        %s198 = scalar_lea.vmem %s3, %s197
      $region24: #{_lambda_.23} parent=11 // pred_fallthru
        _
      // Predicated region
      $region25: #{_lambda_.23} parent=11 // pred_check
        %p199 = pneg %p143
      $region26: #{_lambda_.23} parent=11 // pred_check_branch
        %201 = sbr.rel (%p199) target = $region28
      $region27: #{_lambda_.23} parent=11 // pred_region
        %p202 = scmp.lt.s32.totalorder %s21, 0
        %s203 = scalar_select %p202, %s21, 0
        %s204 = scalar_lea.vmem %s4, %s203
      $region28: #{_lambda_.23} parent=11 // pred_fallthru
        _
    $region12: #{_lambda_.23} parent=5 // pred_fallthru
      _
    %p205 = scmp.lt.s32.totalorder %s11, 2
    // Predicated region
    $region29: #{_lambda_.23} parent=5 // pred_check
      %p206 = pneg %p205
    $region30: #{_lambda_.23} parent=5 // pred_check_branch
      %208 = sbr.rel (%p206) target = $region32
    $region31: #{_lambda_.23} parent=5 // pred_region
      // Predicated region
      $region33: #{_lambda_.23} parent=31 // pred_check
        %p209 = pneg %p43
      $region34: #{_lambda_.23} parent=31 // pred_check_branch
        %211 = sbr.rel (%p209) target = $region36
      $region35: #{_lambda_.23} parent=31 // pred_region
        %p212 = scmp.lt.s32.totalorder %s18, 1
        %s213 = scalar_select %p212, %s18, 1
        %s214 = smul.addr %s213, 4
        %s215 = scalar_lea.vmem %s0, %s214
      $region36: #{_lambda_.23} parent=31 // pred_fallthru
        _
    $region32: #{_lambda_.23} parent=5 // pred_fallthru
      _
    %p216 = scmp.le.s32.totalorder 1, %s11
    %p217 = scmp.lt.s32.totalorder %s11, 3
    %p218 = pnand %p216, %p217
    %p219 = pneg %p218
    // Predicated region
    $region37: #{_lambda_.23} parent=5 // pred_check
      _
    $region38: #{_lambda_.23} parent=5 // pred_check_branch
      %221 = sbr.rel (%p218) target = $region40
    $region39: #{_lambda_.23} parent=5 // pred_region
      %s222 = ssub.s32 %s11, 1
      %p223 = scmp.lt.s32.totalorder %s20, 1
      %s224 = scalar_select %p223, %s20, 1
      %s225 = smul.addr %s224, 4
      %s226 = scalar_lea.vmem %s0, %s225
      %p227 = pneg %p49
      %p228 = pneg %p46
      %p229 = pneg %p70
      %p230 = pneg %p67
      %p231 = pneg %p91
      %p232 = pneg %p88
      %p233 = scmp.lt.s32.totalorder %s21, 0
      %s234 = scalar_select %p233, %s21, 0
      %s235 = smul.addr %s234, 4
      %s236 = scalar_lea.vmem %s3, %s235
      %p237 = pneg %p117
      %p238 = pneg %p114
      %p239 = scmp.lt.s32.totalorder %s21, 0
      %s240 = scalar_select %p239, %s21, 0
      %s241 = scalar_lea.vmem %s4, %s240
      %p242 = pneg %p143
      %p243 = pneg %p140
      %p244 = pneg %p171
      %p245 = pneg %p168
      %p246 = scmp.lt.s32.totalorder %s20, 1
      %s247 = scalar_select %p246, %s20, 1
      %p248 = scmp.lt.s32.totalorder %s21, 0
      %s249 = scalar_select %p248, %s21, 0
      %s250 = sadd.s32 %s249, %s247
      %s251 = smul.addr %s250, 8
      %s252 = scalar_lea.vmem %s5, %s251
      %p253 = scmp.lt.s32.totalorder %s20, 1
      %s254 = scalar_select %p253, %s20, 1
      %s255 = smul.addr %s254, 4
      %s256 = scalar_lea.vmem %s0, %s255
      %p257 = scmp.lt.s32.totalorder %s21, 0
      %s258 = scalar_select %p257, %s21, 0
      %s259 = smul.addr %s258, 4
      %s260 = scalar_lea.vmem %s3, %s259
      %p261 = scmp.lt.s32.totalorder %s21, 0
      %s262 = scalar_select %p261, %s21, 0
      %s263 = scalar_lea.vmem %s4, %s262
      %p264 = scmp.lt.s32.totalorder %s20, 1
      %s265 = scalar_select %p264, %s20, 1
      %p266 = scmp.lt.s32.totalorder %s21, 0
      %s267 = scalar_select %p266, %s21, 0
      %s268 = sadd.s32 %s267, %s265
      %s269 = smul.addr %s268, 8
      %s270 = scalar_lea.vmem %s5, %s269
      %v272 = vld [vmem:[%s256] sm:$0xf]
      %v273 = vunpack.c.l.bf16 %v272
      %v274 = vld [vmem:[%s1] sm:$0x1]
      %v275 = vld [vmem:[%s2] sm:$0x1]
      %vm276 = vcmask 261120
      %v277 = vsel %vm276, %v273, 0.0
      %278 = vadd.xlane.f32.xlu0 %v277
      %v279 = vpop.xlane.xlu0 %278
      %v280 = vrcp.pop 32.0
      %v281 = vmul.f32 %v279, %v280
      %v282 = vsub.f32 %v273, %v281
      %v283 = vmul.f32 %v282, %v282
      %v284 = vsel %vm276, %v283, 0.0
      %285 = vadd.xlane.f32.xlu0 %v284
      %v286 = vpop.xlane.xlu0 %285
      %v287 = vmul.f32 %v286, %v280
      %v288 = vadd.f32 %v287, 1e-05
      %v289 = vrsqrt.pop %v288
      %v290 = vmul.f32 %v282, %v289
      %v292 = vlaneseq
      %v293 = vshrl.u32 %v292, 7
      %v294 = vsub.s32 0, %v293
      %v295 = vrot.slane %v274, %v294
      %v297 = vmul.f32 %v290, %v295
      %v299 = vlaneseq
      %v300 = vshrl.u32 %v299, 7
      %v301 = vsub.s32 0, %v300
      %v302 = vrot.slane %v275, %v301
      %v304 = vadd.f32 %v297, %v302
      %v305 = vpack.c.bf16 %v304, %v304
      %v306 = vld [vmem:[%s260] sm:$0xf]
      %v307 = vld [vmem:[%s260 + $0x4] sm:$0xf]
      %v308 = vld [vmem:[%s260 + $0x8] sm:$0xf]
      %v309 = vld [vmem:[%s260 + $0xc] sm:$0xf]
      %v310 = vld [vmem:[%s263] sm:$0x1]
      %v312 = vlaneseq
      %v313 = vshrl.u32 %v312, 7
      %v314 = vsub.s32 0, %v313
      %v315 = vrot.slane %v310, %v314
      %v321 = vunpack.c.l.b16 %v306
      %v322 = vunpack.c.l.b16 %v307
      %v323 = vunpack.c.l.b16 %v308
      %v324 = vunpack.c.l.b16 %v309
      %v325 = vpack.c.b16 %v322, %v321
      %v326 = vpack.c.b16 %v324, %v323
      %v330 = vsel %vm276, %v305, 0
      %332 = vmatprep.subr.bf16.mxu0 0
      %333 = vmatpush1.bf16.msra.mxu0 0
      %334 = vmatprep.subr.bf16.mxu0 0
      %335 = vmatpush1.bf16.msra.mxu0 0
      %336 = vmatprep.subr.bf16.mxu0 0
      %337 = vmatpush1.bf16.msra.mxu0 0
      %338 = vmatprep.subr.bf16.mxu0 0
      %339 = vmatpush1.bf16.msra.mxu0 0
      %340 = vmatprep.subr.bf16.mxu0 0
      %341 = vmatpush1.bf16.msra.mxu0 0
      %342 = vmatprep.subr.bf16.mxu0 0
      %343 = vmatpush1.bf16.msra.mxu0 0
      %344 = vmatprep.subr.bf16.mxu0 0
      %345 = vmatpush1.bf16.msra.mxu0 %v326
      %346 = vmatprep.subr.bf16.mxu0 0
      %347 = vmatpush1.bf16.msra.mxu0 %v325
      %348 = vmatprep.subr.bf16.mxu0 0
      %349 = vmatpush2.bf16.msra.mxu0 0
      %350 = vmatprep.subr.bf16.mxu0 0
      %351 = vmatpush2.bf16.msra.mxu0 0
      %352 = vmatprep.subr.bf16.mxu0 0
      %353 = vmatpush2.bf16.msra.mxu0 0
      %354 = vmatprep.subr.bf16.mxu0 0
      %355 = vmatpush2.bf16.msra.mxu0 0
      %356 = vmatprep.subr.bf16.mxu0 0
      %357 = vmatpush2.bf16.msra.mxu0 0
      %358 = vmatprep.subr.bf16.mxu0 0
      %359 = vmatpush2.bf16.msra.mxu0 0
      %360 = vmatprep.subr.bf16.mxu0 0
      %361 = vmatpush2.bf16.msra.mxu0 0
      %362 = vmatprep.subr.bf16.mxu0 0
      %363 = vmatpush2.bf16.msra.mxu0 0
      %364 = vmatprep.mubr.bf16.mxu0 0
      %365 = vmatmul.mubr.bf16.gmra.mxu0 %v330
      %v366 = vpop.f32.mrf.mxu0
      %v367 = vadd.f32 %v315, %v366
      %v368 = vpop.f32.mrf.mxu0
      %v369 = vpop.f32.mrf.mxu0
      %v370 = vpop.f32.mrf.mxu0
      %371 = vdwg.mxu0
      %vm372 = vcmask 326656
      %373 = vst.msk [vmem:[%s270] sm:$0xff] %vm372, %v367
      %p374 = scmp.lt.s32.totalorder %s20, 1
      %s375 = scalar_select %p374, %s20, 1
      %p376 = scmp.lt.s32.totalorder %s21, 0
      %s377 = scalar_select %p376, %s21, 0
      %s378 = sadd.s32 %s377, %s375
      %s379 = smul.addr %s378, 8
      %s380 = scalar_lea.vmem %s5, %s379
      // Predicated region
      $region41: #{_lambda_.23} parent=39 // pred_check
        %p381 = pneg %p168
      $region42: #{_lambda_.23} parent=39 // pred_check_branch
        %383 = sbr.rel (%p381) target = $region44
      $region43: #{_lambda_.23} parent=39 // pred_region
        _
      $region44: #{_lambda_.23} parent=39 // pred_fallthru
        _
    $region40: #{_lambda_.23} parent=5 // pred_fallthru
      _
    %p384 = scmp.le.s32.totalorder 2, %s11
    // Predicated region
    $region45: #{_lambda_.23} parent=5 // pred_check
      %p385 = pneg %p384
    $region46: #{_lambda_.23} parent=5 // pred_check_branch
      %387 = sbr.rel (%p385) target = $region48
    $region47: #{_lambda_.23} parent=5 // pred_region
      %s388 = ssub.s32 %s11, 2
      // Predicated region
      $region49: #{_lambda_.23} parent=47 // pred_check
        %p389 = pneg %p174
      $region50: #{_lambda_.23} parent=47 // pred_check_branch
        %391 = sbr.rel (%p389) target = $region52
      $region51: #{_lambda_.23} parent=47 // pred_region
        %p392 = scmp.lt.s32.totalorder %s22, 1
        %s393 = scalar_select %p392, %s22, 1
        %p394 = scmp.lt.s32.totalorder %s23, 0
        %s395 = scalar_select %p394, %s23, 0
        %s396 = sadd.s32 %s395, %s393
        %s397 = smul.addr %s396, 8
        %s398 = scalar_lea.vmem %s5, %s397
      $region52: #{_lambda_.23} parent=47 // pred_fallthru
        _
    $region48: #{_lambda_.23} parent=5 // pred_fallthru
      _
  $region6: #{_lambda_.23} parent=0 // loop_footer
    %s15 = sadd.s32 1, %s11
  $region7: #{_lambda_.23} parent=0 // loop_footer_branch
    %10 = sbr.rel target = $region3
  $region8: #{_lambda_.23} parent=0 // loop_exit
    _

// kernel: _lambda_.17
$region0: #{_lambda_.17}
  #allocation0 [shape = 'u32[]', space=smem, size = 0x4, offset = 0x4, fixed_abs, tag = 'smem constant byte address 0x4 - core index']
  #allocation1 [shape = 'u32[144,128]{1,0:T(1,128)}', space=vmem, size = 0x12000, scoped, tag = 'internal scratch']
  %s0 = inlined_call_operand.vmem [shape: bf16[2,8,32], index: 0, kind: input, shape index: {}]
  %s1 = inlined_call_operand.vmem [shape: bf16[32,32], index: 1, kind: input, shape index: {}]
  %s2 = inlined_call_operand.vmem [shape: f32[1,32], index: 2, kind: input, shape index: {}]
  %s3 = inlined_call_operand.vmem [shape: bf16[32,64], index: 3, kind: input, shape index: {}]
  %s4 = inlined_call_operand.vmem [shape: f32[1,64], index: 4, kind: input, shape index: {}]
  %s5 = inlined_call_operand.vmem [shape: bf16[32,32], index: 5, kind: input, shape index: {}]
  %s6 = inlined_call_operand.vmem [shape: f32[1,32], index: 6, kind: input, shape index: {}]
  %s7 = inlined_call_operand.vmem [shape: f32[1,32], index: 7, kind: input, shape index: {}]
  %s8 = inlined_call_operand.vmem [shape: f32[1,32], index: 8, kind: input, shape index: {}]
  %s9 = inlined_call_operand.vmem [shape: bf16[2,8,32], index: 9, kind: output, shape index: {}]
  %s10 = sld [smem:[#allocation0]]
  $region69: #{_lambda_.17} parent=0
    _
  %s12 = ssub.s32 1, %s10
  %s13 = scalar_select 0, %s12, %s10
  loop: start=0, step=1, limit=4
  $region2: #{_lambda_.17} parent=0 // loop_pre_header
    _
  $region3: #{_lambda_.17} parent=0 // loop_header
    %s15 = sphi 0, %s19
    %p16 = scmp.ge.s32.totalorder %s15, 4
    %s25 = sphi 0, %s27
    %s28 = sphi 0, %s25
    %s29 = sphi 0, %s28
    %s45 = sphi 0, %s29
    %s49 = sphi 0, %s49
    %s51 = sphi 0, %s49
    %s52 = sphi 0, %s51
    %s66 = sphi 0, %s52
    %s70 = sphi 0, %s70
    %s72 = sphi 0, %s70
    %s73 = sphi 0, %s72
    %s87 = sphi 0, %s73
    %s91 = sphi 0, %s91
    %s93 = sphi 0, %s91
    %s94 = sphi 0, %s93
    %s108 = sphi 0, %s94
    %s112 = sphi 0, %s112
    %s114 = sphi 0, %s112
    %s115 = sphi 0, %s114
    %s129 = sphi 0, %s115
    %s133 = sphi 0, %s133
    %s135 = sphi 0, %s133
    %s136 = sphi 0, %s135
    %s150 = sphi 0, %s136
    %s154 = sphi 0, %s154
    %s156 = sphi 0, %s154
    %s157 = sphi 0, %s156
    %s171 = sphi 0, %s157
    %s175 = sphi 0, %s175
    %s177 = sphi 0, %s175
    %s178 = sphi 0, %s177
    %s192 = sphi 0, %s178
    %s196 = sphi 0, %s196
    %s198 = sphi 0, %s196
    %s199 = sphi 0, %s198
    %s213 = sphi 0, %s199
    %s219 = sphi 0, %s221
    %s222 = sphi 0, %s219
    %s223 = sphi 0, %s222
    %s239 = sphi 0, %s223
  $region4: #{_lambda_.17} parent=0 // loop_header_branch
    %18 = sbr.rel (%p16) target = $region8
  $region5: #{_lambda_.17} parent=0 // loop_body
    %s20 = ssub.s32 %s15, 1
    %s21 = ssub.s32 %s15, 2
    %s22 = sadd.s32 %s15, 1
    %s23 = ssub.s32 %s15, %s22
    %p24 = scmp.eq.s32.totalorder %s23, 0
    %s26 = sadd.s32 %s25, 1
    %s27 = scalar_select %p24, %s25, %s26
    %p30 = pneg %p24
    %p31 = scmp.eq.s32.totalorder %s15, 1
    %p32 = por %p30, %p31
    %p33 = scmp.ne.s32.totalorder %s25, %s28
    %p34 = scmp.eq.s32.totalorder %s15, 0
    %p35 = por %p33, %p34
    %p36 = scmp.ne.s32.totalorder %s25, %s28
    %p37 = scmp.eq.s32.totalorder %s20, 1
    %p38 = por %p36, %p37
    %p39 = scmp.ne.s32.totalorder %s28, %s29
    %p40 = scmp.eq.s32.totalorder %s20, 0
    %p41 = por %p39, %p40
    %p42 = scmp.ne.s32.totalorder %s28, %s29
    %p43 = scmp.eq.s32.totalorder %s21, 1
    %p44 = por %p42, %p43
    %p46 = scmp.ne.s32.totalorder %s29, %s45
    %p47 = scmp.eq.s32.totalorder %s21, 0
    %p48 = por %p46, %p47
    %s50 = sadd.s32 %s49, 1
    %p53 = scmp.eq.s32.totalorder %s15, 1
    %p54 = scmp.ne.s32.totalorder %s49, %s51
    %p55 = scmp.eq.s32.totalorder %s15, 0
    %p56 = por %p54, %p55
    %p57 = scmp.ne.s32.totalorder %s49, %s51
    %p58 = scmp.eq.s32.totalorder %s20, 1
    %p59 = por %p57, %p58
    %p60 = scmp.ne.s32.totalorder %s51, %s52
    %p61 = scmp.eq.s32.totalorder %s20, 0
    %p62 = por %p60, %p61
    %p63 = scmp.ne.s32.totalorder %s51, %s52
    %p64 = scmp.eq.s32.totalorder %s21, 1
    %p65 = por %p63, %p64
    %p67 = scmp.ne.s32.totalorder %s52, %s66
    %p68 = scmp.eq.s32.totalorder %s21, 0
    %p69 = por %p67, %p68
    %s71 = sadd.s32 %s70, 1
    %p74 = scmp.eq.s32.totalorder %s15, 1
    %p75 = scmp.ne.s32.totalorder %s70, %s72
    %p76 = scmp.eq.s32.totalorder %s15, 0
    %p77 = por %p75, %p76
    %p78 = scmp.ne.s32.totalorder %s70, %s72
    %p79 = scmp.eq.s32.totalorder %s20, 1
    %p80 = por %p78, %p79
    %p81 = scmp.ne.s32.totalorder %s72, %s73
    %p82 = scmp.eq.s32.totalorder %s20, 0
    %p83 = por %p81, %p82
    %p84 = scmp.ne.s32.totalorder %s72, %s73
    %p85 = scmp.eq.s32.totalorder %s21, 1
    %p86 = por %p84, %p85
    %p88 = scmp.ne.s32.totalorder %s73, %s87
    %p89 = scmp.eq.s32.totalorder %s21, 0
    %p90 = por %p88, %p89
    %s92 = sadd.s32 %s91, 1
    %p95 = scmp.eq.s32.totalorder %s15, 1
    %p96 = scmp.ne.s32.totalorder %s91, %s93
    %p97 = scmp.eq.s32.totalorder %s15, 0
    %p98 = por %p96, %p97
    %p99 = scmp.ne.s32.totalorder %s91, %s93
    %p100 = scmp.eq.s32.totalorder %s20, 1
    %p101 = por %p99, %p100
    %p102 = scmp.ne.s32.totalorder %s93, %s94
    %p103 = scmp.eq.s32.totalorder %s20, 0
    %p104 = por %p102, %p103
    %p105 = scmp.ne.s32.totalorder %s93, %s94
    %p106 = scmp.eq.s32.totalorder %s21, 1
    %p107 = por %p105, %p106
    %p109 = scmp.ne.s32.totalorder %s94, %s108
    %p110 = scmp.eq.s32.totalorder %s21, 0
    %p111 = por %p109, %p110
    %s113 = sadd.s32 %s112, 1
    %p116 = scmp.eq.s32.totalorder %s15, 1
    %p117 = scmp.ne.s32.totalorder %s112, %s114
    %p118 = scmp.eq.s32.totalorder %s15, 0
    %p119 = por %p117, %p118
    %p120 = scmp.ne.s32.totalorder %s112, %s114
    %p121 = scmp.eq.s32.totalorder %s20, 1
    %p122 = por %p120, %p121
    %p123 = scmp.ne.s32.totalorder %s114, %s115
    %p124 = scmp.eq.s32.totalorder %s20, 0
    %p125 = por %p123, %p124
    %p126 = scmp.ne.s32.totalorder %s114, %s115
    %p127 = scmp.eq.s32.totalorder %s21, 1
    %p128 = por %p126, %p127
    %p130 = scmp.ne.s32.totalorder %s115, %s129
    %p131 = scmp.eq.s32.totalorder %s21, 0
    %p132 = por %p130, %p131
    %s134 = sadd.s32 %s133, 1
    %p137 = scmp.eq.s32.totalorder %s15, 1
    %p138 = scmp.ne.s32.totalorder %s133, %s135
    %p139 = scmp.eq.s32.totalorder %s15, 0
    %p140 = por %p138, %p139
    %p141 = scmp.ne.s32.totalorder %s133, %s135
    %p142 = scmp.eq.s32.totalorder %s20, 1
    %p143 = por %p141, %p142
    %p144 = scmp.ne.s32.totalorder %s135, %s136
    %p145 = scmp.eq.s32.totalorder %s20, 0
    %p146 = por %p144, %p145
    %p147 = scmp.ne.s32.totalorder %s135, %s136
    %p148 = scmp.eq.s32.totalorder %s21, 1
    %p149 = por %p147, %p148
    %p151 = scmp.ne.s32.totalorder %s136, %s150
    %p152 = scmp.eq.s32.totalorder %s21, 0
    %p153 = por %p151, %p152
    %s155 = sadd.s32 %s154, 1
    %p158 = scmp.eq.s32.totalorder %s15, 1
    %p159 = scmp.ne.s32.totalorder %s154, %s156
    %p160 = scmp.eq.s32.totalorder %s15, 0
    %p161 = por %p159, %p160
    %p162 = scmp.ne.s32.totalorder %s154, %s156
    %p163 = scmp.eq.s32.totalorder %s20, 1
    %p164 = por %p162, %p163
    %p165 = scmp.ne.s32.totalorder %s156, %s157
    %p166 = scmp.eq.s32.totalorder %s20, 0
    %p167 = por %p165, %p166
    %p168 = scmp.ne.s32.totalorder %s156, %s157
    %p169 = scmp.eq.s32.totalorder %s21, 1
    %p170 = por %p168, %p169
    %p172 = scmp.ne.s32.totalorder %s157, %s171
    %p173 = scmp.eq.s32.totalorder %s21, 0
    %p174 = por %p172, %p173
    %s176 = sadd.s32 %s175, 1
    %p179 = scmp.eq.s32.totalorder %s15, 1
    %p180 = scmp.ne.s32.totalorder %s175, %s177
    %p181 = scmp.eq.s32.totalorder %s15, 0
    %p182 = por %p180, %p181
    %p183 = scmp.ne.s32.totalorder %s175, %s177
    %p184 = scmp.eq.s32.totalorder %s20, 1
    %p185 = por %p183, %p184
    %p186 = scmp.ne.s32.totalorder %s177, %s178
    %p187 = scmp.eq.s32.totalorder %s20, 0
    %p188 = por %p186, %p187
    %p189 = scmp.ne.s32.totalorder %s177, %s178
    %p190 = scmp.eq.s32.totalorder %s21, 1
    %p191 = por %p189, %p190
    %p193 = scmp.ne.s32.totalorder %s178, %s192
    %p194 = scmp.eq.s32.totalorder %s21, 0
    %p195 = por %p193, %p194
    %s197 = sadd.s32 %s196, 1
    %p200 = scmp.eq.s32.totalorder %s15, 1
    %p201 = scmp.ne.s32.totalorder %s196, %s198
    %p202 = scmp.eq.s32.totalorder %s15, 0
    %p203 = por %p201, %p202
    %p204 = scmp.ne.s32.totalorder %s196, %s198
    %p205 = scmp.eq.s32.totalorder %s20, 1
    %p206 = por %p204, %p205
    %p207 = scmp.ne.s32.totalorder %s198, %s199
    %p208 = scmp.eq.s32.totalorder %s20, 0
    %p209 = por %p207, %p208
    %p210 = scmp.ne.s32.totalorder %s198, %s199
    %p211 = scmp.eq.s32.totalorder %s21, 1
    %p212 = por %p210, %p211
    %p214 = scmp.ne.s32.totalorder %s199, %s213
    %p215 = scmp.eq.s32.totalorder %s21, 0
    %p216 = por %p214, %p215
    %s217 = ssub.s32 %s15, %s22
    %p218 = scmp.eq.s32.totalorder %s217, 0
    %s220 = sadd.s32 %s219, 1
    %s221 = scalar_select %p218, %s219, %s220
    %p224 = pneg %p218
    %p225 = scmp.eq.s32.totalorder %s15, 1
    %p226 = por %p224, %p225
    %p227 = scmp.ne.s32.totalorder %s219, %s222
    %p228 = scmp.eq.s32.totalorder %s15, 0
    %p229 = por %p227, %p228
    %p230 = scmp.ne.s32.totalorder %s219, %s222
    %p231 = scmp.eq.s32.totalorder %s20, 1
    %p232 = por %p230, %p231
    %p233 = scmp.ne.s32.totalorder %s222, %s223
    %p234 = scmp.eq.s32.totalorder %s20, 0
    %p235 = por %p233, %p234
    %p236 = scmp.ne.s32.totalorder %s222, %s223
    %p237 = scmp.eq.s32.totalorder %s21, 1
    %p238 = por %p236, %p237
    %p240 = scmp.ne.s32.totalorder %s223, %s239
    %p241 = scmp.eq.s32.totalorder %s21, 0
    %p242 = por %p240, %p241
    %p243 = scmp.le.s32.totalorder 1, %s15
    %p244 = scmp.lt.s32.totalorder %s15, 3
    %p245 = pnand %p243, %p244
    %p246 = pneg %p245
    // Predicated region
    $region9: #{_lambda_.17} parent=5 // pred_check
      _
    $region10: #{_lambda_.17} parent=5 // pred_check_branch
      %248 = sbr.rel (%p245) target = $region12
    $region11: #{_lambda_.17} parent=5 // pred_region
      %s249 = ssub.s32 %s15, 1
      // Predicated region
      $region13: #{_lambda_.17} parent=11 // pred_check
        %p250 = pneg %p62
      $region14: #{_lambda_.17} parent=11 // pred_check_branch
        %252 = sbr.rel (%p250) target = $region16
      $region15: #{_lambda_.17} parent=11 // pred_region
        _
      $region16: #{_lambda_.17} parent=11 // pred_fallthru
        _
      // Predicated region
      $region17: #{_lambda_.17} parent=11 // pred_check
        %p253 = pneg %p83
      $region18: #{_lambda_.17} parent=11 // pred_check_branch
        %255 = sbr.rel (%p253) target = $region20
      $region19: #{_lambda_.17} parent=11 // pred_region
        _
      $region20: #{_lambda_.17} parent=11 // pred_fallthru
        _
      // Predicated region
      $region21: #{_lambda_.17} parent=11 // pred_check
        %p256 = pneg %p104
      $region22: #{_lambda_.17} parent=11 // pred_check_branch
        %258 = sbr.rel (%p256) target = $region24
      $region23: #{_lambda_.17} parent=11 // pred_region
        _
      $region24: #{_lambda_.17} parent=11 // pred_fallthru
        _
      // Predicated region
      $region25: #{_lambda_.17} parent=11 // pred_check
        %p259 = pneg %p125
      $region26: #{_lambda_.17} parent=11 // pred_check_branch
        %261 = sbr.rel (%p259) target = $region28
      $region27: #{_lambda_.17} parent=11 // pred_region
        _
      $region28: #{_lambda_.17} parent=11 // pred_fallthru
        _
      // Predicated region
      $region29: #{_lambda_.17} parent=11 // pred_check
        %p262 = pneg %p146
      $region30: #{_lambda_.17} parent=11 // pred_check_branch
        %264 = sbr.rel (%p262) target = $region32
      $region31: #{_lambda_.17} parent=11 // pred_region
        _
      $region32: #{_lambda_.17} parent=11 // pred_fallthru
        _
      // Predicated region
      $region33: #{_lambda_.17} parent=11 // pred_check
        %p265 = pneg %p167
      $region34: #{_lambda_.17} parent=11 // pred_check_branch
        %267 = sbr.rel (%p265) target = $region36
      $region35: #{_lambda_.17} parent=11 // pred_region
        _
      $region36: #{_lambda_.17} parent=11 // pred_fallthru
        _
      // Predicated region
      $region37: #{_lambda_.17} parent=11 // pred_check
        %p268 = pneg %p188
      $region38: #{_lambda_.17} parent=11 // pred_check_branch
        %270 = sbr.rel (%p268) target = $region40
      $region39: #{_lambda_.17} parent=11 // pred_region
        _
      $region40: #{_lambda_.17} parent=11 // pred_fallthru
        _
      // Predicated region
      $region41: #{_lambda_.17} parent=11 // pred_check
        %p271 = pneg %p209
      $region42: #{_lambda_.17} parent=11 // pred_check_branch
        %273 = sbr.rel (%p271) target = $region44
      $region43: #{_lambda_.17} parent=11 // pred_region
        _
      $region44: #{_lambda_.17} parent=11 // pred_fallthru
        _
    $region12: #{_lambda_.17} parent=5 // pred_fallthru
      _
    %p274 = scmp.lt.s32.totalorder %s15, 2
    // Predicated region
    $region45: #{_lambda_.17} parent=5 // pred_check
      %p275 = pneg %p274
    $region46: #{_lambda_.17} parent=5 // pred_check_branch
      %277 = sbr.rel (%p275) target = $region48
    $region47: #{_lambda_.17} parent=5 // pred_region
      // Predicated region
      $region49: #{_lambda_.17} parent=47 // pred_check
        %p278 = pneg %p35
      $region50: #{_lambda_.17} parent=47 // pred_check_branch
        %280 = sbr.rel (%p278) target = $region52
      $region51: #{_lambda_.17} parent=47 // pred_region
        %p281 = scmp.lt.s32.totalorder %s15, 1
        %s282 = scalar_select %p281, %s15, 1
        %s283 = smul.addr %s282, 4
        %s284 = scalar_lea.vmem %s0, %s283
      $region52: #{_lambda_.17} parent=47 // pred_fallthru
        _
    $region48: #{_lambda_.17} parent=5 // pred_fallthru
      _
    %p285 = scmp.le.s32.totalorder 1, %s15
    %p286 = scmp.lt.s32.totalorder %s15, 3
    %p287 = pnand %p285, %p286
    %p288 = pneg %p287
    // Predicated region
    $region53: #{_lambda_.17} parent=5 // pred_check
      _
    $region54: #{_lambda_.17} parent=5 // pred_check_branch
      %290 = sbr.rel (%p287) target = $region56
    $region55: #{_lambda_.17} parent=5 // pred_region
      %s291 = ssub.s32 %s15, 1
      %p292 = scmp.lt.s32.totalorder %s20, 1
      %s293 = scalar_select %p292, %s20, 1
      %s294 = smul.addr %s293, 4
      %s295 = scalar_lea.vmem %s0, %s294
      %p296 = pneg %p41
      %p297 = pneg %p38
      %p298 = pneg %p62
      %p299 = pneg %p59
      %p300 = pneg %p83
      %p301 = pneg %p80
      %p302 = pneg %p104
      %p303 = pneg %p101
      %p304 = pneg %p125
      %p305 = pneg %p122
      %p306 = pneg %p146
      %p307 = pneg %p143
      %p308 = pneg %p167
      %p309 = pneg %p164
      %p310 = pneg %p188
      %p311 = pneg %p185
      %p312 = pneg %p209
      %p313 = pneg %p206
      %p314 = pneg %p235
      %p315 = pneg %p232
      %p316 = scmp.lt.s32.totalorder %s20, 1
      %s317 = scalar_select %p316, %s20, 1
      %s318 = smul.addr %s317, 4
      %s319 = scalar_lea.vmem %s9, %s318
      %p320 = scmp.lt.s32.totalorder %s20, 1
      %s321 = scalar_select %p320, %s20, 1
      %s322 = smul.addr %s321, 4
      %s323 = scalar_lea.vmem %s0, %s322
      %p324 = scmp.lt.s32.totalorder %s20, 1
      %s325 = scalar_select %p324, %s20, 1
      %s326 = smul.addr %s325, 4
      %s327 = scalar_lea.vmem %s9, %s326
      %v329 = vld [vmem:[%s323] sm:$0xf]
      %v330 = vunpack.c.l.bf16 %v329
      %v331 = vld [vmem:[%s1] sm:$0xf]
      %v332 = vld [vmem:[%s1 + $0x4] sm:$0xf]
      %v333 = vld [vmem:[%s1 + $0x8] sm:$0xf]
      %v334 = vld [vmem:[%s1 + $0xc] sm:$0xf]
      %v335 = vld [vmem:[%s2] sm:$0x1]
      %v337 = vlaneseq
      %v338 = vshrl.u32 %v337, 7
      %v339 = vsub.s32 0, %v338
      %v340 = vrot.slane %v335, %v339
      %v346 = vunpack.c.l.b16 %v331
      %v347 = vunpack.c.l.b16 %v332
      %v348 = vunpack.c.l.b16 %v333
      %v349 = vunpack.c.l.b16 %v334
      %v350 = vpack.c.b16 %v347, %v346
      %v351 = vpack.c.b16 %v349, %v348
      %vm354 = vcmask 261120
      %v356 = vsel %vm354, %v329, 0
      %358 = vmatprep.subr.bf16.mxu0 0
      %359 = vmatpush1.bf16.msra.mxu0 0
      %360 = vmatprep.subr.bf16.mxu0 0
      %361 = vmatpush1.bf16.msra.mxu0 0
      %362 = vmatprep.subr.bf16.mxu0 0
      %363 = vmatpush1.bf16.msra.mxu0 0
      %364 = vmatprep.subr.bf16.mxu0 0
      %365 = vmatpush1.bf16.msra.mxu0 0
      %366 = vmatprep.subr.bf16.mxu0 0
      %367 = vmatpush1.bf16.msra.mxu0 0
      %368 = vmatprep.subr.bf16.mxu0 0
      %369 = vmatpush1.bf16.msra.mxu0 0
      %370 = vmatprep.subr.bf16.mxu0 0
      %371 = vmatpush1.bf16.msra.mxu0 %v351
      %372 = vmatprep.subr.bf16.mxu0 0
      %373 = vmatpush1.bf16.msra.mxu0 %v350
      %374 = vmatprep.subr.bf16.mxu0 0
      %375 = vmatpush2.bf16.msra.mxu0 0
      %376 = vmatprep.subr.bf16.mxu0 0
      %377 = vmatpush2.bf16.msra.mxu0 0
      %378 = vmatprep.subr.bf16.mxu0 0
      %379 = vmatpush2.bf16.msra.mxu0 0
      %380 = vmatprep.subr.bf16.mxu0 0
      %381 = vmatpush2.bf16.msra.mxu0 0
      %382 = vmatprep.subr.bf16.mxu0 0
      %383 = vmatpush2.bf16.msra.mxu0 0
      %384 = vmatprep.subr.bf16.mxu0 0
      %385 = vmatpush2.bf16.msra.mxu0 0
      %386 = vmatprep.subr.bf16.mxu0 0
      %387 = vmatpush2.bf16.msra.mxu0 0
      %388 = vmatprep.subr.bf16.mxu0 0
      %389 = vmatpush2.bf16.msra.mxu0 0
      %390 = vmatprep.mubr.bf16.mxu0 0
      %391 = vmatmul.mubr.bf16.gmra.mxu0 %v356
      %v392 = vpop.f32.mrf.mxu0
      %v393 = vadd.f32 %v340, %v392
      %v394 = vpop.f32.mrf.mxu0
      %v395 = vpop.f32.mrf.mxu0
      %v396 = vpop.f32.mrf.mxu0
      %397 = vdwg.mxu0
      %v398 = vld [vmem:[%s3] sm:$0xf]
      %v399 = vld [vmem:[%s3 + $0x4] sm:$0xf]
      %v400 = vld [vmem:[%s3 + $0x8] sm:$0xf]
      %v401 = vld [vmem:[%s3 + $0xc] sm:$0xf]
      %v402 = vld [vmem:[%s4] sm:$0x1]
      %v404 = vlaneseq
      %v405 = vshrl.u32 %v404, 7
      %v406 = vsub.s32 0, %v405
      %v407 = vrot.slane %v402, %v406
      %v413 = vunpack.c.l.b16 %v398
      %v414 = vunpack.c.l.b16 %v399
      %v415 = vunpack.c.l.b16 %v400
      %v416 = vunpack.c.l.b16 %v401
      %v417 = vpack.c.b16 %v414, %v413
      %v418 = vpack.c.b16 %v416, %v415
      %421 = vmatprep.subr.bf16.mxu0 0
      %422 = vmatpush1.bf16.msra.mxu0 0
      %423 = vmatprep.subr.bf16.mxu0 0
      %424 = vmatpush1.bf16.msra.mxu0 0
      %425 = vmatprep.subr.bf16.mxu0 0
      %426 = vmatpush1.bf16.msra.mxu0 0
      %427 = vmatprep.subr.bf16.mxu0 0
      %428 = vmatpush1.bf16.msra.mxu0 0
      %429 = vmatprep.subr.bf16.mxu0 0
      %430 = vmatpush1.bf16.msra.mxu0 0
      %431 = vmatprep.subr.bf16.mxu0 0
      %432 = vmatpush1.bf16.msra.mxu0 0
      %433 = vmatprep.subr.bf16.mxu0 0
      %434 = vmatpush1.bf16.msra.mxu0 %v418
      %435 = vmatprep.subr.bf16.mxu0 0
      %436 = vmatpush1.bf16.msra.mxu0 %v417
      %437 = vmatprep.subr.bf16.mxu0 0
      %438 = vmatpush2.bf16.msra.mxu0 0
      %439 = vmatprep.subr.bf16.mxu0 0
      %440 = vmatpush2.bf16.msra.mxu0 0
      %441 = vmatprep.subr.bf16.mxu0 0
      %442 = vmatpush2.bf16.msra.mxu0 0
      %443 = vmatprep.subr.bf16.mxu0 0
      %444 = vmatpush2.bf16.msra.mxu0 0
      %445 = vmatprep.subr.bf16.mxu0 0
      %446 = vmatpush2.bf16.msra.mxu0 0
      %447 = vmatprep.subr.bf16.mxu0 0
      %448 = vmatpush2.bf16.msra.mxu0 0
      %449 = vmatprep.subr.bf16.mxu0 0
      %450 = vmatpush2.bf16.msra.mxu0 0
      %451 = vmatprep.subr.bf16.mxu0 0
      %452 = vmatpush2.bf16.msra.mxu0 0
      %453 = vmatprep.mubr.bf16.mxu0 0
      %454 = vmatmul.mubr.bf16.gmra.mxu0 %v356
      %v455 = vpop.f32.mrf.mxu0
      %v456 = vadd.f32 %v407, %v455
      %v457 = vpop.f32.mrf.mxu0
      %v458 = vpop.f32.mrf.mxu0
      %v459 = vpop.f32.mrf.mxu0
      %460 = vdwg.mxu0
      %v461 = vlaneseq
      %v462 = vshrl.u32 %v461, 7
      %v463 = vlaneseq
      %v464 = vand.u32 %v463, 127
      %vm465 = vcmp.le.s32.totalorder %v464, %v462
      %v466 = vmul.f32 %v393, 0.5
      %v467 = vpack.c.bf16 %v466, %v466
      %v468 = vpack.c.bf16 %v456, %v456
      %vm469 = vcmask 31744
      %v471 = vsel %vm469, %v467, 0
      %v474 = vsel %vm469, %v468, 0
      %476 = vmatprep.subr.bf16.mxu0 0
      %477 = vmatpush1.bf16.xpose.msra.mxu0 0
      %478 = vmatprep.subr.bf16.mxu0 0
      %479 = vmatpush1.bf16.xpose.msra.mxu0 0
      %480 = vmatprep.subr.bf16.mxu0 0
      %481 = vmatpush1.bf16.xpose.msra.mxu0 0
      %482 = vmatprep.subr.bf16.mxu0 0
      %483 = vmatpush1.bf16.xpose.msra.mxu0 0
      %484 = vmatprep.subr.bf16.mxu0 0
      %485 = vmatpush1.bf16.xpose.msra.mxu0 0
      %486 = vmatprep.subr.bf16.mxu0 0
      %487 = vmatpush1.bf16.xpose.msra.mxu0 0
      %488 = vmatprep.subr.bf16.mxu0 0
      %489 = vmatpush1.bf16.xpose.msra.mxu0 0
      %490 = vmatprep.subr.bf16.mxu0 0
      %491 = vmatpush1.bf16.xpose.msra.mxu0 %v474
      %492 = vmatprep.subr.bf16.mxu0 0
      %493 = vmatpush2.bf16.xpose.msra.mxu0 0
      %494 = vmatprep.subr.bf16.mxu0 0
      %495 = vmatpush2.bf16.xpose.msra.mxu0 0
      %496 = vmatprep.subr.bf16.mxu0 0
      %497 = vmatpush2.bf16.xpose.msra.mxu0 0
      %498 = vmatprep.subr.bf16.mxu0 0
      %499 = vmatpush2.bf16.xpose.msra.mxu0 0
      %500 = vmatprep.subr.bf16.mxu0 0
      %501 = vmatpush2.bf16.xpose.msra.mxu0 0
      %502 = vmatprep.subr.bf16.mxu0 0
      %503 = vmatpush2.bf16.xpose.msra.mxu0 0
      %504 = vmatprep.subr.bf16.mxu0 0
      %505 = vmatpush2.bf16.xpose.msra.mxu0 0
      %506 = vmatprep.subr.bf16.mxu0 0
      %507 = vmatpush2.bf16.xpose.msra.mxu0 0
      %508 = vmatprep.mubr.bf16.mxu0 0
      %509 = vmatmul.mubr.bf16.gmra.mxu0 %v471
      %v510 = vpop.f32.mrf.mxu0
      %v511 = vadd.f32 0.0, %v510
      %v512 = vpop.f32.mrf.mxu0
      %v513 = vpop.f32.mrf.mxu0
      %v514 = vpop.f32.mrf.mxu0
      %515 = vdwg.mxu0
      %v516 = vsel %vm465, %v511, -inf
      %vm517 = vcmask 64512
      %v518 = vsel %vm517, %v516, -inf
      %519 = vmax.xlane.f32.xlu0 %v518
      %v520 = vpop.xlane.xlu0 %519
      %v521 = vsub.f32 %v516, %v520
      %v522 = vmul.f32 %v521, 1.442695
      %v523 = vpow.pop %v522
      %v524 = vsel %vm517, %v523, 0.0
      %525 = vadd.xlane.f32.xlu0 %v524
      %v526 = vpop.xlane.xlu0 %525
      %v527 = vrcp.pop %v526
      %v528 = vmul.f32 %v523, %v527
      %v529 = vpack.c.bf16 %v528, %v528
      %531 = vrot.lane.b32.xlu0 %v468, 96
      %v532 = vpop.permute.xlu0 %531
      %v534 = vsel %vm517, %v529, 0
      %vm536 = vcmask 1043456
      %v538 = vsel %vm536, %v532, 0
      %540 = vmatprep.subr.bf16.mxu0 0
      %541 = vmatpush1.bf16.msra.mxu0 0
      %542 = vmatprep.subr.bf16.mxu0 0
      %543 = vmatpush1.bf16.msra.mxu0 0
      %544 = vmatprep.subr.bf16.mxu0 0
      %545 = vmatpush1.bf16.msra.mxu0 0
      %546 = vmatprep.subr.bf16.mxu0 0
      %547 = vmatpush1.bf16.msra.mxu0 0
      %548 = vmatprep.subr.bf16.mxu0 0
      %549 = vmatpush1.bf16.msra.mxu0 0
      %550 = vmatprep.subr.bf16.mxu0 0
      %551 = vmatpush1.bf16.msra.mxu0 0
      %552 = vmatprep.subr.bf16.mxu0 0
      %553 = vmatpush1.bf16.msra.mxu0 0
      %554 = vmatprep.subr.bf16.mxu0 0
      %555 = vmatpush1.bf16.msra.mxu0 %v538
      %556 = vmatprep.subr.bf16.mxu0 0
      %557 = vmatpush2.bf16.msra.mxu0 0
      %558 = vmatprep.subr.bf16.mxu0 0
      %559 = vmatpush2.bf16.msra.mxu0 0
      %560 = vmatprep.subr.bf16.mxu0 0
      %561 = vmatpush2.bf16.msra.mxu0 0
      %562 = vmatprep.subr.bf16.mxu0 0
      %563 = vmatpush2.bf16.msra.mxu0 0
      %564 = vmatprep.subr.bf16.mxu0 0
      %565 = vmatpush2.bf16.msra.mxu0 0
      %566 = vmatprep.subr.bf16.mxu0 0
      %567 = vmatpush2.bf16.msra.mxu0 0
      %568 = vmatprep.subr.bf16.mxu0 0
      %569 = vmatpush2.bf16.msra.mxu0 0
      %570 = vmatprep.subr.bf16.mxu0 0
      %571 = vmatpush2.bf16.msra.mxu0 0
      %572 = vmatprep.mubr.bf16.mxu0 0
      %573 = vmatmul.mubr.bf16.gmra.mxu0 %v534
      %v574 = vpop.f32.mrf.mxu0
      %v575 = vadd.f32 0.0, %v574
      %v576 = vpop.f32.mrf.mxu0
      %v577 = vpop.f32.mrf.mxu0
      %v578 = vpop.f32.mrf.mxu0
      %579 = vdwg.mxu0
      %581 = vrot.lane.b32.xlu0 %v467, 124
      %v582 = vpop.permute.xlu0 %581
      %583 = vrot.lane.b32.xlu0 %v468, 124
      %v584 = vpop.permute.xlu0 %583
      %v586 = vsel %vm469, %v582, 0
      %v589 = vsel %vm469, %v584, 0
      %591 = vmatprep.subr.bf16.mxu0 0
      %592 = vmatpush1.bf16.xpose.msra.mxu0 0
      %593 = vmatprep.subr.bf16.mxu0 0
      %594 = vmatpush1.bf16.xpose.msra.mxu0 0
      %595 = vmatprep.subr.bf16.mxu0 0
      %596 = vmatpush1.bf16.xpose.msra.mxu0 0
      %597 = vmatprep.subr.bf16.mxu0 0
      %598 = vmatpush1.bf16.xpose.msra.mxu0 0
      %599 = vmatprep.subr.bf16.mxu0 0
      %600 = vmatpush1.bf16.xpose.msra.mxu0 0
      %601 = vmatprep.subr.bf16.mxu0 0
      %602 = vmatpush1.bf16.xpose.msra.mxu0 0
      %603 = vmatprep.subr.bf16.mxu0 0
      %604 = vmatpush1.bf16.xpose.msra.mxu0 0
      %605 = vmatprep.subr.bf16.mxu0 0
      %606 = vmatpush1.bf16.xpose.msra.mxu0 %v589
      %607 = vmatprep.subr.bf16.mxu0 0
      %608 = vmatpush2.bf16.xpose.msra.mxu0 0
      %609 = vmatprep.subr.bf16.mxu0 0
      %610 = vmatpush2.bf16.xpose.msra.mxu0 0
      %611 = vmatprep.subr.bf16.mxu0 0
      %612 = vmatpush2.bf16.xpose.msra.mxu0 0
      %613 = vmatprep.subr.bf16.mxu0 0
      %614 = vmatpush2.bf16.xpose.msra.mxu0 0
      %615 = vmatprep.subr.bf16.mxu0 0
      %616 = vmatpush2.bf16.xpose.msra.mxu0 0
      %617 = vmatprep.subr.bf16.mxu0 0
      %618 = vmatpush2.bf16.xpose.msra.mxu0 0
      %619 = vmatprep.subr.bf16.mxu0 0
      %620 = vmatpush2.bf16.xpose.msra.mxu0 0
      %621 = vmatprep.subr.bf16.mxu0 0
      %622 = vmatpush2.bf16.xpose.msra.mxu0 0
      %623 = vmatprep.mubr.bf16.mxu0 0
      %624 = vmatmul.mubr.bf16.gmra.mxu0 %v586
      %v625 = vpop.f32.mrf.mxu0
      %v626 = vadd.f32 0.0, %v625
      %v627 = vpop.f32.mrf.mxu0
      %v628 = vpop.f32.mrf.mxu0
      %v629 = vpop.f32.mrf.mxu0
      %630 = vdwg.mxu0
      %v631 = vsel %vm465, %v626, -inf
      %v632 = vsel %vm517, %v631, -inf
      %633 = vmax.xlane.f32.xlu0 %v632
      %v634 = vpop.xlane.xlu0 %633
      %v635 = vsub.f32 %v631, %v634
      %v636 = vmul.f32 %v635, 1.442695
      %v637 = vpow.pop %v636
      %v638 = vsel %vm517, %v637, 0.0
      %639 = vadd.xlane.f32.xlu0 %v638
      %v640 = vpop.xlane.xlu0 %639
      %v641 = vrcp.pop %v640
      %v642 = vmul.f32 %v637, %v641
      %v643 = vpack.c.bf16 %v642, %v642
      %644 = vrot.lane.b32.xlu0 %v468, 92
      %v645 = vpop.permute.xlu0 %644
      %v647 = vsel %vm517, %v643, 0
      %v650 = vsel %vm536, %v645, 0
      %652 = vmatprep.subr.bf16.mxu0 0
      %653 = vmatpush1.bf16.msra.mxu0 0
      %654 = vmatprep.subr.bf16.mxu0 0
      %655 = vmatpush1.bf16.msra.mxu0 0
      %656 = vmatprep.subr.bf16.mxu0 0
      %657 = vmatpush1.bf16.msra.mxu0 0
      %658 = vmatprep.subr.bf16.mxu0 0
      %659 = vmatpush1.bf16.msra.mxu0 0
      %660 = vmatprep.subr.bf16.mxu0 0
      %661 = vmatpush1.bf16.msra.mxu0 0
      %662 = vmatprep.subr.bf16.mxu0 0
      %663 = vmatpush1.bf16.msra.mxu0 0
      %664 = vmatprep.subr.bf16.mxu0 0
      %665 = vmatpush1.bf16.msra.mxu0 0
      %666 = vmatprep.subr.bf16.mxu0 0
      %667 = vmatpush1.bf16.msra.mxu0 %v650
      %668 = vmatprep.subr.bf16.mxu0 0
      %669 = vmatpush2.bf16.msra.mxu0 0
      %670 = vmatprep.subr.bf16.mxu0 0
      %671 = vmatpush2.bf16.msra.mxu0 0
      %672 = vmatprep.subr.bf16.mxu0 0
      %673 = vmatpush2.bf16.msra.mxu0 0
      %674 = vmatprep.subr.bf16.mxu0 0
      %675 = vmatpush2.bf16.msra.mxu0 0
      %676 = vmatprep.subr.bf16.mxu0 0
      %677 = vmatpush2.bf16.msra.mxu0 0
      %678 = vmatprep.subr.bf16.mxu0 0
      %679 = vmatpush2.bf16.msra.mxu0 0
      %680 = vmatprep.subr.bf16.mxu0 0
      %681 = vmatpush2.bf16.msra.mxu0 0
      %682 = vmatprep.subr.bf16.mxu0 0
      %683 = vmatpush2.bf16.msra.mxu0 0
      %684 = vmatprep.mubr.bf16.mxu0 0
      %685 = vmatmul.mubr.bf16.gmra.mxu0 %v647
      %v686 = vpop.f32.mrf.mxu0
      %v687 = vadd.f32 0.0, %v686
      %v688 = vpop.f32.mrf.mxu0
      %v689 = vpop.f32.mrf.mxu0
      %v690 = vpop.f32.mrf.mxu0
      %691 = vdwg.mxu0
      %692 = vrot.lane.b32.xlu0 %v467, 120
      %v693 = vpop.permute.xlu0 %692
      %694 = vrot.lane.b32.xlu0 %v468, 120
      %v695 = vpop.permute.xlu0 %694
      %v697 = vsel %vm469, %v693, 0
      %v700 = vsel %vm469, %v695, 0
      %702 = vmatprep.subr.bf16.mxu0 0
      %703 = vmatpush1.bf16.xpose.msra.mxu0 0
      %704 = vmatprep.subr.bf16.mxu0 0
      %705 = vmatpush1.bf16.xpose.msra.mxu0 0
      %706 = vmatprep.subr.bf16.mxu0 0
      %707 = vmatpush1.bf16.xpose.msra.mxu0 0
      %708 = vmatprep.subr.bf16.mxu0 0
      %709 = vmatpush1.bf16.xpose.msra.mxu0 0
      %710 = vmatprep.subr.bf16.mxu0 0
      %711 = vmatpush1.bf16.xpose.msra.mxu0 0
      %712 = vmatprep.subr.bf16.mxu0 0
      %713 = vmatpush1.bf16.xpose.msra.mxu0 0
      %714 = vmatprep.subr.bf16.mxu0 0
      %715 = vmatpush1.bf16.xpose.msra.mxu0 0
      %716 = vmatprep.subr.bf16.mxu0 0
      %717 = vmatpush1.bf16.xpose.msra.mxu0 %v700
      %718 = vmatprep.subr.bf16.mxu0 0
      %719 = vmatpush2.bf16.xpose.msra.mxu0 0
      %720 = vmatprep.subr.bf16.mxu0 0
      %721 = vmatpush2.bf16.xpose.msra.mxu0 0
      %722 = vmatprep.subr.bf16.mxu0 0
      %723 = vmatpush2.bf16.xpose.msra.mxu0 0
      %724 = vmatprep.subr.bf16.mxu0 0
      %725 = vmatpush2.bf16.xpose.msra.mxu0 0
      %726 = vmatprep.subr.bf16.mxu0 0
      %727 = vmatpush2.bf16.xpose.msra.mxu0 0
      %728 = vmatprep.subr.bf16.mxu0 0
      %729 = vmatpush2.bf16.xpose.msra.mxu0 0
      %730 = vmatprep.subr.bf16.mxu0 0
      %731 = vmatpush2.bf16.xpose.msra.mxu0 0
      %732 = vmatprep.subr.bf16.mxu0 0
      %733 = vmatpush2.bf16.xpose.msra.mxu0 0
      %734 = vmatprep.mubr.bf16.mxu0 0
      %735 = vmatmul.mubr.bf16.gmra.mxu0 %v697
      %v736 = vpop.f32.mrf.mxu0
      %v737 = vadd.f32 0.0, %v736
      %v738 = vpop.f32.mrf.mxu0
      %v739 = vpop.f32.mrf.mxu0
      %v740 = vpop.f32.mrf.mxu0
      %741 = vdwg.mxu0
      %v742 = vsel %vm465, %v737, -inf
      %v743 = vsel %vm517, %v742, -inf
      %744 = vmax.xlane.f32.xlu0 %v743
      %v745 = vpop.xlane.xlu0 %744
      %v746 = vsub.f32 %v742, %v745
      %v747 = vmul.f32 %v746, 1.442695
      %v748 = vpow.pop %v747
      %v749 = vsel %vm517, %v748, 0.0
      %750 = vadd.xlane.f32.xlu0 %v749
      %v751 = vpop.xlane.xlu0 %750
      %v752 = vrcp.pop %v751
      %v753 = vmul.f32 %v748, %v752
      %v754 = vpack.c.bf16 %v753, %v753
      %755 = vrot.lane.b32.xlu0 %v468, 88
      %v756 = vpop.permute.xlu0 %755
      %v758 = vsel %vm517, %v754, 0
      %v761 = vsel %vm536, %v756, 0
      %763 = vmatprep.subr.bf16.mxu0 0
      %764 = vmatpush1.bf16.msra.mxu0 0
      %765 = vmatprep.subr.bf16.mxu0 0
      %766 = vmatpush1.bf16.msra.mxu0 0
      %767 = vmatprep.subr.bf16.mxu0 0
      %768 = vmatpush1.bf16.msra.mxu0 0
      %769 = vmatprep.subr.bf16.mxu0 0
      %770 = vmatpush1.bf16.msra.mxu0 0
      %771 = vmatprep.subr.bf16.mxu0 0
      %772 = vmatpush1.bf16.msra.mxu0 0
      %773 = vmatprep.subr.bf16.mxu0 0
      %774 = vmatpush1.bf16.msra.mxu0 0
      %775 = vmatprep.subr.bf16.mxu0 0
      %776 = vmatpush1.bf16.msra.mxu0 0
      %777 = vmatprep.subr.bf16.mxu0 0
      %778 = vmatpush1.bf16.msra.mxu0 %v761
      %779 = vmatprep.subr.bf16.mxu0 0
      %780 = vmatpush2.bf16.msra.mxu0 0
      %781 = vmatprep.subr.bf16.mxu0 0
      %782 = vmatpush2.bf16.msra.mxu0 0
      %783 = vmatprep.subr.bf16.mxu0 0
      %784 = vmatpush2.bf16.msra.mxu0 0
      %785 = vmatprep.subr.bf16.mxu0 0
      %786 = vmatpush2.bf16.msra.mxu0 0
      %787 = vmatprep.subr.bf16.mxu0 0
      %788 = vmatpush2.bf16.msra.mxu0 0
      %789 = vmatprep.subr.bf16.mxu0 0
      %790 = vmatpush2.bf16.msra.mxu0 0
      %791 = vmatprep.subr.bf16.mxu0 0
      %792 = vmatpush2.bf16.msra.mxu0 0
      %793 = vmatprep.subr.bf16.mxu0 0
      %794 = vmatpush2.bf16.msra.mxu0 0
      %795 = vmatprep.mubr.bf16.mxu0 0
      %796 = vmatmul.mubr.bf16.gmra.mxu0 %v758
      %v797 = vpop.f32.mrf.mxu0
      %v798 = vadd.f32 0.0, %v797
      %v799 = vpop.f32.mrf.mxu0
      %v800 = vpop.f32.mrf.mxu0
      %v801 = vpop.f32.mrf.mxu0
      %802 = vdwg.mxu0
      %803 = vrot.lane.b32.xlu0 %v467, 116
      %v804 = vpop.permute.xlu0 %803
      %805 = vrot.lane.b32.xlu0 %v468, 116
      %v806 = vpop.permute.xlu0 %805
      %v808 = vsel %vm469, %v804, 0
      %v811 = vsel %vm469, %v806, 0
      %813 = vmatprep.subr.bf16.mxu0 0
      %814 = vmatpush1.bf16.xpose.msra.mxu0 0
      %815 = vmatprep.subr.bf16.mxu0 0
      %816 = vmatpush1.bf16.xpose.msra.mxu0 0
      %817 = vmatprep.subr.bf16.mxu0 0
      %818 = vmatpush1.bf16.xpose.msra.mxu0 0
      %819 = vmatprep.subr.bf16.mxu0 0
      %820 = vmatpush1.bf16.xpose.msra.mxu0 0
      %821 = vmatprep.subr.bf16.mxu0 0
      %822 = vmatpush1.bf16.xpose.msra.mxu0 0
      %823 = vmatprep.subr.bf16.mxu0 0
      %824 = vmatpush1.bf16.xpose.msra.mxu0 0
      %825 = vmatprep.subr.bf16.mxu0 0
      %826 = vmatpush1.bf16.xpose.msra.mxu0 0
      %827 = vmatprep.subr.bf16.mxu0 0
      %828 = vmatpush1.bf16.xpose.msra.mxu0 %v811
      %829 = vmatprep.subr.bf16.mxu0 0
      %830 = vmatpush2.bf16.xpose.msra.mxu0 0
      %831 = vmatprep.subr.bf16.mxu0 0
      %832 = vmatpush2.bf16.xpose.msra.mxu0 0
      %833 = vmatprep.subr.bf16.mxu0 0
      %834 = vmatpush2.bf16.xpose.msra.mxu0 0
      %835 = vmatprep.subr.bf16.mxu0 0
      %836 = vmatpush2.bf16.xpose.msra.mxu0 0
      %837 = vmatprep.subr.bf16.mxu0 0
      %838 = vmatpush2.bf16.xpose.msra.mxu0 0
      %839 = vmatprep.subr.bf16.mxu0 0
      %840 = vmatpush2.bf16.xpose.msra.mxu0 0
      %841 = vmatprep.subr.bf16.mxu0 0
      %842 = vmatpush2.bf16.xpose.msra.mxu0 0
      %843 = vmatprep.subr.bf16.mxu0 0
      %844 = vmatpush2.bf16.xpose.msra.mxu0 0
      %845 = vmatprep.mubr.bf16.mxu0 0
      %846 = vmatmul.mubr.bf16.gmra.mxu0 %v808
      %v847 = vpop.f32.mrf.mxu0
      %v848 = vadd.f32 0.0, %v847
      %v849 = vpop.f32.mrf.mxu0
      %v850 = vpop.f32.mrf.mxu0
      %v851 = vpop.f32.mrf.mxu0
      %852 = vdwg.mxu0
      %v853 = vsel %vm465, %v848, -inf
      %v854 = vsel %vm517, %v853, -inf
      %855 = vmax.xlane.f32.xlu0 %v854
      %v856 = vpop.xlane.xlu0 %855
      %v857 = vsub.f32 %v853, %v856
      %v858 = vmul.f32 %v857, 1.442695
      %v859 = vpow.pop %v858
      %v860 = vsel %vm517, %v859, 0.0
      %861 = vadd.xlane.f32.xlu0 %v860
      %v862 = vpop.xlane.xlu0 %861
      %v863 = vrcp.pop %v862
      %v864 = vmul.f32 %v859, %v863
      %v865 = vpack.c.bf16 %v864, %v864
      %866 = vrot.lane.b32.xlu0 %v468, 84
      %v867 = vpop.permute.xlu0 %866
      %v869 = vsel %vm517, %v865, 0
      %v872 = vsel %vm536, %v867, 0
      %874 = vmatprep.subr.bf16.mxu0 0
      %875 = vmatpush1.bf16.msra.mxu0 0
      %876 = vmatprep.subr.bf16.mxu0 0
      %877 = vmatpush1.bf16.msra.mxu0 0
      %878 = vmatprep.subr.bf16.mxu0 0
      %879 = vmatpush1.bf16.msra.mxu0 0
      %880 = vmatprep.subr.bf16.mxu0 0
      %881 = vmatpush1.bf16.msra.mxu0 0
      %882 = vmatprep.subr.bf16.mxu0 0
      %883 = vmatpush1.bf16.msra.mxu0 0
      %884 = vmatprep.subr.bf16.mxu0 0
      %885 = vmatpush1.bf16.msra.mxu0 0
      %886 = vmatprep.subr.bf16.mxu0 0
      %887 = vmatpush1.bf16.msra.mxu0 0
      %888 = vmatprep.subr.bf16.mxu0 0
      %889 = vmatpush1.bf16.msra.mxu0 %v872
      %890 = vmatprep.subr.bf16.mxu0 0
      %891 = vmatpush2.bf16.msra.mxu0 0
      %892 = vmatprep.subr.bf16.mxu0 0
      %893 = vmatpush2.bf16.msra.mxu0 0
      %894 = vmatprep.subr.bf16.mxu0 0
      %895 = vmatpush2.bf16.msra.mxu0 0
      %896 = vmatprep.subr.bf16.mxu0 0
      %897 = vmatpush2.bf16.msra.mxu0 0
      %898 = vmatprep.subr.bf16.mxu0 0
      %899 = vmatpush2.bf16.msra.mxu0 0
      %900 = vmatprep.subr.bf16.mxu0 0
      %901 = vmatpush2.bf16.msra.mxu0 0
      %902 = vmatprep.subr.bf16.mxu0 0
      %903 = vmatpush2.bf16.msra.mxu0 0
      %904 = vmatprep.subr.bf16.mxu0 0
      %905 = vmatpush2.bf16.msra.mxu0 0
      %906 = vmatprep.mubr.bf16.mxu0 0
      %907 = vmatmul.mubr.bf16.gmra.mxu0 %v869
      %v908 = vpop.f32.mrf.mxu0
      %v909 = vadd.f32 0.0, %v908
      %v910 = vpop.f32.mrf.mxu0
      %v911 = vpop.f32.mrf.mxu0
      %v912 = vpop.f32.mrf.mxu0
      %913 = vdwg.mxu0
      %914 = vrot.lane.b32.xlu0 %v467, 112
      %v915 = vpop.permute.xlu0 %914
      %916 = vrot.lane.b32.xlu0 %v468, 112
      %v917 = vpop.permute.xlu0 %916
      %v919 = vsel %vm469, %v915, 0
      %v922 = vsel %vm469, %v917, 0
      %924 = vmatprep.subr.bf16.mxu0 0
      %925 = vmatpush1.bf16.xpose.msra.mxu0 0
      %926 = vmatprep.subr.bf16.mxu0 0
      %927 = vmatpush1.bf16.xpose.msra.mxu0 0
      %928 = vmatprep.subr.bf16.mxu0 0
      %929 = vmatpush1.bf16.xpose.msra.mxu0 0
      %930 = vmatprep.subr.bf16.mxu0 0
      %931 = vmatpush1.bf16.xpose.msra.mxu0 0
      %932 = vmatprep.subr.bf16.mxu0 0
      %933 = vmatpush1.bf16.xpose.msra.mxu0 0
      %934 = vmatprep.subr.bf16.mxu0 0
      %935 = vmatpush1.bf16.xpose.msra.mxu0 0
      %936 = vmatprep.subr.bf16.mxu0 0
      %937 = vmatpush1.bf16.xpose.msra.mxu0 0
      %938 = vmatprep.subr.bf16.mxu0 0
      %939 = vmatpush1.bf16.xpose.msra.mxu0 %v922
      %940 = vmatprep.subr.bf16.mxu0 0
      %941 = vmatpush2.bf16.xpose.msra.mxu0 0
      %942 = vmatprep.subr.bf16.mxu0 0
      %943 = vmatpush2.bf16.xpose.msra.mxu0 0
      %944 = vmatprep.subr.bf16.mxu0 0
      %945 = vmatpush2.bf16.xpose.msra.mxu0 0
      %946 = vmatprep.subr.bf16.mxu0 0
      %947 = vmatpush2.bf16.xpose.msra.mxu0 0
      %948 = vmatprep.subr.bf16.mxu0 0
      %949 = vmatpush2.bf16.xpose.msra.mxu0 0
      %950 = vmatprep.subr.bf16.mxu0 0
      %951 = vmatpush2.bf16.xpose.msra.mxu0 0
      %952 = vmatprep.subr.bf16.mxu0 0
      %953 = vmatpush2.bf16.xpose.msra.mxu0 0
      %954 = vmatprep.subr.bf16.mxu0 0
      %955 = vmatpush2.bf16.xpose.msra.mxu0 0
      %956 = vmatprep.mubr.bf16.mxu0 0
      %957 = vmatmul.mubr.bf16.gmra.mxu0 %v919
      %v958 = vpop.f32.mrf.mxu0
      %v959 = vadd.f32 0.0, %v958
      %v960 = vpop.f32.mrf.mxu0
      %v961 = vpop.f32.mrf.mxu0
      %v962 = vpop.f32.mrf.mxu0
      %963 = vdwg.mxu0
      %v964 = vsel %vm465, %v959, -inf
      %v965 = vsel %vm517, %v964, -inf
      %966 = vmax.xlane.f32.xlu0 %v965
      %v967 = vpop.xlane.xlu0 %966
      %v968 = vsub.f32 %v964, %v967
      %v969 = vmul.f32 %v968, 1.442695
      %v970 = vpow.pop %v969
      %v971 = vsel %vm517, %v970, 0.0
      %972 = vadd.xlane.f32.xlu0 %v971
      %v973 = vpop.xlane.xlu0 %972
      %v974 = vrcp.pop %v973
      %v975 = vmul.f32 %v970, %v974
      %v976 = vpack.c.bf16 %v975, %v975
      %977 = vrot.lane.b32.xlu0 %v468, 80
      %v978 = vpop.permute.xlu0 %977
      %v980 = vsel %vm517, %v976, 0
      %v983 = vsel %vm536, %v978, 0
      %985 = vmatprep.subr.bf16.mxu0 0
      %986 = vmatpush1.bf16.msra.mxu0 0
      %987 = vmatprep.subr.bf16.mxu0 0
      %988 = vmatpush1.bf16.msra.mxu0 0
      %989 = vmatprep.subr.bf16.mxu0 0
      %990 = vmatpush1.bf16.msra.mxu0 0
      %991 = vmatprep.subr.bf16.mxu0 0
      %992 = vmatpush1.bf16.msra.mxu0 0
      %993 = vmatprep.subr.bf16.mxu0 0
      %994 = vmatpush1.bf16.msra.mxu0 0
      %995 = vmatprep.subr.bf16.mxu0 0
      %996 = vmatpush1.bf16.msra.mxu0 0
      %997 = vmatprep.subr.bf16.mxu0 0
      %998 = vmatpush1.bf16.msra.mxu0 0
      %999 = vmatprep.subr.bf16.mxu0 0
      %1000 = vmatpush1.bf16.msra.mxu0 %v983
      %1001 = vmatprep.subr.bf16.mxu0 0
      %1002 = vmatpush2.bf16.msra.mxu0 0
      %1003 = vmatprep.subr.bf16.mxu0 0
      %1004 = vmatpush2.bf16.msra.mxu0 0
      %1005 = vmatprep.subr.bf16.mxu0 0
      %1006 = vmatpush2.bf16.msra.mxu0 0
      %1007 = vmatprep.subr.bf16.mxu0 0
      %1008 = vmatpush2.bf16.msra.mxu0 0
      %1009 = vmatprep.subr.bf16.mxu0 0
      %1010 = vmatpush2.bf16.msra.mxu0 0
      %1011 = vmatprep.subr.bf16.mxu0 0
      %1012 = vmatpush2.bf16.msra.mxu0 0
      %1013 = vmatprep.subr.bf16.mxu0 0
      %1014 = vmatpush2.bf16.msra.mxu0 0
      %1015 = vmatprep.subr.bf16.mxu0 0
      %1016 = vmatpush2.bf16.msra.mxu0 0
      %1017 = vmatprep.mubr.bf16.mxu0 0
      %1018 = vmatmul.mubr.bf16.gmra.mxu0 %v980
      %v1019 = vpop.f32.mrf.mxu0
      %v1020 = vadd.f32 0.0, %v1019
      %v1021 = vpop.f32.mrf.mxu0
      %v1022 = vpop.f32.mrf.mxu0
      %v1023 = vpop.f32.mrf.mxu0
      %1024 = vdwg.mxu0
      %1025 = vrot.lane.b32.xlu0 %v467, 108
      %v1026 = vpop.permute.xlu0 %1025
      %1027 = vrot.lane.b32.xlu0 %v468, 108
      %v1028 = vpop.permute.xlu0 %1027
      %v1030 = vsel %vm469, %v1026, 0
      %v1033 = vsel %vm469, %v1028, 0
      %1035 = vmatprep.subr.bf16.mxu0 0
      %1036 = vmatpush1.bf16.xpose.msra.mxu0 0
      %1037 = vmatprep.subr.bf16.mxu0 0
      %1038 = vmatpush1.bf16.xpose.msra.mxu0 0
      %1039 = vmatprep.subr.bf16.mxu0 0
      %1040 = vmatpush1.bf16.xpose.msra.mxu0 0
      %1041 = vmatprep.subr.bf16.mxu0 0
      %1042 = vmatpush1.bf16.xpose.msra.mxu0 0
      %1043 = vmatprep.subr.bf16.mxu0 0
      %1044 = vmatpush1.bf16.xpose.msra.mxu0 0
      %1045 = vmatprep.subr.bf16.mxu0 0
      %1046 = vmatpush1.bf16.xpose.msra.mxu0 0
      %1047 = vmatprep.subr.bf16.mxu0 0
      %1048 = vmatpush1.bf16.xpose.msra.mxu0 0
      %1049 = vmatprep.subr.bf16.mxu0 0
      %1050 = vmatpush1.bf16.xpose.msra.mxu0 %v1033
      %1051 = vmatprep.subr.bf16.mxu0 0
      %1052 = vmatpush2.bf16.xpose.msra.mxu0 0
      %1053 = vmatprep.subr.bf16.mxu0 0
      %1054 = vmatpush2.bf16.xpose.msra.mxu0 0
      %1055 = vmatprep.subr.bf16.mxu0 0
      %1056 = vmatpush2.bf16.xpose.msra.mxu0 0
      %1057 = vmatprep.subr.bf16.mxu0 0
      %1058 = vmatpush2.bf16.xpose.msra.mxu0 0
      %1059 = vmatprep.subr.bf16.mxu0 0
      %1060 = vmatpush2.bf16.xpose.msra.mxu0 0
      %1061 = vmatprep.subr.bf16.mxu0 0
      %1062 = vmatpush2.bf16.xpose.msra.mxu0 0
      %1063 = vmatprep.subr.bf16.mxu0 0
      %1064 = vmatpush2.bf16.xpose.msra.mxu0 0
      %1065 = vmatprep.subr.bf16.mxu0 0
      %1066 = vmatpush2.bf16.xpose.msra.mxu0 0
      %1067 = vmatprep.mubr.bf16.mxu0 0
      %1068 = vmatmul.mubr.bf16.gmra.mxu0 %v1030
      %v1069 = vpop.f32.mrf.mxu0
      %v1070 = vadd.f32 0.0, %v1069
      %v1071 = vpop.f32.mrf.mxu0
      %v1072 = vpop.f32.mrf.mxu0
      %v1073 = vpop.f32.mrf.mxu0
      %1074 = vdwg.mxu0
      %v1075 = vsel %vm465, %v1070, -inf
      %v1076 = vsel %vm517, %v1075, -inf
      %1077 = vmax.xlane.f32.xlu0 %v1076
      %v1078 = vpop.xlane.xlu0 %1077
      %v1079 = vsub.f32 %v1075, %v1078
      %v1080 = vmul.f32 %v1079, 1.442695
      %v1081 = vpow.pop %v1080
      %v1082 = vsel %vm517, %v1081, 0.0
      %1083 = vadd.xlane.f32.xlu0 %v1082
      %v1084 = vpop.xlane.xlu0 %1083
      %v1085 = vrcp.pop %v1084
      %v1086 = vmul.f32 %v1081, %v1085
      %v1087 = vpack.c.bf16 %v1086, %v1086
      %1088 = vrot.lane.b32.xlu0 %v468, 76
      %v1089 = vpop.permute.xlu0 %1088
      %v1091 = vsel %vm517, %v1087, 0
      %v1094 = vsel %vm536, %v1089, 0
      %1096 = vmatprep.subr.bf16.mxu0 0
      %1097 = vmatpush1.bf16.msra.mxu0 0
      %1098 = vmatprep.subr.bf16.mxu0 0
      %1099 = vmatpush1.bf16.msra.mxu0 0
      %1100 = vmatprep.subr.bf16.mxu0 0
      %1101 = vmatpush1.bf16.msra.mxu0 0
      %1102 = vmatprep.subr.bf16.mxu0 0
      %1103 = vmatpush1.bf16.msra.mxu0 0
      %1104 = vmatprep.subr.bf16.mxu0 0
      %1105 = vmatpush1.bf16.msra.mxu0 0
      %1106 = vmatprep.subr.bf16.mxu0 0
      %1107 = vmatpush1.bf16.msra.mxu0 0
      %1108 = vmatprep.subr.bf16.mxu0 0
      %1109 = vmatpush1.bf16.msra.mxu0 0
      %1110 = vmatprep.subr.bf16.mxu0 0
      %1111 = vmatpush1.bf16.msra.mxu0 %v1094
      %1112 = vmatprep.subr.bf16.mxu0 0
      %1113 = vmatpush2.bf16.msra.mxu0 0
      %1114 = vmatprep.subr.bf16.mxu0 0
      %1115 = vmatpush2.bf16.msra.mxu0 0
      %1116 = vmatprep.subr.bf16.mxu0 0
      %1117 = vmatpush2.bf16.msra.mxu0 0
      %1118 = vmatprep.subr.bf16.mxu0 0
      %1119 = vmatpush2.bf16.msra.mxu0 0
      %1120 = vmatprep.subr.bf16.mxu0 0
      %1121 = vmatpush2.bf16.msra.mxu0 0
      %1122 = vmatprep.subr.bf16.mxu0 0
      %1123 = vmatpush2.bf16.msra.mxu0 0
      %1124 = vmatprep.subr.bf16.mxu0 0
      %1125 = vmatpush2.bf16.msra.mxu0 0
      %1126 = vmatprep.subr.bf16.mxu0 0
      %1127 = vmatpush2.bf16.msra.mxu0 0
      %1128 = vmatprep.mubr.bf16.mxu0 0
      %1129 = vmatmul.mubr.bf16.gmra.mxu0 %v1091
      %v1130 = vpop.f32.mrf.mxu0
      %v1131 = vadd.f32 0.0, %v1130
      %v1132 = vpop.f32.mrf.mxu0
      %v1133 = vpop.f32.mrf.mxu0
      %v1134 = vpop.f32.mrf.mxu0
      %1135 = vdwg.mxu0
      %1136 = vrot.lane.b32.xlu0 %v467, 104
      %v1137 = vpop.permute.xlu0 %1136
      %1138 = vrot.lane.b32.xlu0 %v468, 104
      %v1139 = vpop.permute.xlu0 %1138
      %v1141 = vsel %vm469, %v1137, 0
      %v1144 = vsel %vm469, %v1139, 0
      %1146 = vmatprep.subr.bf16.mxu0 0
      %1147 = vmatpush1.bf16.xpose.msra.mxu0 0
      %1148 = vmatprep.subr.bf16.mxu0 0
      %1149 = vmatpush1.bf16.xpose.msra.mxu0 0
      %1150 = vmatprep.subr.bf16.mxu0 0
      %1151 = vmatpush1.bf16.xpose.msra.mxu0 0
      %1152 = vmatprep.subr.bf16.mxu0 0
      %1153 = vmatpush1.bf16.xpose.msra.mxu0 0
      %1154 = vmatprep.subr.bf16.mxu0 0
      %1155 = vmatpush1.bf16.xpose.msra.mxu0 0
      %1156 = vmatprep.subr.bf16.mxu0 0
      %1157 = vmatpush1.bf16.xpose.msra.mxu0 0
      %1158 = vmatprep.subr.bf16.mxu0 0
      %1159 = vmatpush1.bf16.xpose.msra.mxu0 0
      %1160 = vmatprep.subr.bf16.mxu0 0
      %1161 = vmatpush1.bf16.xpose.msra.mxu0 %v1144
      %1162 = vmatprep.subr.bf16.mxu0 0
      %1163 = vmatpush2.bf16.xpose.msra.mxu0 0
      %1164 = vmatprep.subr.bf16.mxu0 0
      %1165 = vmatpush2.bf16.xpose.msra.mxu0 0
      %1166 = vmatprep.subr.bf16.mxu0 0
      %1167 = vmatpush2.bf16.xpose.msra.mxu0 0
      %1168 = vmatprep.subr.bf16.mxu0 0
      %1169 = vmatpush2.bf16.xpose.msra.mxu0 0
      %1170 = vmatprep.subr.bf16.mxu0 0
      %1171 = vmatpush2.bf16.xpose.msra.mxu0 0
      %1172 = vmatprep.subr.bf16.mxu0 0
      %1173 = vmatpush2.bf16.xpose.msra.mxu0 0
      %1174 = vmatprep.subr.bf16.mxu0 0
      %1175 = vmatpush2.bf16.xpose.msra.mxu0 0
      %1176 = vmatprep.subr.bf16.mxu0 0
      %1177 = vmatpush2.bf16.xpose.msra.mxu0 0
      %1178 = vmatprep.mubr.bf16.mxu0 0
      %1179 = vmatmul.mubr.bf16.gmra.mxu0 %v1141
      %v1180 = vpop.f32.mrf.mxu0
      %v1181 = vadd.f32 0.0, %v1180
      %v1182 = vpop.f32.mrf.mxu0
      %v1183 = vpop.f32.mrf.mxu0
      %v1184 = vpop.f32.mrf.mxu0
      %1185 = vdwg.mxu0
      %v1186 = vsel %vm465, %v1181, -inf
      %v1187 = vsel %vm517, %v1186, -inf
      %1188 = vmax.xlane.f32.xlu0 %v1187
      %v1189 = vpop.xlane.xlu0 %1188
      %v1190 = vsub.f32 %v1186, %v1189
      %v1191 = vmul.f32 %v1190, 1.442695
      %v1192 = vpow.pop %v1191
      %v1193 = vsel %vm517, %v1192, 0.0
      %1194 = vadd.xlane.f32.xlu0 %v1193
      %v1195 = vpop.xlane.xlu0 %1194
      %v1196 = vrcp.pop %v1195
      %v1197 = vmul.f32 %v1192, %v1196
      %v1198 = vpack.c.bf16 %v1197, %v1197
      %1199 = vrot.lane.b32.xlu0 %v468, 72
      %v1200 = vpop.permute.xlu0 %1199
      %v1202 = vsel %vm517, %v1198, 0
      %v1205 = vsel %vm536, %v1200, 0
      %1207 = vmatprep.subr.bf16.mxu0 0
      %1208 = vmatpush1.bf16.msra.mxu0 0
      %1209 = vmatprep.subr.bf16.mxu0 0
      %1210 = vmatpush1.bf16.msra.mxu0 0
      %1211 = vmatprep.subr.bf16.mxu0 0
      %1212 = vmatpush1.bf16.msra.mxu0 0
      %1213 = vmatprep.subr.bf16.mxu0 0
      %1214 = vmatpush1.bf16.msra.mxu0 0
      %1215 = vmatprep.subr.bf16.mxu0 0
      %1216 = vmatpush1.bf16.msra.mxu0 0
      %1217 = vmatprep.subr.bf16.mxu0 0
      %1218 = vmatpush1.bf16.msra.mxu0 0
      %1219 = vmatprep.subr.bf16.mxu0 0
      %1220 = vmatpush1.bf16.msra.mxu0 0
      %1221 = vmatprep.subr.bf16.mxu0 0
      %1222 = vmatpush1.bf16.msra.mxu0 %v1205
      %1223 = vmatprep.subr.bf16.mxu0 0
      %1224 = vmatpush2.bf16.msra.mxu0 0
      %1225 = vmatprep.subr.bf16.mxu0 0
      %1226 = vmatpush2.bf16.msra.mxu0 0
      %1227 = vmatprep.subr.bf16.mxu0 0
      %1228 = vmatpush2.bf16.msra.mxu0 0
      %1229 = vmatprep.subr.bf16.mxu0 0
      %1230 = vmatpush2.bf16.msra.mxu0 0
      %1231 = vmatprep.subr.bf16.mxu0 0
      %1232 = vmatpush2.bf16.msra.mxu0 0
      %1233 = vmatprep.subr.bf16.mxu0 0
      %1234 = vmatpush2.bf16.msra.mxu0 0
      %1235 = vmatprep.subr.bf16.mxu0 0
      %1236 = vmatpush2.bf16.msra.mxu0 0
      %1237 = vmatprep.subr.bf16.mxu0 0
      %1238 = vmatpush2.bf16.msra.mxu0 0
      %1239 = vmatprep.mubr.bf16.mxu0 0
      %1240 = vmatmul.mubr.bf16.gmra.mxu0 %v1202
      %v1241 = vpop.f32.mrf.mxu0
      %v1242 = vadd.f32 0.0, %v1241
      %v1243 = vpop.f32.mrf.mxu0
      %v1244 = vpop.f32.mrf.mxu0
      %v1245 = vpop.f32.mrf.mxu0
      %1246 = vdwg.mxu0
      %1247 = vrot.lane.b32.xlu0 %v467, 100
      %v1248 = vpop.permute.xlu0 %1247
      %1249 = vrot.lane.b32.xlu0 %v468, 100
      %v1250 = vpop.permute.xlu0 %1249
      %v1252 = vsel %vm469, %v1248, 0
      %v1255 = vsel %vm469, %v1250, 0
      %1257 = vmatprep.subr.bf16.mxu0 0
      %1258 = vmatpush1.bf16.xpose.msra.mxu0 0
      %1259 = vmatprep.subr.bf16.mxu0 0
      %1260 = vmatpush1.bf16.xpose.msra.mxu0 0
      %1261 = vmatprep.subr.bf16.mxu0 0
      %1262 = vmatpush1.bf16.xpose.msra.mxu0 0
      %1263 = vmatprep.subr.bf16.mxu0 0
      %1264 = vmatpush1.bf16.xpose.msra.mxu0 0
      %1265 = vmatprep.subr.bf16.mxu0 0
      %1266 = vmatpush1.bf16.xpose.msra.mxu0 0
      %1267 = vmatprep.subr.bf16.mxu0 0
      %1268 = vmatpush1.bf16.xpose.msra.mxu0 0
      %1269 = vmatprep.subr.bf16.mxu0 0
      %1270 = vmatpush1.bf16.xpose.msra.mxu0 0
      %1271 = vmatprep.subr.bf16.mxu0 0
      %1272 = vmatpush1.bf16.xpose.msra.mxu0 %v1255
      %1273 = vmatprep.subr.bf16.mxu0 0
      %1274 = vmatpush2.bf16.xpose.msra.mxu0 0
      %1275 = vmatprep.subr.bf16.mxu0 0
      %1276 = vmatpush2.bf16.xpose.msra.mxu0 0
      %1277 = vmatprep.subr.bf16.mxu0 0
      %1278 = vmatpush2.bf16.xpose.msra.mxu0 0
      %1279 = vmatprep.subr.bf16.mxu0 0
      %1280 = vmatpush2.bf16.xpose.msra.mxu0 0
      %1281 = vmatprep.subr.bf16.mxu0 0
      %1282 = vmatpush2.bf16.xpose.msra.mxu0 0
      %1283 = vmatprep.subr.bf16.mxu0 0
      %1284 = vmatpush2.bf16.xpose.msra.mxu0 0
      %1285 = vmatprep.subr.bf16.mxu0 0
      %1286 = vmatpush2.bf16.xpose.msra.mxu0 0
      %1287 = vmatprep.subr.bf16.mxu0 0
      %1288 = vmatpush2.bf16.xpose.msra.mxu0 0
      %1289 = vmatprep.mubr.bf16.mxu0 0
      %1290 = vmatmul.mubr.bf16.gmra.mxu0 %v1252
      %v1291 = vpop.f32.mrf.mxu0
      %v1292 = vadd.f32 0.0, %v1291
      %v1293 = vpop.f32.mrf.mxu0
      %v1294 = vpop.f32.mrf.mxu0
      %v1295 = vpop.f32.mrf.mxu0
      %1296 = vdwg.mxu0
      %v1297 = vsel %vm465, %v1292, -inf
      %v1298 = vsel %vm517, %v1297, -inf
      %1299 = vmax.xlane.f32.xlu0 %v1298
      %v1300 = vpop.xlane.xlu0 %1299
      %v1301 = vsub.f32 %v1297, %v1300
      %v1302 = vmul.f32 %v1301, 1.442695
      %v1303 = vpow.pop %v1302
      %v1304 = vsel %vm517, %v1303, 0.0
      %1305 = vadd.xlane.f32.xlu0 %v1304
      %v1306 = vpop.xlane.xlu0 %1305
      %v1307 = vrcp.pop %v1306
      %v1308 = vmul.f32 %v1303, %v1307
      %v1309 = vpack.c.bf16 %v1308, %v1308
      %1310 = vrot.lane.b32.xlu0 %v468, 68
      %v1311 = vpop.permute.xlu0 %1310
      %v1313 = vsel %vm517, %v1309, 0
      %v1316 = vsel %vm536, %v1311, 0
      %1318 = vmatprep.subr.bf16.mxu0 0
      %1319 = vmatpush1.bf16.msra.mxu0 0
      %1320 = vmatprep.subr.bf16.mxu0 0
      %1321 = vmatpush1.bf16.msra.mxu0 0
      %1322 = vmatprep.subr.bf16.mxu0 0
      %1323 = vmatpush1.bf16.msra.mxu0 0
      %1324 = vmatprep.subr.bf16.mxu0 0
      %1325 = vmatpush1.bf16.msra.mxu0 0
      %1326 = vmatprep.subr.bf16.mxu0 0
      %1327 = vmatpush1.bf16.msra.mxu0 0
      %1328 = vmatprep.subr.bf16.mxu0 0
      %1329 = vmatpush1.bf16.msra.mxu0 0
      %1330 = vmatprep.subr.bf16.mxu0 0
      %1331 = vmatpush1.bf16.msra.mxu0 0
      %1332 = vmatprep.subr.bf16.mxu0 0
      %1333 = vmatpush1.bf16.msra.mxu0 %v1316
      %1334 = vmatprep.subr.bf16.mxu0 0
      %1335 = vmatpush2.bf16.msra.mxu0 0
      %1336 = vmatprep.subr.bf16.mxu0 0
      %1337 = vmatpush2.bf16.msra.mxu0 0
      %1338 = vmatprep.subr.bf16.mxu0 0
      %1339 = vmatpush2.bf16.msra.mxu0 0
      %1340 = vmatprep.subr.bf16.mxu0 0
      %1341 = vmatpush2.bf16.msra.mxu0 0
      %1342 = vmatprep.subr.bf16.mxu0 0
      %1343 = vmatpush2.bf16.msra.mxu0 0
      %1344 = vmatprep.subr.bf16.mxu0 0
      %1345 = vmatpush2.bf16.msra.mxu0 0
      %1346 = vmatprep.subr.bf16.mxu0 0
      %1347 = vmatpush2.bf16.msra.mxu0 0
      %1348 = vmatprep.subr.bf16.mxu0 0
      %1349 = vmatpush2.bf16.msra.mxu0 0
      %1350 = vmatprep.mubr.bf16.mxu0 0
      %1351 = vmatmul.mubr.bf16.gmra.mxu0 %v1313
      %v1352 = vpop.f32.mrf.mxu0
      %v1353 = vadd.f32 0.0, %v1352
      %v1354 = vpop.f32.mrf.mxu0
      %v1355 = vpop.f32.mrf.mxu0
      %v1356 = vpop.f32.mrf.mxu0
      %1357 = vdwg.mxu0
      %1359 = vrot.lane.b32.xlu0 %v687, 4
      %v1360 = vpop.permute.xlu0 %1359
      %1363 = vrot.lane.b32.xlu0 %v798, 8
      %v1364 = vpop.permute.xlu0 %1363
      %1367 = vrot.lane.b32.xlu0 %v909, 12
      %v1368 = vpop.permute.xlu0 %1367
      %1371 = vrot.lane.b32.xlu0 %v1020, 16
      %v1372 = vpop.permute.xlu0 %1371
      %1375 = vrot.lane.b32.xlu0 %v1131, 20
      %v1376 = vpop.permute.xlu0 %1375
      %1379 = vrot.lane.b32.xlu0 %v1242, 24
      %v1380 = vpop.permute.xlu0 %1379
      %1383 = vrot.lane.b32.xlu0 %v1353, 28
      %v1384 = vpop.permute.xlu0 %1383
      %v1386 = vsel %vm469, %v575, %v1360
      %v1387 = vsel %vm517, %v1386, %v1364
      %vm1388 = vcmask 97280
      %v1389 = vsel %vm1388, %v1387, %v1368
      %vm1390 = vcmask 130048
      %v1391 = vsel %vm1390, %v1389, %v1372
      %vm1392 = vcmask 162816
      %v1393 = vsel %vm1392, %v1391, %v1376
      %vm1394 = vcmask 195584
      %v1395 = vsel %vm1394, %v1393, %v1380
      %vm1396 = vcmask 228352
      %v1397 = vsel %vm1396, %v1395, %v1384
      %v1398 = vpack.c.bf16 %v1397, %v1397
      %v1399 = vld [vmem:[%s5] sm:$0xf]
      %v1400 = vld [vmem:[%s5 + $0x4] sm:$0xf]
      %v1401 = vld [vmem:[%s5 + $0x8] sm:$0xf]
      %v1402 = vld [vmem:[%s5 + $0xc] sm:$0xf]
      %v1403 = vld [vmem:[%s6] sm:$0x1]
      %v1405 = vlaneseq
      %v1406 = vshrl.u32 %v1405, 7
      %v1407 = vsub.s32 0, %v1406
      %v1408 = vrot.slane %v1403, %v1407
      %v1414 = vunpack.c.l.b16 %v1399
      %v1415 = vunpack.c.l.b16 %v1400
      %v1416 = vunpack.c.l.b16 %v1401
      %v1417 = vunpack.c.l.b16 %v1402
      %v1418 = vpack.c.b16 %v1415, %v1414
      %v1419 = vpack.c.b16 %v1417, %v1416
      %v1423 = vsel %vm354, %v1398, 0
      %1425 = vmatprep.subr.bf16.mxu0 0
      %1426 = vmatpush1.bf16.msra.mxu0 0
      %1427 = vmatprep.subr.bf16.mxu0 0
      %1428 = vmatpush1.bf16.msra.mxu0 0
      %1429 = vmatprep.subr.bf16.mxu0 0
      %1430 = vmatpush1.bf16.msra.mxu0 0
      %1431 = vmatprep.subr.bf16.mxu0 0
      %1432 = vmatpush1.bf16.msra.mxu0 0
      %1433 = vmatprep.subr.bf16.mxu0 0
      %1434 = vmatpush1.bf16.msra.mxu0 0
      %1435 = vmatprep.subr.bf16.mxu0 0
      %1436 = vmatpush1.bf16.msra.mxu0 0
      %1437 = vmatprep.subr.bf16.mxu0 0
      %1438 = vmatpush1.bf16.msra.mxu0 %v1419
      %1439 = vmatprep.subr.bf16.mxu0 0
      %1440 = vmatpush1.bf16.msra.mxu0 %v1418
      %1441 = vmatprep.subr.bf16.mxu0 0
      %1442 = vmatpush2.bf16.msra.mxu0 0
      %1443 = vmatprep.subr.bf16.mxu0 0
      %1444 = vmatpush2.bf16.msra.mxu0 0
      %1445 = vmatprep.subr.bf16.mxu0 0
      %1446 = vmatpush2.bf16.msra.mxu0 0
      %1447 = vmatprep.subr.bf16.mxu0 0
      %1448 = vmatpush2.bf16.msra.mxu0 0
      %1449 = vmatprep.subr.bf16.mxu0 0
      %1450 = vmatpush2.bf16.msra.mxu0 0
      %1451 = vmatprep.subr.bf16.mxu0 0
      %1452 = vmatpush2.bf16.msra.mxu0 0
      %1453 = vmatprep.subr.bf16.mxu0 0
      %1454 = vmatpush2.bf16.msra.mxu0 0
      %1455 = vmatprep.subr.bf16.mxu0 0
      %1456 = vmatpush2.bf16.msra.mxu0 0
      %1457 = vmatprep.mubr.bf16.mxu0 0
      %1458 = vmatmul.mubr.bf16.gmra.mxu0 %v1423
      %v1459 = vpop.f32.mrf.mxu0
      %v1460 = vadd.f32 %v1408, %v1459
      %v1461 = vpop.f32.mrf.mxu0
      %v1462 = vpop.f32.mrf.mxu0
      %v1463 = vpop.f32.mrf.mxu0
      %1464 = vdwg.mxu0
      %v1465 = vadd.f32 %v330, %v1460
      %v1466 = vld [vmem:[%s7] sm:$0x1]
      %v1467 = vld [vmem:[%s8] sm:$0x1]
      %v1468 = vsel %vm354, %v1465, 0.0
      %1469 = vadd.xlane.f32.xlu0 %v1468
      %v1470 = vpop.xlane.xlu0 %1469
      %v1471 = vrcp.pop 32.0
      %v1472 = vmul.f32 %v1470, %v1471
      %v1473 = vsub.f32 %v1465, %v1472
      %v1474 = vmul.f32 %v1473, %v1473
      %v1475 = vsel %vm354, %v1474, 0.0
      %1476 = vadd.xlane.f32.xlu0 %v1475
      %v1477 = vpop.xlane.xlu0 %1476
      %v1478 = vmul.f32 %v1477, %v1471
      %v1479 = vadd.f32 %v1478, 1e-05
      %v1480 = vrsqrt.pop %v1479
      %v1481 = vmul.f32 %v1473, %v1480
      %v1483 = vlaneseq
      %v1484 = vshrl.u32 %v1483, 7
      %v1485 = vsub.s32 0, %v1484
      %v1486 = vrot.slane %v1466, %v1485
      %v1488 = vmul.f32 %v1481, %v1486
      %v1490 = vlaneseq
      %v1491 = vshrl.u32 %v1490, 7
      %v1492 = vsub.s32 0, %v1491
      %v1493 = vrot.slane %v1467, %v1492
      %v1495 = vadd.f32 %v1488, %v1493
      %v1496 = vpack.c.bf16 %v1495, %v1495
      %vm1497 = vcmask 257024
      %1498 = vst.msk [vmem:[%s327] sm:$0xf] %vm1497, %v1496
      %p1499 = scmp.lt.s32.totalorder %s20, 1
      %s1500 = scalar_select %p1499, %s20, 1
      %s1501 = smul.addr %s1500, 4
      %s1502 = scalar_lea.vmem %s9, %s1501
      // Predicated region
      $region57: #{_lambda_.17} parent=55 // pred_check
        %p1503 = pneg %p232
      $region58: #{_lambda_.17} parent=55 // pred_check_branch
        %1505 = sbr.rel (%p1503) target = $region60
      $region59: #{_lambda_.17} parent=55 // pred_region
        _
      $region60: #{_lambda_.17} parent=55 // pred_fallthru
        _
    $region56: #{_lambda_.17} parent=5 // pred_fallthru
      _
    %p1506 = scmp.le.s32.totalorder 2, %s15
    // Predicated region
    $region61: #{_lambda_.17} parent=5 // pred_check
      %p1507 = pneg %p1506
    $region62: #{_lambda_.17} parent=5 // pred_check_branch
      %1509 = sbr.rel (%p1507) target = $region64
    $region63: #{_lambda_.17} parent=5 // pred_region
      %s1510 = ssub.s32 %s15, 2
      // Predicated region
      $region65: #{_lambda_.17} parent=63 // pred_check
        %p1511 = pneg %p238
      $region66: #{_lambda_.17} parent=63 // pred_check_branch
        %1513 = sbr.rel (%p1511) target = $region68
      $region67: #{_lambda_.17} parent=63 // pred_region
        %p1514 = scmp.lt.s32.totalorder %s21, 1
        %s1515 = scalar_select %p1514, %s21, 1
        %s1516 = smul.addr %s1515, 4
        %s1517 = scalar_lea.vmem %s9, %s1516
      $region68: #{_lambda_.17} parent=63 // pred_fallthru
        _
    $region64: #{_lambda_.17} parent=5 // pred_fallthru
      _
  $region6: #{_lambda_.17} parent=0 // loop_footer
    %s19 = sadd.s32 1, %s15
  $region7: #{_lambda_.17} parent=0 // loop_footer_branch
    %14 = sbr.rel target = $region3
  $region8: #{_lambda_.17} parent=0 // loop_exit
    _

// kernel: _lambda_.18
$region0: #{_lambda_.18}
  #allocation0 [shape = 'u32[]', space=smem, size = 0x4, offset = 0x4, fixed_abs, tag = 'smem constant byte address 0x4 - core index']
  #allocation1 [shape = 'u32[144,128]{1,0:T(1,128)}', space=vmem, size = 0x12000, scoped, tag = 'internal scratch']
  %s0 = inlined_call_operand.vmem [shape: bf16[2,8,32], index: 0, kind: input, shape index: {}]
  %s1 = inlined_call_operand.vmem [shape: bf16[2,16,32], index: 1, kind: input, shape index: {}]
  %s2 = inlined_call_operand.vmem [shape: bf16[32,32], index: 2, kind: input, shape index: {}]
  %s3 = inlined_call_operand.vmem [shape: f32[1,32], index: 3, kind: input, shape index: {}]
  %s4 = inlined_call_operand.vmem [shape: bf16[32,64], index: 4, kind: input, shape index: {}]
  %s5 = inlined_call_operand.vmem [shape: f32[1,64], index: 5, kind: input, shape index: {}]
  %s6 = inlined_call_operand.vmem [shape: bf16[32,32], index: 6, kind: input, shape index: {}]
  %s7 = inlined_call_operand.vmem [shape: f32[1,32], index: 7, kind: input, shape index: {}]
  %s8 = inlined_call_operand.vmem [shape: f32[1,32], index: 8, kind: input, shape index: {}]
  %s9 = inlined_call_operand.vmem [shape: f32[1,32], index: 9, kind: input, shape index: {}]
  %s10 = inlined_call_operand.vmem [shape: bf16[2,8,32], index: 10, kind: output, shape index: {}]
  %s11 = sld [smem:[#allocation0]]
  $region73: #{_lambda_.18} parent=0
    _
  %s13 = ssub.s32 1, %s11
  %s14 = scalar_select 0, %s13, %s11
  loop: start=0, step=1, limit=4
  $region2: #{_lambda_.18} parent=0 // loop_pre_header
    _
  $region3: #{_lambda_.18} parent=0 // loop_header
    %s16 = sphi 0, %s20
    %p17 = scmp.ge.s32.totalorder %s16, 4
    %s23 = sphi 0, %s35
    %s24 = sphi 0, %s31
    %s25 = sphi 0, %s23
    %s26 = sphi 0, %s24
    %s27 = sphi 0, %s25
    %s28 = sphi 0, %s26
    %s40 = sphi 0, %s42
    %s43 = sphi 0, %s40
    %s44 = sphi 0, %s43
    %s60 = sphi 0, %s44
    %s66 = sphi 0, %s68
    %s69 = sphi 0, %s66
    %s70 = sphi 0, %s69
    %s86 = sphi 0, %s70
    %s90 = sphi 0, %s90
    %s92 = sphi 0, %s90
    %s93 = sphi 0, %s92
    %s107 = sphi 0, %s93
    %s111 = sphi 0, %s111
    %s113 = sphi 0, %s111
    %s114 = sphi 0, %s113
    %s128 = sphi 0, %s114
    %s132 = sphi 0, %s132
    %s134 = sphi 0, %s132
    %s135 = sphi 0, %s134
    %s149 = sphi 0, %s135
    %s153 = sphi 0, %s153
    %s155 = sphi 0, %s153
    %s156 = sphi 0, %s155
    %s170 = sphi 0, %s156
    %s174 = sphi 0, %s174
    %s176 = sphi 0, %s174
    %s177 = sphi 0, %s176
    %s191 = sphi 0, %s177
    %s195 = sphi 0, %s195
    %s197 = sphi 0, %s195
    %s198 = sphi 0, %s197
    %s212 = sphi 0, %s198
    %s216 = sphi 0, %s216
    %s218 = sphi 0, %s216
    %s219 = sphi 0, %s218
    %s233 = sphi 0, %s219
    %s237 = sphi 0, %s237
    %s239 = sphi 0, %s237
    %s240 = sphi 0, %s239
    %s254 = sphi 0, %s240
    %s262 = sphi 0, %s264
    %s265 = sphi 0, %s262
    %s266 = sphi 0, %s265
    %s282 = sphi 0, %s266
  $region4: #{_lambda_.18} parent=0 // loop_header_branch
    %19 = sbr.rel (%p17) target = $region8
  $region5: #{_lambda_.18} parent=0 // loop_body
    %s21 = ssub.s32 %s16, 1
    %s22 = ssub.s32 %s16, 2
    %s29 = sadd.s32 1, %s24
    %p30 = scmp.ge.s32.totalorder %s29, 1
    %s31 = scalar_select %p30, 0, %s29
    %s32 = sadd.s32 1, %s23
    %s33 = scalar_select %p30, %s32, %s23
    %p34 = scmp.ge.s32.totalorder %s33, 2
    %s35 = scalar_select %p34, 0, %s33
    %s36 = ssub.s32 %s23, %s35
    %s37 = ssub.s32 %s24, %s31
    %s38 = sor.u32 %s36, %s37
    %p39 = scmp.eq.s32.totalorder %s38, 0
    %s41 = sadd.s32 %s40, 1
    %s42 = scalar_select %p39, %s40, %s41
    %p45 = pneg %p39
    %p46 = scmp.eq.s32.totalorder %s16, 1
    %p47 = por %p45, %p46
    %p48 = scmp.ne.s32.totalorder %s40, %s43
    %p49 = scmp.eq.s32.totalorder %s16, 0
    %p50 = por %p48, %p49
    %p51 = scmp.ne.s32.totalorder %s40, %s43
    %p52 = scmp.eq.s32.totalorder %s21, 1
    %p53 = por %p51, %p52
    %p54 = scmp.ne.s32.totalorder %s43, %s44
    %p55 = scmp.eq.s32.totalorder %s21, 0
    %p56 = por %p54, %p55
    %p57 = scmp.ne.s32.totalorder %s43, %s44
    %p58 = scmp.eq.s32.totalorder %s22, 1
    %p59 = por %p57, %p58
    %p61 = scmp.ne.s32.totalorder %s44, %s60
    %p62 = scmp.eq.s32.totalorder %s22, 0
    %p63 = por %p61, %p62
    %s64 = ssub.s32 %s23, %s35
    %p65 = scmp.eq.s32.totalorder %s64, 0
    %s67 = sadd.s32 %s66, 1
    %s68 = scalar_select %p65, %s66, %s67
    %p71 = pneg %p65
    %p72 = scmp.eq.s32.totalorder %s16, 1
    %p73 = por %p71, %p72
    %p74 = scmp.ne.s32.totalorder %s66, %s69
    %p75 = scmp.eq.s32.totalorder %s16, 0
    %p76 = por %p74, %p75
    %p77 = scmp.ne.s32.totalorder %s66, %s69
    %p78 = scmp.eq.s32.totalorder %s21, 1
    %p79 = por %p77, %p78
    %p80 = scmp.ne.s32.totalorder %s69, %s70
    %p81 = scmp.eq.s32.totalorder %s21, 0
    %p82 = por %p80, %p81
    %p83 = scmp.ne.s32.totalorder %s69, %s70
    %p84 = scmp.eq.s32.totalorder %s22, 1
    %p85 = por %p83, %p84
    %p87 = scmp.ne.s32.totalorder %s70, %s86
    %p88 = scmp.eq.s32.totalorder %s22, 0
    %p89 = por %p87, %p88
    %s91 = sadd.s32 %s90, 1
    %p94 = scmp.eq.s32.totalorder %s16, 1
    %p95 = scmp.ne.s32.totalorder %s90, %s92
    %p96 = scmp.eq.s32.totalorder %s16, 0
    %p97 = por %p95, %p96
    %p98 = scmp.ne.s32.totalorder %s90, %s92
    %p99 = scmp.eq.s32.totalorder %s21, 1
    %p100 = por %p98, %p99
    %p101 = scmp.ne.s32.totalorder %s92, %s93
    %p102 = scmp.eq.s32.totalorder %s21, 0
    %p103 = por %p101, %p102
    %p104 = scmp.ne.s32.totalorder %s92, %s93
    %p105 = scmp.eq.s32.totalorder %s22, 1
    %p106 = por %p104, %p105
    %p108 = scmp.ne.s32.totalorder %s93, %s107
    %p109 = scmp.eq.s32.totalorder %s22, 0
    %p110 = por %p108, %p109
    %s112 = sadd.s32 %s111, 1
    %p115 = scmp.eq.s32.totalorder %s16, 1
    %p116 = scmp.ne.s32.totalorder %s111, %s113
    %p117 = scmp.eq.s32.totalorder %s16, 0
    %p118 = por %p116, %p117
    %p119 = scmp.ne.s32.totalorder %s111, %s113
    %p120 = scmp.eq.s32.totalorder %s21, 1
    %p121 = por %p119, %p120
    %p122 = scmp.ne.s32.totalorder %s113, %s114
    %p123 = scmp.eq.s32.totalorder %s21, 0
    %p124 = por %p122, %p123
    %p125 = scmp.ne.s32.totalorder %s113, %s114
    %p126 = scmp.eq.s32.totalorder %s22, 1
    %p127 = por %p125, %p126
    %p129 = scmp.ne.s32.totalorder %s114, %s128
    %p130 = scmp.eq.s32.totalorder %s22, 0
    %p131 = por %p129, %p130
    %s133 = sadd.s32 %s132, 1
    %p136 = scmp.eq.s32.totalorder %s16, 1
    %p137 = scmp.ne.s32.totalorder %s132, %s134
    %p138 = scmp.eq.s32.totalorder %s16, 0
    %p139 = por %p137, %p138
    %p140 = scmp.ne.s32.totalorder %s132, %s134
    %p141 = scmp.eq.s32.totalorder %s21, 1
    %p142 = por %p140, %p141
    %p143 = scmp.ne.s32.totalorder %s134, %s135
    %p144 = scmp.eq.s32.totalorder %s21, 0
    %p145 = por %p143, %p144
    %p146 = scmp.ne.s32.totalorder %s134, %s135
    %p147 = scmp.eq.s32.totalorder %s22, 1
    %p148 = por %p146, %p147
    %p150 = scmp.ne.s32.totalorder %s135, %s149
    %p151 = scmp.eq.s32.totalorder %s22, 0
    %p152 = por %p150, %p151
    %s154 = sadd.s32 %s153, 1
    %p157 = scmp.eq.s32.totalorder %s16, 1
    %p158 = scmp.ne.s32.totalorder %s153, %s155
    %p159 = scmp.eq.s32.totalorder %s16, 0
    %p160 = por %p158, %p159
    %p161 = scmp.ne.s32.totalorder %s153, %s155
    %p162 = scmp.eq.s32.totalorder %s21, 1
    %p163 = por %p161, %p162
    %p164 = scmp.ne.s32.totalorder %s155, %s156
    %p165 = scmp.eq.s32.totalorder %s21, 0
    %p166 = por %p164, %p165
    %p167 = scmp.ne.s32.totalorder %s155, %s156
    %p168 = scmp.eq.s32.totalorder %s22, 1
    %p169 = por %p167, %p168
    %p171 = scmp.ne.s32.totalorder %s156, %s170
    %p172 = scmp.eq.s32.totalorder %s22, 0
    %p173 = por %p171, %p172
    %s175 = sadd.s32 %s174, 1
    %p178 = scmp.eq.s32.totalorder %s16, 1
    %p179 = scmp.ne.s32.totalorder %s174, %s176
    %p180 = scmp.eq.s32.totalorder %s16, 0
    %p181 = por %p179, %p180
    %p182 = scmp.ne.s32.totalorder %s174, %s176
    %p183 = scmp.eq.s32.totalorder %s21, 1
    %p184 = por %p182, %p183
    %p185 = scmp.ne.s32.totalorder %s176, %s177
    %p186 = scmp.eq.s32.totalorder %s21, 0
    %p187 = por %p185, %p186
    %p188 = scmp.ne.s32.totalorder %s176, %s177
    %p189 = scmp.eq.s32.totalorder %s22, 1
    %p190 = por %p188, %p189
    %p192 = scmp.ne.s32.totalorder %s177, %s191
    %p193 = scmp.eq.s32.totalorder %s22, 0
    %p194 = por %p192, %p193
    %s196 = sadd.s32 %s195, 1
    %p199 = scmp.eq.s32.totalorder %s16, 1
    %p200 = scmp.ne.s32.totalorder %s195, %s197
    %p201 = scmp.eq.s32.totalorder %s16, 0
    %p202 = por %p200, %p201
    %p203 = scmp.ne.s32.totalorder %s195, %s197
    %p204 = scmp.eq.s32.totalorder %s21, 1
    %p205 = por %p203, %p204
    %p206 = scmp.ne.s32.totalorder %s197, %s198
    %p207 = scmp.eq.s32.totalorder %s21, 0
    %p208 = por %p206, %p207
    %p209 = scmp.ne.s32.totalorder %s197, %s198
    %p210 = scmp.eq.s32.totalorder %s22, 1
    %p211 = por %p209, %p210
    %p213 = scmp.ne.s32.totalorder %s198, %s212
    %p214 = scmp.eq.s32.totalorder %s22, 0
    %p215 = por %p213, %p214
    %s217 = sadd.s32 %s216, 1
    %p220 = scmp.eq.s32.totalorder %s16, 1
    %p221 = scmp.ne.s32.totalorder %s216, %s218
    %p222 = scmp.eq.s32.totalorder %s16, 0
    %p223 = por %p221, %p222
    %p224 = scmp.ne.s32.totalorder %s216, %s218
    %p225 = scmp.eq.s32.totalorder %s21, 1
    %p226 = por %p224, %p225
    %p227 = scmp.ne.s32.totalorder %s218, %s219
    %p228 = scmp.eq.s32.totalorder %s21, 0
    %p229 = por %p227, %p228
    %p230 = scmp.ne.s32.totalorder %s218, %s219
    %p231 = scmp.eq.s32.totalorder %s22, 1
    %p232 = por %p230, %p231
    %p234 = scmp.ne.s32.totalorder %s219, %s233
    %p235 = scmp.eq.s32.totalorder %s22, 0
    %p236 = por %p234, %p235
    %s238 = sadd.s32 %s237, 1
    %p241 = scmp.eq.s32.totalorder %s16, 1
    %p242 = scmp.ne.s32.totalorder %s237, %s239
    %p243 = scmp.eq.s32.totalorder %s16, 0
    %p244 = por %p242, %p243
    %p245 = scmp.ne.s32.totalorder %s237, %s239
    %p246 = scmp.eq.s32.totalorder %s21, 1
    %p247 = por %p245, %p246
    %p248 = scmp.ne.s32.totalorder %s239, %s240
    %p249 = scmp.eq.s32.totalorder %s21, 0
    %p250 = por %p248, %p249
    %p251 = scmp.ne.s32.totalorder %s239, %s240
    %p252 = scmp.eq.s32.totalorder %s22, 1
    %p253 = por %p251, %p252
    %p255 = scmp.ne.s32.totalorder %s240, %s254
    %p256 = scmp.eq.s32.totalorder %s22, 0
    %p257 = por %p255, %p256
    %s258 = ssub.s32 %s23, %s35
    %s259 = ssub.s32 %s24, %s31
    %s260 = sor.u32 %s258, %s259
    %p261 = scmp.eq.s32.totalorder %s260, 0
    %s263 = sadd.s32 %s262, 1
    %s264 = scalar_select %p261, %s262, %s263
    %p267 = pneg %p261
    %p268 = scmp.eq.s32.totalorder %s16, 1
    %p269 = por %p267, %p268
    %p270 = scmp.ne.s32.totalorder %s262, %s265
    %p271 = scmp.eq.s32.totalorder %s16, 0
    %p272 = por %p270, %p271
    %p273 = scmp.ne.s32.totalorder %s262, %s265
    %p274 = scmp.eq.s32.totalorder %s21, 1
    %p275 = por %p273, %p274
    %p276 = scmp.ne.s32.totalorder %s265, %s266
    %p277 = scmp.eq.s32.totalorder %s21, 0
    %p278 = por %p276, %p277
    %p279 = scmp.ne.s32.totalorder %s265, %s266
    %p280 = scmp.eq.s32.totalorder %s22, 1
    %p281 = por %p279, %p280
    %p283 = scmp.ne.s32.totalorder %s266, %s282
    %p284 = scmp.eq.s32.totalorder %s22, 0
    %p285 = por %p283, %p284
    %p286 = scmp.le.s32.totalorder 1, %s16
    %p287 = scmp.lt.s32.totalorder %s16, 3
    %p288 = pnand %p286, %p287
    %p289 = pneg %p288
    // Predicated region
    $region9: #{_lambda_.18} parent=5 // pred_check
      _
    $region10: #{_lambda_.18} parent=5 // pred_check_branch
      %291 = sbr.rel (%p288) target = $region12
    $region11: #{_lambda_.18} parent=5 // pred_region
      %s292 = ssub.s32 %s16, 1
      // Predicated region
      $region13: #{_lambda_.18} parent=11 // pred_check
        %p293 = pneg %p103
      $region14: #{_lambda_.18} parent=11 // pred_check_branch
        %295 = sbr.rel (%p293) target = $region16
      $region15: #{_lambda_.18} parent=11 // pred_region
        _
      $region16: #{_lambda_.18} parent=11 // pred_fallthru
        _
      // Predicated region
      $region17: #{_lambda_.18} parent=11 // pred_check
        %p296 = pneg %p124
      $region18: #{_lambda_.18} parent=11 // pred_check_branch
        %298 = sbr.rel (%p296) target = $region20
      $region19: #{_lambda_.18} parent=11 // pred_region
        _
      $region20: #{_lambda_.18} parent=11 // pred_fallthru
        _
      // Predicated region
      $region21: #{_lambda_.18} parent=11 // pred_check
        %p299 = pneg %p145
      $region22: #{_lambda_.18} parent=11 // pred_check_branch
        %301 = sbr.rel (%p299) target = $region24
      $region23: #{_lambda_.18} parent=11 // pred_region
        _
      $region24: #{_lambda_.18} parent=11 // pred_fallthru
        _
      // Predicated region
      $region25: #{_lambda_.18} parent=11 // pred_check
        %p302 = pneg %p166
      $region26: #{_lambda_.18} parent=11 // pred_check_branch
        %304 = sbr.rel (%p302) target = $region28
      $region27: #{_lambda_.18} parent=11 // pred_region
        _
      $region28: #{_lambda_.18} parent=11 // pred_fallthru
        _
      // Predicated region
      $region29: #{_lambda_.18} parent=11 // pred_check
        %p305 = pneg %p187
      $region30: #{_lambda_.18} parent=11 // pred_check_branch
        %307 = sbr.rel (%p305) target = $region32
      $region31: #{_lambda_.18} parent=11 // pred_region
        _
      $region32: #{_lambda_.18} parent=11 // pred_fallthru
        _
      // Predicated region
      $region33: #{_lambda_.18} parent=11 // pred_check
        %p308 = pneg %p208
      $region34: #{_lambda_.18} parent=11 // pred_check_branch
        %310 = sbr.rel (%p308) target = $region36
      $region35: #{_lambda_.18} parent=11 // pred_region
        _
      $region36: #{_lambda_.18} parent=11 // pred_fallthru
        _
      // Predicated region
      $region37: #{_lambda_.18} parent=11 // pred_check
        %p311 = pneg %p229
      $region38: #{_lambda_.18} parent=11 // pred_check_branch
        %313 = sbr.rel (%p311) target = $region40
      $region39: #{_lambda_.18} parent=11 // pred_region
        _
      $region40: #{_lambda_.18} parent=11 // pred_fallthru
        _
      // Predicated region
      $region41: #{_lambda_.18} parent=11 // pred_check
        %p314 = pneg %p250
      $region42: #{_lambda_.18} parent=11 // pred_check_branch
        %316 = sbr.rel (%p314) target = $region44
      $region43: #{_lambda_.18} parent=11 // pred_region
        _
      $region44: #{_lambda_.18} parent=11 // pred_fallthru
        _
    $region12: #{_lambda_.18} parent=5 // pred_fallthru
      _
    %p317 = scmp.lt.s32.totalorder %s16, 2
    // Predicated region
    $region45: #{_lambda_.18} parent=5 // pred_check
      %p318 = pneg %p317
    $region46: #{_lambda_.18} parent=5 // pred_check_branch
      %320 = sbr.rel (%p318) target = $region48
    $region47: #{_lambda_.18} parent=5 // pred_region
      // Predicated region
      $region49: #{_lambda_.18} parent=47 // pred_check
        %p321 = pneg %p50
      $region50: #{_lambda_.18} parent=47 // pred_check_branch
        %323 = sbr.rel (%p321) target = $region52
      $region51: #{_lambda_.18} parent=47 // pred_region
        %p324 = scmp.lt.s32.totalorder %s23, 1
        %s325 = scalar_select %p324, %s23, 1
        %p326 = scmp.lt.s32.totalorder %s24, 0
        %s327 = scalar_select %p326, %s24, 0
        %s328 = sadd.s32 %s327, %s325
        %s329 = smul.addr %s328, 4
        %s330 = scalar_lea.vmem %s0, %s329
      $region52: #{_lambda_.18} parent=47 // pred_fallthru
        _
      // Predicated region
      $region53: #{_lambda_.18} parent=47 // pred_check
        %p331 = pneg %p76
      $region54: #{_lambda_.18} parent=47 // pred_check_branch
        %333 = sbr.rel (%p331) target = $region56
      $region55: #{_lambda_.18} parent=47 // pred_region
        %p334 = scmp.lt.s32.totalorder %s23, 1
        %s335 = scalar_select %p334, %s23, 1
        %s336 = smul.addr %s335, 2
        %s337 = smul.addr %s336, 4
        %s338 = scalar_lea.vmem %s1, %s337
      $region56: #{_lambda_.18} parent=47 // pred_fallthru
        _
    $region48: #{_lambda_.18} parent=5 // pred_fallthru
      _
    %p339 = scmp.le.s32.totalorder 1, %s16
    %p340 = scmp.lt.s32.totalorder %s16, 3
    %p341 = pnand %p339, %p340
    %p342 = pneg %p341
    // Predicated region
    $region57: #{_lambda_.18} parent=5 // pred_check
      _
    $region58: #{_lambda_.18} parent=5 // pred_check_branch
      %344 = sbr.rel (%p341) target = $region60
    $region59: #{_lambda_.18} parent=5 // pred_region
      %s345 = ssub.s32 %s16, 1
      %p346 = scmp.lt.s32.totalorder %s25, 1
      %s347 = scalar_select %p346, %s25, 1
      %p348 = scmp.lt.s32.totalorder %s26, 0
      %s349 = scalar_select %p348, %s26, 0
      %s350 = sadd.s32 %s349, %s347
      %s351 = smul.addr %s350, 4
      %s352 = scalar_lea.vmem %s0, %s351
      %p353 = pneg %p56
      %p354 = pneg %p53
      %p355 = scmp.lt.s32.totalorder %s25, 1
      %s356 = scalar_select %p355, %s25, 1
      %s357 = smul.addr %s356, 2
      %s358 = smul.addr %s357, 4
      %s359 = scalar_lea.vmem %s1, %s358
      %p360 = pneg %p82
      %p361 = pneg %p79
      %p362 = pneg %p103
      %p363 = pneg %p100
      %p364 = pneg %p124
      %p365 = pneg %p121
      %p366 = pneg %p145
      %p367 = pneg %p142
      %p368 = pneg %p166
      %p369 = pneg %p163
      %p370 = pneg %p187
      %p371 = pneg %p184
      %p372 = pneg %p208
      %p373 = pneg %p205
      %p374 = pneg %p229
      %p375 = pneg %p226
      %p376 = pneg %p250
      %p377 = pneg %p247
      %p378 = pneg %p278
      %p379 = pneg %p275
      %p380 = scmp.lt.s32.totalorder %s25, 1
      %s381 = scalar_select %p380, %s25, 1
      %p382 = scmp.lt.s32.totalorder %s26, 0
      %s383 = scalar_select %p382, %s26, 0
      %s384 = sadd.s32 %s383, %s381
      %s385 = smul.addr %s384, 4
      %s386 = scalar_lea.vmem %s10, %s385
      %p387 = scmp.lt.s32.totalorder %s25, 1
      %s388 = scalar_select %p387, %s25, 1
      %p389 = scmp.lt.s32.totalorder %s26, 0
      %s390 = scalar_select %p389, %s26, 0
      %s391 = sadd.s32 %s390, %s388
      %s392 = smul.addr %s391, 4
      %s393 = scalar_lea.vmem %s0, %s392
      %p394 = scmp.lt.s32.totalorder %s25, 1
      %s395 = scalar_select %p394, %s25, 1
      %s396 = smul.addr %s395, 2
      %s397 = smul.addr %s396, 4
      %s398 = scalar_lea.vmem %s1, %s397
      %p399 = scmp.lt.s32.totalorder %s25, 1
      %s400 = scalar_select %p399, %s25, 1
      %p401 = scmp.lt.s32.totalorder %s26, 0
      %s402 = scalar_select %p401, %s26, 0
      %s403 = sadd.s32 %s402, %s400
      %s404 = smul.addr %s403, 4
      %s405 = scalar_lea.vmem %s10, %s404
      %v407 = vld [vmem:[%s393] sm:$0xf]
      %v408 = vunpack.c.l.bf16 %v407
      %v409 = vld [vmem:[%s398] sm:$0xf]
      %v410 = vld [vmem:[%s398 + $0x4] sm:$0xf]
      %v411 = vld [vmem:[%s2] sm:$0xf]
      %v412 = vld [vmem:[%s2 + $0x4] sm:$0xf]
      %v413 = vld [vmem:[%s2 + $0x8] sm:$0xf]
      %v414 = vld [vmem:[%s2 + $0xc] sm:$0xf]
      %v415 = vld [vmem:[%s3] sm:$0x1]
      %v417 = vlaneseq
      %v418 = vshrl.u32 %v417, 7
      %v419 = vsub.s32 0, %v418
      %v420 = vrot.slane %v415, %v419
      %v426 = vunpack.c.l.b16 %v411
      %v427 = vunpack.c.l.b16 %v412
      %v428 = vunpack.c.l.b16 %v413
      %v429 = vunpack.c.l.b16 %v414
      %v430 = vpack.c.b16 %v427, %v426
      %v431 = vpack.c.b16 %v429, %v428
      %vm434 = vcmask 261120
      %v436 = vsel %vm434, %v407, 0
      %438 = vmatprep.subr.bf16.mxu0 0
      %439 = vmatpush1.bf16.msra.mxu0 0
      %440 = vmatprep.subr.bf16.mxu0 0
      %441 = vmatpush1.bf16.msra.mxu0 0
      %442 = vmatprep.subr.bf16.mxu0 0
      %443 = vmatpush1.bf16.msra.mxu0 0
      %444 = vmatprep.subr.bf16.mxu0 0
      %445 = vmatpush1.bf16.msra.mxu0 0
      %446 = vmatprep.subr.bf16.mxu0 0
      %447 = vmatpush1.bf16.msra.mxu0 0
      %448 = vmatprep.subr.bf16.mxu0 0
      %449 = vmatpush1.bf16.msra.mxu0 0
      %450 = vmatprep.subr.bf16.mxu0 0
      %451 = vmatpush1.bf16.msra.mxu0 %v431
      %452 = vmatprep.subr.bf16.mxu0 0
      %453 = vmatpush1.bf16.msra.mxu0 %v430
      %454 = vmatprep.subr.bf16.mxu0 0
      %455 = vmatpush2.bf16.msra.mxu0 0
      %456 = vmatprep.subr.bf16.mxu0 0
      %457 = vmatpush2.bf16.msra.mxu0 0
      %458 = vmatprep.subr.bf16.mxu0 0
      %459 = vmatpush2.bf16.msra.mxu0 0
      %460 = vmatprep.subr.bf16.mxu0 0
      %461 = vmatpush2.bf16.msra.mxu0 0
      %462 = vmatprep.subr.bf16.mxu0 0
      %463 = vmatpush2.bf16.msra.mxu0 0
      %464 = vmatprep.subr.bf16.mxu0 0
      %465 = vmatpush2.bf16.msra.mxu0 0
      %466 = vmatprep.subr.bf16.mxu0 0
      %467 = vmatpush2.bf16.msra.mxu0 0
      %468 = vmatprep.subr.bf16.mxu0 0
      %469 = vmatpush2.bf16.msra.mxu0 0
      %470 = vmatprep.mubr.bf16.mxu0 0
      %471 = vmatmul.mubr.bf16.gmra.mxu0 %v436
      %v472 = vpop.f32.mrf.mxu0
      %v473 = vadd.f32 %v420, %v472
      %v474 = vpop.f32.mrf.mxu0
      %v475 = vpop.f32.mrf.mxu0
      %v476 = vpop.f32.mrf.mxu0
      %477 = vdwg.mxu0
      %v478 = vld [vmem:[%s4] sm:$0xf]
      %v479 = vld [vmem:[%s4 + $0x4] sm:$0xf]
      %v480 = vld [vmem:[%s4 + $0x8] sm:$0xf]
      %v481 = vld [vmem:[%s4 + $0xc] sm:$0xf]
      %v482 = vld [vmem:[%s5] sm:$0x1]
      %v484 = vlaneseq
      %v485 = vshrl.u32 %v484, 7
      %v486 = vsub.s32 0, %v485
      %v487 = vrot.slane %v482, %v486
      %v491 = vunpack.c.l.b16 %v409
      %v492 = vunpack.c.l.b16 %v410
      %v493 = vpack.c.b16 %v492, %v491
      %v498 = vunpack.c.l.b16 %v478
      %v499 = vunpack.c.l.b16 %v479
      %v500 = vunpack.c.l.b16 %v480
      %v501 = vunpack.c.l.b16 %v481
      %v502 = vpack.c.b16 %v499, %v498
      %v503 = vpack.c.b16 %v501, %v500
      %v507 = vsel %vm434, %v493, 0
      %509 = vmatprep.subr.bf16.mxu0 0
      %510 = vmatpush1.bf16.msra.mxu0 0
      %511 = vmatprep.subr.bf16.mxu0 0
      %512 = vmatpush1.bf16.msra.mxu0 0
      %513 = vmatprep.subr.bf16.mxu0 0
      %514 = vmatpush1.bf16.msra.mxu0 0
      %515 = vmatprep.subr.bf16.mxu0 0
      %516 = vmatpush1.bf16.msra.mxu0 0
      %517 = vmatprep.subr.bf16.mxu0 0
      %518 = vmatpush1.bf16.msra.mxu0 0
      %519 = vmatprep.subr.bf16.mxu0 0
      %520 = vmatpush1.bf16.msra.mxu0 0
      %521 = vmatprep.subr.bf16.mxu0 0
      %522 = vmatpush1.bf16.msra.mxu0 %v503
      %523 = vmatprep.subr.bf16.mxu0 0
      %524 = vmatpush1.bf16.msra.mxu0 %v502
      %525 = vmatprep.subr.bf16.mxu0 0
      %526 = vmatpush2.bf16.msra.mxu0 0
      %527 = vmatprep.subr.bf16.mxu0 0
      %528 = vmatpush2.bf16.msra.mxu0 0
      %529 = vmatprep.subr.bf16.mxu0 0
      %530 = vmatpush2.bf16.msra.mxu0 0
      %531 = vmatprep.subr.bf16.mxu0 0
      %532 = vmatpush2.bf16.msra.mxu0 0
      %533 = vmatprep.subr.bf16.mxu0 0
      %534 = vmatpush2.bf16.msra.mxu0 0
      %535 = vmatprep.subr.bf16.mxu0 0
      %536 = vmatpush2.bf16.msra.mxu0 0
      %537 = vmatprep.subr.bf16.mxu0 0
      %538 = vmatpush2.bf16.msra.mxu0 0
      %539 = vmatprep.subr.bf16.mxu0 0
      %540 = vmatpush2.bf16.msra.mxu0 0
      %541 = vmatprep.mubr.bf16.mxu0 0
      %542 = vmatmul.mubr.bf16.gmra.mxu0 %v507
      %v543 = vpop.f32.mrf.mxu0
      %v544 = vadd.f32 %v487, %v543
      %v545 = vpop.f32.mrf.mxu0
      %v546 = vpop.f32.mrf.mxu0
      %v547 = vadd.f32 %v487, %v546
      %v548 = vpop.f32.mrf.mxu0
      %549 = vdwg.mxu0
      %v550 = vmul.f32 %v473, 0.5
      %v551 = vpack.c.bf16 %v550, %v550
      %v552 = vpack.c.bf16 %v547, %v544
      %vm553 = vcmask 31744
      %v555 = vsel %vm553, %v551, 0
      %v558 = vsel %vm553, %v552, 0
      %560 = vmatprep.subr.bf16.mxu0 0
      %561 = vmatpush1.bf16.xpose.msra.mxu0 0
      %562 = vmatprep.subr.bf16.mxu0 0
      %563 = vmatpush1.bf16.xpose.msra.mxu0 0
      %564 = vmatprep.subr.bf16.mxu0 0
      %565 = vmatpush1.bf16.xpose.msra.mxu0 0
      %566 = vmatprep.subr.bf16.mxu0 0
      %567 = vmatpush1.bf16.xpose.msra.mxu0 0
      %568 = vmatprep.subr.bf16.mxu0 0
      %569 = vmatpush1.bf16.xpose.msra.mxu0 0
      %570 = vmatprep.subr.bf16.mxu0 0
      %571 = vmatpush1.bf16.xpose.msra.mxu0 0
      %572 = vmatprep.subr.bf16.mxu0 0
      %573 = vmatpush1.bf16.xpose.msra.mxu0 0
      %574 = vmatprep.subr.bf16.mxu0 0
      %575 = vmatpush1.bf16.xpose.msra.mxu0 %v558
      %576 = vmatprep.subr.bf16.mxu0 0
      %577 = vmatpush2.bf16.xpose.msra.mxu0 0
      %578 = vmatprep.subr.bf16.mxu0 0
      %579 = vmatpush2.bf16.xpose.msra.mxu0 0
      %580 = vmatprep.subr.bf16.mxu0 0
      %581 = vmatpush2.bf16.xpose.msra.mxu0 0
      %582 = vmatprep.subr.bf16.mxu0 0
      %583 = vmatpush2.bf16.xpose.msra.mxu0 0
      %584 = vmatprep.subr.bf16.mxu0 0
      %585 = vmatpush2.bf16.xpose.msra.mxu0 0
      %586 = vmatprep.subr.bf16.mxu0 0
      %587 = vmatpush2.bf16.xpose.msra.mxu0 0
      %588 = vmatprep.subr.bf16.mxu0 0
      %589 = vmatpush2.bf16.xpose.msra.mxu0 0
      %590 = vmatprep.subr.bf16.mxu0 0
      %591 = vmatpush2.bf16.xpose.msra.mxu0 0
      %592 = vmatprep.mubr.bf16.mxu0 0
      %593 = vmatmul.mubr.bf16.gmra.mxu0 %v555
      %v594 = vpop.f32.mrf.mxu0
      %v595 = vadd.f32 0.0, %v594
      %v596 = vpop.f32.mrf.mxu0
      %v597 = vpop.f32.mrf.mxu0
      %v598 = vpop.f32.mrf.mxu0
      %599 = vdwg.mxu0
      %vm600 = vcmask 130048
      %v601 = vsel %vm600, %v595, -inf
      %602 = vmax.xlane.f32.xlu0 %v601
      %v603 = vpop.xlane.xlu0 %602
      %v604 = vsub.f32 %v595, %v603
      %v605 = vmul.f32 %v604, 1.442695
      %v606 = vpow.pop %v605
      %v607 = vsel %vm600, %v606, 0.0
      %608 = vadd.xlane.f32.xlu0 %v607
      %v609 = vpop.xlane.xlu0 %608
      %v610 = vrcp.pop %v609
      %v611 = vmul.f32 %v606, %v610
      %v612 = vpack.c.bf16 %v611, %v611
      %614 = vrot.lane.b32.xlu0 %v552, 96
      %v615 = vpop.permute.xlu0 %614
      %v618 = vsel %vm600, %v612, 0
      %620 = vmatprep.subr.bf16.mxu0 0
      %621 = vmatpush1.bf16.msra.mxu0 0
      %622 = vmatprep.subr.bf16.mxu0 0
      %623 = vmatpush1.bf16.msra.mxu0 0
      %624 = vmatprep.subr.bf16.mxu0 0
      %625 = vmatpush1.bf16.msra.mxu0 0
      %626 = vmatprep.subr.bf16.mxu0 0
      %627 = vmatpush1.bf16.msra.mxu0 0
      %628 = vmatprep.subr.bf16.mxu0 0
      %629 = vmatpush1.bf16.msra.mxu0 0
      %630 = vmatprep.subr.bf16.mxu0 0
      %631 = vmatpush1.bf16.msra.mxu0 0
      %632 = vmatprep.subr.bf16.mxu0 0
      %633 = vmatpush1.bf16.msra.mxu0 0
      %634 = vmatprep.subr.bf16.mxu0 0
      %635 = vmatpush1.bf16.msra.mxu0 %v615
      %636 = vmatprep.subr.bf16.mxu0 0
      %637 = vmatpush2.bf16.msra.mxu0 0
      %638 = vmatprep.subr.bf16.mxu0 0
      %639 = vmatpush2.bf16.msra.mxu0 0
      %640 = vmatprep.subr.bf16.mxu0 0
      %641 = vmatpush2.bf16.msra.mxu0 0
      %642 = vmatprep.subr.bf16.mxu0 0
      %643 = vmatpush2.bf16.msra.mxu0 0
      %644 = vmatprep.subr.bf16.mxu0 0
      %645 = vmatpush2.bf16.msra.mxu0 0
      %646 = vmatprep.subr.bf16.mxu0 0
      %647 = vmatpush2.bf16.msra.mxu0 0
      %648 = vmatprep.subr.bf16.mxu0 0
      %649 = vmatpush2.bf16.msra.mxu0 0
      %650 = vmatprep.subr.bf16.mxu0 0
      %651 = vmatpush2.bf16.msra.mxu0 0
      %652 = vmatprep.mubr.bf16.mxu0 0
      %653 = vmatmul.mubr.bf16.gmra.mxu0 %v618
      %v654 = vpop.f32.mrf.mxu0
      %v655 = vadd.f32 0.0, %v654
      %v656 = vpop.f32.mrf.mxu0
      %v657 = vpop.f32.mrf.mxu0
      %v658 = vpop.f32.mrf.mxu0
      %659 = vdwg.mxu0
      %661 = vrot.lane.b32.xlu0 %v551, 124
      %v662 = vpop.permute.xlu0 %661
      %663 = vrot.lane.b32.xlu0 %v552, 124
      %v664 = vpop.permute.xlu0 %663
      %v666 = vsel %vm553, %v662, 0
      %v669 = vsel %vm553, %v664, 0
      %671 = vmatprep.subr.bf16.mxu0 0
      %672 = vmatpush1.bf16.xpose.msra.mxu0 0
      %673 = vmatprep.subr.bf16.mxu0 0
      %674 = vmatpush1.bf16.xpose.msra.mxu0 0
      %675 = vmatprep.subr.bf16.mxu0 0
      %676 = vmatpush1.bf16.xpose.msra.mxu0 0
      %677 = vmatprep.subr.bf16.mxu0 0
      %678 = vmatpush1.bf16.xpose.msra.mxu0 0
      %679 = vmatprep.subr.bf16.mxu0 0
      %680 = vmatpush1.bf16.xpose.msra.mxu0 0
      %681 = vmatprep.subr.bf16.mxu0 0
      %682 = vmatpush1.bf16.xpose.msra.mxu0 0
      %683 = vmatprep.subr.bf16.mxu0 0
      %684 = vmatpush1.bf16.xpose.msra.mxu0 0
      %685 = vmatprep.subr.bf16.mxu0 0
      %686 = vmatpush1.bf16.xpose.msra.mxu0 %v669
      %687 = vmatprep.subr.bf16.mxu0 0
      %688 = vmatpush2.bf16.xpose.msra.mxu0 0
      %689 = vmatprep.subr.bf16.mxu0 0
      %690 = vmatpush2.bf16.xpose.msra.mxu0 0
      %691 = vmatprep.subr.bf16.mxu0 0
      %692 = vmatpush2.bf16.xpose.msra.mxu0 0
      %693 = vmatprep.subr.bf16.mxu0 0
      %694 = vmatpush2.bf16.xpose.msra.mxu0 0
      %695 = vmatprep.subr.bf16.mxu0 0
      %696 = vmatpush2.bf16.xpose.msra.mxu0 0
      %697 = vmatprep.subr.bf16.mxu0 0
      %698 = vmatpush2.bf16.xpose.msra.mxu0 0
      %699 = vmatprep.subr.bf16.mxu0 0
      %700 = vmatpush2.bf16.xpose.msra.mxu0 0
      %701 = vmatprep.subr.bf16.mxu0 0
      %702 = vmatpush2.bf16.xpose.msra.mxu0 0
      %703 = vmatprep.mubr.bf16.mxu0 0
      %704 = vmatmul.mubr.bf16.gmra.mxu0 %v666
      %v705 = vpop.f32.mrf.mxu0
      %v706 = vadd.f32 0.0, %v705
      %v707 = vpop.f32.mrf.mxu0
      %v708 = vpop.f32.mrf.mxu0
      %v709 = vpop.f32.mrf.mxu0
      %710 = vdwg.mxu0
      %v711 = vsel %vm600, %v706, -inf
      %712 = vmax.xlane.f32.xlu0 %v711
      %v713 = vpop.xlane.xlu0 %712
      %v714 = vsub.f32 %v706, %v713
      %v715 = vmul.f32 %v714, 1.442695
      %v716 = vpow.pop %v715
      %v717 = vsel %vm600, %v716, 0.0
      %718 = vadd.xlane.f32.xlu0 %v717
      %v719 = vpop.xlane.xlu0 %718
      %v720 = vrcp.pop %v719
      %v721 = vmul.f32 %v716, %v720
      %v722 = vpack.c.bf16 %v721, %v721
      %723 = vrot.lane.b32.xlu0 %v552, 92
      %v724 = vpop.permute.xlu0 %723
      %v727 = vsel %vm600, %v722, 0
      %729 = vmatprep.subr.bf16.mxu0 0
      %730 = vmatpush1.bf16.msra.mxu0 0
      %731 = vmatprep.subr.bf16.mxu0 0
      %732 = vmatpush1.bf16.msra.mxu0 0
      %733 = vmatprep.subr.bf16.mxu0 0
      %734 = vmatpush1.bf16.msra.mxu0 0
      %735 = vmatprep.subr.bf16.mxu0 0
      %736 = vmatpush1.bf16.msra.mxu0 0
      %737 = vmatprep.subr.bf16.mxu0 0
      %738 = vmatpush1.bf16.msra.mxu0 0
      %739 = vmatprep.subr.bf16.mxu0 0
      %740 = vmatpush1.bf16.msra.mxu0 0
      %741 = vmatprep.subr.bf16.mxu0 0
      %742 = vmatpush1.bf16.msra.mxu0 0
      %743 = vmatprep.subr.bf16.mxu0 0
      %744 = vmatpush1.bf16.msra.mxu0 %v724
      %745 = vmatprep.subr.bf16.mxu0 0
      %746 = vmatpush2.bf16.msra.mxu0 0
      %747 = vmatprep.subr.bf16.mxu0 0
      %748 = vmatpush2.bf16.msra.mxu0 0
      %749 = vmatprep.subr.bf16.mxu0 0
      %750 = vmatpush2.bf16.msra.mxu0 0
      %751 = vmatprep.subr.bf16.mxu0 0
      %752 = vmatpush2.bf16.msra.mxu0 0
      %753 = vmatprep.subr.bf16.mxu0 0
      %754 = vmatpush2.bf16.msra.mxu0 0
      %755 = vmatprep.subr.bf16.mxu0 0
      %756 = vmatpush2.bf16.msra.mxu0 0
      %757 = vmatprep.subr.bf16.mxu0 0
      %758 = vmatpush2.bf16.msra.mxu0 0
      %759 = vmatprep.subr.bf16.mxu0 0
      %760 = vmatpush2.bf16.msra.mxu0 0
      %761 = vmatprep.mubr.bf16.mxu0 0
      %762 = vmatmul.mubr.bf16.gmra.mxu0 %v727
      %v763 = vpop.f32.mrf.mxu0
      %v764 = vadd.f32 0.0, %v763
      %v765 = vpop.f32.mrf.mxu0
      %v766 = vpop.f32.mrf.mxu0
      %v767 = vpop.f32.mrf.mxu0
      %768 = vdwg.mxu0
      %769 = vrot.lane.b32.xlu0 %v551, 120
      %v770 = vpop.permute.xlu0 %769
      %771 = vrot.lane.b32.xlu0 %v552, 120
      %v772 = vpop.permute.xlu0 %771
      %v774 = vsel %vm553, %v770, 0
      %v777 = vsel %vm553, %v772, 0
      %779 = vmatprep.subr.bf16.mxu0 0
      %780 = vmatpush1.bf16.xpose.msra.mxu0 0
      %781 = vmatprep.subr.bf16.mxu0 0
      %782 = vmatpush1.bf16.xpose.msra.mxu0 0
      %783 = vmatprep.subr.bf16.mxu0 0
      %784 = vmatpush1.bf16.xpose.msra.mxu0 0
      %785 = vmatprep.subr.bf16.mxu0 0
      %786 = vmatpush1.bf16.xpose.msra.mxu0 0
      %787 = vmatprep.subr.bf16.mxu0 0
      %788 = vmatpush1.bf16.xpose.msra.mxu0 0
      %789 = vmatprep.subr.bf16.mxu0 0
      %790 = vmatpush1.bf16.xpose.msra.mxu0 0
      %791 = vmatprep.subr.bf16.mxu0 0
      %792 = vmatpush1.bf16.xpose.msra.mxu0 0
      %793 = vmatprep.subr.bf16.mxu0 0
      %794 = vmatpush1.bf16.xpose.msra.mxu0 %v777
      %795 = vmatprep.subr.bf16.mxu0 0
      %796 = vmatpush2.bf16.xpose.msra.mxu0 0
      %797 = vmatprep.subr.bf16.mxu0 0
      %798 = vmatpush2.bf16.xpose.msra.mxu0 0
      %799 = vmatprep.subr.bf16.mxu0 0
      %800 = vmatpush2.bf16.xpose.msra.mxu0 0
      %801 = vmatprep.subr.bf16.mxu0 0
      %802 = vmatpush2.bf16.xpose.msra.mxu0 0
      %803 = vmatprep.subr.bf16.mxu0 0
      %804 = vmatpush2.bf16.xpose.msra.mxu0 0
      %805 = vmatprep.subr.bf16.mxu0 0
      %806 = vmatpush2.bf16.xpose.msra.mxu0 0
      %807 = vmatprep.subr.bf16.mxu0 0
      %808 = vmatpush2.bf16.xpose.msra.mxu0 0
      %809 = vmatprep.subr.bf16.mxu0 0
      %810 = vmatpush2.bf16.xpose.msra.mxu0 0
      %811 = vmatprep.mubr.bf16.mxu0 0
      %812 = vmatmul.mubr.bf16.gmra.mxu0 %v774
      %v813 = vpop.f32.mrf.mxu0
      %v814 = vadd.f32 0.0, %v813
      %v815 = vpop.f32.mrf.mxu0
      %v816 = vpop.f32.mrf.mxu0
      %v817 = vpop.f32.mrf.mxu0
      %818 = vdwg.mxu0
      %v819 = vsel %vm600, %v814, -inf
      %820 = vmax.xlane.f32.xlu0 %v819
      %v821 = vpop.xlane.xlu0 %820
      %v822 = vsub.f32 %v814, %v821
      %v823 = vmul.f32 %v822, 1.442695
      %v824 = vpow.pop %v823
      %v825 = vsel %vm600, %v824, 0.0
      %826 = vadd.xlane.f32.xlu0 %v825
      %v827 = vpop.xlane.xlu0 %826
      %v828 = vrcp.pop %v827
      %v829 = vmul.f32 %v824, %v828
      %v830 = vpack.c.bf16 %v829, %v829
      %831 = vrot.lane.b32.xlu0 %v552, 88
      %v832 = vpop.permute.xlu0 %831
      %v835 = vsel %vm600, %v830, 0
      %837 = vmatprep.subr.bf16.mxu0 0
      %838 = vmatpush1.bf16.msra.mxu0 0
      %839 = vmatprep.subr.bf16.mxu0 0
      %840 = vmatpush1.bf16.msra.mxu0 0
      %841 = vmatprep.subr.bf16.mxu0 0
      %842 = vmatpush1.bf16.msra.mxu0 0
      %843 = vmatprep.subr.bf16.mxu0 0
      %844 = vmatpush1.bf16.msra.mxu0 0
      %845 = vmatprep.subr.bf16.mxu0 0
      %846 = vmatpush1.bf16.msra.mxu0 0
      %847 = vmatprep.subr.bf16.mxu0 0
      %848 = vmatpush1.bf16.msra.mxu0 0
      %849 = vmatprep.subr.bf16.mxu0 0
      %850 = vmatpush1.bf16.msra.mxu0 0
      %851 = vmatprep.subr.bf16.mxu0 0
      %852 = vmatpush1.bf16.msra.mxu0 %v832
      %853 = vmatprep.subr.bf16.mxu0 0
      %854 = vmatpush2.bf16.msra.mxu0 0
      %855 = vmatprep.subr.bf16.mxu0 0
      %856 = vmatpush2.bf16.msra.mxu0 0
      %857 = vmatprep.subr.bf16.mxu0 0
      %858 = vmatpush2.bf16.msra.mxu0 0
      %859 = vmatprep.subr.bf16.mxu0 0
      %860 = vmatpush2.bf16.msra.mxu0 0
      %861 = vmatprep.subr.bf16.mxu0 0
      %862 = vmatpush2.bf16.msra.mxu0 0
      %863 = vmatprep.subr.bf16.mxu0 0
      %864 = vmatpush2.bf16.msra.mxu0 0
      %865 = vmatprep.subr.bf16.mxu0 0
      %866 = vmatpush2.bf16.msra.mxu0 0
      %867 = vmatprep.subr.bf16.mxu0 0
      %868 = vmatpush2.bf16.msra.mxu0 0
      %869 = vmatprep.mubr.bf16.mxu0 0
      %870 = vmatmul.mubr.bf16.gmra.mxu0 %v835
      %v871 = vpop.f32.mrf.mxu0
      %v872 = vadd.f32 0.0, %v871
      %v873 = vpop.f32.mrf.mxu0
      %v874 = vpop.f32.mrf.mxu0
      %v875 = vpop.f32.mrf.mxu0
      %876 = vdwg.mxu0
      %877 = vrot.lane.b32.xlu0 %v551, 116
      %v878 = vpop.permute.xlu0 %877
      %879 = vrot.lane.b32.xlu0 %v552, 116
      %v880 = vpop.permute.xlu0 %879
      %v882 = vsel %vm553, %v878, 0
      %v885 = vsel %vm553, %v880, 0
      %887 = vmatprep.subr.bf16.mxu0 0
      %888 = vmatpush1.bf16.xpose.msra.mxu0 0
      %889 = vmatprep.subr.bf16.mxu0 0
      %890 = vmatpush1.bf16.xpose.msra.mxu0 0
      %891 = vmatprep.subr.bf16.mxu0 0
      %892 = vmatpush1.bf16.xpose.msra.mxu0 0
      %893 = vmatprep.subr.bf16.mxu0 0
      %894 = vmatpush1.bf16.xpose.msra.mxu0 0
      %895 = vmatprep.subr.bf16.mxu0 0
      %896 = vmatpush1.bf16.xpose.msra.mxu0 0
      %897 = vmatprep.subr.bf16.mxu0 0
      %898 = vmatpush1.bf16.xpose.msra.mxu0 0
      %899 = vmatprep.subr.bf16.mxu0 0
      %900 = vmatpush1.bf16.xpose.msra.mxu0 0
      %901 = vmatprep.subr.bf16.mxu0 0
      %902 = vmatpush1.bf16.xpose.msra.mxu0 %v885
      %903 = vmatprep.subr.bf16.mxu0 0
      %904 = vmatpush2.bf16.xpose.msra.mxu0 0
      %905 = vmatprep.subr.bf16.mxu0 0
      %906 = vmatpush2.bf16.xpose.msra.mxu0 0
      %907 = vmatprep.subr.bf16.mxu0 0
      %908 = vmatpush2.bf16.xpose.msra.mxu0 0
      %909 = vmatprep.subr.bf16.mxu0 0
      %910 = vmatpush2.bf16.xpose.msra.mxu0 0
      %911 = vmatprep.subr.bf16.mxu0 0
      %912 = vmatpush2.bf16.xpose.msra.mxu0 0
      %913 = vmatprep.subr.bf16.mxu0 0
      %914 = vmatpush2.bf16.xpose.msra.mxu0 0
      %915 = vmatprep.subr.bf16.mxu0 0
      %916 = vmatpush2.bf16.xpose.msra.mxu0 0
      %917 = vmatprep.subr.bf16.mxu0 0
      %918 = vmatpush2.bf16.xpose.msra.mxu0 0
      %919 = vmatprep.mubr.bf16.mxu0 0
      %920 = vmatmul.mubr.bf16.gmra.mxu0 %v882
      %v921 = vpop.f32.mrf.mxu0
      %v922 = vadd.f32 0.0, %v921
      %v923 = vpop.f32.mrf.mxu0
      %v924 = vpop.f32.mrf.mxu0
      %v925 = vpop.f32.mrf.mxu0
      %926 = vdwg.mxu0
      %v927 = vsel %vm600, %v922, -inf
      %928 = vmax.xlane.f32.xlu0 %v927
      %v929 = vpop.xlane.xlu0 %928
      %v930 = vsub.f32 %v922, %v929
      %v931 = vmul.f32 %v930, 1.442695
      %v932 = vpow.pop %v931
      %v933 = vsel %vm600, %v932, 0.0
      %934 = vadd.xlane.f32.xlu0 %v933
      %v935 = vpop.xlane.xlu0 %934
      %v936 = vrcp.pop %v935
      %v937 = vmul.f32 %v932, %v936
      %v938 = vpack.c.bf16 %v937, %v937
      %939 = vrot.lane.b32.xlu0 %v552, 84
      %v940 = vpop.permute.xlu0 %939
      %v943 = vsel %vm600, %v938, 0
      %945 = vmatprep.subr.bf16.mxu0 0
      %946 = vmatpush1.bf16.msra.mxu0 0
      %947 = vmatprep.subr.bf16.mxu0 0
      %948 = vmatpush1.bf16.msra.mxu0 0
      %949 = vmatprep.subr.bf16.mxu0 0
      %950 = vmatpush1.bf16.msra.mxu0 0
      %951 = vmatprep.subr.bf16.mxu0 0
      %952 = vmatpush1.bf16.msra.mxu0 0
      %953 = vmatprep.subr.bf16.mxu0 0
      %954 = vmatpush1.bf16.msra.mxu0 0
      %955 = vmatprep.subr.bf16.mxu0 0
      %956 = vmatpush1.bf16.msra.mxu0 0
      %957 = vmatprep.subr.bf16.mxu0 0
      %958 = vmatpush1.bf16.msra.mxu0 0
      %959 = vmatprep.subr.bf16.mxu0 0
      %960 = vmatpush1.bf16.msra.mxu0 %v940
      %961 = vmatprep.subr.bf16.mxu0 0
      %962 = vmatpush2.bf16.msra.mxu0 0
      %963 = vmatprep.subr.bf16.mxu0 0
      %964 = vmatpush2.bf16.msra.mxu0 0
      %965 = vmatprep.subr.bf16.mxu0 0
      %966 = vmatpush2.bf16.msra.mxu0 0
      %967 = vmatprep.subr.bf16.mxu0 0
      %968 = vmatpush2.bf16.msra.mxu0 0
      %969 = vmatprep.subr.bf16.mxu0 0
      %970 = vmatpush2.bf16.msra.mxu0 0
      %971 = vmatprep.subr.bf16.mxu0 0
      %972 = vmatpush2.bf16.msra.mxu0 0
      %973 = vmatprep.subr.bf16.mxu0 0
      %974 = vmatpush2.bf16.msra.mxu0 0
      %975 = vmatprep.subr.bf16.mxu0 0
      %976 = vmatpush2.bf16.msra.mxu0 0
      %977 = vmatprep.mubr.bf16.mxu0 0
      %978 = vmatmul.mubr.bf16.gmra.mxu0 %v943
      %v979 = vpop.f32.mrf.mxu0
      %v980 = vadd.f32 0.0, %v979
      %v981 = vpop.f32.mrf.mxu0
      %v982 = vpop.f32.mrf.mxu0
      %v983 = vpop.f32.mrf.mxu0
      %984 = vdwg.mxu0
      %985 = vrot.lane.b32.xlu0 %v551, 112
      %v986 = vpop.permute.xlu0 %985
      %987 = vrot.lane.b32.xlu0 %v552, 112
      %v988 = vpop.permute.xlu0 %987
      %v990 = vsel %vm553, %v986, 0
      %v993 = vsel %vm553, %v988, 0
      %995 = vmatprep.subr.bf16.mxu0 0
      %996 = vmatpush1.bf16.xpose.msra.mxu0 0
      %997 = vmatprep.subr.bf16.mxu0 0
      %998 = vmatpush1.bf16.xpose.msra.mxu0 0
      %999 = vmatprep.subr.bf16.mxu0 0
      %1000 = vmatpush1.bf16.xpose.msra.mxu0 0
      %1001 = vmatprep.subr.bf16.mxu0 0
      %1002 = vmatpush1.bf16.xpose.msra.mxu0 0
      %1003 = vmatprep.subr.bf16.mxu0 0
      %1004 = vmatpush1.bf16.xpose.msra.mxu0 0
      %1005 = vmatprep.subr.bf16.mxu0 0
      %1006 = vmatpush1.bf16.xpose.msra.mxu0 0
      %1007 = vmatprep.subr.bf16.mxu0 0
      %1008 = vmatpush1.bf16.xpose.msra.mxu0 0
      %1009 = vmatprep.subr.bf16.mxu0 0
      %1010 = vmatpush1.bf16.xpose.msra.mxu0 %v993
      %1011 = vmatprep.subr.bf16.mxu0 0
      %1012 = vmatpush2.bf16.xpose.msra.mxu0 0
      %1013 = vmatprep.subr.bf16.mxu0 0
      %1014 = vmatpush2.bf16.xpose.msra.mxu0 0
      %1015 = vmatprep.subr.bf16.mxu0 0
      %1016 = vmatpush2.bf16.xpose.msra.mxu0 0
      %1017 = vmatprep.subr.bf16.mxu0 0
      %1018 = vmatpush2.bf16.xpose.msra.mxu0 0
      %1019 = vmatprep.subr.bf16.mxu0 0
      %1020 = vmatpush2.bf16.xpose.msra.mxu0 0
      %1021 = vmatprep.subr.bf16.mxu0 0
      %1022 = vmatpush2.bf16.xpose.msra.mxu0 0
      %1023 = vmatprep.subr.bf16.mxu0 0
      %1024 = vmatpush2.bf16.xpose.msra.mxu0 0
      %1025 = vmatprep.subr.bf16.mxu0 0
      %1026 = vmatpush2.bf16.xpose.msra.mxu0 0
      %1027 = vmatprep.mubr.bf16.mxu0 0
      %1028 = vmatmul.mubr.bf16.gmra.mxu0 %v990
      %v1029 = vpop.f32.mrf.mxu0
      %v1030 = vadd.f32 0.0, %v1029
      %v1031 = vpop.f32.mrf.mxu0
      %v1032 = vpop.f32.mrf.mxu0
      %v1033 = vpop.f32.mrf.mxu0
      %1034 = vdwg.mxu0
      %v1035 = vsel %vm600, %v1030, -inf
      %1036 = vmax.xlane.f32.xlu0 %v1035
      %v1037 = vpop.xlane.xlu0 %1036
      %v1038 = vsub.f32 %v1030, %v1037
      %v1039 = vmul.f32 %v1038, 1.442695
      %v1040 = vpow.pop %v1039
      %v1041 = vsel %vm600, %v1040, 0.0
      %1042 = vadd.xlane.f32.xlu0 %v1041
      %v1043 = vpop.xlane.xlu0 %1042
      %v1044 = vrcp.pop %v1043
      %v1045 = vmul.f32 %v1040, %v1044
      %v1046 = vpack.c.bf16 %v1045, %v1045
      %1047 = vrot.lane.b32.xlu0 %v552, 80
      %v1048 = vpop.permute.xlu0 %1047
      %v1051 = vsel %vm600, %v1046, 0
      %1053 = vmatprep.subr.bf16.mxu0 0
      %1054 = vmatpush1.bf16.msra.mxu0 0
      %1055 = vmatprep.subr.bf16.mxu0 0
      %1056 = vmatpush1.bf16.msra.mxu0 0
      %1057 = vmatprep.subr.bf16.mxu0 0
      %1058 = vmatpush1.bf16.msra.mxu0 0
      %1059 = vmatprep.subr.bf16.mxu0 0
      %1060 = vmatpush1.bf16.msra.mxu0 0
      %1061 = vmatprep.subr.bf16.mxu0 0
      %1062 = vmatpush1.bf16.msra.mxu0 0
      %1063 = vmatprep.subr.bf16.mxu0 0
      %1064 = vmatpush1.bf16.msra.mxu0 0
      %1065 = vmatprep.subr.bf16.mxu0 0
      %1066 = vmatpush1.bf16.msra.mxu0 0
      %1067 = vmatprep.subr.bf16.mxu0 0
      %1068 = vmatpush1.bf16.msra.mxu0 %v1048
      %1069 = vmatprep.subr.bf16.mxu0 0
      %1070 = vmatpush2.bf16.msra.mxu0 0
      %1071 = vmatprep.subr.bf16.mxu0 0
      %1072 = vmatpush2.bf16.msra.mxu0 0
      %1073 = vmatprep.subr.bf16.mxu0 0
      %1074 = vmatpush2.bf16.msra.mxu0 0
      %1075 = vmatprep.subr.bf16.mxu0 0
      %1076 = vmatpush2.bf16.msra.mxu0 0
      %1077 = vmatprep.subr.bf16.mxu0 0
      %1078 = vmatpush2.bf16.msra.mxu0 0
      %1079 = vmatprep.subr.bf16.mxu0 0
      %1080 = vmatpush2.bf16.msra.mxu0 0
      %1081 = vmatprep.subr.bf16.mxu0 0
      %1082 = vmatpush2.bf16.msra.mxu0 0
      %1083 = vmatprep.subr.bf16.mxu0 0
      %1084 = vmatpush2.bf16.msra.mxu0 0
      %1085 = vmatprep.mubr.bf16.mxu0 0
      %1086 = vmatmul.mubr.bf16.gmra.mxu0 %v1051
      %v1087 = vpop.f32.mrf.mxu0
      %v1088 = vadd.f32 0.0, %v1087
      %v1089 = vpop.f32.mrf.mxu0
      %v1090 = vpop.f32.mrf.mxu0
      %v1091 = vpop.f32.mrf.mxu0
      %1092 = vdwg.mxu0
      %1093 = vrot.lane.b32.xlu0 %v551, 108
      %v1094 = vpop.permute.xlu0 %1093
      %1095 = vrot.lane.b32.xlu0 %v552, 108
      %v1096 = vpop.permute.xlu0 %1095
      %v1098 = vsel %vm553, %v1094, 0
      %v1101 = vsel %vm553, %v1096, 0
      %1103 = vmatprep.subr.bf16.mxu0 0
      %1104 = vmatpush1.bf16.xpose.msra.mxu0 0
      %1105 = vmatprep.subr.bf16.mxu0 0
      %1106 = vmatpush1.bf16.xpose.msra.mxu0 0
      %1107 = vmatprep.subr.bf16.mxu0 0
      %1108 = vmatpush1.bf16.xpose.msra.mxu0 0
      %1109 = vmatprep.subr.bf16.mxu0 0
      %1110 = vmatpush1.bf16.xpose.msra.mxu0 0
      %1111 = vmatprep.subr.bf16.mxu0 0
      %1112 = vmatpush1.bf16.xpose.msra.mxu0 0
      %1113 = vmatprep.subr.bf16.mxu0 0
      %1114 = vmatpush1.bf16.xpose.msra.mxu0 0
      %1115 = vmatprep.subr.bf16.mxu0 0
      %1116 = vmatpush1.bf16.xpose.msra.mxu0 0
      %1117 = vmatprep.subr.bf16.mxu0 0
      %1118 = vmatpush1.bf16.xpose.msra.mxu0 %v1101
      %1119 = vmatprep.subr.bf16.mxu0 0
      %1120 = vmatpush2.bf16.xpose.msra.mxu0 0
      %1121 = vmatprep.subr.bf16.mxu0 0
      %1122 = vmatpush2.bf16.xpose.msra.mxu0 0
      %1123 = vmatprep.subr.bf16.mxu0 0
      %1124 = vmatpush2.bf16.xpose.msra.mxu0 0
      %1125 = vmatprep.subr.bf16.mxu0 0
      %1126 = vmatpush2.bf16.xpose.msra.mxu0 0
      %1127 = vmatprep.subr.bf16.mxu0 0
      %1128 = vmatpush2.bf16.xpose.msra.mxu0 0
      %1129 = vmatprep.subr.bf16.mxu0 0
      %1130 = vmatpush2.bf16.xpose.msra.mxu0 0
      %1131 = vmatprep.subr.bf16.mxu0 0
      %1132 = vmatpush2.bf16.xpose.msra.mxu0 0
      %1133 = vmatprep.subr.bf16.mxu0 0
      %1134 = vmatpush2.bf16.xpose.msra.mxu0 0
      %1135 = vmatprep.mubr.bf16.mxu0 0
      %1136 = vmatmul.mubr.bf16.gmra.mxu0 %v1098
      %v1137 = vpop.f32.mrf.mxu0
      %v1138 = vadd.f32 0.0, %v1137
      %v1139 = vpop.f32.mrf.mxu0
      %v1140 = vpop.f32.mrf.mxu0
      %v1141 = vpop.f32.mrf.mxu0
      %1142 = vdwg.mxu0
      %v1143 = vsel %vm600, %v1138, -inf
      %1144 = vmax.xlane.f32.xlu0 %v1143
      %v1145 = vpop.xlane.xlu0 %1144
      %v1146 = vsub.f32 %v1138, %v1145
      %v1147 = vmul.f32 %v1146, 1.442695
      %v1148 = vpow.pop %v1147
      %v1149 = vsel %vm600, %v1148, 0.0
      %1150 = vadd.xlane.f32.xlu0 %v1149
      %v1151 = vpop.xlane.xlu0 %1150
      %v1152 = vrcp.pop %v1151
      %v1153 = vmul.f32 %v1148, %v1152
      %v1154 = vpack.c.bf16 %v1153, %v1153
      %1155 = vrot.lane.b32.xlu0 %v552, 76
      %v1156 = vpop.permute.xlu0 %1155
      %v1159 = vsel %vm600, %v1154, 0
      %1161 = vmatprep.subr.bf16.mxu0 0
      %1162 = vmatpush1.bf16.msra.mxu0 0
      %1163 = vmatprep.subr.bf16.mxu0 0
      %1164 = vmatpush1.bf16.msra.mxu0 0
      %1165 = vmatprep.subr.bf16.mxu0 0
      %1166 = vmatpush1.bf16.msra.mxu0 0
      %1167 = vmatprep.subr.bf16.mxu0 0
      %1168 = vmatpush1.bf16.msra.mxu0 0
      %1169 = vmatprep.subr.bf16.mxu0 0
      %1170 = vmatpush1.bf16.msra.mxu0 0
      %1171 = vmatprep.subr.bf16.mxu0 0
      %1172 = vmatpush1.bf16.msra.mxu0 0
      %1173 = vmatprep.subr.bf16.mxu0 0
      %1174 = vmatpush1.bf16.msra.mxu0 0
      %1175 = vmatprep.subr.bf16.mxu0 0
      %1176 = vmatpush1.bf16.msra.mxu0 %v1156
      %1177 = vmatprep.subr.bf16.mxu0 0
      %1178 = vmatpush2.bf16.msra.mxu0 0
      %1179 = vmatprep.subr.bf16.mxu0 0
      %1180 = vmatpush2.bf16.msra.mxu0 0
      %1181 = vmatprep.subr.bf16.mxu0 0
      %1182 = vmatpush2.bf16.msra.mxu0 0
      %1183 = vmatprep.subr.bf16.mxu0 0
      %1184 = vmatpush2.bf16.msra.mxu0 0
      %1185 = vmatprep.subr.bf16.mxu0 0
      %1186 = vmatpush2.bf16.msra.mxu0 0
      %1187 = vmatprep.subr.bf16.mxu0 0
      %1188 = vmatpush2.bf16.msra.mxu0 0
      %1189 = vmatprep.subr.bf16.mxu0 0
      %1190 = vmatpush2.bf16.msra.mxu0 0
      %1191 = vmatprep.subr.bf16.mxu0 0
      %1192 = vmatpush2.bf16.msra.mxu0 0
      %1193 = vmatprep.mubr.bf16.mxu0 0
      %1194 = vmatmul.mubr.bf16.gmra.mxu0 %v1159
      %v1195 = vpop.f32.mrf.mxu0
      %v1196 = vadd.f32 0.0, %v1195
      %v1197 = vpop.f32.mrf.mxu0
      %v1198 = vpop.f32.mrf.mxu0
      %v1199 = vpop.f32.mrf.mxu0
      %1200 = vdwg.mxu0
      %1201 = vrot.lane.b32.xlu0 %v551, 104
      %v1202 = vpop.permute.xlu0 %1201
      %1203 = vrot.lane.b32.xlu0 %v552, 104
      %v1204 = vpop.permute.xlu0 %1203
      %v1206 = vsel %vm553, %v1202, 0
      %v1209 = vsel %vm553, %v1204, 0
      %1211 = vmatprep.subr.bf16.mxu0 0
      %1212 = vmatpush1.bf16.xpose.msra.mxu0 0
      %1213 = vmatprep.subr.bf16.mxu0 0
      %1214 = vmatpush1.bf16.xpose.msra.mxu0 0
      %1215 = vmatprep.subr.bf16.mxu0 0
      %1216 = vmatpush1.bf16.xpose.msra.mxu0 0
      %1217 = vmatprep.subr.bf16.mxu0 0
      %1218 = vmatpush1.bf16.xpose.msra.mxu0 0
      %1219 = vmatprep.subr.bf16.mxu0 0
      %1220 = vmatpush1.bf16.xpose.msra.mxu0 0
      %1221 = vmatprep.subr.bf16.mxu0 0
      %1222 = vmatpush1.bf16.xpose.msra.mxu0 0
      %1223 = vmatprep.subr.bf16.mxu0 0
      %1224 = vmatpush1.bf16.xpose.msra.mxu0 0
      %1225 = vmatprep.subr.bf16.mxu0 0
      %1226 = vmatpush1.bf16.xpose.msra.mxu0 %v1209
      %1227 = vmatprep.subr.bf16.mxu0 0
      %1228 = vmatpush2.bf16.xpose.msra.mxu0 0
      %1229 = vmatprep.subr.bf16.mxu0 0
      %1230 = vmatpush2.bf16.xpose.msra.mxu0 0
      %1231 = vmatprep.subr.bf16.mxu0 0
      %1232 = vmatpush2.bf16.xpose.msra.mxu0 0
      %1233 = vmatprep.subr.bf16.mxu0 0
      %1234 = vmatpush2.bf16.xpose.msra.mxu0 0
      %1235 = vmatprep.subr.bf16.mxu0 0
      %1236 = vmatpush2.bf16.xpose.msra.mxu0 0
      %1237 = vmatprep.subr.bf16.mxu0 0
      %1238 = vmatpush2.bf16.xpose.msra.mxu0 0
      %1239 = vmatprep.subr.bf16.mxu0 0
      %1240 = vmatpush2.bf16.xpose.msra.mxu0 0
      %1241 = vmatprep.subr.bf16.mxu0 0
      %1242 = vmatpush2.bf16.xpose.msra.mxu0 0
      %1243 = vmatprep.mubr.bf16.mxu0 0
      %1244 = vmatmul.mubr.bf16.gmra.mxu0 %v1206
      %v1245 = vpop.f32.mrf.mxu0
      %v1246 = vadd.f32 0.0, %v1245
      %v1247 = vpop.f32.mrf.mxu0
      %v1248 = vpop.f32.mrf.mxu0
      %v1249 = vpop.f32.mrf.mxu0
      %1250 = vdwg.mxu0
      %v1251 = vsel %vm600, %v1246, -inf
      %1252 = vmax.xlane.f32.xlu0 %v1251
      %v1253 = vpop.xlane.xlu0 %1252
      %v1254 = vsub.f32 %v1246, %v1253
      %v1255 = vmul.f32 %v1254, 1.442695
      %v1256 = vpow.pop %v1255
      %v1257 = vsel %vm600, %v1256, 0.0
      %1258 = vadd.xlane.f32.xlu0 %v1257
      %v1259 = vpop.xlane.xlu0 %1258
      %v1260 = vrcp.pop %v1259
      %v1261 = vmul.f32 %v1256, %v1260
      %v1262 = vpack.c.bf16 %v1261, %v1261
      %1263 = vrot.lane.b32.xlu0 %v552, 72
      %v1264 = vpop.permute.xlu0 %1263
      %v1267 = vsel %vm600, %v1262, 0
      %1269 = vmatprep.subr.bf16.mxu0 0
      %1270 = vmatpush1.bf16.msra.mxu0 0
      %1271 = vmatprep.subr.bf16.mxu0 0
      %1272 = vmatpush1.bf16.msra.mxu0 0
      %1273 = vmatprep.subr.bf16.mxu0 0
      %1274 = vmatpush1.bf16.msra.mxu0 0
      %1275 = vmatprep.subr.bf16.mxu0 0
      %1276 = vmatpush1.bf16.msra.mxu0 0
      %1277 = vmatprep.subr.bf16.mxu0 0
      %1278 = vmatpush1.bf16.msra.mxu0 0
      %1279 = vmatprep.subr.bf16.mxu0 0
      %1280 = vmatpush1.bf16.msra.mxu0 0
      %1281 = vmatprep.subr.bf16.mxu0 0
      %1282 = vmatpush1.bf16.msra.mxu0 0
      %1283 = vmatprep.subr.bf16.mxu0 0
      %1284 = vmatpush1.bf16.msra.mxu0 %v1264
      %1285 = vmatprep.subr.bf16.mxu0 0
      %1286 = vmatpush2.bf16.msra.mxu0 0
      %1287 = vmatprep.subr.bf16.mxu0 0
      %1288 = vmatpush2.bf16.msra.mxu0 0
      %1289 = vmatprep.subr.bf16.mxu0 0
      %1290 = vmatpush2.bf16.msra.mxu0 0
      %1291 = vmatprep.subr.bf16.mxu0 0
      %1292 = vmatpush2.bf16.msra.mxu0 0
      %1293 = vmatprep.subr.bf16.mxu0 0
      %1294 = vmatpush2.bf16.msra.mxu0 0
      %1295 = vmatprep.subr.bf16.mxu0 0
      %1296 = vmatpush2.bf16.msra.mxu0 0
      %1297 = vmatprep.subr.bf16.mxu0 0
      %1298 = vmatpush2.bf16.msra.mxu0 0
      %1299 = vmatprep.subr.bf16.mxu0 0
      %1300 = vmatpush2.bf16.msra.mxu0 0
      %1301 = vmatprep.mubr.bf16.mxu0 0
      %1302 = vmatmul.mubr.bf16.gmra.mxu0 %v1267
      %v1303 = vpop.f32.mrf.mxu0
      %v1304 = vadd.f32 0.0, %v1303
      %v1305 = vpop.f32.mrf.mxu0
      %v1306 = vpop.f32.mrf.mxu0
      %v1307 = vpop.f32.mrf.mxu0
      %1308 = vdwg.mxu0
      %1309 = vrot.lane.b32.xlu0 %v551, 100
      %v1310 = vpop.permute.xlu0 %1309
      %1311 = vrot.lane.b32.xlu0 %v552, 100
      %v1312 = vpop.permute.xlu0 %1311
      %v1314 = vsel %vm553, %v1310, 0
      %v1317 = vsel %vm553, %v1312, 0
      %1319 = vmatprep.subr.bf16.mxu0 0
      %1320 = vmatpush1.bf16.xpose.msra.mxu0 0
      %1321 = vmatprep.subr.bf16.mxu0 0
      %1322 = vmatpush1.bf16.xpose.msra.mxu0 0
      %1323 = vmatprep.subr.bf16.mxu0 0
      %1324 = vmatpush1.bf16.xpose.msra.mxu0 0
      %1325 = vmatprep.subr.bf16.mxu0 0
      %1326 = vmatpush1.bf16.xpose.msra.mxu0 0
      %1327 = vmatprep.subr.bf16.mxu0 0
      %1328 = vmatpush1.bf16.xpose.msra.mxu0 0
      %1329 = vmatprep.subr.bf16.mxu0 0
      %1330 = vmatpush1.bf16.xpose.msra.mxu0 0
      %1331 = vmatprep.subr.bf16.mxu0 0
      %1332 = vmatpush1.bf16.xpose.msra.mxu0 0
      %1333 = vmatprep.subr.bf16.mxu0 0
      %1334 = vmatpush1.bf16.xpose.msra.mxu0 %v1317
      %1335 = vmatprep.subr.bf16.mxu0 0
      %1336 = vmatpush2.bf16.xpose.msra.mxu0 0
      %1337 = vmatprep.subr.bf16.mxu0 0
      %1338 = vmatpush2.bf16.xpose.msra.mxu0 0
      %1339 = vmatprep.subr.bf16.mxu0 0
      %1340 = vmatpush2.bf16.xpose.msra.mxu0 0
      %1341 = vmatprep.subr.bf16.mxu0 0
      %1342 = vmatpush2.bf16.xpose.msra.mxu0 0
      %1343 = vmatprep.subr.bf16.mxu0 0
      %1344 = vmatpush2.bf16.xpose.msra.mxu0 0
      %1345 = vmatprep.subr.bf16.mxu0 0
      %1346 = vmatpush2.bf16.xpose.msra.mxu0 0
      %1347 = vmatprep.subr.bf16.mxu0 0
      %1348 = vmatpush2.bf16.xpose.msra.mxu0 0
      %1349 = vmatprep.subr.bf16.mxu0 0
      %1350 = vmatpush2.bf16.xpose.msra.mxu0 0
      %1351 = vmatprep.mubr.bf16.mxu0 0
      %1352 = vmatmul.mubr.bf16.gmra.mxu0 %v1314
      %v1353 = vpop.f32.mrf.mxu0
      %v1354 = vadd.f32 0.0, %v1353
      %v1355 = vpop.f32.mrf.mxu0
      %v1356 = vpop.f32.mrf.mxu0
      %v1357 = vpop.f32.mrf.mxu0
      %1358 = vdwg.mxu0
      %v1359 = vsel %vm600, %v1354, -inf
      %1360 = vmax.xlane.f32.xlu0 %v1359
      %v1361 = vpop.xlane.xlu0 %1360
      %v1362 = vsub.f32 %v1354, %v1361
      %v1363 = vmul.f32 %v1362, 1.442695
      %v1364 = vpow.pop %v1363
      %v1365 = vsel %vm600, %v1364, 0.0
      %1366 = vadd.xlane.f32.xlu0 %v1365
      %v1367 = vpop.xlane.xlu0 %1366
      %v1368 = vrcp.pop %v1367
      %v1369 = vmul.f32 %v1364, %v1368
      %v1370 = vpack.c.bf16 %v1369, %v1369
      %1371 = vrot.lane.b32.xlu0 %v552, 68
      %v1372 = vpop.permute.xlu0 %1371
      %v1375 = vsel %vm600, %v1370, 0
      %1377 = vmatprep.subr.bf16.mxu0 0
      %1378 = vmatpush1.bf16.msra.mxu0 0
      %1379 = vmatprep.subr.bf16.mxu0 0
      %1380 = vmatpush1.bf16.msra.mxu0 0
      %1381 = vmatprep.subr.bf16.mxu0 0
      %1382 = vmatpush1.bf16.msra.mxu0 0
      %1383 = vmatprep.subr.bf16.mxu0 0
      %1384 = vmatpush1.bf16.msra.mxu0 0
      %1385 = vmatprep.subr.bf16.mxu0 0
      %1386 = vmatpush1.bf16.msra.mxu0 0
      %1387 = vmatprep.subr.bf16.mxu0 0
      %1388 = vmatpush1.bf16.msra.mxu0 0
      %1389 = vmatprep.subr.bf16.mxu0 0
      %1390 = vmatpush1.bf16.msra.mxu0 0
      %1391 = vmatprep.subr.bf16.mxu0 0
      %1392 = vmatpush1.bf16.msra.mxu0 %v1372
      %1393 = vmatprep.subr.bf16.mxu0 0
      %1394 = vmatpush2.bf16.msra.mxu0 0
      %1395 = vmatprep.subr.bf16.mxu0 0
      %1396 = vmatpush2.bf16.msra.mxu0 0
      %1397 = vmatprep.subr.bf16.mxu0 0
      %1398 = vmatpush2.bf16.msra.mxu0 0
      %1399 = vmatprep.subr.bf16.mxu0 0
      %1400 = vmatpush2.bf16.msra.mxu0 0
      %1401 = vmatprep.subr.bf16.mxu0 0
      %1402 = vmatpush2.bf16.msra.mxu0 0
      %1403 = vmatprep.subr.bf16.mxu0 0
      %1404 = vmatpush2.bf16.msra.mxu0 0
      %1405 = vmatprep.subr.bf16.mxu0 0
      %1406 = vmatpush2.bf16.msra.mxu0 0
      %1407 = vmatprep.subr.bf16.mxu0 0
      %1408 = vmatpush2.bf16.msra.mxu0 0
      %1409 = vmatprep.mubr.bf16.mxu0 0
      %1410 = vmatmul.mubr.bf16.gmra.mxu0 %v1375
      %v1411 = vpop.f32.mrf.mxu0
      %v1412 = vadd.f32 0.0, %v1411
      %v1413 = vpop.f32.mrf.mxu0
      %v1414 = vpop.f32.mrf.mxu0
      %v1415 = vpop.f32.mrf.mxu0
      %1416 = vdwg.mxu0
      %1418 = vrot.lane.b32.xlu0 %v764, 4
      %v1419 = vpop.permute.xlu0 %1418
      %1422 = vrot.lane.b32.xlu0 %v872, 8
      %v1423 = vpop.permute.xlu0 %1422
      %1426 = vrot.lane.b32.xlu0 %v980, 12
      %v1427 = vpop.permute.xlu0 %1426
      %1430 = vrot.lane.b32.xlu0 %v1088, 16
      %v1431 = vpop.permute.xlu0 %1430
      %1434 = vrot.lane.b32.xlu0 %v1196, 20
      %v1435 = vpop.permute.xlu0 %1434
      %1438 = vrot.lane.b32.xlu0 %v1304, 24
      %v1439 = vpop.permute.xlu0 %1438
      %1442 = vrot.lane.b32.xlu0 %v1412, 28
      %v1443 = vpop.permute.xlu0 %1442
      %v1445 = vsel %vm553, %v655, %v1419
      %vm1446 = vcmask 64512
      %v1447 = vsel %vm1446, %v1445, %v1423
      %vm1448 = vcmask 97280
      %v1449 = vsel %vm1448, %v1447, %v1427
      %v1450 = vsel %vm600, %v1449, %v1431
      %vm1451 = vcmask 162816
      %v1452 = vsel %vm1451, %v1450, %v1435
      %vm1453 = vcmask 195584
      %v1454 = vsel %vm1453, %v1452, %v1439
      %vm1455 = vcmask 228352
      %v1456 = vsel %vm1455, %v1454, %v1443
      %v1457 = vpack.c.bf16 %v1456, %v1456
      %v1458 = vld [vmem:[%s6] sm:$0xf]
      %v1459 = vld [vmem:[%s6 + $0x4] sm:$0xf]
      %v1460 = vld [vmem:[%s6 + $0x8] sm:$0xf]
      %v1461 = vld [vmem:[%s6 + $0xc] sm:$0xf]
      %v1462 = vld [vmem:[%s7] sm:$0x1]
      %v1464 = vlaneseq
      %v1465 = vshrl.u32 %v1464, 7
      %v1466 = vsub.s32 0, %v1465
      %v1467 = vrot.slane %v1462, %v1466
      %v1473 = vunpack.c.l.b16 %v1458
      %v1474 = vunpack.c.l.b16 %v1459
      %v1475 = vunpack.c.l.b16 %v1460
      %v1476 = vunpack.c.l.b16 %v1461
      %v1477 = vpack.c.b16 %v1474, %v1473
      %v1478 = vpack.c.b16 %v1476, %v1475
      %v1482 = vsel %vm434, %v1457, 0
      %1484 = vmatprep.subr.bf16.mxu0 0
      %1485 = vmatpush1.bf16.msra.mxu0 0
      %1486 = vmatprep.subr.bf16.mxu0 0
      %1487 = vmatpush1.bf16.msra.mxu0 0
      %1488 = vmatprep.subr.bf16.mxu0 0
      %1489 = vmatpush1.bf16.msra.mxu0 0
      %1490 = vmatprep.subr.bf16.mxu0 0
      %1491 = vmatpush1.bf16.msra.mxu0 0
      %1492 = vmatprep.subr.bf16.mxu0 0
      %1493 = vmatpush1.bf16.msra.mxu0 0
      %1494 = vmatprep.subr.bf16.mxu0 0
      %1495 = vmatpush1.bf16.msra.mxu0 0
      %1496 = vmatprep.subr.bf16.mxu0 0
      %1497 = vmatpush1.bf16.msra.mxu0 %v1478
      %1498 = vmatprep.subr.bf16.mxu0 0
      %1499 = vmatpush1.bf16.msra.mxu0 %v1477
      %1500 = vmatprep.subr.bf16.mxu0 0
      %1501 = vmatpush2.bf16.msra.mxu0 0
      %1502 = vmatprep.subr.bf16.mxu0 0
      %1503 = vmatpush2.bf16.msra.mxu0 0
      %1504 = vmatprep.subr.bf16.mxu0 0
      %1505 = vmatpush2.bf16.msra.mxu0 0
      %1506 = vmatprep.subr.bf16.mxu0 0
      %1507 = vmatpush2.bf16.msra.mxu0 0
      %1508 = vmatprep.subr.bf16.mxu0 0
      %1509 = vmatpush2.bf16.msra.mxu0 0
      %1510 = vmatprep.subr.bf16.mxu0 0
      %1511 = vmatpush2.bf16.msra.mxu0 0
      %1512 = vmatprep.subr.bf16.mxu0 0
      %1513 = vmatpush2.bf16.msra.mxu0 0
      %1514 = vmatprep.subr.bf16.mxu0 0
      %1515 = vmatpush2.bf16.msra.mxu0 0
      %1516 = vmatprep.mubr.bf16.mxu0 0
      %1517 = vmatmul.mubr.bf16.gmra.mxu0 %v1482
      %v1518 = vpop.f32.mrf.mxu0
      %v1519 = vadd.f32 %v1467, %v1518
      %v1520 = vpop.f32.mrf.mxu0
      %v1521 = vpop.f32.mrf.mxu0
      %v1522 = vpop.f32.mrf.mxu0
      %1523 = vdwg.mxu0
      %v1524 = vadd.f32 %v408, %v1519
      %v1525 = vld [vmem:[%s8] sm:$0x1]
      %v1526 = vld [vmem:[%s9] sm:$0x1]
      %v1527 = vsel %vm434, %v1524, 0.0
      %1528 = vadd.xlane.f32.xlu0 %v1527
      %v1529 = vpop.xlane.xlu0 %1528
      %v1530 = vrcp.pop 32.0
      %v1531 = vmul.f32 %v1529, %v1530
      %v1532 = vsub.f32 %v1524, %v1531
      %v1533 = vmul.f32 %v1532, %v1532
      %v1534 = vsel %vm434, %v1533, 0.0
      %1535 = vadd.xlane.f32.xlu0 %v1534
      %v1536 = vpop.xlane.xlu0 %1535
      %v1537 = vmul.f32 %v1536, %v1530
      %v1538 = vadd.f32 %v1537, 1e-05
      %v1539 = vrsqrt.pop %v1538
      %v1540 = vmul.f32 %v1532, %v1539
      %v1542 = vlaneseq
      %v1543 = vshrl.u32 %v1542, 7
      %v1544 = vsub.s32 0, %v1543
      %v1545 = vrot.slane %v1525, %v1544
      %v1547 = vmul.f32 %v1540, %v1545
      %v1549 = vlaneseq
      %v1550 = vshrl.u32 %v1549, 7
      %v1551 = vsub.s32 0, %v1550
      %v1552 = vrot.slane %v1526, %v1551
      %v1554 = vadd.f32 %v1547, %v1552
      %v1555 = vpack.c.bf16 %v1554, %v1554
      %vm1556 = vcmask 257024
      %1557 = vst.msk [vmem:[%s405] sm:$0xf] %vm1556, %v1555
      %p1558 = scmp.lt.s32.totalorder %s25, 1
      %s1559 = scalar_select %p1558, %s25, 1
      %p1560 = scmp.lt.s32.totalorder %s26, 0
      %s1561 = scalar_select %p1560, %s26, 0
      %s1562 = sadd.s32 %s1561, %s1559
      %s1563 = smul.addr %s1562, 4
      %s1564 = scalar_lea.vmem %s10, %s1563
      // Predicated region
      $region61: #{_lambda_.18} parent=59 // pred_check
        %p1565 = pneg %p275
      $region62: #{_lambda_.18} parent=59 // pred_check_branch
        %1567 = sbr.rel (%p1565) target = $region64
      $region63: #{_lambda_.18} parent=59 // pred_region
        _
      $region64: #{_lambda_.18} parent=59 // pred_fallthru
        _
    $region60: #{_lambda_.18} parent=5 // pred_fallthru
      _
    %p1568 = scmp.le.s32.totalorder 2, %s16
    // Predicated region
    $region65: #{_lambda_.18} parent=5 // pred_check
      %p1569 = pneg %p1568
    $region66: #{_lambda_.18} parent=5 // pred_check_branch
      %1571 = sbr.rel (%p1569) target = $region68
    $region67: #{_lambda_.18} parent=5 // pred_region
      %s1572 = ssub.s32 %s16, 2
      // Predicated region
      $region69: #{_lambda_.18} parent=67 // pred_check
        %p1573 = pneg %p281
      $region70: #{_lambda_.18} parent=67 // pred_check_branch
        %1575 = sbr.rel (%p1573) target = $region72
      $region71: #{_lambda_.18} parent=67 // pred_region
        %p1576 = scmp.lt.s32.totalorder %s27, 1
        %s1577 = scalar_select %p1576, %s27, 1
        %p1578 = scmp.lt.s32.totalorder %s28, 0
        %s1579 = scalar_select %p1578, %s28, 0
        %s1580 = sadd.s32 %s1579, %s1577
        %s1581 = smul.addr %s1580, 4
        %s1582 = scalar_lea.vmem %s10, %s1581
      $region72: #{_lambda_.18} parent=67 // pred_fallthru
        _
    $region68: #{_lambda_.18} parent=5 // pred_fallthru
      _
  $region6: #{_lambda_.18} parent=0 // loop_footer
    %s20 = sadd.s32 1, %s16
  $region7: #{_lambda_.18} parent=0 // loop_footer_branch
    %15 = sbr.rel target = $region3
  $region8: #{_lambda_.18} parent=0 // loop_exit
    _

</llo_original>
